<compile_context>
chip_gen: v6e
topology: v6e:2x2x1
jax: 0.10.0
libtpu: 0.0.40
codegen_flags: <defaults>
</compile_context>

<pallas_src>
import functools

import numpy as np
import jax
import jax.numpy as jnp
from jax import lax
from jax.experimental import pallas as pl
from jax.experimental.pallas import tpu as pltpu

WINDOW_SIZE = 11
SIGMA = 1.5
PAD = WINDOW_SIZE // 2
C1 = 0.01 ** 2
C2 = 0.03 ** 2


def _round_up(x, m):
    return (x + m - 1) // m * m


def _gaussian_1d(window_size=WINDOW_SIZE, sigma=SIGMA):
    coords = np.arange(window_size, dtype=np.float64)
    g = np.exp(-((coords - window_size // 2) ** 2) / (2.0 * sigma ** 2))
    g = g / g.sum()
    return g.astype(np.float32)


def _band_matrices(H, W, P, Ho_pad, Hp_pad, Wp, Wl, Wol):
    """Banded matrices so that conv(img) = Brow @ img @ Bcol on the MXU.

    Bcol is block-diagonal over the P lane-packed planes, so packed planes
    never contaminate each other."""
    g = _gaussian_1d()
    brow = np.zeros((Ho_pad, Hp_pad), np.float32)
    for i in range(H):
        brow[i, i:i + WINDOW_SIZE] = g
    bcol = np.zeros((Wl, Wol), np.float32)
    for p in range(P):
        for j in range(W):
            bcol[p * Wp + j:p * Wp + j + WINDOW_SIZE, p * W + j] = g
    return jnp.asarray(brow), jnp.asarray(bcol)


def _pick_planes_per_step(nsuper, hp_pad, wl, ho_pad, wol, budget_bytes,
                          max_b=32):
    """Super-planes per grid step: largest count whose honest VMEM footprint
    fits the budget, while keeping >= 2 grid steps when nsuper >= 2 (so the
    'parallel' grid axis can feed both v7x TensorCores).  Prefers choices
    that minimize padded (wasted) super-planes."""
    f32 = 4

    def footprint(b):
        inputs = 2 * 2 * b * hp_pad * wl * f32       # sr + hr, double-buffered
        consts = (ho_pad * hp_pad + wl * wol) * f32  # Brow + Bcol, 1 buffer
        slab = 5 * b * hp_pad * wl * f32             # VMEM scratch
        lane_tmp = 5 * b * hp_pad * wol * f32        # lane-pass result
        epilogue = 12 * ho_pad * wol * f32           # conv outs + elt temps
        outs = 2 * 8 * 128 * f32
        return inputs + consts + slab + lane_tmp + epilogue + outs

    b_cap = min(max_b, nsuper if nsuper < 2 else max(1, nsuper // 2))
    best = 1
    best_work = -(-nsuper // 1) * 1
    for b in range(2, b_cap + 1):
        if footprint(b) > budget_bytes:
            break
        work = -(-nsuper // b) * b
        if work <= best_work:
            best, best_work = b, work
    return best


def _ssim_kernel(brow_ref, bcol_ref, sr_ref, hr_ref, out_ref, slab_ref,
                 *, B, P, H, W, NC):
    # sr_ref / hr_ref: (B, Hp_pad, Wl) zero-padded, lane-packed super-planes.
    _, Hp_pad, Wl = sr_ref.shape
    Ho_pad = brow_ref.shape[0]
    Wol = bcol_ref.shape[1]
    Hb = B * Hp_pad

    x = sr_ref[...].reshape(Hb, Wl)
    y = hr_ref[...].reshape(Hb, Wl)

    # Build the 5-quantity slab directly in VMEM scratch (no concatenate temp).
    slab_ref[0] = x
    slab_ref[1] = y
    slab_ref[2] = x * x
    slab_ref[3] = y * y
    slab_ref[4] = x * y

    # Lane-direction Gaussian pass: ONE MXU matmul, Bcol stationary.
    tmp = jnp.dot(slab_ref[...].reshape(5 * Hb, Wl), bcol_ref[...],
                  preferred_element_type=jnp.float32,
                  precision=lax.Precision.HIGHEST)
    tmp = tmp.reshape(5, B, Hp_pad, Wol)

    brow = brow_ref[...]

    # Hoisted 2-D mask pieces, shared by every plane in this step.
    rows = lax.broadcasted_iota(jnp.int32, (Ho_pad, Wol), 0)
    lanes = lax.broadcasted_iota(jnp.int32, (Ho_pad, Wol), 1)
    base_ok = (rows < H) & (lanes < P * W)
    pslot = jnp.zeros((Ho_pad, Wol), jnp.int32)
    for p in range(1, P):                       # lane -> packed-plane slot
        pslot = pslot + (lanes >= p * W).astype(jnp.int32)

    step = pl.program_id(0)
    acc = jnp.float32(0.0)
    for b in range(B):
        # Sublane-direction Gaussian pass: plain 2-D dots, Brow stationary
        # (no broadcast of Brow, no batched einsum).
        def rowconv(q, _b=b):
            return jnp.dot(brow, tmp[q, _b],
                           preferred_element_type=jnp.float32,
                           precision=lax.Precision.HIGHEST)

        mu1 = rowconv(0)
        mu2 = rowconv(1)
        e_xx = rowconv(2)
        e_yy = rowconv(3)
        e_xy = rowconv(4)

        mu1_sq = mu1 * mu1
        mu2_sq = mu2 * mu2
        mu1_mu2 = mu1 * mu2
        sigma1_sq = e_xx - mu1_sq
        sigma2_sq = e_yy - mu2_sq
        sigma12 = e_xy - mu1_mu2

        num = (2.0 * mu1_mu2 + C1) * (2.0 * sigma12 + C2)
        den = (mu1_sq + mu2_sq + C1) * (sigma1_sq + sigma2_sq + C2)
        inv = pl.reciprocal(den, approx=True)          # EUP slot
        inv = inv * (2.0 - den * inv)                  # one Newton step
        ssim_map = num * inv

        # Exclude row/lane padding and zero-padded planes from the reduction.
        plane_base = (step * B + b) * P
        valid = base_ok & ((plane_base + pslot) < NC)
        acc = acc + jnp.sum(jnp.where(valid, ssim_map, 0.0))

    # Lane-dense per-step partial sum (no cross-step state -> "parallel").
    out_ref[...] = jnp.broadcast_to(acc, out_ref.shape)


def ssim_loss_pallas(sr, hr):
    """1 - SSIM(sr, hr). sr, hr: NCHW float arrays of equal shape."""
    N, C, H, W = sr.shape
    nc = N * C
    Hp, Wp = H + 2 * PAD, W + 2 * PAD

    # Lane pack factor: pack P planes side-by-side (block-diagonal Bcol) so
    # small W doesn't waste MXU columns; keep >= 2 super-planes when nc > 1.
    p_fill = max(1, 256 // W)
    P = max(1, min(p_fill, nc, (nc + 1) // 2)) if nc > 1 else 1
    nsuper = -(-nc // P)

    Hp_pad = _round_up(Hp, 8)
    Ho_pad = _round_up(H, 8)
    Wl = _round_up(P * Wp, 128)
    Wol = _round_up(P * W, 128)

    # Per-generation VMEM sizing (v5e/v6e: 128 MiB physical, v7x: 64 MiB).
    try:
        info = pltpu.get_tpu_info()
        vmem_cap = int(getattr(info, "vmem_capacity_bytes", 64 * 2 ** 20))
    except Exception:
        vmem_cap = 64 * 2 ** 20
    vmem_limit = max(16 * 2 ** 20, min(int(vmem_cap * 0.75), 100 * 2 ** 20))
    budget = int(vmem_limit * 0.8)

    B = _pick_planes_per_step(nsuper, Hp_pad, Wl, Ho_pad, Wol, budget)
    nsteps = -(-nsuper // B)
    total_planes = nsteps * B * P       # zero-padded planes masked in-kernel

    def prep(x):
        x = x.astype(jnp.float32).reshape(nc, H, W)
        x = jnp.pad(x, ((0, total_planes - nc),
                        (PAD, Hp_pad - H - PAD),
                        (PAD, PAD)))
        x = x.reshape(nsteps * B, P, Hp_pad, Wp)
        x = x.transpose(0, 2, 1, 3).reshape(nsteps * B, Hp_pad, P * Wp)
        return jnp.pad(x, ((0, 0), (0, 0), (0, Wl - P * Wp)))

    sr_p = prep(sr)
    hr_p = prep(hr)
    brow, bcol = _band_matrices(H, W, P, Ho_pad, Hp_pad, Wp, Wl, Wol)

    kernel = functools.partial(_ssim_kernel, B=B, P=P, H=H, W=W, NC=nc)

    flops = nsteps * (2 * 5 * B * Hp_pad * Wl * Wol
                      + 2 * 5 * B * Ho_pad * Hp_pad * Wol)
    transcendentals = nsteps * B * Ho_pad * Wol
    bytes_accessed = (2 * nsteps * B * Hp_pad * Wl + Ho_pad * Hp_pad
                      + Wl * Wol + nsteps * 8 * 128) * 4

    def build(single_buffer_consts):
        const_kw = ({"pipeline_mode": pl.Buffered(buffer_count=1)}
                    if single_buffer_consts else {})
        grid_spec = pltpu.PrefetchScalarGridSpec(
            num_scalar_prefetch=0,
            grid=(nsteps,),
            in_specs=[
                pl.BlockSpec((Ho_pad, Hp_pad), lambda i: (0, 0), **const_kw),
                pl.BlockSpec((Wl, Wol), lambda i: (0, 0), **const_kw),
                pl.BlockSpec((B, Hp_pad, Wl), lambda i: (i, 0, 0)),   # sr
                pl.BlockSpec((B, Hp_pad, Wl), lambda i: (i, 0, 0)),   # hr
            ],
            out_specs=pl.BlockSpec((1, 8, 128), lambda i: (i, 0, 0)),
            scratch_shapes=[pltpu.VMEM((5, B * Hp_pad, Wl), jnp.float32)],
        )
        return pl.pallas_call(
            kernel,
            out_shape=jax.ShapeDtypeStruct((nsteps, 8, 128), jnp.float32),
            grid_spec=grid_spec,
            compiler_params=pltpu.CompilerParams(
                dimension_semantics=("parallel",),
                vmem_limit_bytes=vmem_limit),
            cost_estimate=pl.CostEstimate(
                flops=int(flops),
                transcendentals=int(transcendentals),
                bytes_accessed=int(bytes_accessed)),
        )

    try:
        # Preferred: single-buffered constant band matrices.
        partials = jax.block_until_ready(build(True)(brow, bcol, sr_p, hr_p))
    except Exception:
        # Fallback: default (double) buffering for the constants.
        partials = build(False)(brow, bcol, sr_p, hr_p)

    total = jnp.sum(partials[:, 0, 0])
    return jnp.float32(1.0) - total / jnp.float32(nc * H * W)


def ssim_loss_ref(sr, hr):
    """Pure-JAX reference matching pytorch_ssim semantics."""
    g = jnp.asarray(_gaussian_1d(), jnp.float32)
    w2d = jnp.outer(g, g)
    N, C, H, W = sr.shape
    window = jnp.broadcast_to(w2d, (C, 1, WINDOW_SIZE, WINDOW_SIZE))

    def conv(x):
        return lax.conv_general_dilated(
            x, window, window_strides=(1, 1),
            padding=[(PAD, PAD), (PAD, PAD)],
            dimension_numbers=("NCHW", "OIHW", "NCHW"),
            feature_group_count=C)

    mu1 = conv(sr)
    mu2 = conv(hr)
    mu1_sq, mu2_sq, mu1_mu2 = mu1 * mu1, mu2 * mu2, mu1 * mu2
    sigma1_sq = conv(sr * sr) - mu1_sq
    sigma2_sq = conv(hr * hr) - mu2_sq
    sigma12 = conv(sr * hr) - mu1_mu2
    ssim_map = ((2.0 * mu1_mu2 + C1) * (2.0 * sigma12 + C2)) / (
        (mu1_sq + mu2_sq + C1) * (sigma1_sq + sigma2_sq + C2))
    return 1.0 - jnp.mean(ssim_map)


if __name__ == "__main__":
    key = jax.random.PRNGKey(0)
    k_sr, k_hr = jax.random.split(key)
    # Small, module-consistent shapes: batch=2, channels=4, spatial=16x16,
    # images in [0, 1] (SSIM's assumed dynamic range).
    sr = jax.random.uniform(k_sr, (2, 4, 16, 16), dtype=jnp.float32)
    hr = jax.random.uniform(k_hr, (2, 4, 16, 16), dtype=jnp.float32)

    loss = jax.block_until_ready(ssim_loss_pallas(sr, hr))
    ref = jax.block_until_ready(ssim_loss_ref(sr, hr))

    assert loss.shape == () and loss.dtype == jnp.float32
    assert np.allclose(np.asarray(loss), np.asarray(ref), rtol=1e-4, atol=1e-5), (
        loss, ref)
    print("KERNEL_OK")
</pallas_src>

<mosaic_0001>
module attributes {stable_mosaic.version = 11 : i64} {
  func.func @_ssim_kernel(%arg0: i32, %arg1: memref<16x32xf32, #tpu.memory_space<vmem>>, %arg2: memref<128x128xf32, #tpu.memory_space<vmem>>, %arg3: memref<1x32x128xf32, #tpu.memory_space<vmem>>, %arg4: memref<1x32x128xf32, #tpu.memory_space<vmem>>, %arg5: memref<1x8x128xf32, #tpu.memory_space<vmem>>, %arg6: memref<5x32x128xf32, #tpu.memory_space<vmem>>) attributes {dimension_semantics = [#tpu.dimension_semantics<parallel>], iteration_bounds = array<i64: 2>, scalar_prefetch = 0 : i64, scratch_operands = 1 : i64, tpu.core_type = #tpu.core_type<tc>, window_params = [{pipeline_mode = #tpu.pipeline_mode<synchronous>, transform_indices = @transform_0, window_bounds = array<i64: 16, 32>}, {pipeline_mode = #tpu.pipeline_mode<synchronous>, transform_indices = @transform_1, window_bounds = array<i64: 128, 128>}, {transform_indices = @transform_2, window_bounds = array<i64: 1, 32, 128>}, {transform_indices = @transform_3, window_bounds = array<i64: 1, 32, 128>}, {transform_indices = @transform_4, window_bounds = array<i64: 1, 8, 128>}]} {
    %c0 = arith.constant 0 : index
    %c0_0 = arith.constant 0 : index
    %c0_1 = arith.constant 0 : index
    %0 = vector.load %arg3[%c0, %c0_0, %c0_1] : memref<1x32x128xf32, #tpu.memory_space<vmem>>, vector<1x32x128xf32>
    %1 = vector.shape_cast %0 : vector<1x32x128xf32> to vector<32x128xf32>
    %c0_2 = arith.constant 0 : index
    %c0_3 = arith.constant 0 : index
    %c0_4 = arith.constant 0 : index
    %2 = vector.load %arg4[%c0_2, %c0_3, %c0_4] : memref<1x32x128xf32, #tpu.memory_space<vmem>>, vector<1x32x128xf32>
    %3 = vector.shape_cast %2 : vector<1x32x128xf32> to vector<32x128xf32>
    %c0_5 = arith.constant 0 : index
    %c0_6 = arith.constant 0 : index
    %c0_7 = arith.constant 0 : index
    %4 = vector.load %arg6[%c0_5, %c0_6, %c0_7] : memref<5x32x128xf32, #tpu.memory_space<vmem>>, vector<1x32x128xf32>
    %5 = vector.shape_cast %4 : vector<1x32x128xf32> to vector<32x128xf32>
    %6 = vector.shape_cast %1 : vector<32x128xf32> to vector<1x32x128xf32>
    tpu.vector_store %arg6[%c0_5, %c0_6, %c0_7], %6 {strides = array<i32>} : memref<5x32x128xf32, #tpu.memory_space<vmem>>, vector<1x32x128xf32>,
    %c1 = arith.constant 1 : index
    %c0_8 = arith.constant 0 : index
    %c0_9 = arith.constant 0 : index
    %7 = vector.load %arg6[%c1, %c0_8, %c0_9] : memref<5x32x128xf32, #tpu.memory_space<vmem>>, vector<1x32x128xf32>
    %8 = vector.shape_cast %7 : vector<1x32x128xf32> to vector<32x128xf32>
    %9 = vector.shape_cast %3 : vector<32x128xf32> to vector<1x32x128xf32>
    tpu.vector_store %arg6[%c1, %c0_8, %c0_9], %9 {strides = array<i32>} : memref<5x32x128xf32, #tpu.memory_space<vmem>>, vector<1x32x128xf32>,
    %10 = arith.mulf %1, %1 : vector<32x128xf32>
    %c2 = arith.constant 2 : index
    %c0_10 = arith.constant 0 : index
    %c0_11 = arith.constant 0 : index
    %11 = vector.load %arg6[%c2, %c0_10, %c0_11] : memref<5x32x128xf32, #tpu.memory_space<vmem>>, vector<1x32x128xf32>
    %12 = vector.shape_cast %11 : vector<1x32x128xf32> to vector<32x128xf32>
    %13 = vector.shape_cast %10 : vector<32x128xf32> to vector<1x32x128xf32>
    tpu.vector_store %arg6[%c2, %c0_10, %c0_11], %13 {strides = array<i32>} : memref<5x32x128xf32, #tpu.memory_space<vmem>>, vector<1x32x128xf32>,
    %14 = arith.mulf %3, %3 : vector<32x128xf32>
    %c3 = arith.constant 3 : index
    %c0_12 = arith.constant 0 : index
    %c0_13 = arith.constant 0 : index
    %15 = vector.load %arg6[%c3, %c0_12, %c0_13] : memref<5x32x128xf32, #tpu.memory_space<vmem>>, vector<1x32x128xf32>
    %16 = vector.shape_cast %15 : vector<1x32x128xf32> to vector<32x128xf32>
    %17 = vector.shape_cast %14 : vector<32x128xf32> to vector<1x32x128xf32>
    tpu.vector_store %arg6[%c3, %c0_12, %c0_13], %17 {strides = array<i32>} : memref<5x32x128xf32, #tpu.memory_space<vmem>>, vector<1x32x128xf32>,
    %18 = arith.mulf %1, %3 : vector<32x128xf32>
    %c4 = arith.constant 4 : index
    %c0_14 = arith.constant 0 : index
    %c0_15 = arith.constant 0 : index
    %19 = vector.load %arg6[%c4, %c0_14, %c0_15] : memref<5x32x128xf32, #tpu.memory_space<vmem>>, vector<1x32x128xf32>
    %20 = vector.shape_cast %19 : vector<1x32x128xf32> to vector<32x128xf32>
    %21 = vector.shape_cast %18 : vector<32x128xf32> to vector<1x32x128xf32>
    tpu.vector_store %arg6[%c4, %c0_14, %c0_15], %21 {strides = array<i32>} : memref<5x32x128xf32, #tpu.memory_space<vmem>>, vector<1x32x128xf32>,
    %c0_16 = arith.constant 0 : index
    %c0_17 = arith.constant 0 : index
    %c0_18 = arith.constant 0 : index
    %22 = vector.load %arg6[%c0_16, %c0_17, %c0_18] : memref<5x32x128xf32, #tpu.memory_space<vmem>>, vector<5x32x128xf32>
    %23 = vector.shape_cast %22 : vector<5x32x128xf32> to vector<160x128xf32>
    %c0_19 = arith.constant 0 : index
    %c0_20 = arith.constant 0 : index
    %24 = vector.load %arg2[%c0_19, %c0_20] : memref<128x128xf32, #tpu.memory_space<vmem>>, vector<128x128xf32>
    %cst = arith.constant dense<0.000000e+00> : vector<160x128xf32>
    %25 = tpu.matmul %23, %24, %cst {dimension_numbers = #tpu.dot_dimension_numbers<[1], [0], [0], [1], [0, 0, 1, 1], [], []>, precision = #tpu.contract_precision<fp32>} : vector<160x128xf32>, vector<128x128xf32>, vector<160x128xf32> -> vector<160x128xf32>
    %26 = vector.shape_cast %25 : vector<160x128xf32> to vector<5x1x32x128xf32>
    %c0_21 = arith.constant 0 : index
    %c0_22 = arith.constant 0 : index
    %27 = vector.load %arg1[%c0_21, %c0_22] : memref<16x32xf32, #tpu.memory_space<vmem>>, vector<16x32xf32>
    %28 = tpu.iota {dimensions = array<i32: 0>} : vector<16x128xi32>
    %29 = tpu.iota {dimensions = array<i32: 1>} : vector<16x128xi32>
    %c16_i32 = arith.constant 16 : i32
    %30 = vector.broadcast %c16_i32 : i32 to vector<16x128xi32>
    %31 = arith.cmpi slt, %28, %30 : vector<16x128xi32>
    %c64_i32 = arith.constant 64 : i32
    %32 = vector.broadcast %c64_i32 : i32 to vector<16x128xi32>
    %33 = arith.cmpi slt, %29, %32 : vector<16x128xi32>
    %34 = arith.andi %31, %33 : vector<16x128xi1>
    %c0_i32 = arith.constant 0 : i32
    %35 = vector.broadcast %c0_i32 : i32 to vector<16x128xi32>
    %c16_i32_23 = arith.constant 16 : i32
    %36 = vector.broadcast %c16_i32_23 : i32 to vector<16x128xi32>
    %37 = arith.cmpi sge, %29, %36 : vector<16x128xi32>
    %38 = arith.extui %37 : vector<16x128xi1> to vector<16x128xi32>
    %39 = arith.addi %35, %38 : vector<16x128xi32>
    %c32_i32 = arith.constant 32 : i32
    %40 = vector.broadcast %c32_i32 : i32 to vector<16x128xi32>
    %41 = arith.cmpi sge, %29, %40 : vector<16x128xi32>
    %42 = arith.extui %41 : vector<16x128xi1> to vector<16x128xi32>
    %43 = arith.addi %39, %42 : vector<16x128xi32>
    %c48_i32 = arith.constant 48 : i32
    %44 = vector.broadcast %c48_i32 : i32 to vector<16x128xi32>
    %45 = arith.cmpi sge, %29, %44 : vector<16x128xi32>
    %46 = arith.extui %45 : vector<16x128xi1> to vector<16x128xi32>
    %47 = arith.addi %43, %46 : vector<16x128xi32>
    %48 = vector.extract_strided_slice %26 {offsets = [0, 0, 0, 0], sizes = [1, 1, 32, 128], strides = [1, 1, 1, 1]} : vector<5x1x32x128xf32> to vector<1x1x32x128xf32>
    %49 = vector.shape_cast %48 : vector<1x1x32x128xf32> to vector<32x128xf32>
    %cst_24 = arith.constant dense<0.000000e+00> : vector<16x128xf32>
    %50 = tpu.matmul %27, %49, %cst_24 {dimension_numbers = #tpu.dot_dimension_numbers<[1], [0], [0], [1], [0, 0, 1, 1], [], []>, precision = #tpu.contract_precision<fp32>} : vector<16x32xf32>, vector<32x128xf32>, vector<16x128xf32> -> vector<16x128xf32>
    %51 = vector.extract_strided_slice %26 {offsets = [1, 0, 0, 0], sizes = [1, 1, 32, 128], strides = [1, 1, 1, 1]} : vector<5x1x32x128xf32> to vector<1x1x32x128xf32>
    %52 = vector.shape_cast %51 : vector<1x1x32x128xf32> to vector<32x128xf32>
    %cst_25 = arith.constant dense<0.000000e+00> : vector<16x128xf32>
    %53 = tpu.matmul %27, %52, %cst_25 {dimension_numbers = #tpu.dot_dimension_numbers<[1], [0], [0], [1], [0, 0, 1, 1], [], []>, precision = #tpu.contract_precision<fp32>} : vector<16x32xf32>, vector<32x128xf32>, vector<16x128xf32> -> vector<16x128xf32>
    %54 = vector.extract_strided_slice %26 {offsets = [2, 0, 0, 0], sizes = [1, 1, 32, 128], strides = [1, 1, 1, 1]} : vector<5x1x32x128xf32> to vector<1x1x32x128xf32>
    %55 = vector.shape_cast %54 : vector<1x1x32x128xf32> to vector<32x128xf32>
    %cst_26 = arith.constant dense<0.000000e+00> : vector<16x128xf32>
    %56 = tpu.matmul %27, %55, %cst_26 {dimension_numbers = #tpu.dot_dimension_numbers<[1], [0], [0], [1], [0, 0, 1, 1], [], []>, precision = #tpu.contract_precision<fp32>} : vector<16x32xf32>, vector<32x128xf32>, vector<16x128xf32> -> vector<16x128xf32>
    %57 = vector.extract_strided_slice %26 {offsets = [3, 0, 0, 0], sizes = [1, 1, 32, 128], strides = [1, 1, 1, 1]} : vector<5x1x32x128xf32> to vector<1x1x32x128xf32>
    %58 = vector.shape_cast %57 : vector<1x1x32x128xf32> to vector<32x128xf32>
    %cst_27 = arith.constant dense<0.000000e+00> : vector<16x128xf32>
    %59 = tpu.matmul %27, %58, %cst_27 {dimension_numbers = #tpu.dot_dimension_numbers<[1], [0], [0], [1], [0, 0, 1, 1], [], []>, precision = #tpu.contract_precision<fp32>} : vector<16x32xf32>, vector<32x128xf32>, vector<16x128xf32> -> vector<16x128xf32>
    %60 = vector.extract_strided_slice %26 {offsets = [4, 0, 0, 0], sizes = [1, 1, 32, 128], strides = [1, 1, 1, 1]} : vector<5x1x32x128xf32> to vector<1x1x32x128xf32>
    %61 = vector.shape_cast %60 : vector<1x1x32x128xf32> to vector<32x128xf32>
    %cst_28 = arith.constant dense<0.000000e+00> : vector<16x128xf32>
    %62 = tpu.matmul %27, %61, %cst_28 {dimension_numbers = #tpu.dot_dimension_numbers<[1], [0], [0], [1], [0, 0, 1, 1], [], []>, precision = #tpu.contract_precision<fp32>} : vector<16x32xf32>, vector<32x128xf32>, vector<16x128xf32> -> vector<16x128xf32>
    %63 = arith.mulf %50, %50 : vector<16x128xf32>
    %64 = arith.mulf %53, %53 : vector<16x128xf32>
    %65 = arith.mulf %50, %53 : vector<16x128xf32>
    %66 = arith.subf %56, %63 : vector<16x128xf32>
    %67 = arith.subf %59, %64 : vector<16x128xf32>
    %68 = arith.subf %62, %65 : vector<16x128xf32>
    %cst_29 = arith.constant 2.000000e+00 : f32
    %69 = vector.broadcast %cst_29 : f32 to vector<16x128xf32>
    %70 = arith.mulf %69, %65 : vector<16x128xf32>
    %cst_30 = arith.constant 9.99999974E-5 : f32
    %71 = vector.broadcast %cst_30 : f32 to vector<16x128xf32>
    %72 = arith.addf %70, %71 : vector<16x128xf32>
    %cst_31 = arith.constant 2.000000e+00 : f32
    %73 = vector.broadcast %cst_31 : f32 to vector<16x128xf32>
    %74 = arith.mulf %73, %68 : vector<16x128xf32>
    %cst_32 = arith.constant 8.99999984E-4 : f32
    %75 = vector.broadcast %cst_32 : f32 to vector<16x128xf32>
    %76 = arith.addf %74, %75 : vector<16x128xf32>
    %77 = arith.mulf %72, %76 : vector<16x128xf32>
    %78 = arith.addf %63, %64 : vector<16x128xf32>
    %cst_33 = arith.constant 9.99999974E-5 : f32
    %79 = vector.broadcast %cst_33 : f32 to vector<16x128xf32>
    %80 = arith.addf %78, %79 : vector<16x128xf32>
    %81 = arith.addf %66, %67 : vector<16x128xf32>
    %cst_34 = arith.constant 8.99999984E-4 : f32
    %82 = vector.broadcast %cst_34 : f32 to vector<16x128xf32>
    %83 = arith.addf %81, %82 : vector<16x128xf32>
    %84 = arith.mulf %80, %83 : vector<16x128xf32>
    %85 = tpu.reciprocal %84 {approx = true} : vector<16x128xf32> -> vector<16x128xf32>
    %86 = arith.mulf %84, %85 : vector<16x128xf32>
    %cst_35 = arith.constant 2.000000e+00 : f32
    %87 = vector.broadcast %cst_35 : f32 to vector<16x128xf32>
    %88 = arith.subf %87, %86 : vector<16x128xf32>
    %89 = arith.mulf %85, %88 : vector<16x128xf32>
    %90 = arith.mulf %77, %89 : vector<16x128xf32>
    %c1_i32 = arith.constant 1 : i32
    %91 = arith.muli %arg0, %c1_i32 : i32
    %c0_i32_36 = arith.constant 0 : i32
    %92 = arith.addi %91, %c0_i32_36 : i32
    %c4_i32 = arith.constant 4 : i32
    %93 = arith.muli %92, %c4_i32 : i32
    %94 = vector.broadcast %93 : i32 to vector<16x128xi32>
    %95 = arith.addi %94, %47 : vector<16x128xi32>
    %c8_i32 = arith.constant 8 : i32
    %96 = vector.broadcast %c8_i32 : i32 to vector<16x128xi32>
    %97 = arith.cmpi slt, %95, %96 : vector<16x128xi32>
    %98 = arith.andi %34, %97 : vector<16x128xi1>
    %cst_37 = arith.constant 0.000000e+00 : f32
    %99 = vector.broadcast %cst_37 : f32 to vector<16x128xf32>
    %100 = arith.select %98, %90, %99 : vector<16x128xi1>, vector<16x128xf32>
    %101 = vector.shape_cast %100 : vector<16x128xf32> to vector<1x16x128xf32>
    %cst_38 = arith.constant dense<0.000000e+00> : vector<1xf32>
    %102 = vector.multi_reduction <add>, %101, %cst_38 [1, 2] : vector<1x16x128xf32> to vector<1xf32>
    %103 = vector.shape_cast %102 : vector<1xf32> to vector<1x1x1xf32>
    %104 = vector.extract %103[0, 0, 0] : f32 from vector<1x1x1xf32>
    %cst_39 = arith.constant 0.000000e+00 : f32
    %105 = arith.addf %cst_39, %104 : f32
    %106 = vector.broadcast %105 : f32 to vector<1x8x128xf32>
    %c0_40 = arith.constant 0 : index
    %c0_41 = arith.constant 0 : index
    %c0_42 = arith.constant 0 : index
    %107 = vector.load %arg5[%c0_40, %c0_41, %c0_42] : memref<1x8x128xf32, #tpu.memory_space<vmem>>, vector<1x8x128xf32>
    tpu.vector_store %arg5[%c0_40, %c0_41, %c0_42], %106 {strides = array<i32>} : memref<1x8x128xf32, #tpu.memory_space<vmem>>, vector<1x8x128xf32>,
    return
  }
  func.func @transform_0(%arg0: i32) -> (i32, i32) {
    %c0_i32 = arith.constant 0 : i32
    %c0_i32_0 = arith.constant 0 : i32
    %c0_i32_1 = arith.constant 0 : i32
    return %c0_i32, %c0_i32_0 : i32, i32
  }
  func.func @transform_1(%arg0: i32) -> (i32, i32) {
    %c0_i32 = arith.constant 0 : i32
    %c0_i32_0 = arith.constant 0 : i32
    %c0_i32_1 = arith.constant 0 : i32
    return %c0_i32, %c0_i32_0 : i32, i32
  }
  func.func @transform_2(%arg0: i32) -> (i32, i32, i32) {
    %c0_i32 = arith.constant 0 : i32
    %c0_i32_0 = arith.constant 0 : i32
    %c0_i32_1 = arith.constant 0 : i32
    return %arg0, %c0_i32, %c0_i32_0 : i32, i32, i32
  }
  func.func @transform_3(%arg0: i32) -> (i32, i32, i32) {
    %c0_i32 = arith.constant 0 : i32
    %c0_i32_0 = arith.constant 0 : i32
    %c0_i32_1 = arith.constant 0 : i32
    return %arg0, %c0_i32, %c0_i32_0 : i32, i32, i32
  }
  func.func @transform_4(%arg0: i32) -> (i32, i32, i32) {
    %c0_i32 = arith.constant 0 : i32
    %c0_i32_0 = arith.constant 0 : i32
    %c0_i32_1 = arith.constant 0 : i32
    return %arg0, %c0_i32, %c0_i32_0 : i32, i32, i32
  }
}

module attributes {stable_mosaic.version = 11 : i64} {
  func.func @_ssim_kernel(%arg0: i32, %arg1: memref<16x32xf32, #tpu.memory_space<vmem>>, %arg2: memref<128x128xf32, #tpu.memory_space<vmem>>, %arg3: memref<1x32x128xf32, #tpu.memory_space<vmem>>, %arg4: memref<1x32x128xf32, #tpu.memory_space<vmem>>, %arg5: memref<1x8x128xf32, #tpu.memory_space<vmem>>, %arg6: memref<5x32x128xf32, #tpu.memory_space<vmem>>) attributes {dimension_semantics = [#tpu.dimension_semantics<parallel>], iteration_bounds = array<i64: 2>, scalar_prefetch = 0 : i64, scratch_operands = 1 : i64, tpu.core_type = #tpu.core_type<tc>, window_params = [{pipeline_mode = #tpu.pipeline_mode<synchronous>, transform_indices = @transform_0, window_bounds = array<i64: 16, 32>}, {pipeline_mode = #tpu.pipeline_mode<synchronous>, transform_indices = @transform_1, window_bounds = array<i64: 128, 128>}, {transform_indices = @transform_2, window_bounds = array<i64: 1, 32, 128>}, {transform_indices = @transform_3, window_bounds = array<i64: 1, 32, 128>}, {transform_indices = @transform_4, window_bounds = array<i64: 1, 8, 128>}]} {
    %c0 = arith.constant 0 : index
    %c0_0 = arith.constant 0 : index
    %c0_1 = arith.constant 0 : index
    %0 = vector.load %arg3[%c0, %c0_0, %c0_1] : memref<1x32x128xf32, #tpu.memory_space<vmem>>, vector<1x32x128xf32>
    %1 = vector.shape_cast %0 : vector<1x32x128xf32> to vector<32x128xf32>
    %c0_2 = arith.constant 0 : index
    %c0_3 = arith.constant 0 : index
    %c0_4 = arith.constant 0 : index
    %2 = vector.load %arg4[%c0_2, %c0_3, %c0_4] : memref<1x32x128xf32, #tpu.memory_space<vmem>>, vector<1x32x128xf32>
    %3 = vector.shape_cast %2 : vector<1x32x128xf32> to vector<32x128xf32>
    %c0_5 = arith.constant 0 : index
    %c0_6 = arith.constant 0 : index
    %c0_7 = arith.constant 0 : index
    %4 = vector.load %arg6[%c0_5, %c0_6, %c0_7] : memref<5x32x128xf32, #tpu.memory_space<vmem>>, vector<1x32x128xf32>
    %5 = vector.shape_cast %4 : vector<1x32x128xf32> to vector<32x128xf32>
    %6 = vector.shape_cast %1 : vector<32x128xf32> to vector<1x32x128xf32>
    tpu.vector_store %arg6[%c0_5, %c0_6, %c0_7], %6 {strides = array<i32>} : memref<5x32x128xf32, #tpu.memory_space<vmem>>, vector<1x32x128xf32>,
    %c1 = arith.constant 1 : index
    %c0_8 = arith.constant 0 : index
    %c0_9 = arith.constant 0 : index
    %7 = vector.load %arg6[%c1, %c0_8, %c0_9] : memref<5x32x128xf32, #tpu.memory_space<vmem>>, vector<1x32x128xf32>
    %8 = vector.shape_cast %7 : vector<1x32x128xf32> to vector<32x128xf32>
    %9 = vector.shape_cast %3 : vector<32x128xf32> to vector<1x32x128xf32>
    tpu.vector_store %arg6[%c1, %c0_8, %c0_9], %9 {strides = array<i32>} : memref<5x32x128xf32, #tpu.memory_space<vmem>>, vector<1x32x128xf32>,
    %10 = arith.mulf %1, %1 : vector<32x128xf32>
    %c2 = arith.constant 2 : index
    %c0_10 = arith.constant 0 : index
    %c0_11 = arith.constant 0 : index
    %11 = vector.load %arg6[%c2, %c0_10, %c0_11] : memref<5x32x128xf32, #tpu.memory_space<vmem>>, vector<1x32x128xf32>
    %12 = vector.shape_cast %11 : vector<1x32x128xf32> to vector<32x128xf32>
    %13 = vector.shape_cast %10 : vector<32x128xf32> to vector<1x32x128xf32>
    tpu.vector_store %arg6[%c2, %c0_10, %c0_11], %13 {strides = array<i32>} : memref<5x32x128xf32, #tpu.memory_space<vmem>>, vector<1x32x128xf32>,
    %14 = arith.mulf %3, %3 : vector<32x128xf32>
    %c3 = arith.constant 3 : index
    %c0_12 = arith.constant 0 : index
    %c0_13 = arith.constant 0 : index
    %15 = vector.load %arg6[%c3, %c0_12, %c0_13] : memref<5x32x128xf32, #tpu.memory_space<vmem>>, vector<1x32x128xf32>
    %16 = vector.shape_cast %15 : vector<1x32x128xf32> to vector<32x128xf32>
    %17 = vector.shape_cast %14 : vector<32x128xf32> to vector<1x32x128xf32>
    tpu.vector_store %arg6[%c3, %c0_12, %c0_13], %17 {strides = array<i32>} : memref<5x32x128xf32, #tpu.memory_space<vmem>>, vector<1x32x128xf32>,
    %18 = arith.mulf %1, %3 : vector<32x128xf32>
    %c4 = arith.constant 4 : index
    %c0_14 = arith.constant 0 : index
    %c0_15 = arith.constant 0 : index
    %19 = vector.load %arg6[%c4, %c0_14, %c0_15] : memref<5x32x128xf32, #tpu.memory_space<vmem>>, vector<1x32x128xf32>
    %20 = vector.shape_cast %19 : vector<1x32x128xf32> to vector<32x128xf32>
    %21 = vector.shape_cast %18 : vector<32x128xf32> to vector<1x32x128xf32>
    tpu.vector_store %arg6[%c4, %c0_14, %c0_15], %21 {strides = array<i32>} : memref<5x32x128xf32, #tpu.memory_space<vmem>>, vector<1x32x128xf32>,
    %c0_16 = arith.constant 0 : index
    %c0_17 = arith.constant 0 : index
    %c0_18 = arith.constant 0 : index
    %22 = vector.load %arg6[%c0_16, %c0_17, %c0_18] : memref<5x32x128xf32, #tpu.memory_space<vmem>>, vector<5x32x128xf32>
    %23 = vector.shape_cast %22 : vector<5x32x128xf32> to vector<160x128xf32>
    %c0_19 = arith.constant 0 : index
    %c0_20 = arith.constant 0 : index
    %24 = vector.load %arg2[%c0_19, %c0_20] : memref<128x128xf32, #tpu.memory_space<vmem>>, vector<128x128xf32>
    %cst = arith.constant dense<0.000000e+00> : vector<160x128xf32>
    %25 = tpu.matmul %23, %24, %cst {dimension_numbers = #tpu.dot_dimension_numbers<[1], [0], [0], [1], [0, 0, 1, 1], [], []>, precision = #tpu.contract_precision<fp32>} : vector<160x128xf32>, vector<128x128xf32>, vector<160x128xf32> -> vector<160x128xf32>
    %26 = vector.shape_cast %25 : vector<160x128xf32> to vector<5x1x32x128xf32>
    %c0_21 = arith.constant 0 : index
    %c0_22 = arith.constant 0 : index
    %27 = vector.load %arg1[%c0_21, %c0_22] : memref<16x32xf32, #tpu.memory_space<vmem>>, vector<16x32xf32>
    %28 = tpu.iota {dimensions = array<i32: 0>} : vector<16x128xi32>
    %29 = tpu.iota {dimensions = array<i32: 1>} : vector<16x128xi32>
    %c16_i32 = arith.constant 16 : i32
    %30 = vector.broadcast %c16_i32 : i32 to vector<16x128xi32>
    %31 = arith.cmpi slt, %28, %30 : vector<16x128xi32>
    %c64_i32 = arith.constant 64 : i32
    %32 = vector.broadcast %c64_i32 : i32 to vector<16x128xi32>
    %33 = arith.cmpi slt, %29, %32 : vector<16x128xi32>
    %34 = arith.andi %31, %33 : vector<16x128xi1>
    %c0_i32 = arith.constant 0 : i32
    %35 = vector.broadcast %c0_i32 : i32 to vector<16x128xi32>
    %c16_i32_23 = arith.constant 16 : i32
    %36 = vector.broadcast %c16_i32_23 : i32 to vector<16x128xi32>
    %37 = arith.cmpi sge, %29, %36 : vector<16x128xi32>
    %38 = arith.extui %37 : vector<16x128xi1> to vector<16x128xi32>
    %39 = arith.addi %35, %38 : vector<16x128xi32>
    %c32_i32 = arith.constant 32 : i32
    %40 = vector.broadcast %c32_i32 : i32 to vector<16x128xi32>
    %41 = arith.cmpi sge, %29, %40 : vector<16x128xi32>
    %42 = arith.extui %41 : vector<16x128xi1> to vector<16x128xi32>
    %43 = arith.addi %39, %42 : vector<16x128xi32>
    %c48_i32 = arith.constant 48 : i32
    %44 = vector.broadcast %c48_i32 : i32 to vector<16x128xi32>
    %45 = arith.cmpi sge, %29, %44 : vector<16x128xi32>
    %46 = arith.extui %45 : vector<16x128xi1> to vector<16x128xi32>
    %47 = arith.addi %43, %46 : vector<16x128xi32>
    %48 = vector.extract_strided_slice %26 {offsets = [0, 0, 0, 0], sizes = [1, 1, 32, 128], strides = [1, 1, 1, 1]} : vector<5x1x32x128xf32> to vector<1x1x32x128xf32>
    %49 = vector.shape_cast %48 : vector<1x1x32x128xf32> to vector<32x128xf32>
    %cst_24 = arith.constant dense<0.000000e+00> : vector<16x128xf32>
    %50 = tpu.matmul %27, %49, %cst_24 {dimension_numbers = #tpu.dot_dimension_numbers<[1], [0], [0], [1], [0, 0, 1, 1], [], []>, precision = #tpu.contract_precision<fp32>} : vector<16x32xf32>, vector<32x128xf32>, vector<16x128xf32> -> vector<16x128xf32>
    %51 = vector.extract_strided_slice %26 {offsets = [1, 0, 0, 0], sizes = [1, 1, 32, 128], strides = [1, 1, 1, 1]} : vector<5x1x32x128xf32> to vector<1x1x32x128xf32>
    %52 = vector.shape_cast %51 : vector<1x1x32x128xf32> to vector<32x128xf32>
    %cst_25 = arith.constant dense<0.000000e+00> : vector<16x128xf32>
    %53 = tpu.matmul %27, %52, %cst_25 {dimension_numbers = #tpu.dot_dimension_numbers<[1], [0], [0], [1], [0, 0, 1, 1], [], []>, precision = #tpu.contract_precision<fp32>} : vector<16x32xf32>, vector<32x128xf32>, vector<16x128xf32> -> vector<16x128xf32>
    %54 = vector.extract_strided_slice %26 {offsets = [2, 0, 0, 0], sizes = [1, 1, 32, 128], strides = [1, 1, 1, 1]} : vector<5x1x32x128xf32> to vector<1x1x32x128xf32>
    %55 = vector.shape_cast %54 : vector<1x1x32x128xf32> to vector<32x128xf32>
    %cst_26 = arith.constant dense<0.000000e+00> : vector<16x128xf32>
    %56 = tpu.matmul %27, %55, %cst_26 {dimension_numbers = #tpu.dot_dimension_numbers<[1], [0], [0], [1], [0, 0, 1, 1], [], []>, precision = #tpu.contract_precision<fp32>} : vector<16x32xf32>, vector<32x128xf32>, vector<16x128xf32> -> vector<16x128xf32>
    %57 = vector.extract_strided_slice %26 {offsets = [3, 0, 0, 0], sizes = [1, 1, 32, 128], strides = [1, 1, 1, 1]} : vector<5x1x32x128xf32> to vector<1x1x32x128xf32>
    %58 = vector.shape_cast %57 : vector<1x1x32x128xf32> to vector<32x128xf32>
    %cst_27 = arith.constant dense<0.000000e+00> : vector<16x128xf32>
    %59 = tpu.matmul %27, %58, %cst_27 {dimension_numbers = #tpu.dot_dimension_numbers<[1], [0], [0], [1], [0, 0, 1, 1], [], []>, precision = #tpu.contract_precision<fp32>} : vector<16x32xf32>, vector<32x128xf32>, vector<16x128xf32> -> vector<16x128xf32>
    %60 = vector.extract_strided_slice %26 {offsets = [4, 0, 0, 0], sizes = [1, 1, 32, 128], strides = [1, 1, 1, 1]} : vector<5x1x32x128xf32> to vector<1x1x32x128xf32>
    %61 = vector.shape_cast %60 : vector<1x1x32x128xf32> to vector<32x128xf32>
    %cst_28 = arith.constant dense<0.000000e+00> : vector<16x128xf32>
    %62 = tpu.matmul %27, %61, %cst_28 {dimension_numbers = #tpu.dot_dimension_numbers<[1], [0], [0], [1], [0, 0, 1, 1], [], []>, precision = #tpu.contract_precision<fp32>} : vector<16x32xf32>, vector<32x128xf32>, vector<16x128xf32> -> vector<16x128xf32>
    %63 = arith.mulf %50, %50 : vector<16x128xf32>
    %64 = arith.mulf %53, %53 : vector<16x128xf32>
    %65 = arith.mulf %50, %53 : vector<16x128xf32>
    %66 = arith.subf %56, %63 : vector<16x128xf32>
    %67 = arith.subf %59, %64 : vector<16x128xf32>
    %68 = arith.subf %62, %65 : vector<16x128xf32>
    %cst_29 = arith.constant 2.000000e+00 : f32
    %69 = vector.broadcast %cst_29 : f32 to vector<16x128xf32>
    %70 = arith.mulf %69, %65 : vector<16x128xf32>
    %cst_30 = arith.constant 9.99999974E-5 : f32
    %71 = vector.broadcast %cst_30 : f32 to vector<16x128xf32>
    %72 = arith.addf %70, %71 : vector<16x128xf32>
    %cst_31 = arith.constant 2.000000e+00 : f32
    %73 = vector.broadcast %cst_31 : f32 to vector<16x128xf32>
    %74 = arith.mulf %73, %68 : vector<16x128xf32>
    %cst_32 = arith.constant 8.99999984E-4 : f32
    %75 = vector.broadcast %cst_32 : f32 to vector<16x128xf32>
    %76 = arith.addf %74, %75 : vector<16x128xf32>
    %77 = arith.mulf %72, %76 : vector<16x128xf32>
    %78 = arith.addf %63, %64 : vector<16x128xf32>
    %cst_33 = arith.constant 9.99999974E-5 : f32
    %79 = vector.broadcast %cst_33 : f32 to vector<16x128xf32>
    %80 = arith.addf %78, %79 : vector<16x128xf32>
    %81 = arith.addf %66, %67 : vector<16x128xf32>
    %cst_34 = arith.constant 8.99999984E-4 : f32
    %82 = vector.broadcast %cst_34 : f32 to vector<16x128xf32>
    %83 = arith.addf %81, %82 : vector<16x128xf32>
    %84 = arith.mulf %80, %83 : vector<16x128xf32>
    %85 = tpu.reciprocal %84 {approx = true} : vector<16x128xf32> -> vector<16x128xf32>
    %86 = arith.mulf %84, %85 : vector<16x128xf32>
    %cst_35 = arith.constant 2.000000e+00 : f32
    %87 = vector.broadcast %cst_35 : f32 to vector<16x128xf32>
    %88 = arith.subf %87, %86 : vector<16x128xf32>
    %89 = arith.mulf %85, %88 : vector<16x128xf32>
    %90 = arith.mulf %77, %89 : vector<16x128xf32>
    %c1_i32 = arith.constant 1 : i32
    %91 = arith.muli %arg0, %c1_i32 : i32
    %c0_i32_36 = arith.constant 0 : i32
    %92 = arith.addi %91, %c0_i32_36 : i32
    %c4_i32 = arith.constant 4 : i32
    %93 = arith.muli %92, %c4_i32 : i32
    %94 = vector.broadcast %93 : i32 to vector<16x128xi32>
    %95 = arith.addi %94, %47 : vector<16x128xi32>
    %c8_i32 = arith.constant 8 : i32
    %96 = vector.broadcast %c8_i32 : i32 to vector<16x128xi32>
    %97 = arith.cmpi slt, %95, %96 : vector<16x128xi32>
    %98 = arith.andi %34, %97 : vector<16x128xi1>
    %cst_37 = arith.constant 0.000000e+00 : f32
    %99 = vector.broadcast %cst_37 : f32 to vector<16x128xf32>
    %100 = arith.select %98, %90, %99 : vector<16x128xi1>, vector<16x128xf32>
    %101 = vector.shape_cast %100 : vector<16x128xf32> to vector<1x16x128xf32>
    %cst_38 = arith.constant dense<0.000000e+00> : vector<1xf32>
    %102 = vector.multi_reduction <add>, %101, %cst_38 [1, 2] : vector<1x16x128xf32> to vector<1xf32>
    %103 = vector.shape_cast %102 : vector<1xf32> to vector<1x1x1xf32>
    %104 = vector.extract %103[0, 0, 0] : f32 from vector<1x1x1xf32>
    %cst_39 = arith.constant 0.000000e+00 : f32
    %105 = arith.addf %cst_39, %104 : f32
    %106 = vector.broadcast %105 : f32 to vector<1x8x128xf32>
    %c0_40 = arith.constant 0 : index
    %c0_41 = arith.constant 0 : index
    %c0_42 = arith.constant 0 : index
    %107 = vector.load %arg5[%c0_40, %c0_41, %c0_42] : memref<1x8x128xf32, #tpu.memory_space<vmem>>, vector<1x8x128xf32>
    tpu.vector_store %arg5[%c0_40, %c0_41, %c0_42], %106 {strides = array<i32>} : memref<1x8x128xf32, #tpu.memory_space<vmem>>, vector<1x8x128xf32>,
    return
  }
  func.func @transform_0(%arg0: i32) -> (i32, i32) {
    %c0_i32 = arith.constant 0 : i32
    %c0_i32_0 = arith.constant 0 : i32
    %c0_i32_1 = arith.constant 0 : i32
    return %c0_i32, %c0_i32_0 : i32, i32
  }
  func.func @transform_1(%arg0: i32) -> (i32, i32) {
    %c0_i32 = arith.constant 0 : i32
    %c0_i32_0 = arith.constant 0 : i32
    %c0_i32_1 = arith.constant 0 : i32
    return %c0_i32, %c0_i32_0 : i32, i32
  }
  func.func @transform_2(%arg0: i32) -> (i32, i32, i32) {
    %c0_i32 = arith.constant 0 : i32
    %c0_i32_0 = arith.constant 0 : i32
    %c0_i32_1 = arith.constant 0 : i32
    return %arg0, %c0_i32, %c0_i32_0 : i32, i32, i32
  }
  func.func @transform_3(%arg0: i32) -> (i32, i32, i32) {
    %c0_i32 = arith.constant 0 : i32
    %c0_i32_0 = arith.constant 0 : i32
    %c0_i32_1 = arith.constant 0 : i32
    return %arg0, %c0_i32, %c0_i32_0 : i32, i32, i32
  }
  func.func @transform_4(%arg0: i32) -> (i32, i32, i32) {
    %c0_i32 = arith.constant 0 : i32
    %c0_i32_0 = arith.constant 0 : i32
    %c0_i32_1 = arith.constant 0 : i32
    return %arg0, %c0_i32, %c0_i32_0 : i32, i32, i32
  }
}

</mosaic_0001>

<llo_original>
// kernel: tpu_custom_call.1
$region0: #{tpu_custom_call.1}
  #allocation0 [shape = 'u32[]', space=smem, size = 0x4, offset = 0x4, fixed_abs, tag = 'smem constant byte address 0x4 - core index']
  #allocation1 [shape = 'u32[144,128]{1,0:T(1,128)}', space=vmem, size = 0x12000, scoped, tag = 'internal scratch']
  #allocation2 [shape = 'f32[5,32,128]{2,1,0:T(8,128)}', space=vmem, size = 0x14000, scoped, tag = 'scratch operand']
  %s0 = inlined_call_operand.hbm [shape: f32[16,32], index: 0, kind: input, shape index: {}]
  %s1 = inlined_call_operand.hbm [shape: f32[128,128], index: 1, kind: input, shape index: {}]
  %s2 = inlined_call_operand.hbm [shape: f32[2,32,128], index: 2, kind: input, shape index: {}]
  %s3 = inlined_call_operand.hbm [shape: f32[2,32,128], index: 3, kind: input, shape index: {}]
  %s4 = inlined_call_operand.hbm [shape: f32[2,8,128], index: 4, kind: output, shape index: {}]
  %s5 = sld [smem:[#allocation0]]
  $region65: #{tpu_custom_call.1} parent=0
    _
  %s7 = ssub.s32 1, %s5
  %s8 = scalar_select 0, %s7, %s5
  $region1: #{tpu_custom_call.1} parent=0
    #allocation3 [shape = 'u8[8192]{0}', space=vmem, size = 0x2000, scoped, tag = 'input window, operand 0, single buffered']
    #allocation4 [shape = 's32[2]{0}', space=sflag, size = 0x8, scoped, tag = 'scoped memory for tpu_custom_call.1']
    #allocation5 [shape = 's32[2]{0}', space=sflag, size = 0x8, scoped, tag = 'scoped memory for tpu_custom_call.1']
    #allocation6 [shape = 'u8[65536]{0}', space=vmem, size = 0x10000, scoped, tag = 'input window, operand 1, single buffered']
    #allocation7 [shape = 's32[1]{0}', space=sflag, size = 0x4, scoped, tag = 'scoped memory for tpu_custom_call.1']
    #allocation8 [shape = 'u8[32768]{0}', space=vmem, size = 0x8000, scoped, tag = 'input window, operand 2']
    #allocation9 [shape = 'u8[32768]{0}', space=vmem, size = 0x8000, scoped, tag = 'input window, operand 3']
    #allocation10 [shape = 'u8[8192]{0}', space=vmem, size = 0x2000, scoped, tag = 'output window, operand 0']
    %9 = vsyncpa [#allocation4], 0
    %10 = vsyncpa [#allocation7], 0
    %11 = vsyncpa [#allocation5], 0
    %s12 = scalar_lea.sflag [#allocation5], 1
    %13 = vsyncpa %s12, 0
    loop: start=0, step=1, limit=4
    $region2: #{tpu_custom_call.1} parent=1 // loop_pre_header
      _
    $region3: #{tpu_custom_call.1} parent=1 // loop_header
      %s15 = sphi 0, %s19
      %p16 = scmp.ge.s32.totalorder %s15, 4
      %s23 = sphi 0, %s23
      %s25 = sphi 0, %s23
      %s26 = sphi 0, %s25
      %s40 = sphi 0, %s26
      %s44 = sphi 0, %s44
      %s46 = sphi 0, %s44
      %s47 = sphi 0, %s46
      %s61 = sphi 0, %s47
      %s67 = sphi 0, %s69
      %s70 = sphi 0, %s67
      %s71 = sphi 0, %s70
      %s87 = sphi 0, %s71
      %s93 = sphi 0, %s95
      %s96 = sphi 0, %s93
      %s97 = sphi 0, %s96
      %s113 = sphi 0, %s97
      %s119 = sphi 0, %s121
      %s122 = sphi 0, %s119
      %s123 = sphi 0, %s122
      %s139 = sphi 0, %s123
    $region4: #{tpu_custom_call.1} parent=1 // loop_header_branch
      %18 = sbr.rel (%p16) target = $region8
    $region5: #{tpu_custom_call.1} parent=1 // loop_body
      %s20 = ssub.s32 %s15, 1
      %s21 = ssub.s32 %s15, 2
      %s22 = sadd.s32 %s15, 1
      %s24 = sadd.s32 %s23, 1
      %p27 = scmp.eq.s32.totalorder %s15, 1
      %p28 = scmp.ne.s32.totalorder %s23, %s25
      %p29 = scmp.eq.s32.totalorder %s15, 0
      %p30 = por %p28, %p29
      %p31 = scmp.ne.s32.totalorder %s23, %s25
      %p32 = scmp.eq.s32.totalorder %s20, 1
      %p33 = por %p31, %p32
      %p34 = scmp.ne.s32.totalorder %s25, %s26
      %p35 = scmp.eq.s32.totalorder %s20, 0
      %p36 = por %p34, %p35
      %p37 = scmp.ne.s32.totalorder %s25, %s26
      %p38 = scmp.eq.s32.totalorder %s21, 1
      %p39 = por %p37, %p38
      %p41 = scmp.ne.s32.totalorder %s26, %s40
      %p42 = scmp.eq.s32.totalorder %s21, 0
      %p43 = por %p41, %p42
      %s45 = sadd.s32 %s44, 1
      %p48 = scmp.eq.s32.totalorder %s15, 1
      %p49 = scmp.ne.s32.totalorder %s44, %s46
      %p50 = scmp.eq.s32.totalorder %s15, 0
      %p51 = por %p49, %p50
      %p52 = scmp.ne.s32.totalorder %s44, %s46
      %p53 = scmp.eq.s32.totalorder %s20, 1
      %p54 = por %p52, %p53
      %p55 = scmp.ne.s32.totalorder %s46, %s47
      %p56 = scmp.eq.s32.totalorder %s20, 0
      %p57 = por %p55, %p56
      %p58 = scmp.ne.s32.totalorder %s46, %s47
      %p59 = scmp.eq.s32.totalorder %s21, 1
      %p60 = por %p58, %p59
      %p62 = scmp.ne.s32.totalorder %s47, %s61
      %p63 = scmp.eq.s32.totalorder %s21, 0
      %p64 = por %p62, %p63
      %s65 = ssub.s32 %s15, %s22
      %p66 = scmp.eq.s32.totalorder %s65, 0
      %s68 = sadd.s32 %s67, 1
      %s69 = scalar_select %p66, %s67, %s68
      %p72 = pneg %p66
      %p73 = scmp.eq.s32.totalorder %s15, 1
      %p74 = por %p72, %p73
      %p75 = scmp.ne.s32.totalorder %s67, %s70
      %p76 = scmp.eq.s32.totalorder %s15, 0
      %p77 = por %p75, %p76
      %p78 = scmp.ne.s32.totalorder %s67, %s70
      %p79 = scmp.eq.s32.totalorder %s20, 1
      %p80 = por %p78, %p79
      %p81 = scmp.ne.s32.totalorder %s70, %s71
      %p82 = scmp.eq.s32.totalorder %s20, 0
      %p83 = por %p81, %p82
      %p84 = scmp.ne.s32.totalorder %s70, %s71
      %p85 = scmp.eq.s32.totalorder %s21, 1
      %p86 = por %p84, %p85
      %p88 = scmp.ne.s32.totalorder %s71, %s87
      %p89 = scmp.eq.s32.totalorder %s21, 0
      %p90 = por %p88, %p89
      %s91 = ssub.s32 %s15, %s22
      %p92 = scmp.eq.s32.totalorder %s91, 0
      %s94 = sadd.s32 %s93, 1
      %s95 = scalar_select %p92, %s93, %s94
      %p98 = pneg %p92
      %p99 = scmp.eq.s32.totalorder %s15, 1
      %p100 = por %p98, %p99
      %p101 = scmp.ne.s32.totalorder %s93, %s96
      %p102 = scmp.eq.s32.totalorder %s15, 0
      %p103 = por %p101, %p102
      %p104 = scmp.ne.s32.totalorder %s93, %s96
      %p105 = scmp.eq.s32.totalorder %s20, 1
      %p106 = por %p104, %p105
      %p107 = scmp.ne.s32.totalorder %s96, %s97
      %p108 = scmp.eq.s32.totalorder %s20, 0
      %p109 = por %p107, %p108
      %p110 = scmp.ne.s32.totalorder %s96, %s97
      %p111 = scmp.eq.s32.totalorder %s21, 1
      %p112 = por %p110, %p111
      %p114 = scmp.ne.s32.totalorder %s97, %s113
      %p115 = scmp.eq.s32.totalorder %s21, 0
      %p116 = por %p114, %p115
      %s117 = ssub.s32 %s15, %s22
      %p118 = scmp.eq.s32.totalorder %s117, 0
      %s120 = sadd.s32 %s119, 1
      %s121 = scalar_select %p118, %s119, %s120
      %p124 = pneg %p118
      %p125 = scmp.eq.s32.totalorder %s15, 1
      %p126 = por %p124, %p125
      %p127 = scmp.ne.s32.totalorder %s119, %s122
      %p128 = scmp.eq.s32.totalorder %s15, 0
      %p129 = por %p127, %p128
      %p130 = scmp.ne.s32.totalorder %s119, %s122
      %p131 = scmp.eq.s32.totalorder %s20, 1
      %p132 = por %p130, %p131
      %p133 = scmp.ne.s32.totalorder %s122, %s123
      %p134 = scmp.eq.s32.totalorder %s20, 0
      %p135 = por %p133, %p134
      %p136 = scmp.ne.s32.totalorder %s122, %s123
      %p137 = scmp.eq.s32.totalorder %s21, 1
      %p138 = por %p136, %p137
      %p140 = scmp.ne.s32.totalorder %s123, %s139
      %p141 = scmp.eq.s32.totalorder %s21, 0
      %p142 = por %p140, %p141
      %p143 = scmp.le.s32.totalorder 1, %s15
      %p144 = scmp.lt.s32.totalorder %s15, 3
      %p145 = pnand %p143, %p144
      %p146 = pneg %p145
      // Predicated region
      $region9: #{tpu_custom_call.1} parent=5 // pred_check
        _
      $region10: #{tpu_custom_call.1} parent=5 // pred_check_branch
        %148 = sbr.rel (%p145) target = $region12
      $region11: #{tpu_custom_call.1} parent=5 // pred_region
        %s149 = ssub.s32 %s15, 1
        // Predicated region
        $region13: #{tpu_custom_call.1} parent=11 // pred_check
          %p150 = pneg %p36
        $region14: #{tpu_custom_call.1} parent=11 // pred_check_branch
          %152 = sbr.rel (%p150) target = $region16
        $region15: #{tpu_custom_call.1} parent=11 // pred_region
          %s154 = ssub.s32 256, 256
          %155 = vsyncadd [#allocation4], %s154
          %s156 = sshll.u32 [#allocation3], 4
          %s157 = int_to_ptr.vmem [resolvable:$true] %s156
          %162 = dma.hbm_to_vmem [thread:$0]  %s0, 256, %s157, [#allocation4], 128, 128, 8
        $region16: #{tpu_custom_call.1} parent=11 // pred_fallthru
          _
        // Predicated region
        $region17: #{tpu_custom_call.1} parent=11 // pred_check
          %p163 = pneg %p57
        $region18: #{tpu_custom_call.1} parent=11 // pred_check_branch
          %165 = sbr.rel (%p163) target = $region20
        $region19: #{tpu_custom_call.1} parent=11 // pred_region
          %s167 = ssub.s32 2048, 2048
          %168 = vsyncadd [#allocation7], %s167
          %s169 = sshll.u32 [#allocation6], 4
          %s170 = int_to_ptr.vmem [resolvable:$true] %s169
          %175 = dma.hbm_to_vmem [thread:$0]  %s1, 2048, %s170, [#allocation7], 128, 128, 8
        $region20: #{tpu_custom_call.1} parent=11 // pred_fallthru
          _
      $region12: #{tpu_custom_call.1} parent=5 // pred_fallthru
        _
      %p176 = scmp.lt.s32.totalorder %s15, 2
      // Predicated region
      $region21: #{tpu_custom_call.1} parent=5 // pred_check
        %p177 = pneg %p176
      $region22: #{tpu_custom_call.1} parent=5 // pred_check_branch
        %179 = sbr.rel (%p177) target = $region24
      $region23: #{tpu_custom_call.1} parent=5 // pred_region
        // Predicated region
        $region25: #{tpu_custom_call.1} parent=23 // pred_check
          %p180 = pneg %p77
        $region26: #{tpu_custom_call.1} parent=23 // pred_check_branch
          %182 = sbr.rel (%p180) target = $region28
        $region27: #{tpu_custom_call.1} parent=23 // pred_region
          %s183 = sand.u32 %s15, 1
          %s184 = scalar_lea.sflag [#allocation4], %s183
          %s185 = sand.u32 %s67, 1
          %s186 = smul.addr %s185, 32
          %s187 = scalar_lea.vmem [#allocation8], %s186
          %s189 = ssub.s32 512, 512
          %190 = vsyncadd %s184, %s189
          %s191 = smul.addr %s15, 4
          %s192 = smul.addr %s191, 128
          %s193 = scalar_lea.hbm %s2, %s192
          %s194 = sshll.u32 %s187, 4
          %s195 = int_to_ptr.vmem [resolvable:$true] %s194
          %200 = dma.hbm_to_vmem [thread:$0]  %s193, 512, %s195, %s184, 128, 128, 8
        $region28: #{tpu_custom_call.1} parent=23 // pred_fallthru
          _
        // Predicated region
        $region29: #{tpu_custom_call.1} parent=23 // pred_check
          %p201 = pneg %p103
        $region30: #{tpu_custom_call.1} parent=23 // pred_check_branch
          %203 = sbr.rel (%p201) target = $region32
        $region31: #{tpu_custom_call.1} parent=23 // pred_region
          %s204 = sand.u32 %s15, 1
          %s205 = scalar_lea.sflag [#allocation4], %s204
          %s206 = sand.u32 %s93, 1
          %s207 = smul.addr %s206, 32
          %s208 = scalar_lea.vmem [#allocation9], %s207
          %s210 = ssub.s32 512, 512
          %211 = vsyncadd %s205, %s210
          %s212 = smul.addr %s15, 4
          %s213 = smul.addr %s212, 128
          %s214 = scalar_lea.hbm %s3, %s213
          %s215 = sshll.u32 %s208, 4
          %s216 = int_to_ptr.vmem [resolvable:$true] %s215
          %221 = dma.hbm_to_vmem [thread:$0]  %s214, 512, %s216, %s205, 128, 128, 8
        $region32: #{tpu_custom_call.1} parent=23 // pred_fallthru
          _
      $region24: #{tpu_custom_call.1} parent=5 // pred_fallthru
        _
      %p222 = scmp.le.s32.totalorder 1, %s15
      %p223 = scmp.lt.s32.totalorder %s15, 3
      %p224 = pnand %p222, %p223
      %p225 = pneg %p224
      // Predicated region
      $region33: #{tpu_custom_call.1} parent=5 // pred_check
        _
      $region34: #{tpu_custom_call.1} parent=5 // pred_check_branch
        %227 = sbr.rel (%p224) target = $region36
      $region35: #{tpu_custom_call.1} parent=5 // pred_region
        %s228 = ssub.s32 %s15, 1
        // Predicated region
        $region37: #{tpu_custom_call.1} parent=35 // pred_check
          %p229 = pneg %p36
        $region38: #{tpu_custom_call.1} parent=35 // pred_check_branch
          %231 = sbr.rel (%p229) target = $region40
        $region39: #{tpu_custom_call.1} parent=35 // pred_region
          %232 = dma.done [#allocation4], 256
        $region40: #{tpu_custom_call.1} parent=35 // pred_fallthru
          _
        // Predicated region
        $region41: #{tpu_custom_call.1} parent=35 // pred_check
          %p233 = pneg %p57
        $region42: #{tpu_custom_call.1} parent=35 // pred_check_branch
          %235 = sbr.rel (%p233) target = $region44
        $region43: #{tpu_custom_call.1} parent=35 // pred_region
          %236 = dma.done [#allocation7], 2048
        $region44: #{tpu_custom_call.1} parent=35 // pred_fallthru
          _
        %s237 = sand.u32 %s20, 1
        %s238 = scalar_lea.sflag [#allocation4], %s237
        %s239 = sand.u32 %s70, 1
        %s240 = smul.addr %s239, 32
        %s241 = scalar_lea.vmem [#allocation8], %s240
        // Predicated region
        $region45: #{tpu_custom_call.1} parent=35 // pred_check
          %p242 = pneg %p83
        $region46: #{tpu_custom_call.1} parent=35 // pred_check_branch
          %244 = sbr.rel (%p242) target = $region48
        $region47: #{tpu_custom_call.1} parent=35 // pred_region
          %245 = dma.done %s238, 512
        $region48: #{tpu_custom_call.1} parent=35 // pred_fallthru
          _
        %s246 = sand.u32 %s20, 1
        %s247 = scalar_lea.sflag [#allocation4], %s246
        %s248 = sand.u32 %s96, 1
        %s249 = smul.addr %s248, 32
        %s250 = scalar_lea.vmem [#allocation9], %s249
        // Predicated region
        $region49: #{tpu_custom_call.1} parent=35 // pred_check
          %p251 = pneg %p109
        $region50: #{tpu_custom_call.1} parent=35 // pred_check_branch
          %253 = sbr.rel (%p251) target = $region52
        $region51: #{tpu_custom_call.1} parent=35 // pred_region
          %254 = dma.done %s247, 512
        $region52: #{tpu_custom_call.1} parent=35 // pred_fallthru
          _
        %p255 = pneg %p36
        %p256 = pneg %p33
        %p257 = pneg %p57
        %p258 = pneg %p54
        %s259 = sand.u32 %s20, 1
        %s260 = scalar_lea.sflag [#allocation4], %s259
        %s261 = sand.u32 %s70, 1
        %s262 = smul.addr %s261, 32
        %s263 = scalar_lea.vmem [#allocation8], %s262
        %p264 = pneg %p83
        %p265 = pneg %p80
        %s266 = sand.u32 %s20, 1
        %s267 = scalar_lea.sflag [#allocation4], %s266
        %s268 = sand.u32 %s96, 1
        %s269 = smul.addr %s268, 32
        %s270 = scalar_lea.vmem [#allocation9], %s269
        %p271 = pneg %p109
        %p272 = pneg %p106
        %p273 = pneg %p135
        %p274 = pneg %p132
        %s275 = sand.u32 %s122, 1
        %s276 = scalar_lea.sflag [#allocation5], %s275
        %s277 = sand.u32 %s122, 1
        %s278 = smul.addr %s277, 8
        %s279 = scalar_lea.vmem [#allocation10], %s278
        %v280 = vld [vmem:[%s241] sm:$0xff]
        %v281 = vld [vmem:[%s241 + $0x8] sm:$0xff]
        %v282 = vld [vmem:[%s241 + $0x10] sm:$0xff]
        %v283 = vld [vmem:[%s241 + $0x18] sm:$0xff]
        %v284 = vld [vmem:[%s250] sm:$0xff]
        %v285 = vld [vmem:[%s250 + $0x8] sm:$0xff]
        %v286 = vld [vmem:[%s250 + $0x10] sm:$0xff]
        %v287 = vld [vmem:[%s250 + $0x18] sm:$0xff]
        %288 = vst [vmem:[#allocation2] sm:$0xff] %v280
        %289 = vst [vmem:[#allocation2 + $0x8] sm:$0xff] %v281
        %290 = vst [vmem:[#allocation2 + $0x10] sm:$0xff] %v282
        %291 = vst [vmem:[#allocation2 + $0x18] sm:$0xff] %v283
        %s292 = scalar_lea.vmem [#allocation2], 32
        %293 = vst [vmem:[%s292] sm:$0xff] %v284
        %294 = vst [vmem:[%s292 + $0x8] sm:$0xff] %v285
        %295 = vst [vmem:[%s292 + $0x10] sm:$0xff] %v286
        %296 = vst [vmem:[%s292 + $0x18] sm:$0xff] %v287
        %v297 = vmul.f32 %v280, %v280
        %v298 = vmul.f32 %v281, %v281
        %v299 = vmul.f32 %v282, %v282
        %v300 = vmul.f32 %v283, %v283
        %s301 = scalar_lea.vmem [#allocation2], 64
        %302 = vst [vmem:[%s301] sm:$0xff] %v297
        %303 = vst [vmem:[%s301 + $0x8] sm:$0xff] %v298
        %304 = vst [vmem:[%s301 + $0x10] sm:$0xff] %v299
        %305 = vst [vmem:[%s301 + $0x18] sm:$0xff] %v300
        %v306 = vmul.f32 %v284, %v284
        %v307 = vmul.f32 %v285, %v285
        %v308 = vmul.f32 %v286, %v286
        %v309 = vmul.f32 %v287, %v287
        %s310 = scalar_lea.vmem [#allocation2], 96
        %311 = vst [vmem:[%s310] sm:$0xff] %v306
        %312 = vst [vmem:[%s310 + $0x8] sm:$0xff] %v307
        %313 = vst [vmem:[%s310 + $0x10] sm:$0xff] %v308
        %314 = vst [vmem:[%s310 + $0x18] sm:$0xff] %v309
        %v315 = vmul.f32 %v280, %v284
        %v316 = vmul.f32 %v281, %v285
        %v317 = vmul.f32 %v282, %v286
        %v318 = vmul.f32 %v283, %v287
        %s319 = scalar_lea.vmem [#allocation2], 128
        %320 = vst [vmem:[%s319] sm:$0xff] %v315
        %321 = vst [vmem:[%s319 + $0x8] sm:$0xff] %v316
        %322 = vst [vmem:[%s319 + $0x10] sm:$0xff] %v317
        %323 = vst [vmem:[%s319 + $0x18] sm:$0xff] %v318
        %v324 = vld [vmem:[#allocation2] sm:$0xff]
        %v325 = vld [vmem:[#allocation2 + $0x8] sm:$0xff]
        %v326 = vld [vmem:[#allocation2 + $0x10] sm:$0xff]
        %v327 = vld [vmem:[#allocation2 + $0x18] sm:$0xff]
        %v328 = vld [vmem:[#allocation2 + $0x20] sm:$0xff]
        %v329 = vld [vmem:[#allocation2 + $0x28] sm:$0xff]
        %v330 = vld [vmem:[#allocation2 + $0x30] sm:$0xff]
        %v331 = vld [vmem:[#allocation2 + $0x38] sm:$0xff]
        %v332 = vld [vmem:[#allocation2 + $0x40] sm:$0xff]
        %v333 = vld [vmem:[#allocation2 + $0x48] sm:$0xff]
        %v334 = vld [vmem:[#allocation2 + $0x50] sm:$0xff]
        %v335 = vld [vmem:[#allocation2 + $0x58] sm:$0xff]
        %v336 = vld [vmem:[#allocation2 + $0x60] sm:$0xff]
        %v337 = vld [vmem:[#allocation2 + $0x68] sm:$0xff]
        %v338 = vld [vmem:[#allocation2 + $0x70] sm:$0xff]
        %v339 = vld [vmem:[#allocation2 + $0x78] sm:$0xff]
        %v340 = vld [vmem:[#allocation2 + $0x80] sm:$0xff]
        %v341 = vld [vmem:[#allocation2 + $0x88] sm:$0xff]
        %v342 = vld [vmem:[#allocation2 + $0x90] sm:$0xff]
        %v343 = vld [vmem:[#allocation2 + $0x98] sm:$0xff]
        %v344 = vld [vmem:[#allocation6] sm:$0xff]
        %v345 = vld [vmem:[#allocation6 + $0x8] sm:$0xff]
        %v346 = vld [vmem:[#allocation6 + $0x10] sm:$0xff]
        %v347 = vld [vmem:[#allocation6 + $0x18] sm:$0xff]
        %v348 = vld [vmem:[#allocation6 + $0x20] sm:$0xff]
        %v349 = vld [vmem:[#allocation6 + $0x28] sm:$0xff]
        %v350 = vld [vmem:[#allocation6 + $0x30] sm:$0xff]
        %v351 = vld [vmem:[#allocation6 + $0x38] sm:$0xff]
        %v352 = vld [vmem:[#allocation6 + $0x40] sm:$0xff]
        %v353 = vld [vmem:[#allocation6 + $0x48] sm:$0xff]
        %v354 = vld [vmem:[#allocation6 + $0x50] sm:$0xff]
        %v355 = vld [vmem:[#allocation6 + $0x58] sm:$0xff]
        %v356 = vld [vmem:[#allocation6 + $0x60] sm:$0xff]
        %v357 = vld [vmem:[#allocation6 + $0x68] sm:$0xff]
        %v358 = vld [vmem:[#allocation6 + $0x70] sm:$0xff]
        %v359 = vld [vmem:[#allocation6 + $0x78] sm:$0xff]
        %360 = vmatprep.subr.mxu0 0.0
        %v361 = vand.u32 %v359, 4294901760
        %362 = vmatpush1.msra.mxu0 %v361
        %363 = vmatprep.subr.mxu0 0.0
        %v364 = vand.u32 %v358, 4294901760
        %365 = vmatpush1.msra.mxu0 %v364
        %366 = vmatprep.subr.mxu0 0.0
        %v367 = vand.u32 %v357, 4294901760
        %368 = vmatpush1.msra.mxu0 %v367
        %369 = vmatprep.subr.mxu0 0.0
        %v370 = vand.u32 %v356, 4294901760
        %371 = vmatpush1.msra.mxu0 %v370
        %372 = vmatprep.subr.mxu0 0.0
        %v373 = vand.u32 %v355, 4294901760
        %374 = vmatpush1.msra.mxu0 %v373
        %375 = vmatprep.subr.mxu0 0.0
        %v376 = vand.u32 %v354, 4294901760
        %377 = vmatpush1.msra.mxu0 %v376
        %378 = vmatprep.subr.mxu0 0.0
        %v379 = vand.u32 %v353, 4294901760
        %380 = vmatpush1.msra.mxu0 %v379
        %381 = vmatprep.subr.mxu0 0.0
        %v382 = vand.u32 %v352, 4294901760
        %383 = vmatpush1.msra.mxu0 %v382
        %384 = vmatprep.subr.mxu0 0.0
        %v385 = vand.u32 %v351, 4294901760
        %386 = vmatpush1.msra.mxu0 %v385
        %387 = vmatprep.subr.mxu0 0.0
        %v388 = vand.u32 %v350, 4294901760
        %389 = vmatpush1.msra.mxu0 %v388
        %390 = vmatprep.subr.mxu0 0.0
        %v391 = vand.u32 %v349, 4294901760
        %392 = vmatpush1.msra.mxu0 %v391
        %393 = vmatprep.subr.mxu0 0.0
        %v394 = vand.u32 %v348, 4294901760
        %395 = vmatpush1.msra.mxu0 %v394
        %396 = vmatprep.subr.mxu0 0.0
        %v397 = vand.u32 %v347, 4294901760
        %398 = vmatpush1.msra.mxu0 %v397
        %399 = vmatprep.subr.mxu0 0.0
        %v400 = vand.u32 %v346, 4294901760
        %401 = vmatpush1.msra.mxu0 %v400
        %402 = vmatprep.subr.mxu0 0.0
        %v403 = vand.u32 %v345, 4294901760
        %404 = vmatpush1.msra.mxu0 %v403
        %405 = vmatprep.subr.mxu0 0.0
        %v406 = vand.u32 %v344, 4294901760
        %407 = vmatpush1.msra.mxu0 %v406
        %408 = vmatprep.subr.mxu0 0.0
        %409 = vmatpush2.msra.mxu0 0.0
        %410 = vmatprep.subr.mxu0 0.0
        %411 = vmatpush2.msra.mxu0 0.0
        %412 = vmatprep.subr.mxu0 0.0
        %413 = vmatpush2.msra.mxu0 0.0
        %414 = vmatprep.subr.mxu0 0.0
        %415 = vmatpush2.msra.mxu0 0.0
        %416 = vmatprep.subr.mxu0 0.0
        %417 = vmatpush2.msra.mxu0 0.0
        %418 = vmatprep.subr.mxu0 0.0
        %419 = vmatpush2.msra.mxu0 0.0
        %420 = vmatprep.subr.mxu0 0.0
        %421 = vmatpush2.msra.mxu0 0.0
        %422 = vmatprep.subr.mxu0 0.0
        %423 = vmatpush2.msra.mxu0 0.0
        %424 = vmatprep.subr.mxu0 0.0
        %425 = vmatpush2.msra.mxu0 0.0
        %426 = vmatprep.subr.mxu0 0.0
        %427 = vmatpush2.msra.mxu0 0.0
        %428 = vmatprep.subr.mxu0 0.0
        %429 = vmatpush2.msra.mxu0 0.0
        %430 = vmatprep.subr.mxu0 0.0
        %431 = vmatpush2.msra.mxu0 0.0
        %432 = vmatprep.subr.mxu0 0.0
        %433 = vmatpush2.msra.mxu0 0.0
        %434 = vmatprep.subr.mxu0 0.0
        %435 = vmatpush2.msra.mxu0 0.0
        %436 = vmatprep.subr.mxu0 0.0
        %437 = vmatpush2.msra.mxu0 0.0
        %438 = vmatprep.subr.mxu0 0.0
        %439 = vmatpush2.msra.mxu0 0.0
        %440 = vmatprep.mubr.f32.mxu0 0.0
        %v441 = vand.u32 %v324, 4294901760
        %v442 = vsub.f32 %v324, %v441
        %v443 = vand.u32 %v442, 4294901760
        %v444 = vsub.f32 %v442, %v443
        %v445 = vand.u32 %v444, 4294901760
        %446 = vmatmul.mubr.f32.gmra.mxu0 %v445
        %v447 = vpop.f32.mrf.mxu0
        %v448 = vadd.f32 0.0, %v447
        %v449 = vpop.f32.mrf.mxu0
        %450 = vmatprep.mubr.f32.mxu0 0.0
        %v451 = vand.u32 %v325, 4294901760
        %v452 = vsub.f32 %v325, %v451
        %v453 = vand.u32 %v452, 4294901760
        %v454 = vsub.f32 %v452, %v453
        %v455 = vand.u32 %v454, 4294901760
        %456 = vmatmul.mubr.f32.gmra.mxu0 %v455
        %v457 = vpop.f32.mrf.mxu0
        %v458 = vadd.f32 0.0, %v457
        %v459 = vpop.f32.mrf.mxu0
        %460 = vmatprep.mubr.f32.mxu0 0.0
        %v461 = vand.u32 %v326, 4294901760
        %v462 = vsub.f32 %v326, %v461
        %v463 = vand.u32 %v462, 4294901760
        %v464 = vsub.f32 %v462, %v463
        %v465 = vand.u32 %v464, 4294901760
        %466 = vmatmul.mubr.f32.gmra.mxu0 %v465
        %v467 = vpop.f32.mrf.mxu0
        %v468 = vadd.f32 0.0, %v467
        %v469 = vpop.f32.mrf.mxu0
        %470 = vmatprep.mubr.f32.mxu0 0.0
        %v471 = vand.u32 %v327, 4294901760
        %v472 = vsub.f32 %v327, %v471
        %v473 = vand.u32 %v472, 4294901760
        %v474 = vsub.f32 %v472, %v473
        %v475 = vand.u32 %v474, 4294901760
        %476 = vmatmul.mubr.f32.gmra.mxu0 %v475
        %v477 = vpop.f32.mrf.mxu0
        %v478 = vadd.f32 0.0, %v477
        %v479 = vpop.f32.mrf.mxu0
        %480 = vmatprep.mubr.f32.mxu0 0.0
        %v481 = vand.u32 %v328, 4294901760
        %v482 = vsub.f32 %v328, %v481
        %v483 = vand.u32 %v482, 4294901760
        %v484 = vsub.f32 %v482, %v483
        %v485 = vand.u32 %v484, 4294901760
        %486 = vmatmul.mubr.f32.gmra.mxu0 %v485
        %v487 = vpop.f32.mrf.mxu0
        %v488 = vadd.f32 0.0, %v487
        %v489 = vpop.f32.mrf.mxu0
        %490 = vmatprep.mubr.f32.mxu0 0.0
        %v491 = vand.u32 %v329, 4294901760
        %v492 = vsub.f32 %v329, %v491
        %v493 = vand.u32 %v492, 4294901760
        %v494 = vsub.f32 %v492, %v493
        %v495 = vand.u32 %v494, 4294901760
        %496 = vmatmul.mubr.f32.gmra.mxu0 %v495
        %v497 = vpop.f32.mrf.mxu0
        %v498 = vadd.f32 0.0, %v497
        %v499 = vpop.f32.mrf.mxu0
        %500 = vmatprep.mubr.f32.mxu0 0.0
        %v501 = vand.u32 %v330, 4294901760
        %v502 = vsub.f32 %v330, %v501
        %v503 = vand.u32 %v502, 4294901760
        %v504 = vsub.f32 %v502, %v503
        %v505 = vand.u32 %v504, 4294901760
        %506 = vmatmul.mubr.f32.gmra.mxu0 %v505
        %v507 = vpop.f32.mrf.mxu0
        %v508 = vadd.f32 0.0, %v507
        %v509 = vpop.f32.mrf.mxu0
        %510 = vmatprep.mubr.f32.mxu0 0.0
        %v511 = vand.u32 %v331, 4294901760
        %v512 = vsub.f32 %v331, %v511
        %v513 = vand.u32 %v512, 4294901760
        %v514 = vsub.f32 %v512, %v513
        %v515 = vand.u32 %v514, 4294901760
        %516 = vmatmul.mubr.f32.gmra.mxu0 %v515
        %v517 = vpop.f32.mrf.mxu0
        %v518 = vadd.f32 0.0, %v517
        %v519 = vpop.f32.mrf.mxu0
        %520 = vmatprep.mubr.f32.mxu0 0.0
        %v521 = vand.u32 %v332, 4294901760
        %v522 = vsub.f32 %v332, %v521
        %v523 = vand.u32 %v522, 4294901760
        %v524 = vsub.f32 %v522, %v523
        %v525 = vand.u32 %v524, 4294901760
        %526 = vmatmul.mubr.f32.gmra.mxu0 %v525
        %v527 = vpop.f32.mrf.mxu0
        %v528 = vadd.f32 0.0, %v527
        %v529 = vpop.f32.mrf.mxu0
        %530 = vmatprep.mubr.f32.mxu0 0.0
        %v531 = vand.u32 %v333, 4294901760
        %v532 = vsub.f32 %v333, %v531
        %v533 = vand.u32 %v532, 4294901760
        %v534 = vsub.f32 %v532, %v533
        %v535 = vand.u32 %v534, 4294901760
        %536 = vmatmul.mubr.f32.gmra.mxu0 %v535
        %v537 = vpop.f32.mrf.mxu0
        %v538 = vadd.f32 0.0, %v537
        %v539 = vpop.f32.mrf.mxu0
        %540 = vmatprep.mubr.f32.mxu0 0.0
        %v541 = vand.u32 %v334, 4294901760
        %v542 = vsub.f32 %v334, %v541
        %v543 = vand.u32 %v542, 4294901760
        %v544 = vsub.f32 %v542, %v543
        %v545 = vand.u32 %v544, 4294901760
        %546 = vmatmul.mubr.f32.gmra.mxu0 %v545
        %v547 = vpop.f32.mrf.mxu0
        %v548 = vadd.f32 0.0, %v547
        %v549 = vpop.f32.mrf.mxu0
        %550 = vmatprep.mubr.f32.mxu0 0.0
        %v551 = vand.u32 %v335, 4294901760
        %v552 = vsub.f32 %v335, %v551
        %v553 = vand.u32 %v552, 4294901760
        %v554 = vsub.f32 %v552, %v553
        %v555 = vand.u32 %v554, 4294901760
        %556 = vmatmul.mubr.f32.gmra.mxu0 %v555
        %v557 = vpop.f32.mrf.mxu0
        %v558 = vadd.f32 0.0, %v557
        %v559 = vpop.f32.mrf.mxu0
        %560 = vmatprep.mubr.f32.mxu0 0.0
        %v561 = vand.u32 %v336, 4294901760
        %v562 = vsub.f32 %v336, %v561
        %v563 = vand.u32 %v562, 4294901760
        %v564 = vsub.f32 %v562, %v563
        %v565 = vand.u32 %v564, 4294901760
        %566 = vmatmul.mubr.f32.gmra.mxu0 %v565
        %v567 = vpop.f32.mrf.mxu0
        %v568 = vadd.f32 0.0, %v567
        %v569 = vpop.f32.mrf.mxu0
        %570 = vmatprep.mubr.f32.mxu0 0.0
        %v571 = vand.u32 %v337, 4294901760
        %v572 = vsub.f32 %v337, %v571
        %v573 = vand.u32 %v572, 4294901760
        %v574 = vsub.f32 %v572, %v573
        %v575 = vand.u32 %v574, 4294901760
        %576 = vmatmul.mubr.f32.gmra.mxu0 %v575
        %v577 = vpop.f32.mrf.mxu0
        %v578 = vadd.f32 0.0, %v577
        %v579 = vpop.f32.mrf.mxu0
        %580 = vmatprep.mubr.f32.mxu0 0.0
        %v581 = vand.u32 %v338, 4294901760
        %v582 = vsub.f32 %v338, %v581
        %v583 = vand.u32 %v582, 4294901760
        %v584 = vsub.f32 %v582, %v583
        %v585 = vand.u32 %v584, 4294901760
        %586 = vmatmul.mubr.f32.gmra.mxu0 %v585
        %v587 = vpop.f32.mrf.mxu0
        %v588 = vadd.f32 0.0, %v587
        %v589 = vpop.f32.mrf.mxu0
        %590 = vmatprep.mubr.f32.mxu0 0.0
        %v591 = vand.u32 %v339, 4294901760
        %v592 = vsub.f32 %v339, %v591
        %v593 = vand.u32 %v592, 4294901760
        %v594 = vsub.f32 %v592, %v593
        %v595 = vand.u32 %v594, 4294901760
        %596 = vmatmul.mubr.f32.gmra.mxu0 %v595
        %v597 = vpop.f32.mrf.mxu0
        %v598 = vadd.f32 0.0, %v597
        %v599 = vpop.f32.mrf.mxu0
        %600 = vmatprep.mubr.f32.mxu0 0.0
        %v601 = vand.u32 %v340, 4294901760
        %v602 = vsub.f32 %v340, %v601
        %v603 = vand.u32 %v602, 4294901760
        %v604 = vsub.f32 %v602, %v603
        %v605 = vand.u32 %v604, 4294901760
        %606 = vmatmul.mubr.f32.gmra.mxu0 %v605
        %v607 = vpop.f32.mrf.mxu0
        %v608 = vadd.f32 0.0, %v607
        %v609 = vpop.f32.mrf.mxu0
        %610 = vmatprep.mubr.f32.mxu0 0.0
        %v611 = vand.u32 %v341, 4294901760
        %v612 = vsub.f32 %v341, %v611
        %v613 = vand.u32 %v612, 4294901760
        %v614 = vsub.f32 %v612, %v613
        %v615 = vand.u32 %v614, 4294901760
        %616 = vmatmul.mubr.f32.gmra.mxu0 %v615
        %v617 = vpop.f32.mrf.mxu0
        %v618 = vadd.f32 0.0, %v617
        %v619 = vpop.f32.mrf.mxu0
        %620 = vmatprep.mubr.f32.mxu0 0.0
        %v621 = vand.u32 %v342, 4294901760
        %v622 = vsub.f32 %v342, %v621
        %v623 = vand.u32 %v622, 4294901760
        %v624 = vsub.f32 %v622, %v623
        %v625 = vand.u32 %v624, 4294901760
        %626 = vmatmul.mubr.f32.gmra.mxu0 %v625
        %v627 = vpop.f32.mrf.mxu0
        %v628 = vadd.f32 0.0, %v627
        %v629 = vpop.f32.mrf.mxu0
        %630 = vmatprep.mubr.f32.mxu0 0.0
        %v631 = vand.u32 %v343, 4294901760
        %v632 = vsub.f32 %v343, %v631
        %v633 = vand.u32 %v632, 4294901760
        %v634 = vsub.f32 %v632, %v633
        %v635 = vand.u32 %v634, 4294901760
        %636 = vmatmul.mubr.f32.gmra.mxu0 %v635
        %v637 = vpop.f32.mrf.mxu0
        %v638 = vadd.f32 0.0, %v637
        %v639 = vpop.f32.mrf.mxu0
        %640 = vdwg.mxu0
        %641 = vmatprep.subr.mxu0 0.0
        %v642 = vand.u32 %v359, 4294901760
        %v643 = vsub.f32 %v359, %v642
        %v644 = vand.u32 %v643, 4294901760
        %v645 = vsub.f32 %v643, %v644
        %v646 = vand.u32 %v645, 4294901760
        %647 = vmatpush1.msra.mxu0 %v646
        %648 = vmatprep.subr.mxu0 0.0
        %v649 = vand.u32 %v358, 4294901760
        %v650 = vsub.f32 %v358, %v649
        %v651 = vand.u32 %v650, 4294901760
        %v652 = vsub.f32 %v650, %v651
        %v653 = vand.u32 %v652, 4294901760
        %654 = vmatpush1.msra.mxu0 %v653
        %655 = vmatprep.subr.mxu0 0.0
        %v656 = vand.u32 %v357, 4294901760
        %v657 = vsub.f32 %v357, %v656
        %v658 = vand.u32 %v657, 4294901760
        %v659 = vsub.f32 %v657, %v658
        %v660 = vand.u32 %v659, 4294901760
        %661 = vmatpush1.msra.mxu0 %v660
        %662 = vmatprep.subr.mxu0 0.0
        %v663 = vand.u32 %v356, 4294901760
        %v664 = vsub.f32 %v356, %v663
        %v665 = vand.u32 %v664, 4294901760
        %v666 = vsub.f32 %v664, %v665
        %v667 = vand.u32 %v666, 4294901760
        %668 = vmatpush1.msra.mxu0 %v667
        %669 = vmatprep.subr.mxu0 0.0
        %v670 = vand.u32 %v355, 4294901760
        %v671 = vsub.f32 %v355, %v670
        %v672 = vand.u32 %v671, 4294901760
        %v673 = vsub.f32 %v671, %v672
        %v674 = vand.u32 %v673, 4294901760
        %675 = vmatpush1.msra.mxu0 %v674
        %676 = vmatprep.subr.mxu0 0.0
        %v677 = vand.u32 %v354, 4294901760
        %v678 = vsub.f32 %v354, %v677
        %v679 = vand.u32 %v678, 4294901760
        %v680 = vsub.f32 %v678, %v679
        %v681 = vand.u32 %v680, 4294901760
        %682 = vmatpush1.msra.mxu0 %v681
        %683 = vmatprep.subr.mxu0 0.0
        %v684 = vand.u32 %v353, 4294901760
        %v685 = vsub.f32 %v353, %v684
        %v686 = vand.u32 %v685, 4294901760
        %v687 = vsub.f32 %v685, %v686
        %v688 = vand.u32 %v687, 4294901760
        %689 = vmatpush1.msra.mxu0 %v688
        %690 = vmatprep.subr.mxu0 0.0
        %v691 = vand.u32 %v352, 4294901760
        %v692 = vsub.f32 %v352, %v691
        %v693 = vand.u32 %v692, 4294901760
        %v694 = vsub.f32 %v692, %v693
        %v695 = vand.u32 %v694, 4294901760
        %696 = vmatpush1.msra.mxu0 %v695
        %697 = vmatprep.subr.mxu0 0.0
        %v698 = vand.u32 %v351, 4294901760
        %v699 = vsub.f32 %v351, %v698
        %v700 = vand.u32 %v699, 4294901760
        %v701 = vsub.f32 %v699, %v700
        %v702 = vand.u32 %v701, 4294901760
        %703 = vmatpush1.msra.mxu0 %v702
        %704 = vmatprep.subr.mxu0 0.0
        %v705 = vand.u32 %v350, 4294901760
        %v706 = vsub.f32 %v350, %v705
        %v707 = vand.u32 %v706, 4294901760
        %v708 = vsub.f32 %v706, %v707
        %v709 = vand.u32 %v708, 4294901760
        %710 = vmatpush1.msra.mxu0 %v709
        %711 = vmatprep.subr.mxu0 0.0
        %v712 = vand.u32 %v349, 4294901760
        %v713 = vsub.f32 %v349, %v712
        %v714 = vand.u32 %v713, 4294901760
        %v715 = vsub.f32 %v713, %v714
        %v716 = vand.u32 %v715, 4294901760
        %717 = vmatpush1.msra.mxu0 %v716
        %718 = vmatprep.subr.mxu0 0.0
        %v719 = vand.u32 %v348, 4294901760
        %v720 = vsub.f32 %v348, %v719
        %v721 = vand.u32 %v720, 4294901760
        %v722 = vsub.f32 %v720, %v721
        %v723 = vand.u32 %v722, 4294901760
        %724 = vmatpush1.msra.mxu0 %v723
        %725 = vmatprep.subr.mxu0 0.0
        %v726 = vand.u32 %v347, 4294901760
        %v727 = vsub.f32 %v347, %v726
        %v728 = vand.u32 %v727, 4294901760
        %v729 = vsub.f32 %v727, %v728
        %v730 = vand.u32 %v729, 4294901760
        %731 = vmatpush1.msra.mxu0 %v730
        %732 = vmatprep.subr.mxu0 0.0
        %v733 = vand.u32 %v346, 4294901760
        %v734 = vsub.f32 %v346, %v733
        %v735 = vand.u32 %v734, 4294901760
        %v736 = vsub.f32 %v734, %v735
        %v737 = vand.u32 %v736, 4294901760
        %738 = vmatpush1.msra.mxu0 %v737
        %739 = vmatprep.subr.mxu0 0.0
        %v740 = vand.u32 %v345, 4294901760
        %v741 = vsub.f32 %v345, %v740
        %v742 = vand.u32 %v741, 4294901760
        %v743 = vsub.f32 %v741, %v742
        %v744 = vand.u32 %v743, 4294901760
        %745 = vmatpush1.msra.mxu0 %v744
        %746 = vmatprep.subr.mxu0 0.0
        %v747 = vand.u32 %v344, 4294901760
        %v748 = vsub.f32 %v344, %v747
        %v749 = vand.u32 %v748, 4294901760
        %v750 = vsub.f32 %v748, %v749
        %v751 = vand.u32 %v750, 4294901760
        %752 = vmatpush1.msra.mxu0 %v751
        %753 = vmatprep.subr.mxu0 0.0
        %754 = vmatpush2.msra.mxu0 0.0
        %755 = vmatprep.subr.mxu0 0.0
        %756 = vmatpush2.msra.mxu0 0.0
        %757 = vmatprep.subr.mxu0 0.0
        %758 = vmatpush2.msra.mxu0 0.0
        %759 = vmatprep.subr.mxu0 0.0
        %760 = vmatpush2.msra.mxu0 0.0
        %761 = vmatprep.subr.mxu0 0.0
        %762 = vmatpush2.msra.mxu0 0.0
        %763 = vmatprep.subr.mxu0 0.0
        %764 = vmatpush2.msra.mxu0 0.0
        %765 = vmatprep.subr.mxu0 0.0
        %766 = vmatpush2.msra.mxu0 0.0
        %767 = vmatprep.subr.mxu0 0.0
        %768 = vmatpush2.msra.mxu0 0.0
        %769 = vmatprep.subr.mxu0 0.0
        %770 = vmatpush2.msra.mxu0 0.0
        %771 = vmatprep.subr.mxu0 0.0
        %772 = vmatpush2.msra.mxu0 0.0
        %773 = vmatprep.subr.mxu0 0.0
        %774 = vmatpush2.msra.mxu0 0.0
        %775 = vmatprep.subr.mxu0 0.0
        %776 = vmatpush2.msra.mxu0 0.0
        %777 = vmatprep.subr.mxu0 0.0
        %778 = vmatpush2.msra.mxu0 0.0
        %779 = vmatprep.subr.mxu0 0.0
        %780 = vmatpush2.msra.mxu0 0.0
        %781 = vmatprep.subr.mxu0 0.0
        %782 = vmatpush2.msra.mxu0 0.0
        %783 = vmatprep.subr.mxu0 0.0
        %784 = vmatpush2.msra.mxu0 0.0
        %785 = vmatprep.mubr.f32.mxu0 0.0
        %v786 = vand.u32 %v324, 4294901760
        %787 = vmatmul.mubr.f32.gmra.mxu0 %v786
        %v788 = vpop.f32.mrf.mxu0
        %v789 = vadd.f32 %v448, %v788
        %v790 = vpop.f32.mrf.mxu0
        %791 = vmatprep.mubr.f32.mxu0 0.0
        %v792 = vand.u32 %v325, 4294901760
        %793 = vmatmul.mubr.f32.gmra.mxu0 %v792
        %v794 = vpop.f32.mrf.mxu0
        %v795 = vadd.f32 %v458, %v794
        %v796 = vpop.f32.mrf.mxu0
        %797 = vmatprep.mubr.f32.mxu0 0.0
        %v798 = vand.u32 %v326, 4294901760
        %799 = vmatmul.mubr.f32.gmra.mxu0 %v798
        %v800 = vpop.f32.mrf.mxu0
        %v801 = vadd.f32 %v468, %v800
        %v802 = vpop.f32.mrf.mxu0
        %803 = vmatprep.mubr.f32.mxu0 0.0
        %v804 = vand.u32 %v327, 4294901760
        %805 = vmatmul.mubr.f32.gmra.mxu0 %v804
        %v806 = vpop.f32.mrf.mxu0
        %v807 = vadd.f32 %v478, %v806
        %v808 = vpop.f32.mrf.mxu0
        %809 = vmatprep.mubr.f32.mxu0 0.0
        %v810 = vand.u32 %v328, 4294901760
        %811 = vmatmul.mubr.f32.gmra.mxu0 %v810
        %v812 = vpop.f32.mrf.mxu0
        %v813 = vadd.f32 %v488, %v812
        %v814 = vpop.f32.mrf.mxu0
        %815 = vmatprep.mubr.f32.mxu0 0.0
        %v816 = vand.u32 %v329, 4294901760
        %817 = vmatmul.mubr.f32.gmra.mxu0 %v816
        %v818 = vpop.f32.mrf.mxu0
        %v819 = vadd.f32 %v498, %v818
        %v820 = vpop.f32.mrf.mxu0
        %821 = vmatprep.mubr.f32.mxu0 0.0
        %v822 = vand.u32 %v330, 4294901760
        %823 = vmatmul.mubr.f32.gmra.mxu0 %v822
        %v824 = vpop.f32.mrf.mxu0
        %v825 = vadd.f32 %v508, %v824
        %v826 = vpop.f32.mrf.mxu0
        %827 = vmatprep.mubr.f32.mxu0 0.0
        %v828 = vand.u32 %v331, 4294901760
        %829 = vmatmul.mubr.f32.gmra.mxu0 %v828
        %v830 = vpop.f32.mrf.mxu0
        %v831 = vadd.f32 %v518, %v830
        %v832 = vpop.f32.mrf.mxu0
        %833 = vmatprep.mubr.f32.mxu0 0.0
        %v834 = vand.u32 %v332, 4294901760
        %835 = vmatmul.mubr.f32.gmra.mxu0 %v834
        %v836 = vpop.f32.mrf.mxu0
        %v837 = vadd.f32 %v528, %v836
        %v838 = vpop.f32.mrf.mxu0
        %839 = vmatprep.mubr.f32.mxu0 0.0
        %v840 = vand.u32 %v333, 4294901760
        %841 = vmatmul.mubr.f32.gmra.mxu0 %v840
        %v842 = vpop.f32.mrf.mxu0
        %v843 = vadd.f32 %v538, %v842
        %v844 = vpop.f32.mrf.mxu0
        %845 = vmatprep.mubr.f32.mxu0 0.0
        %v846 = vand.u32 %v334, 4294901760
        %847 = vmatmul.mubr.f32.gmra.mxu0 %v846
        %v848 = vpop.f32.mrf.mxu0
        %v849 = vadd.f32 %v548, %v848
        %v850 = vpop.f32.mrf.mxu0
        %851 = vmatprep.mubr.f32.mxu0 0.0
        %v852 = vand.u32 %v335, 4294901760
        %853 = vmatmul.mubr.f32.gmra.mxu0 %v852
        %v854 = vpop.f32.mrf.mxu0
        %v855 = vadd.f32 %v558, %v854
        %v856 = vpop.f32.mrf.mxu0
        %857 = vmatprep.mubr.f32.mxu0 0.0
        %v858 = vand.u32 %v336, 4294901760
        %859 = vmatmul.mubr.f32.gmra.mxu0 %v858
        %v860 = vpop.f32.mrf.mxu0
        %v861 = vadd.f32 %v568, %v860
        %v862 = vpop.f32.mrf.mxu0
        %863 = vmatprep.mubr.f32.mxu0 0.0
        %v864 = vand.u32 %v337, 4294901760
        %865 = vmatmul.mubr.f32.gmra.mxu0 %v864
        %v866 = vpop.f32.mrf.mxu0
        %v867 = vadd.f32 %v578, %v866
        %v868 = vpop.f32.mrf.mxu0
        %869 = vmatprep.mubr.f32.mxu0 0.0
        %v870 = vand.u32 %v338, 4294901760
        %871 = vmatmul.mubr.f32.gmra.mxu0 %v870
        %v872 = vpop.f32.mrf.mxu0
        %v873 = vadd.f32 %v588, %v872
        %v874 = vpop.f32.mrf.mxu0
        %875 = vmatprep.mubr.f32.mxu0 0.0
        %v876 = vand.u32 %v339, 4294901760
        %877 = vmatmul.mubr.f32.gmra.mxu0 %v876
        %v878 = vpop.f32.mrf.mxu0
        %v879 = vadd.f32 %v598, %v878
        %v880 = vpop.f32.mrf.mxu0
        %881 = vmatprep.mubr.f32.mxu0 0.0
        %v882 = vand.u32 %v340, 4294901760
        %883 = vmatmul.mubr.f32.gmra.mxu0 %v882
        %v884 = vpop.f32.mrf.mxu0
        %v885 = vadd.f32 %v608, %v884
        %v886 = vpop.f32.mrf.mxu0
        %887 = vmatprep.mubr.f32.mxu0 0.0
        %v888 = vand.u32 %v341, 4294901760
        %889 = vmatmul.mubr.f32.gmra.mxu0 %v888
        %v890 = vpop.f32.mrf.mxu0
        %v891 = vadd.f32 %v618, %v890
        %v892 = vpop.f32.mrf.mxu0
        %893 = vmatprep.mubr.f32.mxu0 0.0
        %v894 = vand.u32 %v342, 4294901760
        %895 = vmatmul.mubr.f32.gmra.mxu0 %v894
        %v896 = vpop.f32.mrf.mxu0
        %v897 = vadd.f32 %v628, %v896
        %v898 = vpop.f32.mrf.mxu0
        %899 = vmatprep.mubr.f32.mxu0 0.0
        %v900 = vand.u32 %v343, 4294901760
        %901 = vmatmul.mubr.f32.gmra.mxu0 %v900
        %v902 = vpop.f32.mrf.mxu0
        %v903 = vadd.f32 %v638, %v902
        %v904 = vpop.f32.mrf.mxu0
        %905 = vdwg.mxu0
        %906 = vmatprep.subr.mxu0 0.0
        %v907 = vand.u32 %v359, 4294901760
        %v908 = vsub.f32 %v359, %v907
        %909 = vmatpush1.msra.mxu0 %v908
        %910 = vmatprep.subr.mxu0 0.0
        %v911 = vand.u32 %v358, 4294901760
        %v912 = vsub.f32 %v358, %v911
        %913 = vmatpush1.msra.mxu0 %v912
        %914 = vmatprep.subr.mxu0 0.0
        %v915 = vand.u32 %v357, 4294901760
        %v916 = vsub.f32 %v357, %v915
        %917 = vmatpush1.msra.mxu0 %v916
        %918 = vmatprep.subr.mxu0 0.0
        %v919 = vand.u32 %v356, 4294901760
        %v920 = vsub.f32 %v356, %v919
        %921 = vmatpush1.msra.mxu0 %v920
        %922 = vmatprep.subr.mxu0 0.0
        %v923 = vand.u32 %v355, 4294901760
        %v924 = vsub.f32 %v355, %v923
        %925 = vmatpush1.msra.mxu0 %v924
        %926 = vmatprep.subr.mxu0 0.0
        %v927 = vand.u32 %v354, 4294901760
        %v928 = vsub.f32 %v354, %v927
        %929 = vmatpush1.msra.mxu0 %v928
        %930 = vmatprep.subr.mxu0 0.0
        %v931 = vand.u32 %v353, 4294901760
        %v932 = vsub.f32 %v353, %v931
        %933 = vmatpush1.msra.mxu0 %v932
        %934 = vmatprep.subr.mxu0 0.0
        %v935 = vand.u32 %v352, 4294901760
        %v936 = vsub.f32 %v352, %v935
        %937 = vmatpush1.msra.mxu0 %v936
        %938 = vmatprep.subr.mxu0 0.0
        %v939 = vand.u32 %v351, 4294901760
        %v940 = vsub.f32 %v351, %v939
        %941 = vmatpush1.msra.mxu0 %v940
        %942 = vmatprep.subr.mxu0 0.0
        %v943 = vand.u32 %v350, 4294901760
        %v944 = vsub.f32 %v350, %v943
        %945 = vmatpush1.msra.mxu0 %v944
        %946 = vmatprep.subr.mxu0 0.0
        %v947 = vand.u32 %v349, 4294901760
        %v948 = vsub.f32 %v349, %v947
        %949 = vmatpush1.msra.mxu0 %v948
        %950 = vmatprep.subr.mxu0 0.0
        %v951 = vand.u32 %v348, 4294901760
        %v952 = vsub.f32 %v348, %v951
        %953 = vmatpush1.msra.mxu0 %v952
        %954 = vmatprep.subr.mxu0 0.0
        %v955 = vand.u32 %v347, 4294901760
        %v956 = vsub.f32 %v347, %v955
        %957 = vmatpush1.msra.mxu0 %v956
        %958 = vmatprep.subr.mxu0 0.0
        %v959 = vand.u32 %v346, 4294901760
        %v960 = vsub.f32 %v346, %v959
        %961 = vmatpush1.msra.mxu0 %v960
        %962 = vmatprep.subr.mxu0 0.0
        %v963 = vand.u32 %v345, 4294901760
        %v964 = vsub.f32 %v345, %v963
        %965 = vmatpush1.msra.mxu0 %v964
        %966 = vmatprep.subr.mxu0 0.0
        %v967 = vand.u32 %v344, 4294901760
        %v968 = vsub.f32 %v344, %v967
        %969 = vmatpush1.msra.mxu0 %v968
        %970 = vmatprep.subr.mxu0 0.0
        %971 = vmatpush2.msra.mxu0 0.0
        %972 = vmatprep.subr.mxu0 0.0
        %973 = vmatpush2.msra.mxu0 0.0
        %974 = vmatprep.subr.mxu0 0.0
        %975 = vmatpush2.msra.mxu0 0.0
        %976 = vmatprep.subr.mxu0 0.0
        %977 = vmatpush2.msra.mxu0 0.0
        %978 = vmatprep.subr.mxu0 0.0
        %979 = vmatpush2.msra.mxu0 0.0
        %980 = vmatprep.subr.mxu0 0.0
        %981 = vmatpush2.msra.mxu0 0.0
        %982 = vmatprep.subr.mxu0 0.0
        %983 = vmatpush2.msra.mxu0 0.0
        %984 = vmatprep.subr.mxu0 0.0
        %985 = vmatpush2.msra.mxu0 0.0
        %986 = vmatprep.subr.mxu0 0.0
        %987 = vmatpush2.msra.mxu0 0.0
        %988 = vmatprep.subr.mxu0 0.0
        %989 = vmatpush2.msra.mxu0 0.0
        %990 = vmatprep.subr.mxu0 0.0
        %991 = vmatpush2.msra.mxu0 0.0
        %992 = vmatprep.subr.mxu0 0.0
        %993 = vmatpush2.msra.mxu0 0.0
        %994 = vmatprep.subr.mxu0 0.0
        %995 = vmatpush2.msra.mxu0 0.0
        %996 = vmatprep.subr.mxu0 0.0
        %997 = vmatpush2.msra.mxu0 0.0
        %998 = vmatprep.subr.mxu0 0.0
        %999 = vmatpush2.msra.mxu0 0.0
        %1000 = vmatprep.subr.mxu0 0.0
        %1001 = vmatpush2.msra.mxu0 0.0
        %1002 = vmatprep.mubr.f32.mxu0 0.0
        %v1003 = vand.u32 %v324, 4294901760
        %v1004 = vsub.f32 %v324, %v1003
        %1005 = vmatmul.mubr.f32.gmra.mxu0 %v1004
        %v1006 = vpop.f32.mrf.mxu0
        %v1007 = vadd.f32 %v789, %v1006
        %v1008 = vpop.f32.mrf.mxu0
        %1009 = vmatprep.mubr.f32.mxu0 0.0
        %v1010 = vand.u32 %v325, 4294901760
        %v1011 = vsub.f32 %v325, %v1010
        %1012 = vmatmul.mubr.f32.gmra.mxu0 %v1011
        %v1013 = vpop.f32.mrf.mxu0
        %v1014 = vadd.f32 %v795, %v1013
        %v1015 = vpop.f32.mrf.mxu0
        %1016 = vmatprep.mubr.f32.mxu0 0.0
        %v1017 = vand.u32 %v326, 4294901760
        %v1018 = vsub.f32 %v326, %v1017
        %1019 = vmatmul.mubr.f32.gmra.mxu0 %v1018
        %v1020 = vpop.f32.mrf.mxu0
        %v1021 = vadd.f32 %v801, %v1020
        %v1022 = vpop.f32.mrf.mxu0
        %1023 = vmatprep.mubr.f32.mxu0 0.0
        %v1024 = vand.u32 %v327, 4294901760
        %v1025 = vsub.f32 %v327, %v1024
        %1026 = vmatmul.mubr.f32.gmra.mxu0 %v1025
        %v1027 = vpop.f32.mrf.mxu0
        %v1028 = vadd.f32 %v807, %v1027
        %v1029 = vpop.f32.mrf.mxu0
        %1030 = vmatprep.mubr.f32.mxu0 0.0
        %v1031 = vand.u32 %v328, 4294901760
        %v1032 = vsub.f32 %v328, %v1031
        %1033 = vmatmul.mubr.f32.gmra.mxu0 %v1032
        %v1034 = vpop.f32.mrf.mxu0
        %v1035 = vadd.f32 %v813, %v1034
        %v1036 = vpop.f32.mrf.mxu0
        %1037 = vmatprep.mubr.f32.mxu0 0.0
        %v1038 = vand.u32 %v329, 4294901760
        %v1039 = vsub.f32 %v329, %v1038
        %1040 = vmatmul.mubr.f32.gmra.mxu0 %v1039
        %v1041 = vpop.f32.mrf.mxu0
        %v1042 = vadd.f32 %v819, %v1041
        %v1043 = vpop.f32.mrf.mxu0
        %1044 = vmatprep.mubr.f32.mxu0 0.0
        %v1045 = vand.u32 %v330, 4294901760
        %v1046 = vsub.f32 %v330, %v1045
        %1047 = vmatmul.mubr.f32.gmra.mxu0 %v1046
        %v1048 = vpop.f32.mrf.mxu0
        %v1049 = vadd.f32 %v825, %v1048
        %v1050 = vpop.f32.mrf.mxu0
        %1051 = vmatprep.mubr.f32.mxu0 0.0
        %v1052 = vand.u32 %v331, 4294901760
        %v1053 = vsub.f32 %v331, %v1052
        %1054 = vmatmul.mubr.f32.gmra.mxu0 %v1053
        %v1055 = vpop.f32.mrf.mxu0
        %v1056 = vadd.f32 %v831, %v1055
        %v1057 = vpop.f32.mrf.mxu0
        %1058 = vmatprep.mubr.f32.mxu0 0.0
        %v1059 = vand.u32 %v332, 4294901760
        %v1060 = vsub.f32 %v332, %v1059
        %1061 = vmatmul.mubr.f32.gmra.mxu0 %v1060
        %v1062 = vpop.f32.mrf.mxu0
        %v1063 = vadd.f32 %v837, %v1062
        %v1064 = vpop.f32.mrf.mxu0
        %1065 = vmatprep.mubr.f32.mxu0 0.0
        %v1066 = vand.u32 %v333, 4294901760
        %v1067 = vsub.f32 %v333, %v1066
        %1068 = vmatmul.mubr.f32.gmra.mxu0 %v1067
        %v1069 = vpop.f32.mrf.mxu0
        %v1070 = vadd.f32 %v843, %v1069
        %v1071 = vpop.f32.mrf.mxu0
        %1072 = vmatprep.mubr.f32.mxu0 0.0
        %v1073 = vand.u32 %v334, 4294901760
        %v1074 = vsub.f32 %v334, %v1073
        %1075 = vmatmul.mubr.f32.gmra.mxu0 %v1074
        %v1076 = vpop.f32.mrf.mxu0
        %v1077 = vadd.f32 %v849, %v1076
        %v1078 = vpop.f32.mrf.mxu0
        %1079 = vmatprep.mubr.f32.mxu0 0.0
        %v1080 = vand.u32 %v335, 4294901760
        %v1081 = vsub.f32 %v335, %v1080
        %1082 = vmatmul.mubr.f32.gmra.mxu0 %v1081
        %v1083 = vpop.f32.mrf.mxu0
        %v1084 = vadd.f32 %v855, %v1083
        %v1085 = vpop.f32.mrf.mxu0
        %1086 = vmatprep.mubr.f32.mxu0 0.0
        %v1087 = vand.u32 %v336, 4294901760
        %v1088 = vsub.f32 %v336, %v1087
        %1089 = vmatmul.mubr.f32.gmra.mxu0 %v1088
        %v1090 = vpop.f32.mrf.mxu0
        %v1091 = vadd.f32 %v861, %v1090
        %v1092 = vpop.f32.mrf.mxu0
        %1093 = vmatprep.mubr.f32.mxu0 0.0
        %v1094 = vand.u32 %v337, 4294901760
        %v1095 = vsub.f32 %v337, %v1094
        %1096 = vmatmul.mubr.f32.gmra.mxu0 %v1095
        %v1097 = vpop.f32.mrf.mxu0
        %v1098 = vadd.f32 %v867, %v1097
        %v1099 = vpop.f32.mrf.mxu0
        %1100 = vmatprep.mubr.f32.mxu0 0.0
        %v1101 = vand.u32 %v338, 4294901760
        %v1102 = vsub.f32 %v338, %v1101
        %1103 = vmatmul.mubr.f32.gmra.mxu0 %v1102
        %v1104 = vpop.f32.mrf.mxu0
        %v1105 = vadd.f32 %v873, %v1104
        %v1106 = vpop.f32.mrf.mxu0
        %1107 = vmatprep.mubr.f32.mxu0 0.0
        %v1108 = vand.u32 %v339, 4294901760
        %v1109 = vsub.f32 %v339, %v1108
        %1110 = vmatmul.mubr.f32.gmra.mxu0 %v1109
        %v1111 = vpop.f32.mrf.mxu0
        %v1112 = vadd.f32 %v879, %v1111
        %v1113 = vpop.f32.mrf.mxu0
        %1114 = vmatprep.mubr.f32.mxu0 0.0
        %v1115 = vand.u32 %v340, 4294901760
        %v1116 = vsub.f32 %v340, %v1115
        %1117 = vmatmul.mubr.f32.gmra.mxu0 %v1116
        %v1118 = vpop.f32.mrf.mxu0
        %v1119 = vadd.f32 %v885, %v1118
        %v1120 = vpop.f32.mrf.mxu0
        %1121 = vmatprep.mubr.f32.mxu0 0.0
        %v1122 = vand.u32 %v341, 4294901760
        %v1123 = vsub.f32 %v341, %v1122
        %1124 = vmatmul.mubr.f32.gmra.mxu0 %v1123
        %v1125 = vpop.f32.mrf.mxu0
        %v1126 = vadd.f32 %v891, %v1125
        %v1127 = vpop.f32.mrf.mxu0
        %1128 = vmatprep.mubr.f32.mxu0 0.0
        %v1129 = vand.u32 %v342, 4294901760
        %v1130 = vsub.f32 %v342, %v1129
        %1131 = vmatmul.mubr.f32.gmra.mxu0 %v1130
        %v1132 = vpop.f32.mrf.mxu0
        %v1133 = vadd.f32 %v897, %v1132
        %v1134 = vpop.f32.mrf.mxu0
        %1135 = vmatprep.mubr.f32.mxu0 0.0
        %v1136 = vand.u32 %v343, 4294901760
        %v1137 = vsub.f32 %v343, %v1136
        %1138 = vmatmul.mubr.f32.gmra.mxu0 %v1137
        %v1139 = vpop.f32.mrf.mxu0
        %v1140 = vadd.f32 %v903, %v1139
        %v1141 = vpop.f32.mrf.mxu0
        %1142 = vdwg.mxu0
        %1143 = vmatprep.subr.mxu0 0.0
        %v1144 = vand.u32 %v359, 4294901760
        %1145 = vmatpush1.msra.mxu0 %v1144
        %1146 = vmatprep.subr.mxu0 0.0
        %v1147 = vand.u32 %v358, 4294901760
        %1148 = vmatpush1.msra.mxu0 %v1147
        %1149 = vmatprep.subr.mxu0 0.0
        %v1150 = vand.u32 %v357, 4294901760
        %1151 = vmatpush1.msra.mxu0 %v1150
        %1152 = vmatprep.subr.mxu0 0.0
        %v1153 = vand.u32 %v356, 4294901760
        %1154 = vmatpush1.msra.mxu0 %v1153
        %1155 = vmatprep.subr.mxu0 0.0
        %v1156 = vand.u32 %v355, 4294901760
        %1157 = vmatpush1.msra.mxu0 %v1156
        %1158 = vmatprep.subr.mxu0 0.0
        %v1159 = vand.u32 %v354, 4294901760
        %1160 = vmatpush1.msra.mxu0 %v1159
        %1161 = vmatprep.subr.mxu0 0.0
        %v1162 = vand.u32 %v353, 4294901760
        %1163 = vmatpush1.msra.mxu0 %v1162
        %1164 = vmatprep.subr.mxu0 0.0
        %v1165 = vand.u32 %v352, 4294901760
        %1166 = vmatpush1.msra.mxu0 %v1165
        %1167 = vmatprep.subr.mxu0 0.0
        %v1168 = vand.u32 %v351, 4294901760
        %1169 = vmatpush1.msra.mxu0 %v1168
        %1170 = vmatprep.subr.mxu0 0.0
        %v1171 = vand.u32 %v350, 4294901760
        %1172 = vmatpush1.msra.mxu0 %v1171
        %1173 = vmatprep.subr.mxu0 0.0
        %v1174 = vand.u32 %v349, 4294901760
        %1175 = vmatpush1.msra.mxu0 %v1174
        %1176 = vmatprep.subr.mxu0 0.0
        %v1177 = vand.u32 %v348, 4294901760
        %1178 = vmatpush1.msra.mxu0 %v1177
        %1179 = vmatprep.subr.mxu0 0.0
        %v1180 = vand.u32 %v347, 4294901760
        %1181 = vmatpush1.msra.mxu0 %v1180
        %1182 = vmatprep.subr.mxu0 0.0
        %v1183 = vand.u32 %v346, 4294901760
        %1184 = vmatpush1.msra.mxu0 %v1183
        %1185 = vmatprep.subr.mxu0 0.0
        %v1186 = vand.u32 %v345, 4294901760
        %1187 = vmatpush1.msra.mxu0 %v1186
        %1188 = vmatprep.subr.mxu0 0.0
        %v1189 = vand.u32 %v344, 4294901760
        %1190 = vmatpush1.msra.mxu0 %v1189
        %1191 = vmatprep.subr.mxu0 0.0
        %1192 = vmatpush2.msra.mxu0 0.0
        %1193 = vmatprep.subr.mxu0 0.0
        %1194 = vmatpush2.msra.mxu0 0.0
        %1195 = vmatprep.subr.mxu0 0.0
        %1196 = vmatpush2.msra.mxu0 0.0
        %1197 = vmatprep.subr.mxu0 0.0
        %1198 = vmatpush2.msra.mxu0 0.0
        %1199 = vmatprep.subr.mxu0 0.0
        %1200 = vmatpush2.msra.mxu0 0.0
        %1201 = vmatprep.subr.mxu0 0.0
        %1202 = vmatpush2.msra.mxu0 0.0
        %1203 = vmatprep.subr.mxu0 0.0
        %1204 = vmatpush2.msra.mxu0 0.0
        %1205 = vmatprep.subr.mxu0 0.0
        %1206 = vmatpush2.msra.mxu0 0.0
        %1207 = vmatprep.subr.mxu0 0.0
        %1208 = vmatpush2.msra.mxu0 0.0
        %1209 = vmatprep.subr.mxu0 0.0
        %1210 = vmatpush2.msra.mxu0 0.0
        %1211 = vmatprep.subr.mxu0 0.0
        %1212 = vmatpush2.msra.mxu0 0.0
        %1213 = vmatprep.subr.mxu0 0.0
        %1214 = vmatpush2.msra.mxu0 0.0
        %1215 = vmatprep.subr.mxu0 0.0
        %1216 = vmatpush2.msra.mxu0 0.0
        %1217 = vmatprep.subr.mxu0 0.0
        %1218 = vmatpush2.msra.mxu0 0.0
        %1219 = vmatprep.subr.mxu0 0.0
        %1220 = vmatpush2.msra.mxu0 0.0
        %1221 = vmatprep.subr.mxu0 0.0
        %1222 = vmatpush2.msra.mxu0 0.0
        %1223 = vmatprep.mubr.f32.mxu0 0.0
        %v1224 = vand.u32 %v324, 4294901760
        %v1225 = vsub.f32 %v324, %v1224
        %v1226 = vand.u32 %v1225, 4294901760
        %1227 = vmatmul.mubr.f32.gmra.mxu0 %v1226
        %v1228 = vpop.f32.mrf.mxu0
        %v1229 = vadd.f32 %v1007, %v1228
        %v1230 = vpop.f32.mrf.mxu0
        %1231 = vmatprep.mubr.f32.mxu0 0.0
        %v1232 = vand.u32 %v325, 4294901760
        %v1233 = vsub.f32 %v325, %v1232
        %v1234 = vand.u32 %v1233, 4294901760
        %1235 = vmatmul.mubr.f32.gmra.mxu0 %v1234
        %v1236 = vpop.f32.mrf.mxu0
        %v1237 = vadd.f32 %v1014, %v1236
        %v1238 = vpop.f32.mrf.mxu0
        %1239 = vmatprep.mubr.f32.mxu0 0.0
        %v1240 = vand.u32 %v326, 4294901760
        %v1241 = vsub.f32 %v326, %v1240
        %v1242 = vand.u32 %v1241, 4294901760
        %1243 = vmatmul.mubr.f32.gmra.mxu0 %v1242
        %v1244 = vpop.f32.mrf.mxu0
        %v1245 = vadd.f32 %v1021, %v1244
        %v1246 = vpop.f32.mrf.mxu0
        %1247 = vmatprep.mubr.f32.mxu0 0.0
        %v1248 = vand.u32 %v327, 4294901760
        %v1249 = vsub.f32 %v327, %v1248
        %v1250 = vand.u32 %v1249, 4294901760
        %1251 = vmatmul.mubr.f32.gmra.mxu0 %v1250
        %v1252 = vpop.f32.mrf.mxu0
        %v1253 = vadd.f32 %v1028, %v1252
        %v1254 = vpop.f32.mrf.mxu0
        %1255 = vmatprep.mubr.f32.mxu0 0.0
        %v1256 = vand.u32 %v328, 4294901760
        %v1257 = vsub.f32 %v328, %v1256
        %v1258 = vand.u32 %v1257, 4294901760
        %1259 = vmatmul.mubr.f32.gmra.mxu0 %v1258
        %v1260 = vpop.f32.mrf.mxu0
        %v1261 = vadd.f32 %v1035, %v1260
        %v1262 = vpop.f32.mrf.mxu0
        %1263 = vmatprep.mubr.f32.mxu0 0.0
        %v1264 = vand.u32 %v329, 4294901760
        %v1265 = vsub.f32 %v329, %v1264
        %v1266 = vand.u32 %v1265, 4294901760
        %1267 = vmatmul.mubr.f32.gmra.mxu0 %v1266
        %v1268 = vpop.f32.mrf.mxu0
        %v1269 = vadd.f32 %v1042, %v1268
        %v1270 = vpop.f32.mrf.mxu0
        %1271 = vmatprep.mubr.f32.mxu0 0.0
        %v1272 = vand.u32 %v330, 4294901760
        %v1273 = vsub.f32 %v330, %v1272
        %v1274 = vand.u32 %v1273, 4294901760
        %1275 = vmatmul.mubr.f32.gmra.mxu0 %v1274
        %v1276 = vpop.f32.mrf.mxu0
        %v1277 = vadd.f32 %v1049, %v1276
        %v1278 = vpop.f32.mrf.mxu0
        %1279 = vmatprep.mubr.f32.mxu0 0.0
        %v1280 = vand.u32 %v331, 4294901760
        %v1281 = vsub.f32 %v331, %v1280
        %v1282 = vand.u32 %v1281, 4294901760
        %1283 = vmatmul.mubr.f32.gmra.mxu0 %v1282
        %v1284 = vpop.f32.mrf.mxu0
        %v1285 = vadd.f32 %v1056, %v1284
        %v1286 = vpop.f32.mrf.mxu0
        %1287 = vmatprep.mubr.f32.mxu0 0.0
        %v1288 = vand.u32 %v332, 4294901760
        %v1289 = vsub.f32 %v332, %v1288
        %v1290 = vand.u32 %v1289, 4294901760
        %1291 = vmatmul.mubr.f32.gmra.mxu0 %v1290
        %v1292 = vpop.f32.mrf.mxu0
        %v1293 = vadd.f32 %v1063, %v1292
        %v1294 = vpop.f32.mrf.mxu0
        %1295 = vmatprep.mubr.f32.mxu0 0.0
        %v1296 = vand.u32 %v333, 4294901760
        %v1297 = vsub.f32 %v333, %v1296
        %v1298 = vand.u32 %v1297, 4294901760
        %1299 = vmatmul.mubr.f32.gmra.mxu0 %v1298
        %v1300 = vpop.f32.mrf.mxu0
        %v1301 = vadd.f32 %v1070, %v1300
        %v1302 = vpop.f32.mrf.mxu0
        %1303 = vmatprep.mubr.f32.mxu0 0.0
        %v1304 = vand.u32 %v334, 4294901760
        %v1305 = vsub.f32 %v334, %v1304
        %v1306 = vand.u32 %v1305, 4294901760
        %1307 = vmatmul.mubr.f32.gmra.mxu0 %v1306
        %v1308 = vpop.f32.mrf.mxu0
        %v1309 = vadd.f32 %v1077, %v1308
        %v1310 = vpop.f32.mrf.mxu0
        %1311 = vmatprep.mubr.f32.mxu0 0.0
        %v1312 = vand.u32 %v335, 4294901760
        %v1313 = vsub.f32 %v335, %v1312
        %v1314 = vand.u32 %v1313, 4294901760
        %1315 = vmatmul.mubr.f32.gmra.mxu0 %v1314
        %v1316 = vpop.f32.mrf.mxu0
        %v1317 = vadd.f32 %v1084, %v1316
        %v1318 = vpop.f32.mrf.mxu0
        %1319 = vmatprep.mubr.f32.mxu0 0.0
        %v1320 = vand.u32 %v336, 4294901760
        %v1321 = vsub.f32 %v336, %v1320
        %v1322 = vand.u32 %v1321, 4294901760
        %1323 = vmatmul.mubr.f32.gmra.mxu0 %v1322
        %v1324 = vpop.f32.mrf.mxu0
        %v1325 = vadd.f32 %v1091, %v1324
        %v1326 = vpop.f32.mrf.mxu0
        %1327 = vmatprep.mubr.f32.mxu0 0.0
        %v1328 = vand.u32 %v337, 4294901760
        %v1329 = vsub.f32 %v337, %v1328
        %v1330 = vand.u32 %v1329, 4294901760
        %1331 = vmatmul.mubr.f32.gmra.mxu0 %v1330
        %v1332 = vpop.f32.mrf.mxu0
        %v1333 = vadd.f32 %v1098, %v1332
        %v1334 = vpop.f32.mrf.mxu0
        %1335 = vmatprep.mubr.f32.mxu0 0.0
        %v1336 = vand.u32 %v338, 4294901760
        %v1337 = vsub.f32 %v338, %v1336
        %v1338 = vand.u32 %v1337, 4294901760
        %1339 = vmatmul.mubr.f32.gmra.mxu0 %v1338
        %v1340 = vpop.f32.mrf.mxu0
        %v1341 = vadd.f32 %v1105, %v1340
        %v1342 = vpop.f32.mrf.mxu0
        %1343 = vmatprep.mubr.f32.mxu0 0.0
        %v1344 = vand.u32 %v339, 4294901760
        %v1345 = vsub.f32 %v339, %v1344
        %v1346 = vand.u32 %v1345, 4294901760
        %1347 = vmatmul.mubr.f32.gmra.mxu0 %v1346
        %v1348 = vpop.f32.mrf.mxu0
        %v1349 = vadd.f32 %v1112, %v1348
        %v1350 = vpop.f32.mrf.mxu0
        %1351 = vmatprep.mubr.f32.mxu0 0.0
        %v1352 = vand.u32 %v340, 4294901760
        %v1353 = vsub.f32 %v340, %v1352
        %v1354 = vand.u32 %v1353, 4294901760
        %1355 = vmatmul.mubr.f32.gmra.mxu0 %v1354
        %v1356 = vpop.f32.mrf.mxu0
        %v1357 = vadd.f32 %v1119, %v1356
        %v1358 = vpop.f32.mrf.mxu0
        %1359 = vmatprep.mubr.f32.mxu0 0.0
        %v1360 = vand.u32 %v341, 4294901760
        %v1361 = vsub.f32 %v341, %v1360
        %v1362 = vand.u32 %v1361, 4294901760
        %1363 = vmatmul.mubr.f32.gmra.mxu0 %v1362
        %v1364 = vpop.f32.mrf.mxu0
        %v1365 = vadd.f32 %v1126, %v1364
        %v1366 = vpop.f32.mrf.mxu0
        %1367 = vmatprep.mubr.f32.mxu0 0.0
        %v1368 = vand.u32 %v342, 4294901760
        %v1369 = vsub.f32 %v342, %v1368
        %v1370 = vand.u32 %v1369, 4294901760
        %1371 = vmatmul.mubr.f32.gmra.mxu0 %v1370
        %v1372 = vpop.f32.mrf.mxu0
        %v1373 = vadd.f32 %v1133, %v1372
        %v1374 = vpop.f32.mrf.mxu0
        %1375 = vmatprep.mubr.f32.mxu0 0.0
        %v1376 = vand.u32 %v343, 4294901760
        %v1377 = vsub.f32 %v343, %v1376
        %v1378 = vand.u32 %v1377, 4294901760
        %1379 = vmatmul.mubr.f32.gmra.mxu0 %v1378
        %v1380 = vpop.f32.mrf.mxu0
        %v1381 = vadd.f32 %v1140, %v1380
        %v1382 = vpop.f32.mrf.mxu0
        %1383 = vdwg.mxu0
        %1384 = vmatprep.subr.mxu0 0.0
        %v1385 = vand.u32 %v359, 4294901760
        %v1386 = vsub.f32 %v359, %v1385
        %v1387 = vand.u32 %v1386, 4294901760
        %1388 = vmatpush1.msra.mxu0 %v1387
        %1389 = vmatprep.subr.mxu0 0.0
        %v1390 = vand.u32 %v358, 4294901760
        %v1391 = vsub.f32 %v358, %v1390
        %v1392 = vand.u32 %v1391, 4294901760
        %1393 = vmatpush1.msra.mxu0 %v1392
        %1394 = vmatprep.subr.mxu0 0.0
        %v1395 = vand.u32 %v357, 4294901760
        %v1396 = vsub.f32 %v357, %v1395
        %v1397 = vand.u32 %v1396, 4294901760
        %1398 = vmatpush1.msra.mxu0 %v1397
        %1399 = vmatprep.subr.mxu0 0.0
        %v1400 = vand.u32 %v356, 4294901760
        %v1401 = vsub.f32 %v356, %v1400
        %v1402 = vand.u32 %v1401, 4294901760
        %1403 = vmatpush1.msra.mxu0 %v1402
        %1404 = vmatprep.subr.mxu0 0.0
        %v1405 = vand.u32 %v355, 4294901760
        %v1406 = vsub.f32 %v355, %v1405
        %v1407 = vand.u32 %v1406, 4294901760
        %1408 = vmatpush1.msra.mxu0 %v1407
        %1409 = vmatprep.subr.mxu0 0.0
        %v1410 = vand.u32 %v354, 4294901760
        %v1411 = vsub.f32 %v354, %v1410
        %v1412 = vand.u32 %v1411, 4294901760
        %1413 = vmatpush1.msra.mxu0 %v1412
        %1414 = vmatprep.subr.mxu0 0.0
        %v1415 = vand.u32 %v353, 4294901760
        %v1416 = vsub.f32 %v353, %v1415
        %v1417 = vand.u32 %v1416, 4294901760
        %1418 = vmatpush1.msra.mxu0 %v1417
        %1419 = vmatprep.subr.mxu0 0.0
        %v1420 = vand.u32 %v352, 4294901760
        %v1421 = vsub.f32 %v352, %v1420
        %v1422 = vand.u32 %v1421, 4294901760
        %1423 = vmatpush1.msra.mxu0 %v1422
        %1424 = vmatprep.subr.mxu0 0.0
        %v1425 = vand.u32 %v351, 4294901760
        %v1426 = vsub.f32 %v351, %v1425
        %v1427 = vand.u32 %v1426, 4294901760
        %1428 = vmatpush1.msra.mxu0 %v1427
        %1429 = vmatprep.subr.mxu0 0.0
        %v1430 = vand.u32 %v350, 4294901760
        %v1431 = vsub.f32 %v350, %v1430
        %v1432 = vand.u32 %v1431, 4294901760
        %1433 = vmatpush1.msra.mxu0 %v1432
        %1434 = vmatprep.subr.mxu0 0.0
        %v1435 = vand.u32 %v349, 4294901760
        %v1436 = vsub.f32 %v349, %v1435
        %v1437 = vand.u32 %v1436, 4294901760
        %1438 = vmatpush1.msra.mxu0 %v1437
        %1439 = vmatprep.subr.mxu0 0.0
        %v1440 = vand.u32 %v348, 4294901760
        %v1441 = vsub.f32 %v348, %v1440
        %v1442 = vand.u32 %v1441, 4294901760
        %1443 = vmatpush1.msra.mxu0 %v1442
        %1444 = vmatprep.subr.mxu0 0.0
        %v1445 = vand.u32 %v347, 4294901760
        %v1446 = vsub.f32 %v347, %v1445
        %v1447 = vand.u32 %v1446, 4294901760
        %1448 = vmatpush1.msra.mxu0 %v1447
        %1449 = vmatprep.subr.mxu0 0.0
        %v1450 = vand.u32 %v346, 4294901760
        %v1451 = vsub.f32 %v346, %v1450
        %v1452 = vand.u32 %v1451, 4294901760
        %1453 = vmatpush1.msra.mxu0 %v1452
        %1454 = vmatprep.subr.mxu0 0.0
        %v1455 = vand.u32 %v345, 4294901760
        %v1456 = vsub.f32 %v345, %v1455
        %v1457 = vand.u32 %v1456, 4294901760
        %1458 = vmatpush1.msra.mxu0 %v1457
        %1459 = vmatprep.subr.mxu0 0.0
        %v1460 = vand.u32 %v344, 4294901760
        %v1461 = vsub.f32 %v344, %v1460
        %v1462 = vand.u32 %v1461, 4294901760
        %1463 = vmatpush1.msra.mxu0 %v1462
        %1464 = vmatprep.subr.mxu0 0.0
        %1465 = vmatpush2.msra.mxu0 0.0
        %1466 = vmatprep.subr.mxu0 0.0
        %1467 = vmatpush2.msra.mxu0 0.0
        %1468 = vmatprep.subr.mxu0 0.0
        %1469 = vmatpush2.msra.mxu0 0.0
        %1470 = vmatprep.subr.mxu0 0.0
        %1471 = vmatpush2.msra.mxu0 0.0
        %1472 = vmatprep.subr.mxu0 0.0
        %1473 = vmatpush2.msra.mxu0 0.0
        %1474 = vmatprep.subr.mxu0 0.0
        %1475 = vmatpush2.msra.mxu0 0.0
        %1476 = vmatprep.subr.mxu0 0.0
        %1477 = vmatpush2.msra.mxu0 0.0
        %1478 = vmatprep.subr.mxu0 0.0
        %1479 = vmatpush2.msra.mxu0 0.0
        %1480 = vmatprep.subr.mxu0 0.0
        %1481 = vmatpush2.msra.mxu0 0.0
        %1482 = vmatprep.subr.mxu0 0.0
        %1483 = vmatpush2.msra.mxu0 0.0
        %1484 = vmatprep.subr.mxu0 0.0
        %1485 = vmatpush2.msra.mxu0 0.0
        %1486 = vmatprep.subr.mxu0 0.0
        %1487 = vmatpush2.msra.mxu0 0.0
        %1488 = vmatprep.subr.mxu0 0.0
        %1489 = vmatpush2.msra.mxu0 0.0
        %1490 = vmatprep.subr.mxu0 0.0
        %1491 = vmatpush2.msra.mxu0 0.0
        %1492 = vmatprep.subr.mxu0 0.0
        %1493 = vmatpush2.msra.mxu0 0.0
        %1494 = vmatprep.subr.mxu0 0.0
        %1495 = vmatpush2.msra.mxu0 0.0
        %1496 = vmatprep.mubr.f32.mxu0 0.0
        %v1497 = vand.u32 %v324, 4294901760
        %1498 = vmatmul.mubr.f32.gmra.mxu0 %v1497
        %v1499 = vpop.f32.mrf.mxu0
        %v1500 = vadd.f32 %v1229, %v1499
        %v1501 = vpop.f32.mrf.mxu0
        %1502 = vmatprep.mubr.f32.mxu0 0.0
        %v1503 = vand.u32 %v325, 4294901760
        %1504 = vmatmul.mubr.f32.gmra.mxu0 %v1503
        %v1505 = vpop.f32.mrf.mxu0
        %v1506 = vadd.f32 %v1237, %v1505
        %v1507 = vpop.f32.mrf.mxu0
        %1508 = vmatprep.mubr.f32.mxu0 0.0
        %v1509 = vand.u32 %v326, 4294901760
        %1510 = vmatmul.mubr.f32.gmra.mxu0 %v1509
        %v1511 = vpop.f32.mrf.mxu0
        %v1512 = vadd.f32 %v1245, %v1511
        %v1513 = vpop.f32.mrf.mxu0
        %1514 = vmatprep.mubr.f32.mxu0 0.0
        %v1515 = vand.u32 %v327, 4294901760
        %1516 = vmatmul.mubr.f32.gmra.mxu0 %v1515
        %v1517 = vpop.f32.mrf.mxu0
        %v1518 = vadd.f32 %v1253, %v1517
        %v1519 = vpop.f32.mrf.mxu0
        %1520 = vmatprep.mubr.f32.mxu0 0.0
        %v1521 = vand.u32 %v328, 4294901760
        %1522 = vmatmul.mubr.f32.gmra.mxu0 %v1521
        %v1523 = vpop.f32.mrf.mxu0
        %v1524 = vadd.f32 %v1261, %v1523
        %v1525 = vpop.f32.mrf.mxu0
        %1526 = vmatprep.mubr.f32.mxu0 0.0
        %v1527 = vand.u32 %v329, 4294901760
        %1528 = vmatmul.mubr.f32.gmra.mxu0 %v1527
        %v1529 = vpop.f32.mrf.mxu0
        %v1530 = vadd.f32 %v1269, %v1529
        %v1531 = vpop.f32.mrf.mxu0
        %1532 = vmatprep.mubr.f32.mxu0 0.0
        %v1533 = vand.u32 %v330, 4294901760
        %1534 = vmatmul.mubr.f32.gmra.mxu0 %v1533
        %v1535 = vpop.f32.mrf.mxu0
        %v1536 = vadd.f32 %v1277, %v1535
        %v1537 = vpop.f32.mrf.mxu0
        %1538 = vmatprep.mubr.f32.mxu0 0.0
        %v1539 = vand.u32 %v331, 4294901760
        %1540 = vmatmul.mubr.f32.gmra.mxu0 %v1539
        %v1541 = vpop.f32.mrf.mxu0
        %v1542 = vadd.f32 %v1285, %v1541
        %v1543 = vpop.f32.mrf.mxu0
        %1544 = vmatprep.mubr.f32.mxu0 0.0
        %v1545 = vand.u32 %v332, 4294901760
        %1546 = vmatmul.mubr.f32.gmra.mxu0 %v1545
        %v1547 = vpop.f32.mrf.mxu0
        %v1548 = vadd.f32 %v1293, %v1547
        %v1549 = vpop.f32.mrf.mxu0
        %1550 = vmatprep.mubr.f32.mxu0 0.0
        %v1551 = vand.u32 %v333, 4294901760
        %1552 = vmatmul.mubr.f32.gmra.mxu0 %v1551
        %v1553 = vpop.f32.mrf.mxu0
        %v1554 = vadd.f32 %v1301, %v1553
        %v1555 = vpop.f32.mrf.mxu0
        %1556 = vmatprep.mubr.f32.mxu0 0.0
        %v1557 = vand.u32 %v334, 4294901760
        %1558 = vmatmul.mubr.f32.gmra.mxu0 %v1557
        %v1559 = vpop.f32.mrf.mxu0
        %v1560 = vadd.f32 %v1309, %v1559
        %v1561 = vpop.f32.mrf.mxu0
        %1562 = vmatprep.mubr.f32.mxu0 0.0
        %v1563 = vand.u32 %v335, 4294901760
        %1564 = vmatmul.mubr.f32.gmra.mxu0 %v1563
        %v1565 = vpop.f32.mrf.mxu0
        %v1566 = vadd.f32 %v1317, %v1565
        %v1567 = vpop.f32.mrf.mxu0
        %1568 = vmatprep.mubr.f32.mxu0 0.0
        %v1569 = vand.u32 %v336, 4294901760
        %1570 = vmatmul.mubr.f32.gmra.mxu0 %v1569
        %v1571 = vpop.f32.mrf.mxu0
        %v1572 = vadd.f32 %v1325, %v1571
        %v1573 = vpop.f32.mrf.mxu0
        %1574 = vmatprep.mubr.f32.mxu0 0.0
        %v1575 = vand.u32 %v337, 4294901760
        %1576 = vmatmul.mubr.f32.gmra.mxu0 %v1575
        %v1577 = vpop.f32.mrf.mxu0
        %v1578 = vadd.f32 %v1333, %v1577
        %v1579 = vpop.f32.mrf.mxu0
        %1580 = vmatprep.mubr.f32.mxu0 0.0
        %v1581 = vand.u32 %v338, 4294901760
        %1582 = vmatmul.mubr.f32.gmra.mxu0 %v1581
        %v1583 = vpop.f32.mrf.mxu0
        %v1584 = vadd.f32 %v1341, %v1583
        %v1585 = vpop.f32.mrf.mxu0
        %1586 = vmatprep.mubr.f32.mxu0 0.0
        %v1587 = vand.u32 %v339, 4294901760
        %1588 = vmatmul.mubr.f32.gmra.mxu0 %v1587
        %v1589 = vpop.f32.mrf.mxu0
        %v1590 = vadd.f32 %v1349, %v1589
        %v1591 = vpop.f32.mrf.mxu0
        %1592 = vmatprep.mubr.f32.mxu0 0.0
        %v1593 = vand.u32 %v340, 4294901760
        %1594 = vmatmul.mubr.f32.gmra.mxu0 %v1593
        %v1595 = vpop.f32.mrf.mxu0
        %v1596 = vadd.f32 %v1357, %v1595
        %v1597 = vpop.f32.mrf.mxu0
        %1598 = vmatprep.mubr.f32.mxu0 0.0
        %v1599 = vand.u32 %v341, 4294901760
        %1600 = vmatmul.mubr.f32.gmra.mxu0 %v1599
        %v1601 = vpop.f32.mrf.mxu0
        %v1602 = vadd.f32 %v1365, %v1601
        %v1603 = vpop.f32.mrf.mxu0
        %1604 = vmatprep.mubr.f32.mxu0 0.0
        %v1605 = vand.u32 %v342, 4294901760
        %1606 = vmatmul.mubr.f32.gmra.mxu0 %v1605
        %v1607 = vpop.f32.mrf.mxu0
        %v1608 = vadd.f32 %v1373, %v1607
        %v1609 = vpop.f32.mrf.mxu0
        %1610 = vmatprep.mubr.f32.mxu0 0.0
        %v1611 = vand.u32 %v343, 4294901760
        %1612 = vmatmul.mubr.f32.gmra.mxu0 %v1611
        %v1613 = vpop.f32.mrf.mxu0
        %v1614 = vadd.f32 %v1381, %v1613
        %v1615 = vpop.f32.mrf.mxu0
        %1616 = vdwg.mxu0
        %1617 = vmatprep.subr.mxu0 0.0
        %v1618 = vand.u32 %v359, 4294901760
        %1619 = vmatpush1.msra.mxu0 %v1618
        %1620 = vmatprep.subr.mxu0 0.0
        %v1621 = vand.u32 %v358, 4294901760
        %1622 = vmatpush1.msra.mxu0 %v1621
        %1623 = vmatprep.subr.mxu0 0.0
        %v1624 = vand.u32 %v357, 4294901760
        %1625 = vmatpush1.msra.mxu0 %v1624
        %1626 = vmatprep.subr.mxu0 0.0
        %v1627 = vand.u32 %v356, 4294901760
        %1628 = vmatpush1.msra.mxu0 %v1627
        %1629 = vmatprep.subr.mxu0 0.0
        %v1630 = vand.u32 %v355, 4294901760
        %1631 = vmatpush1.msra.mxu0 %v1630
        %1632 = vmatprep.subr.mxu0 0.0
        %v1633 = vand.u32 %v354, 4294901760
        %1634 = vmatpush1.msra.mxu0 %v1633
        %1635 = vmatprep.subr.mxu0 0.0
        %v1636 = vand.u32 %v353, 4294901760
        %1637 = vmatpush1.msra.mxu0 %v1636
        %1638 = vmatprep.subr.mxu0 0.0
        %v1639 = vand.u32 %v352, 4294901760
        %1640 = vmatpush1.msra.mxu0 %v1639
        %1641 = vmatprep.subr.mxu0 0.0
        %v1642 = vand.u32 %v351, 4294901760
        %1643 = vmatpush1.msra.mxu0 %v1642
        %1644 = vmatprep.subr.mxu0 0.0
        %v1645 = vand.u32 %v350, 4294901760
        %1646 = vmatpush1.msra.mxu0 %v1645
        %1647 = vmatprep.subr.mxu0 0.0
        %v1648 = vand.u32 %v349, 4294901760
        %1649 = vmatpush1.msra.mxu0 %v1648
        %1650 = vmatprep.subr.mxu0 0.0
        %v1651 = vand.u32 %v348, 4294901760
        %1652 = vmatpush1.msra.mxu0 %v1651
        %1653 = vmatprep.subr.mxu0 0.0
        %v1654 = vand.u32 %v347, 4294901760
        %1655 = vmatpush1.msra.mxu0 %v1654
        %1656 = vmatprep.subr.mxu0 0.0
        %v1657 = vand.u32 %v346, 4294901760
        %1658 = vmatpush1.msra.mxu0 %v1657
        %1659 = vmatprep.subr.mxu0 0.0
        %v1660 = vand.u32 %v345, 4294901760
        %1661 = vmatpush1.msra.mxu0 %v1660
        %1662 = vmatprep.subr.mxu0 0.0
        %v1663 = vand.u32 %v344, 4294901760
        %1664 = vmatpush1.msra.mxu0 %v1663
        %1665 = vmatprep.subr.mxu0 0.0
        %1666 = vmatpush2.msra.mxu0 0.0
        %1667 = vmatprep.subr.mxu0 0.0
        %1668 = vmatpush2.msra.mxu0 0.0
        %1669 = vmatprep.subr.mxu0 0.0
        %1670 = vmatpush2.msra.mxu0 0.0
        %1671 = vmatprep.subr.mxu0 0.0
        %1672 = vmatpush2.msra.mxu0 0.0
        %1673 = vmatprep.subr.mxu0 0.0
        %1674 = vmatpush2.msra.mxu0 0.0
        %1675 = vmatprep.subr.mxu0 0.0
        %1676 = vmatpush2.msra.mxu0 0.0
        %1677 = vmatprep.subr.mxu0 0.0
        %1678 = vmatpush2.msra.mxu0 0.0
        %1679 = vmatprep.subr.mxu0 0.0
        %1680 = vmatpush2.msra.mxu0 0.0
        %1681 = vmatprep.subr.mxu0 0.0
        %1682 = vmatpush2.msra.mxu0 0.0
        %1683 = vmatprep.subr.mxu0 0.0
        %1684 = vmatpush2.msra.mxu0 0.0
        %1685 = vmatprep.subr.mxu0 0.0
        %1686 = vmatpush2.msra.mxu0 0.0
        %1687 = vmatprep.subr.mxu0 0.0
        %1688 = vmatpush2.msra.mxu0 0.0
        %1689 = vmatprep.subr.mxu0 0.0
        %1690 = vmatpush2.msra.mxu0 0.0
        %1691 = vmatprep.subr.mxu0 0.0
        %1692 = vmatpush2.msra.mxu0 0.0
        %1693 = vmatprep.subr.mxu0 0.0
        %1694 = vmatpush2.msra.mxu0 0.0
        %1695 = vmatprep.subr.mxu0 0.0
        %1696 = vmatpush2.msra.mxu0 0.0
        %1697 = vmatprep.mubr.f32.mxu0 0.0
        %v1698 = vand.u32 %v324, 4294901760
        %1699 = vmatmul.mubr.f32.gmra.mxu0 %v1698
        %v1700 = vpop.f32.mrf.mxu0
        %v1701 = vadd.f32 %v1500, %v1700
        %v1702 = vpop.f32.mrf.mxu0
        %1703 = vmatprep.mubr.f32.mxu0 0.0
        %v1704 = vand.u32 %v325, 4294901760
        %1705 = vmatmul.mubr.f32.gmra.mxu0 %v1704
        %v1706 = vpop.f32.mrf.mxu0
        %v1707 = vadd.f32 %v1506, %v1706
        %v1708 = vpop.f32.mrf.mxu0
        %1709 = vmatprep.mubr.f32.mxu0 0.0
        %v1710 = vand.u32 %v326, 4294901760
        %1711 = vmatmul.mubr.f32.gmra.mxu0 %v1710
        %v1712 = vpop.f32.mrf.mxu0
        %v1713 = vadd.f32 %v1512, %v1712
        %v1714 = vpop.f32.mrf.mxu0
        %1715 = vmatprep.mubr.f32.mxu0 0.0
        %v1716 = vand.u32 %v327, 4294901760
        %1717 = vmatmul.mubr.f32.gmra.mxu0 %v1716
        %v1718 = vpop.f32.mrf.mxu0
        %v1719 = vadd.f32 %v1518, %v1718
        %v1720 = vpop.f32.mrf.mxu0
        %1721 = vmatprep.mubr.f32.mxu0 0.0
        %v1722 = vand.u32 %v328, 4294901760
        %1723 = vmatmul.mubr.f32.gmra.mxu0 %v1722
        %v1724 = vpop.f32.mrf.mxu0
        %v1725 = vadd.f32 %v1524, %v1724
        %v1726 = vpop.f32.mrf.mxu0
        %1727 = vmatprep.mubr.f32.mxu0 0.0
        %v1728 = vand.u32 %v329, 4294901760
        %1729 = vmatmul.mubr.f32.gmra.mxu0 %v1728
        %v1730 = vpop.f32.mrf.mxu0
        %v1731 = vadd.f32 %v1530, %v1730
        %v1732 = vpop.f32.mrf.mxu0
        %1733 = vmatprep.mubr.f32.mxu0 0.0
        %v1734 = vand.u32 %v330, 4294901760
        %1735 = vmatmul.mubr.f32.gmra.mxu0 %v1734
        %v1736 = vpop.f32.mrf.mxu0
        %v1737 = vadd.f32 %v1536, %v1736
        %v1738 = vpop.f32.mrf.mxu0
        %1739 = vmatprep.mubr.f32.mxu0 0.0
        %v1740 = vand.u32 %v331, 4294901760
        %1741 = vmatmul.mubr.f32.gmra.mxu0 %v1740
        %v1742 = vpop.f32.mrf.mxu0
        %v1743 = vadd.f32 %v1542, %v1742
        %v1744 = vpop.f32.mrf.mxu0
        %1745 = vmatprep.mubr.f32.mxu0 0.0
        %v1746 = vand.u32 %v332, 4294901760
        %1747 = vmatmul.mubr.f32.gmra.mxu0 %v1746
        %v1748 = vpop.f32.mrf.mxu0
        %v1749 = vadd.f32 %v1548, %v1748
        %v1750 = vpop.f32.mrf.mxu0
        %1751 = vmatprep.mubr.f32.mxu0 0.0
        %v1752 = vand.u32 %v333, 4294901760
        %1753 = vmatmul.mubr.f32.gmra.mxu0 %v1752
        %v1754 = vpop.f32.mrf.mxu0
        %v1755 = vadd.f32 %v1554, %v1754
        %v1756 = vpop.f32.mrf.mxu0
        %1757 = vmatprep.mubr.f32.mxu0 0.0
        %v1758 = vand.u32 %v334, 4294901760
        %1759 = vmatmul.mubr.f32.gmra.mxu0 %v1758
        %v1760 = vpop.f32.mrf.mxu0
        %v1761 = vadd.f32 %v1560, %v1760
        %v1762 = vpop.f32.mrf.mxu0
        %1763 = vmatprep.mubr.f32.mxu0 0.0
        %v1764 = vand.u32 %v335, 4294901760
        %1765 = vmatmul.mubr.f32.gmra.mxu0 %v1764
        %v1766 = vpop.f32.mrf.mxu0
        %v1767 = vadd.f32 %v1566, %v1766
        %v1768 = vpop.f32.mrf.mxu0
        %1769 = vmatprep.mubr.f32.mxu0 0.0
        %v1770 = vand.u32 %v336, 4294901760
        %1771 = vmatmul.mubr.f32.gmra.mxu0 %v1770
        %v1772 = vpop.f32.mrf.mxu0
        %v1773 = vadd.f32 %v1572, %v1772
        %v1774 = vpop.f32.mrf.mxu0
        %1775 = vmatprep.mubr.f32.mxu0 0.0
        %v1776 = vand.u32 %v337, 4294901760
        %1777 = vmatmul.mubr.f32.gmra.mxu0 %v1776
        %v1778 = vpop.f32.mrf.mxu0
        %v1779 = vadd.f32 %v1578, %v1778
        %v1780 = vpop.f32.mrf.mxu0
        %1781 = vmatprep.mubr.f32.mxu0 0.0
        %v1782 = vand.u32 %v338, 4294901760
        %1783 = vmatmul.mubr.f32.gmra.mxu0 %v1782
        %v1784 = vpop.f32.mrf.mxu0
        %v1785 = vadd.f32 %v1584, %v1784
        %v1786 = vpop.f32.mrf.mxu0
        %1787 = vmatprep.mubr.f32.mxu0 0.0
        %v1788 = vand.u32 %v339, 4294901760
        %1789 = vmatmul.mubr.f32.gmra.mxu0 %v1788
        %v1790 = vpop.f32.mrf.mxu0
        %v1791 = vadd.f32 %v1590, %v1790
        %v1792 = vpop.f32.mrf.mxu0
        %1793 = vmatprep.mubr.f32.mxu0 0.0
        %v1794 = vand.u32 %v340, 4294901760
        %1795 = vmatmul.mubr.f32.gmra.mxu0 %v1794
        %v1796 = vpop.f32.mrf.mxu0
        %v1797 = vadd.f32 %v1596, %v1796
        %v1798 = vpop.f32.mrf.mxu0
        %1799 = vmatprep.mubr.f32.mxu0 0.0
        %v1800 = vand.u32 %v341, 4294901760
        %1801 = vmatmul.mubr.f32.gmra.mxu0 %v1800
        %v1802 = vpop.f32.mrf.mxu0
        %v1803 = vadd.f32 %v1602, %v1802
        %v1804 = vpop.f32.mrf.mxu0
        %1805 = vmatprep.mubr.f32.mxu0 0.0
        %v1806 = vand.u32 %v342, 4294901760
        %1807 = vmatmul.mubr.f32.gmra.mxu0 %v1806
        %v1808 = vpop.f32.mrf.mxu0
        %v1809 = vadd.f32 %v1608, %v1808
        %v1810 = vpop.f32.mrf.mxu0
        %1811 = vmatprep.mubr.f32.mxu0 0.0
        %v1812 = vand.u32 %v343, 4294901760
        %1813 = vmatmul.mubr.f32.gmra.mxu0 %v1812
        %v1814 = vpop.f32.mrf.mxu0
        %v1815 = vadd.f32 %v1614, %v1814
        %v1816 = vpop.f32.mrf.mxu0
        %1817 = vdwg.mxu0
        %v1818 = vld [vmem:[#allocation3] sm:$0xff]
        %v1819 = vld [vmem:[#allocation3 + $0x8] sm:$0xff]
        %v1820 = vlaneseq
        %v1821 = vshrl.u32 %v1820, 7
        %v1822 = vadd.s32 %v1821, 8
        %v1823 = vlaneseq
        %v1824 = vand.u32 %v1823, 127
        %vm1825 = vcmp.lt.s32.totalorder %v1821, 16
        %vm1826 = vcmp.lt.s32.totalorder %v1822, 16
        %vm1827 = vcmp.lt.s32.totalorder %v1824, 64
        %vm1828 = vmand %vm1825, %vm1827
        %vm1829 = vmand %vm1826, %vm1827
        %vm1830 = vcmp.ge.s32.totalorder %v1824, 16
        %v1831 = vsel %vm1830, 1, 0
        %vm1832 = vcmp.ge.s32.totalorder %v1824, 32
        %v1833 = vsel %vm1832, 1, 0
        %v1834 = vadd.s32 %v1831, %v1833
        %vm1835 = vcmp.ge.s32.totalorder %v1824, 48
        %v1836 = vsel %vm1835, 1, 0
        %v1837 = vadd.s32 %v1834, %v1836
        %vm1838 = vcmask 261120
        %v1840 = vsel %vm1838, %v1818, 0
        %v1843 = vsel %vm1838, %v1819, 0
        %1845 = vmatprep.subr.mxu0 0.0
        %1846 = vmatpush1.msra.mxu0 0.0
        %1847 = vmatprep.subr.mxu0 0.0
        %1848 = vmatpush1.msra.mxu0 0.0
        %1849 = vmatprep.subr.mxu0 0.0
        %1850 = vmatpush1.msra.mxu0 0.0
        %1851 = vmatprep.subr.mxu0 0.0
        %1852 = vmatpush1.msra.mxu0 0.0
        %1853 = vmatprep.subr.mxu0 0.0
        %1854 = vmatpush1.msra.mxu0 0.0
        %1855 = vmatprep.subr.mxu0 0.0
        %1856 = vmatpush1.msra.mxu0 0.0
        %1857 = vmatprep.subr.mxu0 0.0
        %1858 = vmatpush1.msra.mxu0 0.0
        %1859 = vmatprep.subr.mxu0 0.0
        %1860 = vmatpush1.msra.mxu0 0.0
        %1861 = vmatprep.subr.mxu0 0.0
        %1862 = vmatpush1.msra.mxu0 0.0
        %1863 = vmatprep.subr.mxu0 0.0
        %1864 = vmatpush1.msra.mxu0 0.0
        %1865 = vmatprep.subr.mxu0 0.0
        %1866 = vmatpush1.msra.mxu0 0.0
        %1867 = vmatprep.subr.mxu0 0.0
        %1868 = vmatpush1.msra.mxu0 0.0
        %1869 = vmatprep.subr.mxu0 0.0
        %v1870 = vand.u32 %v1719, 4294901760
        %1871 = vmatpush1.msra.mxu0 %v1870
        %1872 = vmatprep.subr.mxu0 0.0
        %v1873 = vand.u32 %v1713, 4294901760
        %1874 = vmatpush1.msra.mxu0 %v1873
        %1875 = vmatprep.subr.mxu0 0.0
        %v1876 = vand.u32 %v1707, 4294901760
        %1877 = vmatpush1.msra.mxu0 %v1876
        %1878 = vmatprep.subr.mxu0 0.0
        %v1879 = vand.u32 %v1701, 4294901760
        %1880 = vmatpush1.msra.mxu0 %v1879
        %1881 = vmatprep.subr.mxu0 0.0
        %1882 = vmatpush2.msra.mxu0 0.0
        %1883 = vmatprep.subr.mxu0 0.0
        %1884 = vmatpush2.msra.mxu0 0.0
        %1885 = vmatprep.subr.mxu0 0.0
        %1886 = vmatpush2.msra.mxu0 0.0
        %1887 = vmatprep.subr.mxu0 0.0
        %1888 = vmatpush2.msra.mxu0 0.0
        %1889 = vmatprep.subr.mxu0 0.0
        %1890 = vmatpush2.msra.mxu0 0.0
        %1891 = vmatprep.subr.mxu0 0.0
        %1892 = vmatpush2.msra.mxu0 0.0
        %1893 = vmatprep.subr.mxu0 0.0
        %1894 = vmatpush2.msra.mxu0 0.0
        %1895 = vmatprep.subr.mxu0 0.0
        %1896 = vmatpush2.msra.mxu0 0.0
        %1897 = vmatprep.subr.mxu0 0.0
        %1898 = vmatpush2.msra.mxu0 0.0
        %1899 = vmatprep.subr.mxu0 0.0
        %1900 = vmatpush2.msra.mxu0 0.0
        %1901 = vmatprep.subr.mxu0 0.0
        %1902 = vmatpush2.msra.mxu0 0.0
        %1903 = vmatprep.subr.mxu0 0.0
        %1904 = vmatpush2.msra.mxu0 0.0
        %1905 = vmatprep.subr.mxu0 0.0
        %1906 = vmatpush2.msra.mxu0 0.0
        %1907 = vmatprep.subr.mxu0 0.0
        %1908 = vmatpush2.msra.mxu0 0.0
        %1909 = vmatprep.subr.mxu0 0.0
        %1910 = vmatpush2.msra.mxu0 0.0
        %1911 = vmatprep.subr.mxu0 0.0
        %1912 = vmatpush2.msra.mxu0 0.0
        %1913 = vmatprep.mubr.f32.mxu0 0.0
        %v1914 = vand.u32 %v1840, 4294901760
        %v1915 = vsub.f32 %v1840, %v1914
        %v1916 = vand.u32 %v1915, 4294901760
        %v1917 = vsub.f32 %v1915, %v1916
        %v1918 = vand.u32 %v1917, 4294901760
        %1919 = vmatmul.mubr.f32.gmra.mxu0 %v1918
        %v1920 = vpop.f32.mrf.mxu0
        %v1921 = vadd.f32 0.0, %v1920
        %v1922 = vpop.f32.mrf.mxu0
        %1923 = vmatprep.mubr.f32.mxu0 0.0
        %v1924 = vand.u32 %v1843, 4294901760
        %v1925 = vsub.f32 %v1843, %v1924
        %v1926 = vand.u32 %v1925, 4294901760
        %v1927 = vsub.f32 %v1925, %v1926
        %v1928 = vand.u32 %v1927, 4294901760
        %1929 = vmatmul.mubr.f32.gmra.mxu0 %v1928
        %v1930 = vpop.f32.mrf.mxu0
        %v1931 = vadd.f32 0.0, %v1930
        %v1932 = vpop.f32.mrf.mxu0
        %1933 = vdwg.mxu0
        %1934 = vmatprep.subr.mxu0 0.0
        %1935 = vmatpush1.msra.mxu0 0.0
        %1936 = vmatprep.subr.mxu0 0.0
        %1937 = vmatpush1.msra.mxu0 0.0
        %1938 = vmatprep.subr.mxu0 0.0
        %1939 = vmatpush1.msra.mxu0 0.0
        %1940 = vmatprep.subr.mxu0 0.0
        %1941 = vmatpush1.msra.mxu0 0.0
        %1942 = vmatprep.subr.mxu0 0.0
        %1943 = vmatpush1.msra.mxu0 0.0
        %1944 = vmatprep.subr.mxu0 0.0
        %1945 = vmatpush1.msra.mxu0 0.0
        %1946 = vmatprep.subr.mxu0 0.0
        %1947 = vmatpush1.msra.mxu0 0.0
        %1948 = vmatprep.subr.mxu0 0.0
        %1949 = vmatpush1.msra.mxu0 0.0
        %1950 = vmatprep.subr.mxu0 0.0
        %1951 = vmatpush1.msra.mxu0 0.0
        %1952 = vmatprep.subr.mxu0 0.0
        %1953 = vmatpush1.msra.mxu0 0.0
        %1954 = vmatprep.subr.mxu0 0.0
        %1955 = vmatpush1.msra.mxu0 0.0
        %1956 = vmatprep.subr.mxu0 0.0
        %1957 = vmatpush1.msra.mxu0 0.0
        %1958 = vmatprep.subr.mxu0 0.0
        %v1959 = vand.u32 %v1719, 4294901760
        %v1960 = vsub.f32 %v1719, %v1959
        %v1961 = vand.u32 %v1960, 4294901760
        %v1962 = vsub.f32 %v1960, %v1961
        %v1963 = vand.u32 %v1962, 4294901760
        %1964 = vmatpush1.msra.mxu0 %v1963
        %1965 = vmatprep.subr.mxu0 0.0
        %v1966 = vand.u32 %v1713, 4294901760
        %v1967 = vsub.f32 %v1713, %v1966
        %v1968 = vand.u32 %v1967, 4294901760
        %v1969 = vsub.f32 %v1967, %v1968
        %v1970 = vand.u32 %v1969, 4294901760
        %1971 = vmatpush1.msra.mxu0 %v1970
        %1972 = vmatprep.subr.mxu0 0.0
        %v1973 = vand.u32 %v1707, 4294901760
        %v1974 = vsub.f32 %v1707, %v1973
        %v1975 = vand.u32 %v1974, 4294901760
        %v1976 = vsub.f32 %v1974, %v1975
        %v1977 = vand.u32 %v1976, 4294901760
        %1978 = vmatpush1.msra.mxu0 %v1977
        %1979 = vmatprep.subr.mxu0 0.0
        %v1980 = vand.u32 %v1701, 4294901760
        %v1981 = vsub.f32 %v1701, %v1980
        %v1982 = vand.u32 %v1981, 4294901760
        %v1983 = vsub.f32 %v1981, %v1982
        %v1984 = vand.u32 %v1983, 4294901760
        %1985 = vmatpush1.msra.mxu0 %v1984
        %1986 = vmatprep.subr.mxu0 0.0
        %1987 = vmatpush2.msra.mxu0 0.0
        %1988 = vmatprep.subr.mxu0 0.0
        %1989 = vmatpush2.msra.mxu0 0.0
        %1990 = vmatprep.subr.mxu0 0.0
        %1991 = vmatpush2.msra.mxu0 0.0
        %1992 = vmatprep.subr.mxu0 0.0
        %1993 = vmatpush2.msra.mxu0 0.0
        %1994 = vmatprep.subr.mxu0 0.0
        %1995 = vmatpush2.msra.mxu0 0.0
        %1996 = vmatprep.subr.mxu0 0.0
        %1997 = vmatpush2.msra.mxu0 0.0
        %1998 = vmatprep.subr.mxu0 0.0
        %1999 = vmatpush2.msra.mxu0 0.0
        %2000 = vmatprep.subr.mxu0 0.0
        %2001 = vmatpush2.msra.mxu0 0.0
        %2002 = vmatprep.subr.mxu0 0.0
        %2003 = vmatpush2.msra.mxu0 0.0
        %2004 = vmatprep.subr.mxu0 0.0
        %2005 = vmatpush2.msra.mxu0 0.0
        %2006 = vmatprep.subr.mxu0 0.0
        %2007 = vmatpush2.msra.mxu0 0.0
        %2008 = vmatprep.subr.mxu0 0.0
        %2009 = vmatpush2.msra.mxu0 0.0
        %2010 = vmatprep.subr.mxu0 0.0
        %2011 = vmatpush2.msra.mxu0 0.0
        %2012 = vmatprep.subr.mxu0 0.0
        %2013 = vmatpush2.msra.mxu0 0.0
        %2014 = vmatprep.subr.mxu0 0.0
        %2015 = vmatpush2.msra.mxu0 0.0
        %2016 = vmatprep.subr.mxu0 0.0
        %2017 = vmatpush2.msra.mxu0 0.0
        %2018 = vmatprep.mubr.f32.mxu0 0.0
        %v2019 = vand.u32 %v1840, 4294901760
        %2020 = vmatmul.mubr.f32.gmra.mxu0 %v2019
        %v2021 = vpop.f32.mrf.mxu0
        %v2022 = vadd.f32 %v1921, %v2021
        %v2023 = vpop.f32.mrf.mxu0
        %2024 = vmatprep.mubr.f32.mxu0 0.0
        %v2025 = vand.u32 %v1843, 4294901760
        %2026 = vmatmul.mubr.f32.gmra.mxu0 %v2025
        %v2027 = vpop.f32.mrf.mxu0
        %v2028 = vadd.f32 %v1931, %v2027
        %v2029 = vpop.f32.mrf.mxu0
        %2030 = vdwg.mxu0
        %2031 = vmatprep.subr.mxu0 0.0
        %2032 = vmatpush1.msra.mxu0 0.0
        %2033 = vmatprep.subr.mxu0 0.0
        %2034 = vmatpush1.msra.mxu0 0.0
        %2035 = vmatprep.subr.mxu0 0.0
        %2036 = vmatpush1.msra.mxu0 0.0
        %2037 = vmatprep.subr.mxu0 0.0
        %2038 = vmatpush1.msra.mxu0 0.0
        %2039 = vmatprep.subr.mxu0 0.0
        %2040 = vmatpush1.msra.mxu0 0.0
        %2041 = vmatprep.subr.mxu0 0.0
        %2042 = vmatpush1.msra.mxu0 0.0
        %2043 = vmatprep.subr.mxu0 0.0
        %2044 = vmatpush1.msra.mxu0 0.0
        %2045 = vmatprep.subr.mxu0 0.0
        %2046 = vmatpush1.msra.mxu0 0.0
        %2047 = vmatprep.subr.mxu0 0.0
        %2048 = vmatpush1.msra.mxu0 0.0
        %2049 = vmatprep.subr.mxu0 0.0
        %2050 = vmatpush1.msra.mxu0 0.0
        %2051 = vmatprep.subr.mxu0 0.0
        %2052 = vmatpush1.msra.mxu0 0.0
        %2053 = vmatprep.subr.mxu0 0.0
        %2054 = vmatpush1.msra.mxu0 0.0
        %2055 = vmatprep.subr.mxu0 0.0
        %v2056 = vand.u32 %v1719, 4294901760
        %v2057 = vsub.f32 %v1719, %v2056
        %2058 = vmatpush1.msra.mxu0 %v2057
        %2059 = vmatprep.subr.mxu0 0.0
        %v2060 = vand.u32 %v1713, 4294901760
        %v2061 = vsub.f32 %v1713, %v2060
        %2062 = vmatpush1.msra.mxu0 %v2061
        %2063 = vmatprep.subr.mxu0 0.0
        %v2064 = vand.u32 %v1707, 4294901760
        %v2065 = vsub.f32 %v1707, %v2064
        %2066 = vmatpush1.msra.mxu0 %v2065
        %2067 = vmatprep.subr.mxu0 0.0
        %v2068 = vand.u32 %v1701, 4294901760
        %v2069 = vsub.f32 %v1701, %v2068
        %2070 = vmatpush1.msra.mxu0 %v2069
        %2071 = vmatprep.subr.mxu0 0.0
        %2072 = vmatpush2.msra.mxu0 0.0
        %2073 = vmatprep.subr.mxu0 0.0
        %2074 = vmatpush2.msra.mxu0 0.0
        %2075 = vmatprep.subr.mxu0 0.0
        %2076 = vmatpush2.msra.mxu0 0.0
        %2077 = vmatprep.subr.mxu0 0.0
        %2078 = vmatpush2.msra.mxu0 0.0
        %2079 = vmatprep.subr.mxu0 0.0
        %2080 = vmatpush2.msra.mxu0 0.0
        %2081 = vmatprep.subr.mxu0 0.0
        %2082 = vmatpush2.msra.mxu0 0.0
        %2083 = vmatprep.subr.mxu0 0.0
        %2084 = vmatpush2.msra.mxu0 0.0
        %2085 = vmatprep.subr.mxu0 0.0
        %2086 = vmatpush2.msra.mxu0 0.0
        %2087 = vmatprep.subr.mxu0 0.0
        %2088 = vmatpush2.msra.mxu0 0.0
        %2089 = vmatprep.subr.mxu0 0.0
        %2090 = vmatpush2.msra.mxu0 0.0
        %2091 = vmatprep.subr.mxu0 0.0
        %2092 = vmatpush2.msra.mxu0 0.0
        %2093 = vmatprep.subr.mxu0 0.0
        %2094 = vmatpush2.msra.mxu0 0.0
        %2095 = vmatprep.subr.mxu0 0.0
        %2096 = vmatpush2.msra.mxu0 0.0
        %2097 = vmatprep.subr.mxu0 0.0
        %2098 = vmatpush2.msra.mxu0 0.0
        %2099 = vmatprep.subr.mxu0 0.0
        %2100 = vmatpush2.msra.mxu0 0.0
        %2101 = vmatprep.subr.mxu0 0.0
        %2102 = vmatpush2.msra.mxu0 0.0
        %2103 = vmatprep.mubr.f32.mxu0 0.0
        %v2104 = vand.u32 %v1840, 4294901760
        %v2105 = vsub.f32 %v1840, %v2104
        %2106 = vmatmul.mubr.f32.gmra.mxu0 %v2105
        %v2107 = vpop.f32.mrf.mxu0
        %v2108 = vadd.f32 %v2022, %v2107
        %v2109 = vpop.f32.mrf.mxu0
        %2110 = vmatprep.mubr.f32.mxu0 0.0
        %v2111 = vand.u32 %v1843, 4294901760
        %v2112 = vsub.f32 %v1843, %v2111
        %2113 = vmatmul.mubr.f32.gmra.mxu0 %v2112
        %v2114 = vpop.f32.mrf.mxu0
        %v2115 = vadd.f32 %v2028, %v2114
        %v2116 = vpop.f32.mrf.mxu0
        %2117 = vdwg.mxu0
        %2118 = vmatprep.subr.mxu0 0.0
        %2119 = vmatpush1.msra.mxu0 0.0
        %2120 = vmatprep.subr.mxu0 0.0
        %2121 = vmatpush1.msra.mxu0 0.0
        %2122 = vmatprep.subr.mxu0 0.0
        %2123 = vmatpush1.msra.mxu0 0.0
        %2124 = vmatprep.subr.mxu0 0.0
        %2125 = vmatpush1.msra.mxu0 0.0
        %2126 = vmatprep.subr.mxu0 0.0
        %2127 = vmatpush1.msra.mxu0 0.0
        %2128 = vmatprep.subr.mxu0 0.0
        %2129 = vmatpush1.msra.mxu0 0.0
        %2130 = vmatprep.subr.mxu0 0.0
        %2131 = vmatpush1.msra.mxu0 0.0
        %2132 = vmatprep.subr.mxu0 0.0
        %2133 = vmatpush1.msra.mxu0 0.0
        %2134 = vmatprep.subr.mxu0 0.0
        %2135 = vmatpush1.msra.mxu0 0.0
        %2136 = vmatprep.subr.mxu0 0.0
        %2137 = vmatpush1.msra.mxu0 0.0
        %2138 = vmatprep.subr.mxu0 0.0
        %2139 = vmatpush1.msra.mxu0 0.0
        %2140 = vmatprep.subr.mxu0 0.0
        %2141 = vmatpush1.msra.mxu0 0.0
        %2142 = vmatprep.subr.mxu0 0.0
        %v2143 = vand.u32 %v1719, 4294901760
        %2144 = vmatpush1.msra.mxu0 %v2143
        %2145 = vmatprep.subr.mxu0 0.0
        %v2146 = vand.u32 %v1713, 4294901760
        %2147 = vmatpush1.msra.mxu0 %v2146
        %2148 = vmatprep.subr.mxu0 0.0
        %v2149 = vand.u32 %v1707, 4294901760
        %2150 = vmatpush1.msra.mxu0 %v2149
        %2151 = vmatprep.subr.mxu0 0.0
        %v2152 = vand.u32 %v1701, 4294901760
        %2153 = vmatpush1.msra.mxu0 %v2152
        %2154 = vmatprep.subr.mxu0 0.0
        %2155 = vmatpush2.msra.mxu0 0.0
        %2156 = vmatprep.subr.mxu0 0.0
        %2157 = vmatpush2.msra.mxu0 0.0
        %2158 = vmatprep.subr.mxu0 0.0
        %2159 = vmatpush2.msra.mxu0 0.0
        %2160 = vmatprep.subr.mxu0 0.0
        %2161 = vmatpush2.msra.mxu0 0.0
        %2162 = vmatprep.subr.mxu0 0.0
        %2163 = vmatpush2.msra.mxu0 0.0
        %2164 = vmatprep.subr.mxu0 0.0
        %2165 = vmatpush2.msra.mxu0 0.0
        %2166 = vmatprep.subr.mxu0 0.0
        %2167 = vmatpush2.msra.mxu0 0.0
        %2168 = vmatprep.subr.mxu0 0.0
        %2169 = vmatpush2.msra.mxu0 0.0
        %2170 = vmatprep.subr.mxu0 0.0
        %2171 = vmatpush2.msra.mxu0 0.0
        %2172 = vmatprep.subr.mxu0 0.0
        %2173 = vmatpush2.msra.mxu0 0.0
        %2174 = vmatprep.subr.mxu0 0.0
        %2175 = vmatpush2.msra.mxu0 0.0
        %2176 = vmatprep.subr.mxu0 0.0
        %2177 = vmatpush2.msra.mxu0 0.0
        %2178 = vmatprep.subr.mxu0 0.0
        %2179 = vmatpush2.msra.mxu0 0.0
        %2180 = vmatprep.subr.mxu0 0.0
        %2181 = vmatpush2.msra.mxu0 0.0
        %2182 = vmatprep.subr.mxu0 0.0
        %2183 = vmatpush2.msra.mxu0 0.0
        %2184 = vmatprep.subr.mxu0 0.0
        %2185 = vmatpush2.msra.mxu0 0.0
        %2186 = vmatprep.mubr.f32.mxu0 0.0
        %v2187 = vand.u32 %v1840, 4294901760
        %v2188 = vsub.f32 %v1840, %v2187
        %v2189 = vand.u32 %v2188, 4294901760
        %2190 = vmatmul.mubr.f32.gmra.mxu0 %v2189
        %v2191 = vpop.f32.mrf.mxu0
        %v2192 = vadd.f32 %v2108, %v2191
        %v2193 = vpop.f32.mrf.mxu0
        %2194 = vmatprep.mubr.f32.mxu0 0.0
        %v2195 = vand.u32 %v1843, 4294901760
        %v2196 = vsub.f32 %v1843, %v2195
        %v2197 = vand.u32 %v2196, 4294901760
        %2198 = vmatmul.mubr.f32.gmra.mxu0 %v2197
        %v2199 = vpop.f32.mrf.mxu0
        %v2200 = vadd.f32 %v2115, %v2199
        %v2201 = vpop.f32.mrf.mxu0
        %2202 = vdwg.mxu0
        %2203 = vmatprep.subr.mxu0 0.0
        %2204 = vmatpush1.msra.mxu0 0.0
        %2205 = vmatprep.subr.mxu0 0.0
        %2206 = vmatpush1.msra.mxu0 0.0
        %2207 = vmatprep.subr.mxu0 0.0
        %2208 = vmatpush1.msra.mxu0 0.0
        %2209 = vmatprep.subr.mxu0 0.0
        %2210 = vmatpush1.msra.mxu0 0.0
        %2211 = vmatprep.subr.mxu0 0.0
        %2212 = vmatpush1.msra.mxu0 0.0
        %2213 = vmatprep.subr.mxu0 0.0
        %2214 = vmatpush1.msra.mxu0 0.0
        %2215 = vmatprep.subr.mxu0 0.0
        %2216 = vmatpush1.msra.mxu0 0.0
        %2217 = vmatprep.subr.mxu0 0.0
        %2218 = vmatpush1.msra.mxu0 0.0
        %2219 = vmatprep.subr.mxu0 0.0
        %2220 = vmatpush1.msra.mxu0 0.0
        %2221 = vmatprep.subr.mxu0 0.0
        %2222 = vmatpush1.msra.mxu0 0.0
        %2223 = vmatprep.subr.mxu0 0.0
        %2224 = vmatpush1.msra.mxu0 0.0
        %2225 = vmatprep.subr.mxu0 0.0
        %2226 = vmatpush1.msra.mxu0 0.0
        %2227 = vmatprep.subr.mxu0 0.0
        %v2228 = vand.u32 %v1719, 4294901760
        %v2229 = vsub.f32 %v1719, %v2228
        %v2230 = vand.u32 %v2229, 4294901760
        %2231 = vmatpush1.msra.mxu0 %v2230
        %2232 = vmatprep.subr.mxu0 0.0
        %v2233 = vand.u32 %v1713, 4294901760
        %v2234 = vsub.f32 %v1713, %v2233
        %v2235 = vand.u32 %v2234, 4294901760
        %2236 = vmatpush1.msra.mxu0 %v2235
        %2237 = vmatprep.subr.mxu0 0.0
        %v2238 = vand.u32 %v1707, 4294901760
        %v2239 = vsub.f32 %v1707, %v2238
        %v2240 = vand.u32 %v2239, 4294901760
        %2241 = vmatpush1.msra.mxu0 %v2240
        %2242 = vmatprep.subr.mxu0 0.0
        %v2243 = vand.u32 %v1701, 4294901760
        %v2244 = vsub.f32 %v1701, %v2243
        %v2245 = vand.u32 %v2244, 4294901760
        %2246 = vmatpush1.msra.mxu0 %v2245
        %2247 = vmatprep.subr.mxu0 0.0
        %2248 = vmatpush2.msra.mxu0 0.0
        %2249 = vmatprep.subr.mxu0 0.0
        %2250 = vmatpush2.msra.mxu0 0.0
        %2251 = vmatprep.subr.mxu0 0.0
        %2252 = vmatpush2.msra.mxu0 0.0
        %2253 = vmatprep.subr.mxu0 0.0
        %2254 = vmatpush2.msra.mxu0 0.0
        %2255 = vmatprep.subr.mxu0 0.0
        %2256 = vmatpush2.msra.mxu0 0.0
        %2257 = vmatprep.subr.mxu0 0.0
        %2258 = vmatpush2.msra.mxu0 0.0
        %2259 = vmatprep.subr.mxu0 0.0
        %2260 = vmatpush2.msra.mxu0 0.0
        %2261 = vmatprep.subr.mxu0 0.0
        %2262 = vmatpush2.msra.mxu0 0.0
        %2263 = vmatprep.subr.mxu0 0.0
        %2264 = vmatpush2.msra.mxu0 0.0
        %2265 = vmatprep.subr.mxu0 0.0
        %2266 = vmatpush2.msra.mxu0 0.0
        %2267 = vmatprep.subr.mxu0 0.0
        %2268 = vmatpush2.msra.mxu0 0.0
        %2269 = vmatprep.subr.mxu0 0.0
        %2270 = vmatpush2.msra.mxu0 0.0
        %2271 = vmatprep.subr.mxu0 0.0
        %2272 = vmatpush2.msra.mxu0 0.0
        %2273 = vmatprep.subr.mxu0 0.0
        %2274 = vmatpush2.msra.mxu0 0.0
        %2275 = vmatprep.subr.mxu0 0.0
        %2276 = vmatpush2.msra.mxu0 0.0
        %2277 = vmatprep.subr.mxu0 0.0
        %2278 = vmatpush2.msra.mxu0 0.0
        %2279 = vmatprep.mubr.f32.mxu0 0.0
        %v2280 = vand.u32 %v1840, 4294901760
        %2281 = vmatmul.mubr.f32.gmra.mxu0 %v2280
        %v2282 = vpop.f32.mrf.mxu0
        %v2283 = vadd.f32 %v2192, %v2282
        %v2284 = vpop.f32.mrf.mxu0
        %2285 = vmatprep.mubr.f32.mxu0 0.0
        %v2286 = vand.u32 %v1843, 4294901760
        %2287 = vmatmul.mubr.f32.gmra.mxu0 %v2286
        %v2288 = vpop.f32.mrf.mxu0
        %v2289 = vadd.f32 %v2200, %v2288
        %v2290 = vpop.f32.mrf.mxu0
        %2291 = vdwg.mxu0
        %2292 = vmatprep.subr.mxu0 0.0
        %2293 = vmatpush1.msra.mxu0 0.0
        %2294 = vmatprep.subr.mxu0 0.0
        %2295 = vmatpush1.msra.mxu0 0.0
        %2296 = vmatprep.subr.mxu0 0.0
        %2297 = vmatpush1.msra.mxu0 0.0
        %2298 = vmatprep.subr.mxu0 0.0
        %2299 = vmatpush1.msra.mxu0 0.0
        %2300 = vmatprep.subr.mxu0 0.0
        %2301 = vmatpush1.msra.mxu0 0.0
        %2302 = vmatprep.subr.mxu0 0.0
        %2303 = vmatpush1.msra.mxu0 0.0
        %2304 = vmatprep.subr.mxu0 0.0
        %2305 = vmatpush1.msra.mxu0 0.0
        %2306 = vmatprep.subr.mxu0 0.0
        %2307 = vmatpush1.msra.mxu0 0.0
        %2308 = vmatprep.subr.mxu0 0.0
        %2309 = vmatpush1.msra.mxu0 0.0
        %2310 = vmatprep.subr.mxu0 0.0
        %2311 = vmatpush1.msra.mxu0 0.0
        %2312 = vmatprep.subr.mxu0 0.0
        %2313 = vmatpush1.msra.mxu0 0.0
        %2314 = vmatprep.subr.mxu0 0.0
        %2315 = vmatpush1.msra.mxu0 0.0
        %2316 = vmatprep.subr.mxu0 0.0
        %v2317 = vand.u32 %v1719, 4294901760
        %2318 = vmatpush1.msra.mxu0 %v2317
        %2319 = vmatprep.subr.mxu0 0.0
        %v2320 = vand.u32 %v1713, 4294901760
        %2321 = vmatpush1.msra.mxu0 %v2320
        %2322 = vmatprep.subr.mxu0 0.0
        %v2323 = vand.u32 %v1707, 4294901760
        %2324 = vmatpush1.msra.mxu0 %v2323
        %2325 = vmatprep.subr.mxu0 0.0
        %v2326 = vand.u32 %v1701, 4294901760
        %2327 = vmatpush1.msra.mxu0 %v2326
        %2328 = vmatprep.subr.mxu0 0.0
        %2329 = vmatpush2.msra.mxu0 0.0
        %2330 = vmatprep.subr.mxu0 0.0
        %2331 = vmatpush2.msra.mxu0 0.0
        %2332 = vmatprep.subr.mxu0 0.0
        %2333 = vmatpush2.msra.mxu0 0.0
        %2334 = vmatprep.subr.mxu0 0.0
        %2335 = vmatpush2.msra.mxu0 0.0
        %2336 = vmatprep.subr.mxu0 0.0
        %2337 = vmatpush2.msra.mxu0 0.0
        %2338 = vmatprep.subr.mxu0 0.0
        %2339 = vmatpush2.msra.mxu0 0.0
        %2340 = vmatprep.subr.mxu0 0.0
        %2341 = vmatpush2.msra.mxu0 0.0
        %2342 = vmatprep.subr.mxu0 0.0
        %2343 = vmatpush2.msra.mxu0 0.0
        %2344 = vmatprep.subr.mxu0 0.0
        %2345 = vmatpush2.msra.mxu0 0.0
        %2346 = vmatprep.subr.mxu0 0.0
        %2347 = vmatpush2.msra.mxu0 0.0
        %2348 = vmatprep.subr.mxu0 0.0
        %2349 = vmatpush2.msra.mxu0 0.0
        %2350 = vmatprep.subr.mxu0 0.0
        %2351 = vmatpush2.msra.mxu0 0.0
        %2352 = vmatprep.subr.mxu0 0.0
        %2353 = vmatpush2.msra.mxu0 0.0
        %2354 = vmatprep.subr.mxu0 0.0
        %2355 = vmatpush2.msra.mxu0 0.0
        %2356 = vmatprep.subr.mxu0 0.0
        %2357 = vmatpush2.msra.mxu0 0.0
        %2358 = vmatprep.subr.mxu0 0.0
        %2359 = vmatpush2.msra.mxu0 0.0
        %2360 = vmatprep.mubr.f32.mxu0 0.0
        %v2361 = vand.u32 %v1840, 4294901760
        %2362 = vmatmul.mubr.f32.gmra.mxu0 %v2361
        %v2363 = vpop.f32.mrf.mxu0
        %v2364 = vadd.f32 %v2283, %v2363
        %v2365 = vpop.f32.mrf.mxu0
        %2366 = vmatprep.mubr.f32.mxu0 0.0
        %v2367 = vand.u32 %v1843, 4294901760
        %2368 = vmatmul.mubr.f32.gmra.mxu0 %v2367
        %v2369 = vpop.f32.mrf.mxu0
        %v2370 = vadd.f32 %v2289, %v2369
        %v2371 = vpop.f32.mrf.mxu0
        %2372 = vdwg.mxu0
        %2373 = vmatprep.subr.mxu0 0.0
        %2374 = vmatpush1.msra.mxu0 0.0
        %2375 = vmatprep.subr.mxu0 0.0
        %2376 = vmatpush1.msra.mxu0 0.0
        %2377 = vmatprep.subr.mxu0 0.0
        %2378 = vmatpush1.msra.mxu0 0.0
        %2379 = vmatprep.subr.mxu0 0.0
        %2380 = vmatpush1.msra.mxu0 0.0
        %2381 = vmatprep.subr.mxu0 0.0
        %2382 = vmatpush1.msra.mxu0 0.0
        %2383 = vmatprep.subr.mxu0 0.0
        %2384 = vmatpush1.msra.mxu0 0.0
        %2385 = vmatprep.subr.mxu0 0.0
        %2386 = vmatpush1.msra.mxu0 0.0
        %2387 = vmatprep.subr.mxu0 0.0
        %2388 = vmatpush1.msra.mxu0 0.0
        %2389 = vmatprep.subr.mxu0 0.0
        %2390 = vmatpush1.msra.mxu0 0.0
        %2391 = vmatprep.subr.mxu0 0.0
        %2392 = vmatpush1.msra.mxu0 0.0
        %2393 = vmatprep.subr.mxu0 0.0
        %2394 = vmatpush1.msra.mxu0 0.0
        %2395 = vmatprep.subr.mxu0 0.0
        %2396 = vmatpush1.msra.mxu0 0.0
        %2397 = vmatprep.subr.mxu0 0.0
        %v2398 = vand.u32 %v1743, 4294901760
        %2399 = vmatpush1.msra.mxu0 %v2398
        %2400 = vmatprep.subr.mxu0 0.0
        %v2401 = vand.u32 %v1737, 4294901760
        %2402 = vmatpush1.msra.mxu0 %v2401
        %2403 = vmatprep.subr.mxu0 0.0
        %v2404 = vand.u32 %v1731, 4294901760
        %2405 = vmatpush1.msra.mxu0 %v2404
        %2406 = vmatprep.subr.mxu0 0.0
        %v2407 = vand.u32 %v1725, 4294901760
        %2408 = vmatpush1.msra.mxu0 %v2407
        %2409 = vmatprep.subr.mxu0 0.0
        %2410 = vmatpush2.msra.mxu0 0.0
        %2411 = vmatprep.subr.mxu0 0.0
        %2412 = vmatpush2.msra.mxu0 0.0
        %2413 = vmatprep.subr.mxu0 0.0
        %2414 = vmatpush2.msra.mxu0 0.0
        %2415 = vmatprep.subr.mxu0 0.0
        %2416 = vmatpush2.msra.mxu0 0.0
        %2417 = vmatprep.subr.mxu0 0.0
        %2418 = vmatpush2.msra.mxu0 0.0
        %2419 = vmatprep.subr.mxu0 0.0
        %2420 = vmatpush2.msra.mxu0 0.0
        %2421 = vmatprep.subr.mxu0 0.0
        %2422 = vmatpush2.msra.mxu0 0.0
        %2423 = vmatprep.subr.mxu0 0.0
        %2424 = vmatpush2.msra.mxu0 0.0
        %2425 = vmatprep.subr.mxu0 0.0
        %2426 = vmatpush2.msra.mxu0 0.0
        %2427 = vmatprep.subr.mxu0 0.0
        %2428 = vmatpush2.msra.mxu0 0.0
        %2429 = vmatprep.subr.mxu0 0.0
        %2430 = vmatpush2.msra.mxu0 0.0
        %2431 = vmatprep.subr.mxu0 0.0
        %2432 = vmatpush2.msra.mxu0 0.0
        %2433 = vmatprep.subr.mxu0 0.0
        %2434 = vmatpush2.msra.mxu0 0.0
        %2435 = vmatprep.subr.mxu0 0.0
        %2436 = vmatpush2.msra.mxu0 0.0
        %2437 = vmatprep.subr.mxu0 0.0
        %2438 = vmatpush2.msra.mxu0 0.0
        %2439 = vmatprep.subr.mxu0 0.0
        %2440 = vmatpush2.msra.mxu0 0.0
        %2441 = vmatprep.mubr.f32.mxu0 0.0
        %v2442 = vand.u32 %v1840, 4294901760
        %v2443 = vsub.f32 %v1840, %v2442
        %v2444 = vand.u32 %v2443, 4294901760
        %v2445 = vsub.f32 %v2443, %v2444
        %v2446 = vand.u32 %v2445, 4294901760
        %2447 = vmatmul.mubr.f32.gmra.mxu0 %v2446
        %v2448 = vpop.f32.mrf.mxu0
        %v2449 = vadd.f32 0.0, %v2448
        %v2450 = vpop.f32.mrf.mxu0
        %2451 = vmatprep.mubr.f32.mxu0 0.0
        %v2452 = vand.u32 %v1843, 4294901760
        %v2453 = vsub.f32 %v1843, %v2452
        %v2454 = vand.u32 %v2453, 4294901760
        %v2455 = vsub.f32 %v2453, %v2454
        %v2456 = vand.u32 %v2455, 4294901760
        %2457 = vmatmul.mubr.f32.gmra.mxu0 %v2456
        %v2458 = vpop.f32.mrf.mxu0
        %v2459 = vadd.f32 0.0, %v2458
        %v2460 = vpop.f32.mrf.mxu0
        %2461 = vdwg.mxu0
        %2462 = vmatprep.subr.mxu0 0.0
        %2463 = vmatpush1.msra.mxu0 0.0
        %2464 = vmatprep.subr.mxu0 0.0
        %2465 = vmatpush1.msra.mxu0 0.0
        %2466 = vmatprep.subr.mxu0 0.0
        %2467 = vmatpush1.msra.mxu0 0.0
        %2468 = vmatprep.subr.mxu0 0.0
        %2469 = vmatpush1.msra.mxu0 0.0
        %2470 = vmatprep.subr.mxu0 0.0
        %2471 = vmatpush1.msra.mxu0 0.0
        %2472 = vmatprep.subr.mxu0 0.0
        %2473 = vmatpush1.msra.mxu0 0.0
        %2474 = vmatprep.subr.mxu0 0.0
        %2475 = vmatpush1.msra.mxu0 0.0
        %2476 = vmatprep.subr.mxu0 0.0
        %2477 = vmatpush1.msra.mxu0 0.0
        %2478 = vmatprep.subr.mxu0 0.0
        %2479 = vmatpush1.msra.mxu0 0.0
        %2480 = vmatprep.subr.mxu0 0.0
        %2481 = vmatpush1.msra.mxu0 0.0
        %2482 = vmatprep.subr.mxu0 0.0
        %2483 = vmatpush1.msra.mxu0 0.0
        %2484 = vmatprep.subr.mxu0 0.0
        %2485 = vmatpush1.msra.mxu0 0.0
        %2486 = vmatprep.subr.mxu0 0.0
        %v2487 = vand.u32 %v1743, 4294901760
        %v2488 = vsub.f32 %v1743, %v2487
        %v2489 = vand.u32 %v2488, 4294901760
        %v2490 = vsub.f32 %v2488, %v2489
        %v2491 = vand.u32 %v2490, 4294901760
        %2492 = vmatpush1.msra.mxu0 %v2491
        %2493 = vmatprep.subr.mxu0 0.0
        %v2494 = vand.u32 %v1737, 4294901760
        %v2495 = vsub.f32 %v1737, %v2494
        %v2496 = vand.u32 %v2495, 4294901760
        %v2497 = vsub.f32 %v2495, %v2496
        %v2498 = vand.u32 %v2497, 4294901760
        %2499 = vmatpush1.msra.mxu0 %v2498
        %2500 = vmatprep.subr.mxu0 0.0
        %v2501 = vand.u32 %v1731, 4294901760
        %v2502 = vsub.f32 %v1731, %v2501
        %v2503 = vand.u32 %v2502, 4294901760
        %v2504 = vsub.f32 %v2502, %v2503
        %v2505 = vand.u32 %v2504, 4294901760
        %2506 = vmatpush1.msra.mxu0 %v2505
        %2507 = vmatprep.subr.mxu0 0.0
        %v2508 = vand.u32 %v1725, 4294901760
        %v2509 = vsub.f32 %v1725, %v2508
        %v2510 = vand.u32 %v2509, 4294901760
        %v2511 = vsub.f32 %v2509, %v2510
        %v2512 = vand.u32 %v2511, 4294901760
        %2513 = vmatpush1.msra.mxu0 %v2512
        %2514 = vmatprep.subr.mxu0 0.0
        %2515 = vmatpush2.msra.mxu0 0.0
        %2516 = vmatprep.subr.mxu0 0.0
        %2517 = vmatpush2.msra.mxu0 0.0
        %2518 = vmatprep.subr.mxu0 0.0
        %2519 = vmatpush2.msra.mxu0 0.0
        %2520 = vmatprep.subr.mxu0 0.0
        %2521 = vmatpush2.msra.mxu0 0.0
        %2522 = vmatprep.subr.mxu0 0.0
        %2523 = vmatpush2.msra.mxu0 0.0
        %2524 = vmatprep.subr.mxu0 0.0
        %2525 = vmatpush2.msra.mxu0 0.0
        %2526 = vmatprep.subr.mxu0 0.0
        %2527 = vmatpush2.msra.mxu0 0.0
        %2528 = vmatprep.subr.mxu0 0.0
        %2529 = vmatpush2.msra.mxu0 0.0
        %2530 = vmatprep.subr.mxu0 0.0
        %2531 = vmatpush2.msra.mxu0 0.0
        %2532 = vmatprep.subr.mxu0 0.0
        %2533 = vmatpush2.msra.mxu0 0.0
        %2534 = vmatprep.subr.mxu0 0.0
        %2535 = vmatpush2.msra.mxu0 0.0
        %2536 = vmatprep.subr.mxu0 0.0
        %2537 = vmatpush2.msra.mxu0 0.0
        %2538 = vmatprep.subr.mxu0 0.0
        %2539 = vmatpush2.msra.mxu0 0.0
        %2540 = vmatprep.subr.mxu0 0.0
        %2541 = vmatpush2.msra.mxu0 0.0
        %2542 = vmatprep.subr.mxu0 0.0
        %2543 = vmatpush2.msra.mxu0 0.0
        %2544 = vmatprep.subr.mxu0 0.0
        %2545 = vmatpush2.msra.mxu0 0.0
        %2546 = vmatprep.mubr.f32.mxu0 0.0
        %v2547 = vand.u32 %v1840, 4294901760
        %2548 = vmatmul.mubr.f32.gmra.mxu0 %v2547
        %v2549 = vpop.f32.mrf.mxu0
        %v2550 = vadd.f32 %v2449, %v2549
        %v2551 = vpop.f32.mrf.mxu0
        %2552 = vmatprep.mubr.f32.mxu0 0.0
        %v2553 = vand.u32 %v1843, 4294901760
        %2554 = vmatmul.mubr.f32.gmra.mxu0 %v2553
        %v2555 = vpop.f32.mrf.mxu0
        %v2556 = vadd.f32 %v2459, %v2555
        %v2557 = vpop.f32.mrf.mxu0
        %2558 = vdwg.mxu0
        %2559 = vmatprep.subr.mxu0 0.0
        %2560 = vmatpush1.msra.mxu0 0.0
        %2561 = vmatprep.subr.mxu0 0.0
        %2562 = vmatpush1.msra.mxu0 0.0
        %2563 = vmatprep.subr.mxu0 0.0
        %2564 = vmatpush1.msra.mxu0 0.0
        %2565 = vmatprep.subr.mxu0 0.0
        %2566 = vmatpush1.msra.mxu0 0.0
        %2567 = vmatprep.subr.mxu0 0.0
        %2568 = vmatpush1.msra.mxu0 0.0
        %2569 = vmatprep.subr.mxu0 0.0
        %2570 = vmatpush1.msra.mxu0 0.0
        %2571 = vmatprep.subr.mxu0 0.0
        %2572 = vmatpush1.msra.mxu0 0.0
        %2573 = vmatprep.subr.mxu0 0.0
        %2574 = vmatpush1.msra.mxu0 0.0
        %2575 = vmatprep.subr.mxu0 0.0
        %2576 = vmatpush1.msra.mxu0 0.0
        %2577 = vmatprep.subr.mxu0 0.0
        %2578 = vmatpush1.msra.mxu0 0.0
        %2579 = vmatprep.subr.mxu0 0.0
        %2580 = vmatpush1.msra.mxu0 0.0
        %2581 = vmatprep.subr.mxu0 0.0
        %2582 = vmatpush1.msra.mxu0 0.0
        %2583 = vmatprep.subr.mxu0 0.0
        %v2584 = vand.u32 %v1743, 4294901760
        %v2585 = vsub.f32 %v1743, %v2584
        %2586 = vmatpush1.msra.mxu0 %v2585
        %2587 = vmatprep.subr.mxu0 0.0
        %v2588 = vand.u32 %v1737, 4294901760
        %v2589 = vsub.f32 %v1737, %v2588
        %2590 = vmatpush1.msra.mxu0 %v2589
        %2591 = vmatprep.subr.mxu0 0.0
        %v2592 = vand.u32 %v1731, 4294901760
        %v2593 = vsub.f32 %v1731, %v2592
        %2594 = vmatpush1.msra.mxu0 %v2593
        %2595 = vmatprep.subr.mxu0 0.0
        %v2596 = vand.u32 %v1725, 4294901760
        %v2597 = vsub.f32 %v1725, %v2596
        %2598 = vmatpush1.msra.mxu0 %v2597
        %2599 = vmatprep.subr.mxu0 0.0
        %2600 = vmatpush2.msra.mxu0 0.0
        %2601 = vmatprep.subr.mxu0 0.0
        %2602 = vmatpush2.msra.mxu0 0.0
        %2603 = vmatprep.subr.mxu0 0.0
        %2604 = vmatpush2.msra.mxu0 0.0
        %2605 = vmatprep.subr.mxu0 0.0
        %2606 = vmatpush2.msra.mxu0 0.0
        %2607 = vmatprep.subr.mxu0 0.0
        %2608 = vmatpush2.msra.mxu0 0.0
        %2609 = vmatprep.subr.mxu0 0.0
        %2610 = vmatpush2.msra.mxu0 0.0
        %2611 = vmatprep.subr.mxu0 0.0
        %2612 = vmatpush2.msra.mxu0 0.0
        %2613 = vmatprep.subr.mxu0 0.0
        %2614 = vmatpush2.msra.mxu0 0.0
        %2615 = vmatprep.subr.mxu0 0.0
        %2616 = vmatpush2.msra.mxu0 0.0
        %2617 = vmatprep.subr.mxu0 0.0
        %2618 = vmatpush2.msra.mxu0 0.0
        %2619 = vmatprep.subr.mxu0 0.0
        %2620 = vmatpush2.msra.mxu0 0.0
        %2621 = vmatprep.subr.mxu0 0.0
        %2622 = vmatpush2.msra.mxu0 0.0
        %2623 = vmatprep.subr.mxu0 0.0
        %2624 = vmatpush2.msra.mxu0 0.0
        %2625 = vmatprep.subr.mxu0 0.0
        %2626 = vmatpush2.msra.mxu0 0.0
        %2627 = vmatprep.subr.mxu0 0.0
        %2628 = vmatpush2.msra.mxu0 0.0
        %2629 = vmatprep.subr.mxu0 0.0
        %2630 = vmatpush2.msra.mxu0 0.0
        %2631 = vmatprep.mubr.f32.mxu0 0.0
        %v2632 = vand.u32 %v1840, 4294901760
        %v2633 = vsub.f32 %v1840, %v2632
        %2634 = vmatmul.mubr.f32.gmra.mxu0 %v2633
        %v2635 = vpop.f32.mrf.mxu0
        %v2636 = vadd.f32 %v2550, %v2635
        %v2637 = vpop.f32.mrf.mxu0
        %2638 = vmatprep.mubr.f32.mxu0 0.0
        %v2639 = vand.u32 %v1843, 4294901760
        %v2640 = vsub.f32 %v1843, %v2639
        %2641 = vmatmul.mubr.f32.gmra.mxu0 %v2640
        %v2642 = vpop.f32.mrf.mxu0
        %v2643 = vadd.f32 %v2556, %v2642
        %v2644 = vpop.f32.mrf.mxu0
        %2645 = vdwg.mxu0
        %2646 = vmatprep.subr.mxu0 0.0
        %2647 = vmatpush1.msra.mxu0 0.0
        %2648 = vmatprep.subr.mxu0 0.0
        %2649 = vmatpush1.msra.mxu0 0.0
        %2650 = vmatprep.subr.mxu0 0.0
        %2651 = vmatpush1.msra.mxu0 0.0
        %2652 = vmatprep.subr.mxu0 0.0
        %2653 = vmatpush1.msra.mxu0 0.0
        %2654 = vmatprep.subr.mxu0 0.0
        %2655 = vmatpush1.msra.mxu0 0.0
        %2656 = vmatprep.subr.mxu0 0.0
        %2657 = vmatpush1.msra.mxu0 0.0
        %2658 = vmatprep.subr.mxu0 0.0
        %2659 = vmatpush1.msra.mxu0 0.0
        %2660 = vmatprep.subr.mxu0 0.0
        %2661 = vmatpush1.msra.mxu0 0.0
        %2662 = vmatprep.subr.mxu0 0.0
        %2663 = vmatpush1.msra.mxu0 0.0
        %2664 = vmatprep.subr.mxu0 0.0
        %2665 = vmatpush1.msra.mxu0 0.0
        %2666 = vmatprep.subr.mxu0 0.0
        %2667 = vmatpush1.msra.mxu0 0.0
        %2668 = vmatprep.subr.mxu0 0.0
        %2669 = vmatpush1.msra.mxu0 0.0
        %2670 = vmatprep.subr.mxu0 0.0
        %v2671 = vand.u32 %v1743, 4294901760
        %2672 = vmatpush1.msra.mxu0 %v2671
        %2673 = vmatprep.subr.mxu0 0.0
        %v2674 = vand.u32 %v1737, 4294901760
        %2675 = vmatpush1.msra.mxu0 %v2674
        %2676 = vmatprep.subr.mxu0 0.0
        %v2677 = vand.u32 %v1731, 4294901760
        %2678 = vmatpush1.msra.mxu0 %v2677
        %2679 = vmatprep.subr.mxu0 0.0
        %v2680 = vand.u32 %v1725, 4294901760
        %2681 = vmatpush1.msra.mxu0 %v2680
        %2682 = vmatprep.subr.mxu0 0.0
        %2683 = vmatpush2.msra.mxu0 0.0
        %2684 = vmatprep.subr.mxu0 0.0
        %2685 = vmatpush2.msra.mxu0 0.0
        %2686 = vmatprep.subr.mxu0 0.0
        %2687 = vmatpush2.msra.mxu0 0.0
        %2688 = vmatprep.subr.mxu0 0.0
        %2689 = vmatpush2.msra.mxu0 0.0
        %2690 = vmatprep.subr.mxu0 0.0
        %2691 = vmatpush2.msra.mxu0 0.0
        %2692 = vmatprep.subr.mxu0 0.0
        %2693 = vmatpush2.msra.mxu0 0.0
        %2694 = vmatprep.subr.mxu0 0.0
        %2695 = vmatpush2.msra.mxu0 0.0
        %2696 = vmatprep.subr.mxu0 0.0
        %2697 = vmatpush2.msra.mxu0 0.0
        %2698 = vmatprep.subr.mxu0 0.0
        %2699 = vmatpush2.msra.mxu0 0.0
        %2700 = vmatprep.subr.mxu0 0.0
        %2701 = vmatpush2.msra.mxu0 0.0
        %2702 = vmatprep.subr.mxu0 0.0
        %2703 = vmatpush2.msra.mxu0 0.0
        %2704 = vmatprep.subr.mxu0 0.0
        %2705 = vmatpush2.msra.mxu0 0.0
        %2706 = vmatprep.subr.mxu0 0.0
        %2707 = vmatpush2.msra.mxu0 0.0
        %2708 = vmatprep.subr.mxu0 0.0
        %2709 = vmatpush2.msra.mxu0 0.0
        %2710 = vmatprep.subr.mxu0 0.0
        %2711 = vmatpush2.msra.mxu0 0.0
        %2712 = vmatprep.subr.mxu0 0.0
        %2713 = vmatpush2.msra.mxu0 0.0
        %2714 = vmatprep.mubr.f32.mxu0 0.0
        %v2715 = vand.u32 %v1840, 4294901760
        %v2716 = vsub.f32 %v1840, %v2715
        %v2717 = vand.u32 %v2716, 4294901760
        %2718 = vmatmul.mubr.f32.gmra.mxu0 %v2717
        %v2719 = vpop.f32.mrf.mxu0
        %v2720 = vadd.f32 %v2636, %v2719
        %v2721 = vpop.f32.mrf.mxu0
        %2722 = vmatprep.mubr.f32.mxu0 0.0
        %v2723 = vand.u32 %v1843, 4294901760
        %v2724 = vsub.f32 %v1843, %v2723
        %v2725 = vand.u32 %v2724, 4294901760
        %2726 = vmatmul.mubr.f32.gmra.mxu0 %v2725
        %v2727 = vpop.f32.mrf.mxu0
        %v2728 = vadd.f32 %v2643, %v2727
        %v2729 = vpop.f32.mrf.mxu0
        %2730 = vdwg.mxu0
        %2731 = vmatprep.subr.mxu0 0.0
        %2732 = vmatpush1.msra.mxu0 0.0
        %2733 = vmatprep.subr.mxu0 0.0
        %2734 = vmatpush1.msra.mxu0 0.0
        %2735 = vmatprep.subr.mxu0 0.0
        %2736 = vmatpush1.msra.mxu0 0.0
        %2737 = vmatprep.subr.mxu0 0.0
        %2738 = vmatpush1.msra.mxu0 0.0
        %2739 = vmatprep.subr.mxu0 0.0
        %2740 = vmatpush1.msra.mxu0 0.0
        %2741 = vmatprep.subr.mxu0 0.0
        %2742 = vmatpush1.msra.mxu0 0.0
        %2743 = vmatprep.subr.mxu0 0.0
        %2744 = vmatpush1.msra.mxu0 0.0
        %2745 = vmatprep.subr.mxu0 0.0
        %2746 = vmatpush1.msra.mxu0 0.0
        %2747 = vmatprep.subr.mxu0 0.0
        %2748 = vmatpush1.msra.mxu0 0.0
        %2749 = vmatprep.subr.mxu0 0.0
        %2750 = vmatpush1.msra.mxu0 0.0
        %2751 = vmatprep.subr.mxu0 0.0
        %2752 = vmatpush1.msra.mxu0 0.0
        %2753 = vmatprep.subr.mxu0 0.0
        %2754 = vmatpush1.msra.mxu0 0.0
        %2755 = vmatprep.subr.mxu0 0.0
        %v2756 = vand.u32 %v1743, 4294901760
        %v2757 = vsub.f32 %v1743, %v2756
        %v2758 = vand.u32 %v2757, 4294901760
        %2759 = vmatpush1.msra.mxu0 %v2758
        %2760 = vmatprep.subr.mxu0 0.0
        %v2761 = vand.u32 %v1737, 4294901760
        %v2762 = vsub.f32 %v1737, %v2761
        %v2763 = vand.u32 %v2762, 4294901760
        %2764 = vmatpush1.msra.mxu0 %v2763
        %2765 = vmatprep.subr.mxu0 0.0
        %v2766 = vand.u32 %v1731, 4294901760
        %v2767 = vsub.f32 %v1731, %v2766
        %v2768 = vand.u32 %v2767, 4294901760
        %2769 = vmatpush1.msra.mxu0 %v2768
        %2770 = vmatprep.subr.mxu0 0.0
        %v2771 = vand.u32 %v1725, 4294901760
        %v2772 = vsub.f32 %v1725, %v2771
        %v2773 = vand.u32 %v2772, 4294901760
        %2774 = vmatpush1.msra.mxu0 %v2773
        %2775 = vmatprep.subr.mxu0 0.0
        %2776 = vmatpush2.msra.mxu0 0.0
        %2777 = vmatprep.subr.mxu0 0.0
        %2778 = vmatpush2.msra.mxu0 0.0
        %2779 = vmatprep.subr.mxu0 0.0
        %2780 = vmatpush2.msra.mxu0 0.0
        %2781 = vmatprep.subr.mxu0 0.0
        %2782 = vmatpush2.msra.mxu0 0.0
        %2783 = vmatprep.subr.mxu0 0.0
        %2784 = vmatpush2.msra.mxu0 0.0
        %2785 = vmatprep.subr.mxu0 0.0
        %2786 = vmatpush2.msra.mxu0 0.0
        %2787 = vmatprep.subr.mxu0 0.0
        %2788 = vmatpush2.msra.mxu0 0.0
        %2789 = vmatprep.subr.mxu0 0.0
        %2790 = vmatpush2.msra.mxu0 0.0
        %2791 = vmatprep.subr.mxu0 0.0
        %2792 = vmatpush2.msra.mxu0 0.0
        %2793 = vmatprep.subr.mxu0 0.0
        %2794 = vmatpush2.msra.mxu0 0.0
        %2795 = vmatprep.subr.mxu0 0.0
        %2796 = vmatpush2.msra.mxu0 0.0
        %2797 = vmatprep.subr.mxu0 0.0
        %2798 = vmatpush2.msra.mxu0 0.0
        %2799 = vmatprep.subr.mxu0 0.0
        %2800 = vmatpush2.msra.mxu0 0.0
        %2801 = vmatprep.subr.mxu0 0.0
        %2802 = vmatpush2.msra.mxu0 0.0
        %2803 = vmatprep.subr.mxu0 0.0
        %2804 = vmatpush2.msra.mxu0 0.0
        %2805 = vmatprep.subr.mxu0 0.0
        %2806 = vmatpush2.msra.mxu0 0.0
        %2807 = vmatprep.mubr.f32.mxu0 0.0
        %v2808 = vand.u32 %v1840, 4294901760
        %2809 = vmatmul.mubr.f32.gmra.mxu0 %v2808
        %v2810 = vpop.f32.mrf.mxu0
        %v2811 = vadd.f32 %v2720, %v2810
        %v2812 = vpop.f32.mrf.mxu0
        %2813 = vmatprep.mubr.f32.mxu0 0.0
        %v2814 = vand.u32 %v1843, 4294901760
        %2815 = vmatmul.mubr.f32.gmra.mxu0 %v2814
        %v2816 = vpop.f32.mrf.mxu0
        %v2817 = vadd.f32 %v2728, %v2816
        %v2818 = vpop.f32.mrf.mxu0
        %2819 = vdwg.mxu0
        %2820 = vmatprep.subr.mxu0 0.0
        %2821 = vmatpush1.msra.mxu0 0.0
        %2822 = vmatprep.subr.mxu0 0.0
        %2823 = vmatpush1.msra.mxu0 0.0
        %2824 = vmatprep.subr.mxu0 0.0
        %2825 = vmatpush1.msra.mxu0 0.0
        %2826 = vmatprep.subr.mxu0 0.0
        %2827 = vmatpush1.msra.mxu0 0.0
        %2828 = vmatprep.subr.mxu0 0.0
        %2829 = vmatpush1.msra.mxu0 0.0
        %2830 = vmatprep.subr.mxu0 0.0
        %2831 = vmatpush1.msra.mxu0 0.0
        %2832 = vmatprep.subr.mxu0 0.0
        %2833 = vmatpush1.msra.mxu0 0.0
        %2834 = vmatprep.subr.mxu0 0.0
        %2835 = vmatpush1.msra.mxu0 0.0
        %2836 = vmatprep.subr.mxu0 0.0
        %2837 = vmatpush1.msra.mxu0 0.0
        %2838 = vmatprep.subr.mxu0 0.0
        %2839 = vmatpush1.msra.mxu0 0.0
        %2840 = vmatprep.subr.mxu0 0.0
        %2841 = vmatpush1.msra.mxu0 0.0
        %2842 = vmatprep.subr.mxu0 0.0
        %2843 = vmatpush1.msra.mxu0 0.0
        %2844 = vmatprep.subr.mxu0 0.0
        %v2845 = vand.u32 %v1743, 4294901760
        %2846 = vmatpush1.msra.mxu0 %v2845
        %2847 = vmatprep.subr.mxu0 0.0
        %v2848 = vand.u32 %v1737, 4294901760
        %2849 = vmatpush1.msra.mxu0 %v2848
        %2850 = vmatprep.subr.mxu0 0.0
        %v2851 = vand.u32 %v1731, 4294901760
        %2852 = vmatpush1.msra.mxu0 %v2851
        %2853 = vmatprep.subr.mxu0 0.0
        %v2854 = vand.u32 %v1725, 4294901760
        %2855 = vmatpush1.msra.mxu0 %v2854
        %2856 = vmatprep.subr.mxu0 0.0
        %2857 = vmatpush2.msra.mxu0 0.0
        %2858 = vmatprep.subr.mxu0 0.0
        %2859 = vmatpush2.msra.mxu0 0.0
        %2860 = vmatprep.subr.mxu0 0.0
        %2861 = vmatpush2.msra.mxu0 0.0
        %2862 = vmatprep.subr.mxu0 0.0
        %2863 = vmatpush2.msra.mxu0 0.0
        %2864 = vmatprep.subr.mxu0 0.0
        %2865 = vmatpush2.msra.mxu0 0.0
        %2866 = vmatprep.subr.mxu0 0.0
        %2867 = vmatpush2.msra.mxu0 0.0
        %2868 = vmatprep.subr.mxu0 0.0
        %2869 = vmatpush2.msra.mxu0 0.0
        %2870 = vmatprep.subr.mxu0 0.0
        %2871 = vmatpush2.msra.mxu0 0.0
        %2872 = vmatprep.subr.mxu0 0.0
        %2873 = vmatpush2.msra.mxu0 0.0
        %2874 = vmatprep.subr.mxu0 0.0
        %2875 = vmatpush2.msra.mxu0 0.0
        %2876 = vmatprep.subr.mxu0 0.0
        %2877 = vmatpush2.msra.mxu0 0.0
        %2878 = vmatprep.subr.mxu0 0.0
        %2879 = vmatpush2.msra.mxu0 0.0
        %2880 = vmatprep.subr.mxu0 0.0
        %2881 = vmatpush2.msra.mxu0 0.0
        %2882 = vmatprep.subr.mxu0 0.0
        %2883 = vmatpush2.msra.mxu0 0.0
        %2884 = vmatprep.subr.mxu0 0.0
        %2885 = vmatpush2.msra.mxu0 0.0
        %2886 = vmatprep.subr.mxu0 0.0
        %2887 = vmatpush2.msra.mxu0 0.0
        %2888 = vmatprep.mubr.f32.mxu0 0.0
        %v2889 = vand.u32 %v1840, 4294901760
        %2890 = vmatmul.mubr.f32.gmra.mxu0 %v2889
        %v2891 = vpop.f32.mrf.mxu0
        %v2892 = vadd.f32 %v2811, %v2891
        %v2893 = vpop.f32.mrf.mxu0
        %2894 = vmatprep.mubr.f32.mxu0 0.0
        %v2895 = vand.u32 %v1843, 4294901760
        %2896 = vmatmul.mubr.f32.gmra.mxu0 %v2895
        %v2897 = vpop.f32.mrf.mxu0
        %v2898 = vadd.f32 %v2817, %v2897
        %v2899 = vpop.f32.mrf.mxu0
        %2900 = vdwg.mxu0
        %2901 = vmatprep.subr.mxu0 0.0
        %2902 = vmatpush1.msra.mxu0 0.0
        %2903 = vmatprep.subr.mxu0 0.0
        %2904 = vmatpush1.msra.mxu0 0.0
        %2905 = vmatprep.subr.mxu0 0.0
        %2906 = vmatpush1.msra.mxu0 0.0
        %2907 = vmatprep.subr.mxu0 0.0
        %2908 = vmatpush1.msra.mxu0 0.0
        %2909 = vmatprep.subr.mxu0 0.0
        %2910 = vmatpush1.msra.mxu0 0.0
        %2911 = vmatprep.subr.mxu0 0.0
        %2912 = vmatpush1.msra.mxu0 0.0
        %2913 = vmatprep.subr.mxu0 0.0
        %2914 = vmatpush1.msra.mxu0 0.0
        %2915 = vmatprep.subr.mxu0 0.0
        %2916 = vmatpush1.msra.mxu0 0.0
        %2917 = vmatprep.subr.mxu0 0.0
        %2918 = vmatpush1.msra.mxu0 0.0
        %2919 = vmatprep.subr.mxu0 0.0
        %2920 = vmatpush1.msra.mxu0 0.0
        %2921 = vmatprep.subr.mxu0 0.0
        %2922 = vmatpush1.msra.mxu0 0.0
        %2923 = vmatprep.subr.mxu0 0.0
        %2924 = vmatpush1.msra.mxu0 0.0
        %2925 = vmatprep.subr.mxu0 0.0
        %v2926 = vand.u32 %v1767, 4294901760
        %2927 = vmatpush1.msra.mxu0 %v2926
        %2928 = vmatprep.subr.mxu0 0.0
        %v2929 = vand.u32 %v1761, 4294901760
        %2930 = vmatpush1.msra.mxu0 %v2929
        %2931 = vmatprep.subr.mxu0 0.0
        %v2932 = vand.u32 %v1755, 4294901760
        %2933 = vmatpush1.msra.mxu0 %v2932
        %2934 = vmatprep.subr.mxu0 0.0
        %v2935 = vand.u32 %v1749, 4294901760
        %2936 = vmatpush1.msra.mxu0 %v2935
        %2937 = vmatprep.subr.mxu0 0.0
        %2938 = vmatpush2.msra.mxu0 0.0
        %2939 = vmatprep.subr.mxu0 0.0
        %2940 = vmatpush2.msra.mxu0 0.0
        %2941 = vmatprep.subr.mxu0 0.0
        %2942 = vmatpush2.msra.mxu0 0.0
        %2943 = vmatprep.subr.mxu0 0.0
        %2944 = vmatpush2.msra.mxu0 0.0
        %2945 = vmatprep.subr.mxu0 0.0
        %2946 = vmatpush2.msra.mxu0 0.0
        %2947 = vmatprep.subr.mxu0 0.0
        %2948 = vmatpush2.msra.mxu0 0.0
        %2949 = vmatprep.subr.mxu0 0.0
        %2950 = vmatpush2.msra.mxu0 0.0
        %2951 = vmatprep.subr.mxu0 0.0
        %2952 = vmatpush2.msra.mxu0 0.0
        %2953 = vmatprep.subr.mxu0 0.0
        %2954 = vmatpush2.msra.mxu0 0.0
        %2955 = vmatprep.subr.mxu0 0.0
        %2956 = vmatpush2.msra.mxu0 0.0
        %2957 = vmatprep.subr.mxu0 0.0
        %2958 = vmatpush2.msra.mxu0 0.0
        %2959 = vmatprep.subr.mxu0 0.0
        %2960 = vmatpush2.msra.mxu0 0.0
        %2961 = vmatprep.subr.mxu0 0.0
        %2962 = vmatpush2.msra.mxu0 0.0
        %2963 = vmatprep.subr.mxu0 0.0
        %2964 = vmatpush2.msra.mxu0 0.0
        %2965 = vmatprep.subr.mxu0 0.0
        %2966 = vmatpush2.msra.mxu0 0.0
        %2967 = vmatprep.subr.mxu0 0.0
        %2968 = vmatpush2.msra.mxu0 0.0
        %2969 = vmatprep.mubr.f32.mxu0 0.0
        %v2970 = vand.u32 %v1840, 4294901760
        %v2971 = vsub.f32 %v1840, %v2970
        %v2972 = vand.u32 %v2971, 4294901760
        %v2973 = vsub.f32 %v2971, %v2972
        %v2974 = vand.u32 %v2973, 4294901760
        %2975 = vmatmul.mubr.f32.gmra.mxu0 %v2974
        %v2976 = vpop.f32.mrf.mxu0
        %v2977 = vadd.f32 0.0, %v2976
        %v2978 = vpop.f32.mrf.mxu0
        %2979 = vmatprep.mubr.f32.mxu0 0.0
        %v2980 = vand.u32 %v1843, 4294901760
        %v2981 = vsub.f32 %v1843, %v2980
        %v2982 = vand.u32 %v2981, 4294901760
        %v2983 = vsub.f32 %v2981, %v2982
        %v2984 = vand.u32 %v2983, 4294901760
        %2985 = vmatmul.mubr.f32.gmra.mxu0 %v2984
        %v2986 = vpop.f32.mrf.mxu0
        %v2987 = vadd.f32 0.0, %v2986
        %v2988 = vpop.f32.mrf.mxu0
        %2989 = vdwg.mxu0
        %2990 = vmatprep.subr.mxu0 0.0
        %2991 = vmatpush1.msra.mxu0 0.0
        %2992 = vmatprep.subr.mxu0 0.0
        %2993 = vmatpush1.msra.mxu0 0.0
        %2994 = vmatprep.subr.mxu0 0.0
        %2995 = vmatpush1.msra.mxu0 0.0
        %2996 = vmatprep.subr.mxu0 0.0
        %2997 = vmatpush1.msra.mxu0 0.0
        %2998 = vmatprep.subr.mxu0 0.0
        %2999 = vmatpush1.msra.mxu0 0.0
        %3000 = vmatprep.subr.mxu0 0.0
        %3001 = vmatpush1.msra.mxu0 0.0
        %3002 = vmatprep.subr.mxu0 0.0
        %3003 = vmatpush1.msra.mxu0 0.0
        %3004 = vmatprep.subr.mxu0 0.0
        %3005 = vmatpush1.msra.mxu0 0.0
        %3006 = vmatprep.subr.mxu0 0.0
        %3007 = vmatpush1.msra.mxu0 0.0
        %3008 = vmatprep.subr.mxu0 0.0
        %3009 = vmatpush1.msra.mxu0 0.0
        %3010 = vmatprep.subr.mxu0 0.0
        %3011 = vmatpush1.msra.mxu0 0.0
        %3012 = vmatprep.subr.mxu0 0.0
        %3013 = vmatpush1.msra.mxu0 0.0
        %3014 = vmatprep.subr.mxu0 0.0
        %v3015 = vand.u32 %v1767, 4294901760
        %v3016 = vsub.f32 %v1767, %v3015
        %v3017 = vand.u32 %v3016, 4294901760
        %v3018 = vsub.f32 %v3016, %v3017
        %v3019 = vand.u32 %v3018, 4294901760
        %3020 = vmatpush1.msra.mxu0 %v3019
        %3021 = vmatprep.subr.mxu0 0.0
        %v3022 = vand.u32 %v1761, 4294901760
        %v3023 = vsub.f32 %v1761, %v3022
        %v3024 = vand.u32 %v3023, 4294901760
        %v3025 = vsub.f32 %v3023, %v3024
        %v3026 = vand.u32 %v3025, 4294901760
        %3027 = vmatpush1.msra.mxu0 %v3026
        %3028 = vmatprep.subr.mxu0 0.0
        %v3029 = vand.u32 %v1755, 4294901760
        %v3030 = vsub.f32 %v1755, %v3029
        %v3031 = vand.u32 %v3030, 4294901760
        %v3032 = vsub.f32 %v3030, %v3031
        %v3033 = vand.u32 %v3032, 4294901760
        %3034 = vmatpush1.msra.mxu0 %v3033
        %3035 = vmatprep.subr.mxu0 0.0
        %v3036 = vand.u32 %v1749, 4294901760
        %v3037 = vsub.f32 %v1749, %v3036
        %v3038 = vand.u32 %v3037, 4294901760
        %v3039 = vsub.f32 %v3037, %v3038
        %v3040 = vand.u32 %v3039, 4294901760
        %3041 = vmatpush1.msra.mxu0 %v3040
        %3042 = vmatprep.subr.mxu0 0.0
        %3043 = vmatpush2.msra.mxu0 0.0
        %3044 = vmatprep.subr.mxu0 0.0
        %3045 = vmatpush2.msra.mxu0 0.0
        %3046 = vmatprep.subr.mxu0 0.0
        %3047 = vmatpush2.msra.mxu0 0.0
        %3048 = vmatprep.subr.mxu0 0.0
        %3049 = vmatpush2.msra.mxu0 0.0
        %3050 = vmatprep.subr.mxu0 0.0
        %3051 = vmatpush2.msra.mxu0 0.0
        %3052 = vmatprep.subr.mxu0 0.0
        %3053 = vmatpush2.msra.mxu0 0.0
        %3054 = vmatprep.subr.mxu0 0.0
        %3055 = vmatpush2.msra.mxu0 0.0
        %3056 = vmatprep.subr.mxu0 0.0
        %3057 = vmatpush2.msra.mxu0 0.0
        %3058 = vmatprep.subr.mxu0 0.0
        %3059 = vmatpush2.msra.mxu0 0.0
        %3060 = vmatprep.subr.mxu0 0.0
        %3061 = vmatpush2.msra.mxu0 0.0
        %3062 = vmatprep.subr.mxu0 0.0
        %3063 = vmatpush2.msra.mxu0 0.0
        %3064 = vmatprep.subr.mxu0 0.0
        %3065 = vmatpush2.msra.mxu0 0.0
        %3066 = vmatprep.subr.mxu0 0.0
        %3067 = vmatpush2.msra.mxu0 0.0
        %3068 = vmatprep.subr.mxu0 0.0
        %3069 = vmatpush2.msra.mxu0 0.0
        %3070 = vmatprep.subr.mxu0 0.0
        %3071 = vmatpush2.msra.mxu0 0.0
        %3072 = vmatprep.subr.mxu0 0.0
        %3073 = vmatpush2.msra.mxu0 0.0
        %3074 = vmatprep.mubr.f32.mxu0 0.0
        %v3075 = vand.u32 %v1840, 4294901760
        %3076 = vmatmul.mubr.f32.gmra.mxu0 %v3075
        %v3077 = vpop.f32.mrf.mxu0
        %v3078 = vadd.f32 %v2977, %v3077
        %v3079 = vpop.f32.mrf.mxu0
        %3080 = vmatprep.mubr.f32.mxu0 0.0
        %v3081 = vand.u32 %v1843, 4294901760
        %3082 = vmatmul.mubr.f32.gmra.mxu0 %v3081
        %v3083 = vpop.f32.mrf.mxu0
        %v3084 = vadd.f32 %v2987, %v3083
        %v3085 = vpop.f32.mrf.mxu0
        %3086 = vdwg.mxu0
        %3087 = vmatprep.subr.mxu0 0.0
        %3088 = vmatpush1.msra.mxu0 0.0
        %3089 = vmatprep.subr.mxu0 0.0
        %3090 = vmatpush1.msra.mxu0 0.0
        %3091 = vmatprep.subr.mxu0 0.0
        %3092 = vmatpush1.msra.mxu0 0.0
        %3093 = vmatprep.subr.mxu0 0.0
        %3094 = vmatpush1.msra.mxu0 0.0
        %3095 = vmatprep.subr.mxu0 0.0
        %3096 = vmatpush1.msra.mxu0 0.0
        %3097 = vmatprep.subr.mxu0 0.0
        %3098 = vmatpush1.msra.mxu0 0.0
        %3099 = vmatprep.subr.mxu0 0.0
        %3100 = vmatpush1.msra.mxu0 0.0
        %3101 = vmatprep.subr.mxu0 0.0
        %3102 = vmatpush1.msra.mxu0 0.0
        %3103 = vmatprep.subr.mxu0 0.0
        %3104 = vmatpush1.msra.mxu0 0.0
        %3105 = vmatprep.subr.mxu0 0.0
        %3106 = vmatpush1.msra.mxu0 0.0
        %3107 = vmatprep.subr.mxu0 0.0
        %3108 = vmatpush1.msra.mxu0 0.0
        %3109 = vmatprep.subr.mxu0 0.0
        %3110 = vmatpush1.msra.mxu0 0.0
        %3111 = vmatprep.subr.mxu0 0.0
        %v3112 = vand.u32 %v1767, 4294901760
        %v3113 = vsub.f32 %v1767, %v3112
        %3114 = vmatpush1.msra.mxu0 %v3113
        %3115 = vmatprep.subr.mxu0 0.0
        %v3116 = vand.u32 %v1761, 4294901760
        %v3117 = vsub.f32 %v1761, %v3116
        %3118 = vmatpush1.msra.mxu0 %v3117
        %3119 = vmatprep.subr.mxu0 0.0
        %v3120 = vand.u32 %v1755, 4294901760
        %v3121 = vsub.f32 %v1755, %v3120
        %3122 = vmatpush1.msra.mxu0 %v3121
        %3123 = vmatprep.subr.mxu0 0.0
        %v3124 = vand.u32 %v1749, 4294901760
        %v3125 = vsub.f32 %v1749, %v3124
        %3126 = vmatpush1.msra.mxu0 %v3125
        %3127 = vmatprep.subr.mxu0 0.0
        %3128 = vmatpush2.msra.mxu0 0.0
        %3129 = vmatprep.subr.mxu0 0.0
        %3130 = vmatpush2.msra.mxu0 0.0
        %3131 = vmatprep.subr.mxu0 0.0
        %3132 = vmatpush2.msra.mxu0 0.0
        %3133 = vmatprep.subr.mxu0 0.0
        %3134 = vmatpush2.msra.mxu0 0.0
        %3135 = vmatprep.subr.mxu0 0.0
        %3136 = vmatpush2.msra.mxu0 0.0
        %3137 = vmatprep.subr.mxu0 0.0
        %3138 = vmatpush2.msra.mxu0 0.0
        %3139 = vmatprep.subr.mxu0 0.0
        %3140 = vmatpush2.msra.mxu0 0.0
        %3141 = vmatprep.subr.mxu0 0.0
        %3142 = vmatpush2.msra.mxu0 0.0
        %3143 = vmatprep.subr.mxu0 0.0
        %3144 = vmatpush2.msra.mxu0 0.0
        %3145 = vmatprep.subr.mxu0 0.0
        %3146 = vmatpush2.msra.mxu0 0.0
        %3147 = vmatprep.subr.mxu0 0.0
        %3148 = vmatpush2.msra.mxu0 0.0
        %3149 = vmatprep.subr.mxu0 0.0
        %3150 = vmatpush2.msra.mxu0 0.0
        %3151 = vmatprep.subr.mxu0 0.0
        %3152 = vmatpush2.msra.mxu0 0.0
        %3153 = vmatprep.subr.mxu0 0.0
        %3154 = vmatpush2.msra.mxu0 0.0
        %3155 = vmatprep.subr.mxu0 0.0
        %3156 = vmatpush2.msra.mxu0 0.0
        %3157 = vmatprep.subr.mxu0 0.0
        %3158 = vmatpush2.msra.mxu0 0.0
        %3159 = vmatprep.mubr.f32.mxu0 0.0
        %v3160 = vand.u32 %v1840, 4294901760
        %v3161 = vsub.f32 %v1840, %v3160
        %3162 = vmatmul.mubr.f32.gmra.mxu0 %v3161
        %v3163 = vpop.f32.mrf.mxu0
        %v3164 = vadd.f32 %v3078, %v3163
        %v3165 = vpop.f32.mrf.mxu0
        %3166 = vmatprep.mubr.f32.mxu0 0.0
        %v3167 = vand.u32 %v1843, 4294901760
        %v3168 = vsub.f32 %v1843, %v3167
        %3169 = vmatmul.mubr.f32.gmra.mxu0 %v3168
        %v3170 = vpop.f32.mrf.mxu0
        %v3171 = vadd.f32 %v3084, %v3170
        %v3172 = vpop.f32.mrf.mxu0
        %3173 = vdwg.mxu0
        %3174 = vmatprep.subr.mxu0 0.0
        %3175 = vmatpush1.msra.mxu0 0.0
        %3176 = vmatprep.subr.mxu0 0.0
        %3177 = vmatpush1.msra.mxu0 0.0
        %3178 = vmatprep.subr.mxu0 0.0
        %3179 = vmatpush1.msra.mxu0 0.0
        %3180 = vmatprep.subr.mxu0 0.0
        %3181 = vmatpush1.msra.mxu0 0.0
        %3182 = vmatprep.subr.mxu0 0.0
        %3183 = vmatpush1.msra.mxu0 0.0
        %3184 = vmatprep.subr.mxu0 0.0
        %3185 = vmatpush1.msra.mxu0 0.0
        %3186 = vmatprep.subr.mxu0 0.0
        %3187 = vmatpush1.msra.mxu0 0.0
        %3188 = vmatprep.subr.mxu0 0.0
        %3189 = vmatpush1.msra.mxu0 0.0
        %3190 = vmatprep.subr.mxu0 0.0
        %3191 = vmatpush1.msra.mxu0 0.0
        %3192 = vmatprep.subr.mxu0 0.0
        %3193 = vmatpush1.msra.mxu0 0.0
        %3194 = vmatprep.subr.mxu0 0.0
        %3195 = vmatpush1.msra.mxu0 0.0
        %3196 = vmatprep.subr.mxu0 0.0
        %3197 = vmatpush1.msra.mxu0 0.0
        %3198 = vmatprep.subr.mxu0 0.0
        %v3199 = vand.u32 %v1767, 4294901760
        %3200 = vmatpush1.msra.mxu0 %v3199
        %3201 = vmatprep.subr.mxu0 0.0
        %v3202 = vand.u32 %v1761, 4294901760
        %3203 = vmatpush1.msra.mxu0 %v3202
        %3204 = vmatprep.subr.mxu0 0.0
        %v3205 = vand.u32 %v1755, 4294901760
        %3206 = vmatpush1.msra.mxu0 %v3205
        %3207 = vmatprep.subr.mxu0 0.0
        %v3208 = vand.u32 %v1749, 4294901760
        %3209 = vmatpush1.msra.mxu0 %v3208
        %3210 = vmatprep.subr.mxu0 0.0
        %3211 = vmatpush2.msra.mxu0 0.0
        %3212 = vmatprep.subr.mxu0 0.0
        %3213 = vmatpush2.msra.mxu0 0.0
        %3214 = vmatprep.subr.mxu0 0.0
        %3215 = vmatpush2.msra.mxu0 0.0
        %3216 = vmatprep.subr.mxu0 0.0
        %3217 = vmatpush2.msra.mxu0 0.0
        %3218 = vmatprep.subr.mxu0 0.0
        %3219 = vmatpush2.msra.mxu0 0.0
        %3220 = vmatprep.subr.mxu0 0.0
        %3221 = vmatpush2.msra.mxu0 0.0
        %3222 = vmatprep.subr.mxu0 0.0
        %3223 = vmatpush2.msra.mxu0 0.0
        %3224 = vmatprep.subr.mxu0 0.0
        %3225 = vmatpush2.msra.mxu0 0.0
        %3226 = vmatprep.subr.mxu0 0.0
        %3227 = vmatpush2.msra.mxu0 0.0
        %3228 = vmatprep.subr.mxu0 0.0
        %3229 = vmatpush2.msra.mxu0 0.0
        %3230 = vmatprep.subr.mxu0 0.0
        %3231 = vmatpush2.msra.mxu0 0.0
        %3232 = vmatprep.subr.mxu0 0.0
        %3233 = vmatpush2.msra.mxu0 0.0
        %3234 = vmatprep.subr.mxu0 0.0
        %3235 = vmatpush2.msra.mxu0 0.0
        %3236 = vmatprep.subr.mxu0 0.0
        %3237 = vmatpush2.msra.mxu0 0.0
        %3238 = vmatprep.subr.mxu0 0.0
        %3239 = vmatpush2.msra.mxu0 0.0
        %3240 = vmatprep.subr.mxu0 0.0
        %3241 = vmatpush2.msra.mxu0 0.0
        %3242 = vmatprep.mubr.f32.mxu0 0.0
        %v3243 = vand.u32 %v1840, 4294901760
        %v3244 = vsub.f32 %v1840, %v3243
        %v3245 = vand.u32 %v3244, 4294901760
        %3246 = vmatmul.mubr.f32.gmra.mxu0 %v3245
        %v3247 = vpop.f32.mrf.mxu0
        %v3248 = vadd.f32 %v3164, %v3247
        %v3249 = vpop.f32.mrf.mxu0
        %3250 = vmatprep.mubr.f32.mxu0 0.0
        %v3251 = vand.u32 %v1843, 4294901760
        %v3252 = vsub.f32 %v1843, %v3251
        %v3253 = vand.u32 %v3252, 4294901760
        %3254 = vmatmul.mubr.f32.gmra.mxu0 %v3253
        %v3255 = vpop.f32.mrf.mxu0
        %v3256 = vadd.f32 %v3171, %v3255
        %v3257 = vpop.f32.mrf.mxu0
        %3258 = vdwg.mxu0
        %3259 = vmatprep.subr.mxu0 0.0
        %3260 = vmatpush1.msra.mxu0 0.0
        %3261 = vmatprep.subr.mxu0 0.0
        %3262 = vmatpush1.msra.mxu0 0.0
        %3263 = vmatprep.subr.mxu0 0.0
        %3264 = vmatpush1.msra.mxu0 0.0
        %3265 = vmatprep.subr.mxu0 0.0
        %3266 = vmatpush1.msra.mxu0 0.0
        %3267 = vmatprep.subr.mxu0 0.0
        %3268 = vmatpush1.msra.mxu0 0.0
        %3269 = vmatprep.subr.mxu0 0.0
        %3270 = vmatpush1.msra.mxu0 0.0
        %3271 = vmatprep.subr.mxu0 0.0
        %3272 = vmatpush1.msra.mxu0 0.0
        %3273 = vmatprep.subr.mxu0 0.0
        %3274 = vmatpush1.msra.mxu0 0.0
        %3275 = vmatprep.subr.mxu0 0.0
        %3276 = vmatpush1.msra.mxu0 0.0
        %3277 = vmatprep.subr.mxu0 0.0
        %3278 = vmatpush1.msra.mxu0 0.0
        %3279 = vmatprep.subr.mxu0 0.0
        %3280 = vmatpush1.msra.mxu0 0.0
        %3281 = vmatprep.subr.mxu0 0.0
        %3282 = vmatpush1.msra.mxu0 0.0
        %3283 = vmatprep.subr.mxu0 0.0
        %v3284 = vand.u32 %v1767, 4294901760
        %v3285 = vsub.f32 %v1767, %v3284
        %v3286 = vand.u32 %v3285, 4294901760
        %3287 = vmatpush1.msra.mxu0 %v3286
        %3288 = vmatprep.subr.mxu0 0.0
        %v3289 = vand.u32 %v1761, 4294901760
        %v3290 = vsub.f32 %v1761, %v3289
        %v3291 = vand.u32 %v3290, 4294901760
        %3292 = vmatpush1.msra.mxu0 %v3291
        %3293 = vmatprep.subr.mxu0 0.0
        %v3294 = vand.u32 %v1755, 4294901760
        %v3295 = vsub.f32 %v1755, %v3294
        %v3296 = vand.u32 %v3295, 4294901760
        %3297 = vmatpush1.msra.mxu0 %v3296
        %3298 = vmatprep.subr.mxu0 0.0
        %v3299 = vand.u32 %v1749, 4294901760
        %v3300 = vsub.f32 %v1749, %v3299
        %v3301 = vand.u32 %v3300, 4294901760
        %3302 = vmatpush1.msra.mxu0 %v3301
        %3303 = vmatprep.subr.mxu0 0.0
        %3304 = vmatpush2.msra.mxu0 0.0
        %3305 = vmatprep.subr.mxu0 0.0
        %3306 = vmatpush2.msra.mxu0 0.0
        %3307 = vmatprep.subr.mxu0 0.0
        %3308 = vmatpush2.msra.mxu0 0.0
        %3309 = vmatprep.subr.mxu0 0.0
        %3310 = vmatpush2.msra.mxu0 0.0
        %3311 = vmatprep.subr.mxu0 0.0
        %3312 = vmatpush2.msra.mxu0 0.0
        %3313 = vmatprep.subr.mxu0 0.0
        %3314 = vmatpush2.msra.mxu0 0.0
        %3315 = vmatprep.subr.mxu0 0.0
        %3316 = vmatpush2.msra.mxu0 0.0
        %3317 = vmatprep.subr.mxu0 0.0
        %3318 = vmatpush2.msra.mxu0 0.0
        %3319 = vmatprep.subr.mxu0 0.0
        %3320 = vmatpush2.msra.mxu0 0.0
        %3321 = vmatprep.subr.mxu0 0.0
        %3322 = vmatpush2.msra.mxu0 0.0
        %3323 = vmatprep.subr.mxu0 0.0
        %3324 = vmatpush2.msra.mxu0 0.0
        %3325 = vmatprep.subr.mxu0 0.0
        %3326 = vmatpush2.msra.mxu0 0.0
        %3327 = vmatprep.subr.mxu0 0.0
        %3328 = vmatpush2.msra.mxu0 0.0
        %3329 = vmatprep.subr.mxu0 0.0
        %3330 = vmatpush2.msra.mxu0 0.0
        %3331 = vmatprep.subr.mxu0 0.0
        %3332 = vmatpush2.msra.mxu0 0.0
        %3333 = vmatprep.subr.mxu0 0.0
        %3334 = vmatpush2.msra.mxu0 0.0
        %3335 = vmatprep.mubr.f32.mxu0 0.0
        %v3336 = vand.u32 %v1840, 4294901760
        %3337 = vmatmul.mubr.f32.gmra.mxu0 %v3336
        %v3338 = vpop.f32.mrf.mxu0
        %v3339 = vadd.f32 %v3248, %v3338
        %v3340 = vpop.f32.mrf.mxu0
        %3341 = vmatprep.mubr.f32.mxu0 0.0
        %v3342 = vand.u32 %v1843, 4294901760
        %3343 = vmatmul.mubr.f32.gmra.mxu0 %v3342
        %v3344 = vpop.f32.mrf.mxu0
        %v3345 = vadd.f32 %v3256, %v3344
        %v3346 = vpop.f32.mrf.mxu0
        %3347 = vdwg.mxu0
        %3348 = vmatprep.subr.mxu0 0.0
        %3349 = vmatpush1.msra.mxu0 0.0
        %3350 = vmatprep.subr.mxu0 0.0
        %3351 = vmatpush1.msra.mxu0 0.0
        %3352 = vmatprep.subr.mxu0 0.0
        %3353 = vmatpush1.msra.mxu0 0.0
        %3354 = vmatprep.subr.mxu0 0.0
        %3355 = vmatpush1.msra.mxu0 0.0
        %3356 = vmatprep.subr.mxu0 0.0
        %3357 = vmatpush1.msra.mxu0 0.0
        %3358 = vmatprep.subr.mxu0 0.0
        %3359 = vmatpush1.msra.mxu0 0.0
        %3360 = vmatprep.subr.mxu0 0.0
        %3361 = vmatpush1.msra.mxu0 0.0
        %3362 = vmatprep.subr.mxu0 0.0
        %3363 = vmatpush1.msra.mxu0 0.0
        %3364 = vmatprep.subr.mxu0 0.0
        %3365 = vmatpush1.msra.mxu0 0.0
        %3366 = vmatprep.subr.mxu0 0.0
        %3367 = vmatpush1.msra.mxu0 0.0
        %3368 = vmatprep.subr.mxu0 0.0
        %3369 = vmatpush1.msra.mxu0 0.0
        %3370 = vmatprep.subr.mxu0 0.0
        %3371 = vmatpush1.msra.mxu0 0.0
        %3372 = vmatprep.subr.mxu0 0.0
        %v3373 = vand.u32 %v1767, 4294901760
        %3374 = vmatpush1.msra.mxu0 %v3373
        %3375 = vmatprep.subr.mxu0 0.0
        %v3376 = vand.u32 %v1761, 4294901760
        %3377 = vmatpush1.msra.mxu0 %v3376
        %3378 = vmatprep.subr.mxu0 0.0
        %v3379 = vand.u32 %v1755, 4294901760
        %3380 = vmatpush1.msra.mxu0 %v3379
        %3381 = vmatprep.subr.mxu0 0.0
        %v3382 = vand.u32 %v1749, 4294901760
        %3383 = vmatpush1.msra.mxu0 %v3382
        %3384 = vmatprep.subr.mxu0 0.0
        %3385 = vmatpush2.msra.mxu0 0.0
        %3386 = vmatprep.subr.mxu0 0.0
        %3387 = vmatpush2.msra.mxu0 0.0
        %3388 = vmatprep.subr.mxu0 0.0
        %3389 = vmatpush2.msra.mxu0 0.0
        %3390 = vmatprep.subr.mxu0 0.0
        %3391 = vmatpush2.msra.mxu0 0.0
        %3392 = vmatprep.subr.mxu0 0.0
        %3393 = vmatpush2.msra.mxu0 0.0
        %3394 = vmatprep.subr.mxu0 0.0
        %3395 = vmatpush2.msra.mxu0 0.0
        %3396 = vmatprep.subr.mxu0 0.0
        %3397 = vmatpush2.msra.mxu0 0.0
        %3398 = vmatprep.subr.mxu0 0.0
        %3399 = vmatpush2.msra.mxu0 0.0
        %3400 = vmatprep.subr.mxu0 0.0
        %3401 = vmatpush2.msra.mxu0 0.0
        %3402 = vmatprep.subr.mxu0 0.0
        %3403 = vmatpush2.msra.mxu0 0.0
        %3404 = vmatprep.subr.mxu0 0.0
        %3405 = vmatpush2.msra.mxu0 0.0
        %3406 = vmatprep.subr.mxu0 0.0
        %3407 = vmatpush2.msra.mxu0 0.0
        %3408 = vmatprep.subr.mxu0 0.0
        %3409 = vmatpush2.msra.mxu0 0.0
        %3410 = vmatprep.subr.mxu0 0.0
        %3411 = vmatpush2.msra.mxu0 0.0
        %3412 = vmatprep.subr.mxu0 0.0
        %3413 = vmatpush2.msra.mxu0 0.0
        %3414 = vmatprep.subr.mxu0 0.0
        %3415 = vmatpush2.msra.mxu0 0.0
        %3416 = vmatprep.mubr.f32.mxu0 0.0
        %v3417 = vand.u32 %v1840, 4294901760
        %3418 = vmatmul.mubr.f32.gmra.mxu0 %v3417
        %v3419 = vpop.f32.mrf.mxu0
        %v3420 = vadd.f32 %v3339, %v3419
        %v3421 = vpop.f32.mrf.mxu0
        %3422 = vmatprep.mubr.f32.mxu0 0.0
        %v3423 = vand.u32 %v1843, 4294901760
        %3424 = vmatmul.mubr.f32.gmra.mxu0 %v3423
        %v3425 = vpop.f32.mrf.mxu0
        %v3426 = vadd.f32 %v3345, %v3425
        %v3427 = vpop.f32.mrf.mxu0
        %3428 = vdwg.mxu0
        %3429 = vmatprep.subr.mxu0 0.0
        %3430 = vmatpush1.msra.mxu0 0.0
        %3431 = vmatprep.subr.mxu0 0.0
        %3432 = vmatpush1.msra.mxu0 0.0
        %3433 = vmatprep.subr.mxu0 0.0
        %3434 = vmatpush1.msra.mxu0 0.0
        %3435 = vmatprep.subr.mxu0 0.0
        %3436 = vmatpush1.msra.mxu0 0.0
        %3437 = vmatprep.subr.mxu0 0.0
        %3438 = vmatpush1.msra.mxu0 0.0
        %3439 = vmatprep.subr.mxu0 0.0
        %3440 = vmatpush1.msra.mxu0 0.0
        %3441 = vmatprep.subr.mxu0 0.0
        %3442 = vmatpush1.msra.mxu0 0.0
        %3443 = vmatprep.subr.mxu0 0.0
        %3444 = vmatpush1.msra.mxu0 0.0
        %3445 = vmatprep.subr.mxu0 0.0
        %3446 = vmatpush1.msra.mxu0 0.0
        %3447 = vmatprep.subr.mxu0 0.0
        %3448 = vmatpush1.msra.mxu0 0.0
        %3449 = vmatprep.subr.mxu0 0.0
        %3450 = vmatpush1.msra.mxu0 0.0
        %3451 = vmatprep.subr.mxu0 0.0
        %3452 = vmatpush1.msra.mxu0 0.0
        %3453 = vmatprep.subr.mxu0 0.0
        %v3454 = vand.u32 %v1791, 4294901760
        %3455 = vmatpush1.msra.mxu0 %v3454
        %3456 = vmatprep.subr.mxu0 0.0
        %v3457 = vand.u32 %v1785, 4294901760
        %3458 = vmatpush1.msra.mxu0 %v3457
        %3459 = vmatprep.subr.mxu0 0.0
        %v3460 = vand.u32 %v1779, 4294901760
        %3461 = vmatpush1.msra.mxu0 %v3460
        %3462 = vmatprep.subr.mxu0 0.0
        %v3463 = vand.u32 %v1773, 4294901760
        %3464 = vmatpush1.msra.mxu0 %v3463
        %3465 = vmatprep.subr.mxu0 0.0
        %3466 = vmatpush2.msra.mxu0 0.0
        %3467 = vmatprep.subr.mxu0 0.0
        %3468 = vmatpush2.msra.mxu0 0.0
        %3469 = vmatprep.subr.mxu0 0.0
        %3470 = vmatpush2.msra.mxu0 0.0
        %3471 = vmatprep.subr.mxu0 0.0
        %3472 = vmatpush2.msra.mxu0 0.0
        %3473 = vmatprep.subr.mxu0 0.0
        %3474 = vmatpush2.msra.mxu0 0.0
        %3475 = vmatprep.subr.mxu0 0.0
        %3476 = vmatpush2.msra.mxu0 0.0
        %3477 = vmatprep.subr.mxu0 0.0
        %3478 = vmatpush2.msra.mxu0 0.0
        %3479 = vmatprep.subr.mxu0 0.0
        %3480 = vmatpush2.msra.mxu0 0.0
        %3481 = vmatprep.subr.mxu0 0.0
        %3482 = vmatpush2.msra.mxu0 0.0
        %3483 = vmatprep.subr.mxu0 0.0
        %3484 = vmatpush2.msra.mxu0 0.0
        %3485 = vmatprep.subr.mxu0 0.0
        %3486 = vmatpush2.msra.mxu0 0.0
        %3487 = vmatprep.subr.mxu0 0.0
        %3488 = vmatpush2.msra.mxu0 0.0
        %3489 = vmatprep.subr.mxu0 0.0
        %3490 = vmatpush2.msra.mxu0 0.0
        %3491 = vmatprep.subr.mxu0 0.0
        %3492 = vmatpush2.msra.mxu0 0.0
        %3493 = vmatprep.subr.mxu0 0.0
        %3494 = vmatpush2.msra.mxu0 0.0
        %3495 = vmatprep.subr.mxu0 0.0
        %3496 = vmatpush2.msra.mxu0 0.0
        %3497 = vmatprep.mubr.f32.mxu0 0.0
        %v3498 = vand.u32 %v1840, 4294901760
        %v3499 = vsub.f32 %v1840, %v3498
        %v3500 = vand.u32 %v3499, 4294901760
        %v3501 = vsub.f32 %v3499, %v3500
        %v3502 = vand.u32 %v3501, 4294901760
        %3503 = vmatmul.mubr.f32.gmra.mxu0 %v3502
        %v3504 = vpop.f32.mrf.mxu0
        %v3505 = vadd.f32 0.0, %v3504
        %v3506 = vpop.f32.mrf.mxu0
        %3507 = vmatprep.mubr.f32.mxu0 0.0
        %v3508 = vand.u32 %v1843, 4294901760
        %v3509 = vsub.f32 %v1843, %v3508
        %v3510 = vand.u32 %v3509, 4294901760
        %v3511 = vsub.f32 %v3509, %v3510
        %v3512 = vand.u32 %v3511, 4294901760
        %3513 = vmatmul.mubr.f32.gmra.mxu0 %v3512
        %v3514 = vpop.f32.mrf.mxu0
        %v3515 = vadd.f32 0.0, %v3514
        %v3516 = vpop.f32.mrf.mxu0
        %3517 = vdwg.mxu0
        %3518 = vmatprep.subr.mxu0 0.0
        %3519 = vmatpush1.msra.mxu0 0.0
        %3520 = vmatprep.subr.mxu0 0.0
        %3521 = vmatpush1.msra.mxu0 0.0
        %3522 = vmatprep.subr.mxu0 0.0
        %3523 = vmatpush1.msra.mxu0 0.0
        %3524 = vmatprep.subr.mxu0 0.0
        %3525 = vmatpush1.msra.mxu0 0.0
        %3526 = vmatprep.subr.mxu0 0.0
        %3527 = vmatpush1.msra.mxu0 0.0
        %3528 = vmatprep.subr.mxu0 0.0
        %3529 = vmatpush1.msra.mxu0 0.0
        %3530 = vmatprep.subr.mxu0 0.0
        %3531 = vmatpush1.msra.mxu0 0.0
        %3532 = vmatprep.subr.mxu0 0.0
        %3533 = vmatpush1.msra.mxu0 0.0
        %3534 = vmatprep.subr.mxu0 0.0
        %3535 = vmatpush1.msra.mxu0 0.0
        %3536 = vmatprep.subr.mxu0 0.0
        %3537 = vmatpush1.msra.mxu0 0.0
        %3538 = vmatprep.subr.mxu0 0.0
        %3539 = vmatpush1.msra.mxu0 0.0
        %3540 = vmatprep.subr.mxu0 0.0
        %3541 = vmatpush1.msra.mxu0 0.0
        %3542 = vmatprep.subr.mxu0 0.0
        %v3543 = vand.u32 %v1791, 4294901760
        %v3544 = vsub.f32 %v1791, %v3543
        %v3545 = vand.u32 %v3544, 4294901760
        %v3546 = vsub.f32 %v3544, %v3545
        %v3547 = vand.u32 %v3546, 4294901760
        %3548 = vmatpush1.msra.mxu0 %v3547
        %3549 = vmatprep.subr.mxu0 0.0
        %v3550 = vand.u32 %v1785, 4294901760
        %v3551 = vsub.f32 %v1785, %v3550
        %v3552 = vand.u32 %v3551, 4294901760
        %v3553 = vsub.f32 %v3551, %v3552
        %v3554 = vand.u32 %v3553, 4294901760
        %3555 = vmatpush1.msra.mxu0 %v3554
        %3556 = vmatprep.subr.mxu0 0.0
        %v3557 = vand.u32 %v1779, 4294901760
        %v3558 = vsub.f32 %v1779, %v3557
        %v3559 = vand.u32 %v3558, 4294901760
        %v3560 = vsub.f32 %v3558, %v3559
        %v3561 = vand.u32 %v3560, 4294901760
        %3562 = vmatpush1.msra.mxu0 %v3561
        %3563 = vmatprep.subr.mxu0 0.0
        %v3564 = vand.u32 %v1773, 4294901760
        %v3565 = vsub.f32 %v1773, %v3564
        %v3566 = vand.u32 %v3565, 4294901760
        %v3567 = vsub.f32 %v3565, %v3566
        %v3568 = vand.u32 %v3567, 4294901760
        %3569 = vmatpush1.msra.mxu0 %v3568
        %3570 = vmatprep.subr.mxu0 0.0
        %3571 = vmatpush2.msra.mxu0 0.0
        %3572 = vmatprep.subr.mxu0 0.0
        %3573 = vmatpush2.msra.mxu0 0.0
        %3574 = vmatprep.subr.mxu0 0.0
        %3575 = vmatpush2.msra.mxu0 0.0
        %3576 = vmatprep.subr.mxu0 0.0
        %3577 = vmatpush2.msra.mxu0 0.0
        %3578 = vmatprep.subr.mxu0 0.0
        %3579 = vmatpush2.msra.mxu0 0.0
        %3580 = vmatprep.subr.mxu0 0.0
        %3581 = vmatpush2.msra.mxu0 0.0
        %3582 = vmatprep.subr.mxu0 0.0
        %3583 = vmatpush2.msra.mxu0 0.0
        %3584 = vmatprep.subr.mxu0 0.0
        %3585 = vmatpush2.msra.mxu0 0.0
        %3586 = vmatprep.subr.mxu0 0.0
        %3587 = vmatpush2.msra.mxu0 0.0
        %3588 = vmatprep.subr.mxu0 0.0
        %3589 = vmatpush2.msra.mxu0 0.0
        %3590 = vmatprep.subr.mxu0 0.0
        %3591 = vmatpush2.msra.mxu0 0.0
        %3592 = vmatprep.subr.mxu0 0.0
        %3593 = vmatpush2.msra.mxu0 0.0
        %3594 = vmatprep.subr.mxu0 0.0
        %3595 = vmatpush2.msra.mxu0 0.0
        %3596 = vmatprep.subr.mxu0 0.0
        %3597 = vmatpush2.msra.mxu0 0.0
        %3598 = vmatprep.subr.mxu0 0.0
        %3599 = vmatpush2.msra.mxu0 0.0
        %3600 = vmatprep.subr.mxu0 0.0
        %3601 = vmatpush2.msra.mxu0 0.0
        %3602 = vmatprep.mubr.f32.mxu0 0.0
        %v3603 = vand.u32 %v1840, 4294901760
        %3604 = vmatmul.mubr.f32.gmra.mxu0 %v3603
        %v3605 = vpop.f32.mrf.mxu0
        %v3606 = vadd.f32 %v3505, %v3605
        %v3607 = vpop.f32.mrf.mxu0
        %3608 = vmatprep.mubr.f32.mxu0 0.0
        %v3609 = vand.u32 %v1843, 4294901760
        %3610 = vmatmul.mubr.f32.gmra.mxu0 %v3609
        %v3611 = vpop.f32.mrf.mxu0
        %v3612 = vadd.f32 %v3515, %v3611
        %v3613 = vpop.f32.mrf.mxu0
        %3614 = vdwg.mxu0
        %3615 = vmatprep.subr.mxu0 0.0
        %3616 = vmatpush1.msra.mxu0 0.0
        %3617 = vmatprep.subr.mxu0 0.0
        %3618 = vmatpush1.msra.mxu0 0.0
        %3619 = vmatprep.subr.mxu0 0.0
        %3620 = vmatpush1.msra.mxu0 0.0
        %3621 = vmatprep.subr.mxu0 0.0
        %3622 = vmatpush1.msra.mxu0 0.0
        %3623 = vmatprep.subr.mxu0 0.0
        %3624 = vmatpush1.msra.mxu0 0.0
        %3625 = vmatprep.subr.mxu0 0.0
        %3626 = vmatpush1.msra.mxu0 0.0
        %3627 = vmatprep.subr.mxu0 0.0
        %3628 = vmatpush1.msra.mxu0 0.0
        %3629 = vmatprep.subr.mxu0 0.0
        %3630 = vmatpush1.msra.mxu0 0.0
        %3631 = vmatprep.subr.mxu0 0.0
        %3632 = vmatpush1.msra.mxu0 0.0
        %3633 = vmatprep.subr.mxu0 0.0
        %3634 = vmatpush1.msra.mxu0 0.0
        %3635 = vmatprep.subr.mxu0 0.0
        %3636 = vmatpush1.msra.mxu0 0.0
        %3637 = vmatprep.subr.mxu0 0.0
        %3638 = vmatpush1.msra.mxu0 0.0
        %3639 = vmatprep.subr.mxu0 0.0
        %v3640 = vand.u32 %v1791, 4294901760
        %v3641 = vsub.f32 %v1791, %v3640
        %3642 = vmatpush1.msra.mxu0 %v3641
        %3643 = vmatprep.subr.mxu0 0.0
        %v3644 = vand.u32 %v1785, 4294901760
        %v3645 = vsub.f32 %v1785, %v3644
        %3646 = vmatpush1.msra.mxu0 %v3645
        %3647 = vmatprep.subr.mxu0 0.0
        %v3648 = vand.u32 %v1779, 4294901760
        %v3649 = vsub.f32 %v1779, %v3648
        %3650 = vmatpush1.msra.mxu0 %v3649
        %3651 = vmatprep.subr.mxu0 0.0
        %v3652 = vand.u32 %v1773, 4294901760
        %v3653 = vsub.f32 %v1773, %v3652
        %3654 = vmatpush1.msra.mxu0 %v3653
        %3655 = vmatprep.subr.mxu0 0.0
        %3656 = vmatpush2.msra.mxu0 0.0
        %3657 = vmatprep.subr.mxu0 0.0
        %3658 = vmatpush2.msra.mxu0 0.0
        %3659 = vmatprep.subr.mxu0 0.0
        %3660 = vmatpush2.msra.mxu0 0.0
        %3661 = vmatprep.subr.mxu0 0.0
        %3662 = vmatpush2.msra.mxu0 0.0
        %3663 = vmatprep.subr.mxu0 0.0
        %3664 = vmatpush2.msra.mxu0 0.0
        %3665 = vmatprep.subr.mxu0 0.0
        %3666 = vmatpush2.msra.mxu0 0.0
        %3667 = vmatprep.subr.mxu0 0.0
        %3668 = vmatpush2.msra.mxu0 0.0
        %3669 = vmatprep.subr.mxu0 0.0
        %3670 = vmatpush2.msra.mxu0 0.0
        %3671 = vmatprep.subr.mxu0 0.0
        %3672 = vmatpush2.msra.mxu0 0.0
        %3673 = vmatprep.subr.mxu0 0.0
        %3674 = vmatpush2.msra.mxu0 0.0
        %3675 = vmatprep.subr.mxu0 0.0
        %3676 = vmatpush2.msra.mxu0 0.0
        %3677 = vmatprep.subr.mxu0 0.0
        %3678 = vmatpush2.msra.mxu0 0.0
        %3679 = vmatprep.subr.mxu0 0.0
        %3680 = vmatpush2.msra.mxu0 0.0
        %3681 = vmatprep.subr.mxu0 0.0
        %3682 = vmatpush2.msra.mxu0 0.0
        %3683 = vmatprep.subr.mxu0 0.0
        %3684 = vmatpush2.msra.mxu0 0.0
        %3685 = vmatprep.subr.mxu0 0.0
        %3686 = vmatpush2.msra.mxu0 0.0
        %3687 = vmatprep.mubr.f32.mxu0 0.0
        %v3688 = vand.u32 %v1840, 4294901760
        %v3689 = vsub.f32 %v1840, %v3688
        %3690 = vmatmul.mubr.f32.gmra.mxu0 %v3689
        %v3691 = vpop.f32.mrf.mxu0
        %v3692 = vadd.f32 %v3606, %v3691
        %v3693 = vpop.f32.mrf.mxu0
        %3694 = vmatprep.mubr.f32.mxu0 0.0
        %v3695 = vand.u32 %v1843, 4294901760
        %v3696 = vsub.f32 %v1843, %v3695
        %3697 = vmatmul.mubr.f32.gmra.mxu0 %v3696
        %v3698 = vpop.f32.mrf.mxu0
        %v3699 = vadd.f32 %v3612, %v3698
        %v3700 = vpop.f32.mrf.mxu0
        %3701 = vdwg.mxu0
        %3702 = vmatprep.subr.mxu0 0.0
        %3703 = vmatpush1.msra.mxu0 0.0
        %3704 = vmatprep.subr.mxu0 0.0
        %3705 = vmatpush1.msra.mxu0 0.0
        %3706 = vmatprep.subr.mxu0 0.0
        %3707 = vmatpush1.msra.mxu0 0.0
        %3708 = vmatprep.subr.mxu0 0.0
        %3709 = vmatpush1.msra.mxu0 0.0
        %3710 = vmatprep.subr.mxu0 0.0
        %3711 = vmatpush1.msra.mxu0 0.0
        %3712 = vmatprep.subr.mxu0 0.0
        %3713 = vmatpush1.msra.mxu0 0.0
        %3714 = vmatprep.subr.mxu0 0.0
        %3715 = vmatpush1.msra.mxu0 0.0
        %3716 = vmatprep.subr.mxu0 0.0
        %3717 = vmatpush1.msra.mxu0 0.0
        %3718 = vmatprep.subr.mxu0 0.0
        %3719 = vmatpush1.msra.mxu0 0.0
        %3720 = vmatprep.subr.mxu0 0.0
        %3721 = vmatpush1.msra.mxu0 0.0
        %3722 = vmatprep.subr.mxu0 0.0
        %3723 = vmatpush1.msra.mxu0 0.0
        %3724 = vmatprep.subr.mxu0 0.0
        %3725 = vmatpush1.msra.mxu0 0.0
        %3726 = vmatprep.subr.mxu0 0.0
        %v3727 = vand.u32 %v1791, 4294901760
        %3728 = vmatpush1.msra.mxu0 %v3727
        %3729 = vmatprep.subr.mxu0 0.0
        %v3730 = vand.u32 %v1785, 4294901760
        %3731 = vmatpush1.msra.mxu0 %v3730
        %3732 = vmatprep.subr.mxu0 0.0
        %v3733 = vand.u32 %v1779, 4294901760
        %3734 = vmatpush1.msra.mxu0 %v3733
        %3735 = vmatprep.subr.mxu0 0.0
        %v3736 = vand.u32 %v1773, 4294901760
        %3737 = vmatpush1.msra.mxu0 %v3736
        %3738 = vmatprep.subr.mxu0 0.0
        %3739 = vmatpush2.msra.mxu0 0.0
        %3740 = vmatprep.subr.mxu0 0.0
        %3741 = vmatpush2.msra.mxu0 0.0
        %3742 = vmatprep.subr.mxu0 0.0
        %3743 = vmatpush2.msra.mxu0 0.0
        %3744 = vmatprep.subr.mxu0 0.0
        %3745 = vmatpush2.msra.mxu0 0.0
        %3746 = vmatprep.subr.mxu0 0.0
        %3747 = vmatpush2.msra.mxu0 0.0
        %3748 = vmatprep.subr.mxu0 0.0
        %3749 = vmatpush2.msra.mxu0 0.0
        %3750 = vmatprep.subr.mxu0 0.0
        %3751 = vmatpush2.msra.mxu0 0.0
        %3752 = vmatprep.subr.mxu0 0.0
        %3753 = vmatpush2.msra.mxu0 0.0
        %3754 = vmatprep.subr.mxu0 0.0
        %3755 = vmatpush2.msra.mxu0 0.0
        %3756 = vmatprep.subr.mxu0 0.0
        %3757 = vmatpush2.msra.mxu0 0.0
        %3758 = vmatprep.subr.mxu0 0.0
        %3759 = vmatpush2.msra.mxu0 0.0
        %3760 = vmatprep.subr.mxu0 0.0
        %3761 = vmatpush2.msra.mxu0 0.0
        %3762 = vmatprep.subr.mxu0 0.0
        %3763 = vmatpush2.msra.mxu0 0.0
        %3764 = vmatprep.subr.mxu0 0.0
        %3765 = vmatpush2.msra.mxu0 0.0
        %3766 = vmatprep.subr.mxu0 0.0
        %3767 = vmatpush2.msra.mxu0 0.0
        %3768 = vmatprep.subr.mxu0 0.0
        %3769 = vmatpush2.msra.mxu0 0.0
        %3770 = vmatprep.mubr.f32.mxu0 0.0
        %v3771 = vand.u32 %v1840, 4294901760
        %v3772 = vsub.f32 %v1840, %v3771
        %v3773 = vand.u32 %v3772, 4294901760
        %3774 = vmatmul.mubr.f32.gmra.mxu0 %v3773
        %v3775 = vpop.f32.mrf.mxu0
        %v3776 = vadd.f32 %v3692, %v3775
        %v3777 = vpop.f32.mrf.mxu0
        %3778 = vmatprep.mubr.f32.mxu0 0.0
        %v3779 = vand.u32 %v1843, 4294901760
        %v3780 = vsub.f32 %v1843, %v3779
        %v3781 = vand.u32 %v3780, 4294901760
        %3782 = vmatmul.mubr.f32.gmra.mxu0 %v3781
        %v3783 = vpop.f32.mrf.mxu0
        %v3784 = vadd.f32 %v3699, %v3783
        %v3785 = vpop.f32.mrf.mxu0
        %3786 = vdwg.mxu0
        %3787 = vmatprep.subr.mxu0 0.0
        %3788 = vmatpush1.msra.mxu0 0.0
        %3789 = vmatprep.subr.mxu0 0.0
        %3790 = vmatpush1.msra.mxu0 0.0
        %3791 = vmatprep.subr.mxu0 0.0
        %3792 = vmatpush1.msra.mxu0 0.0
        %3793 = vmatprep.subr.mxu0 0.0
        %3794 = vmatpush1.msra.mxu0 0.0
        %3795 = vmatprep.subr.mxu0 0.0
        %3796 = vmatpush1.msra.mxu0 0.0
        %3797 = vmatprep.subr.mxu0 0.0
        %3798 = vmatpush1.msra.mxu0 0.0
        %3799 = vmatprep.subr.mxu0 0.0
        %3800 = vmatpush1.msra.mxu0 0.0
        %3801 = vmatprep.subr.mxu0 0.0
        %3802 = vmatpush1.msra.mxu0 0.0
        %3803 = vmatprep.subr.mxu0 0.0
        %3804 = vmatpush1.msra.mxu0 0.0
        %3805 = vmatprep.subr.mxu0 0.0
        %3806 = vmatpush1.msra.mxu0 0.0
        %3807 = vmatprep.subr.mxu0 0.0
        %3808 = vmatpush1.msra.mxu0 0.0
        %3809 = vmatprep.subr.mxu0 0.0
        %3810 = vmatpush1.msra.mxu0 0.0
        %3811 = vmatprep.subr.mxu0 0.0
        %v3812 = vand.u32 %v1791, 4294901760
        %v3813 = vsub.f32 %v1791, %v3812
        %v3814 = vand.u32 %v3813, 4294901760
        %3815 = vmatpush1.msra.mxu0 %v3814
        %3816 = vmatprep.subr.mxu0 0.0
        %v3817 = vand.u32 %v1785, 4294901760
        %v3818 = vsub.f32 %v1785, %v3817
        %v3819 = vand.u32 %v3818, 4294901760
        %3820 = vmatpush1.msra.mxu0 %v3819
        %3821 = vmatprep.subr.mxu0 0.0
        %v3822 = vand.u32 %v1779, 4294901760
        %v3823 = vsub.f32 %v1779, %v3822
        %v3824 = vand.u32 %v3823, 4294901760
        %3825 = vmatpush1.msra.mxu0 %v3824
        %3826 = vmatprep.subr.mxu0 0.0
        %v3827 = vand.u32 %v1773, 4294901760
        %v3828 = vsub.f32 %v1773, %v3827
        %v3829 = vand.u32 %v3828, 4294901760
        %3830 = vmatpush1.msra.mxu0 %v3829
        %3831 = vmatprep.subr.mxu0 0.0
        %3832 = vmatpush2.msra.mxu0 0.0
        %3833 = vmatprep.subr.mxu0 0.0
        %3834 = vmatpush2.msra.mxu0 0.0
        %3835 = vmatprep.subr.mxu0 0.0
        %3836 = vmatpush2.msra.mxu0 0.0
        %3837 = vmatprep.subr.mxu0 0.0
        %3838 = vmatpush2.msra.mxu0 0.0
        %3839 = vmatprep.subr.mxu0 0.0
        %3840 = vmatpush2.msra.mxu0 0.0
        %3841 = vmatprep.subr.mxu0 0.0
        %3842 = vmatpush2.msra.mxu0 0.0
        %3843 = vmatprep.subr.mxu0 0.0
        %3844 = vmatpush2.msra.mxu0 0.0
        %3845 = vmatprep.subr.mxu0 0.0
        %3846 = vmatpush2.msra.mxu0 0.0
        %3847 = vmatprep.subr.mxu0 0.0
        %3848 = vmatpush2.msra.mxu0 0.0
        %3849 = vmatprep.subr.mxu0 0.0
        %3850 = vmatpush2.msra.mxu0 0.0
        %3851 = vmatprep.subr.mxu0 0.0
        %3852 = vmatpush2.msra.mxu0 0.0
        %3853 = vmatprep.subr.mxu0 0.0
        %3854 = vmatpush2.msra.mxu0 0.0
        %3855 = vmatprep.subr.mxu0 0.0
        %3856 = vmatpush2.msra.mxu0 0.0
        %3857 = vmatprep.subr.mxu0 0.0
        %3858 = vmatpush2.msra.mxu0 0.0
        %3859 = vmatprep.subr.mxu0 0.0
        %3860 = vmatpush2.msra.mxu0 0.0
        %3861 = vmatprep.subr.mxu0 0.0
        %3862 = vmatpush2.msra.mxu0 0.0
        %3863 = vmatprep.mubr.f32.mxu0 0.0
        %v3864 = vand.u32 %v1840, 4294901760
        %3865 = vmatmul.mubr.f32.gmra.mxu0 %v3864
        %v3866 = vpop.f32.mrf.mxu0
        %v3867 = vadd.f32 %v3776, %v3866
        %v3868 = vpop.f32.mrf.mxu0
        %3869 = vmatprep.mubr.f32.mxu0 0.0
        %v3870 = vand.u32 %v1843, 4294901760
        %3871 = vmatmul.mubr.f32.gmra.mxu0 %v3870
        %v3872 = vpop.f32.mrf.mxu0
        %v3873 = vadd.f32 %v3784, %v3872
        %v3874 = vpop.f32.mrf.mxu0
        %3875 = vdwg.mxu0
        %3876 = vmatprep.subr.mxu0 0.0
        %3877 = vmatpush1.msra.mxu0 0.0
        %3878 = vmatprep.subr.mxu0 0.0
        %3879 = vmatpush1.msra.mxu0 0.0
        %3880 = vmatprep.subr.mxu0 0.0
        %3881 = vmatpush1.msra.mxu0 0.0
        %3882 = vmatprep.subr.mxu0 0.0
        %3883 = vmatpush1.msra.mxu0 0.0
        %3884 = vmatprep.subr.mxu0 0.0
        %3885 = vmatpush1.msra.mxu0 0.0
        %3886 = vmatprep.subr.mxu0 0.0
        %3887 = vmatpush1.msra.mxu0 0.0
        %3888 = vmatprep.subr.mxu0 0.0
        %3889 = vmatpush1.msra.mxu0 0.0
        %3890 = vmatprep.subr.mxu0 0.0
        %3891 = vmatpush1.msra.mxu0 0.0
        %3892 = vmatprep.subr.mxu0 0.0
        %3893 = vmatpush1.msra.mxu0 0.0
        %3894 = vmatprep.subr.mxu0 0.0
        %3895 = vmatpush1.msra.mxu0 0.0
        %3896 = vmatprep.subr.mxu0 0.0
        %3897 = vmatpush1.msra.mxu0 0.0
        %3898 = vmatprep.subr.mxu0 0.0
        %3899 = vmatpush1.msra.mxu0 0.0
        %3900 = vmatprep.subr.mxu0 0.0
        %v3901 = vand.u32 %v1791, 4294901760
        %3902 = vmatpush1.msra.mxu0 %v3901
        %3903 = vmatprep.subr.mxu0 0.0
        %v3904 = vand.u32 %v1785, 4294901760
        %3905 = vmatpush1.msra.mxu0 %v3904
        %3906 = vmatprep.subr.mxu0 0.0
        %v3907 = vand.u32 %v1779, 4294901760
        %3908 = vmatpush1.msra.mxu0 %v3907
        %3909 = vmatprep.subr.mxu0 0.0
        %v3910 = vand.u32 %v1773, 4294901760
        %3911 = vmatpush1.msra.mxu0 %v3910
        %3912 = vmatprep.subr.mxu0 0.0
        %3913 = vmatpush2.msra.mxu0 0.0
        %3914 = vmatprep.subr.mxu0 0.0
        %3915 = vmatpush2.msra.mxu0 0.0
        %3916 = vmatprep.subr.mxu0 0.0
        %3917 = vmatpush2.msra.mxu0 0.0
        %3918 = vmatprep.subr.mxu0 0.0
        %3919 = vmatpush2.msra.mxu0 0.0
        %3920 = vmatprep.subr.mxu0 0.0
        %3921 = vmatpush2.msra.mxu0 0.0
        %3922 = vmatprep.subr.mxu0 0.0
        %3923 = vmatpush2.msra.mxu0 0.0
        %3924 = vmatprep.subr.mxu0 0.0
        %3925 = vmatpush2.msra.mxu0 0.0
        %3926 = vmatprep.subr.mxu0 0.0
        %3927 = vmatpush2.msra.mxu0 0.0
        %3928 = vmatprep.subr.mxu0 0.0
        %3929 = vmatpush2.msra.mxu0 0.0
        %3930 = vmatprep.subr.mxu0 0.0
        %3931 = vmatpush2.msra.mxu0 0.0
        %3932 = vmatprep.subr.mxu0 0.0
        %3933 = vmatpush2.msra.mxu0 0.0
        %3934 = vmatprep.subr.mxu0 0.0
        %3935 = vmatpush2.msra.mxu0 0.0
        %3936 = vmatprep.subr.mxu0 0.0
        %3937 = vmatpush2.msra.mxu0 0.0
        %3938 = vmatprep.subr.mxu0 0.0
        %3939 = vmatpush2.msra.mxu0 0.0
        %3940 = vmatprep.subr.mxu0 0.0
        %3941 = vmatpush2.msra.mxu0 0.0
        %3942 = vmatprep.subr.mxu0 0.0
        %3943 = vmatpush2.msra.mxu0 0.0
        %3944 = vmatprep.mubr.f32.mxu0 0.0
        %v3945 = vand.u32 %v1840, 4294901760
        %3946 = vmatmul.mubr.f32.gmra.mxu0 %v3945
        %v3947 = vpop.f32.mrf.mxu0
        %v3948 = vadd.f32 %v3867, %v3947
        %v3949 = vpop.f32.mrf.mxu0
        %3950 = vmatprep.mubr.f32.mxu0 0.0
        %v3951 = vand.u32 %v1843, 4294901760
        %3952 = vmatmul.mubr.f32.gmra.mxu0 %v3951
        %v3953 = vpop.f32.mrf.mxu0
        %v3954 = vadd.f32 %v3873, %v3953
        %v3955 = vpop.f32.mrf.mxu0
        %3956 = vdwg.mxu0
        %3957 = vmatprep.subr.mxu0 0.0
        %3958 = vmatpush1.msra.mxu0 0.0
        %3959 = vmatprep.subr.mxu0 0.0
        %3960 = vmatpush1.msra.mxu0 0.0
        %3961 = vmatprep.subr.mxu0 0.0
        %3962 = vmatpush1.msra.mxu0 0.0
        %3963 = vmatprep.subr.mxu0 0.0
        %3964 = vmatpush1.msra.mxu0 0.0
        %3965 = vmatprep.subr.mxu0 0.0
        %3966 = vmatpush1.msra.mxu0 0.0
        %3967 = vmatprep.subr.mxu0 0.0
        %3968 = vmatpush1.msra.mxu0 0.0
        %3969 = vmatprep.subr.mxu0 0.0
        %3970 = vmatpush1.msra.mxu0 0.0
        %3971 = vmatprep.subr.mxu0 0.0
        %3972 = vmatpush1.msra.mxu0 0.0
        %3973 = vmatprep.subr.mxu0 0.0
        %3974 = vmatpush1.msra.mxu0 0.0
        %3975 = vmatprep.subr.mxu0 0.0
        %3976 = vmatpush1.msra.mxu0 0.0
        %3977 = vmatprep.subr.mxu0 0.0
        %3978 = vmatpush1.msra.mxu0 0.0
        %3979 = vmatprep.subr.mxu0 0.0
        %3980 = vmatpush1.msra.mxu0 0.0
        %3981 = vmatprep.subr.mxu0 0.0
        %v3982 = vand.u32 %v1815, 4294901760
        %3983 = vmatpush1.msra.mxu0 %v3982
        %3984 = vmatprep.subr.mxu0 0.0
        %v3985 = vand.u32 %v1809, 4294901760
        %3986 = vmatpush1.msra.mxu0 %v3985
        %3987 = vmatprep.subr.mxu0 0.0
        %v3988 = vand.u32 %v1803, 4294901760
        %3989 = vmatpush1.msra.mxu0 %v3988
        %3990 = vmatprep.subr.mxu0 0.0
        %v3991 = vand.u32 %v1797, 4294901760
        %3992 = vmatpush1.msra.mxu0 %v3991
        %3993 = vmatprep.subr.mxu0 0.0
        %3994 = vmatpush2.msra.mxu0 0.0
        %3995 = vmatprep.subr.mxu0 0.0
        %3996 = vmatpush2.msra.mxu0 0.0
        %3997 = vmatprep.subr.mxu0 0.0
        %3998 = vmatpush2.msra.mxu0 0.0
        %3999 = vmatprep.subr.mxu0 0.0
        %4000 = vmatpush2.msra.mxu0 0.0
        %4001 = vmatprep.subr.mxu0 0.0
        %4002 = vmatpush2.msra.mxu0 0.0
        %4003 = vmatprep.subr.mxu0 0.0
        %4004 = vmatpush2.msra.mxu0 0.0
        %4005 = vmatprep.subr.mxu0 0.0
        %4006 = vmatpush2.msra.mxu0 0.0
        %4007 = vmatprep.subr.mxu0 0.0
        %4008 = vmatpush2.msra.mxu0 0.0
        %4009 = vmatprep.subr.mxu0 0.0
        %4010 = vmatpush2.msra.mxu0 0.0
        %4011 = vmatprep.subr.mxu0 0.0
        %4012 = vmatpush2.msra.mxu0 0.0
        %4013 = vmatprep.subr.mxu0 0.0
        %4014 = vmatpush2.msra.mxu0 0.0
        %4015 = vmatprep.subr.mxu0 0.0
        %4016 = vmatpush2.msra.mxu0 0.0
        %4017 = vmatprep.subr.mxu0 0.0
        %4018 = vmatpush2.msra.mxu0 0.0
        %4019 = vmatprep.subr.mxu0 0.0
        %4020 = vmatpush2.msra.mxu0 0.0
        %4021 = vmatprep.subr.mxu0 0.0
        %4022 = vmatpush2.msra.mxu0 0.0
        %4023 = vmatprep.subr.mxu0 0.0
        %4024 = vmatpush2.msra.mxu0 0.0
        %4025 = vmatprep.mubr.f32.mxu0 0.0
        %v4026 = vand.u32 %v1840, 4294901760
        %v4027 = vsub.f32 %v1840, %v4026
        %v4028 = vand.u32 %v4027, 4294901760
        %v4029 = vsub.f32 %v4027, %v4028
        %v4030 = vand.u32 %v4029, 4294901760
        %4031 = vmatmul.mubr.f32.gmra.mxu0 %v4030
        %v4032 = vpop.f32.mrf.mxu0
        %v4033 = vadd.f32 0.0, %v4032
        %v4034 = vpop.f32.mrf.mxu0
        %4035 = vmatprep.mubr.f32.mxu0 0.0
        %v4036 = vand.u32 %v1843, 4294901760
        %v4037 = vsub.f32 %v1843, %v4036
        %v4038 = vand.u32 %v4037, 4294901760
        %v4039 = vsub.f32 %v4037, %v4038
        %v4040 = vand.u32 %v4039, 4294901760
        %4041 = vmatmul.mubr.f32.gmra.mxu0 %v4040
        %v4042 = vpop.f32.mrf.mxu0
        %v4043 = vadd.f32 0.0, %v4042
        %v4044 = vpop.f32.mrf.mxu0
        %4045 = vdwg.mxu0
        %4046 = vmatprep.subr.mxu0 0.0
        %4047 = vmatpush1.msra.mxu0 0.0
        %4048 = vmatprep.subr.mxu0 0.0
        %4049 = vmatpush1.msra.mxu0 0.0
        %4050 = vmatprep.subr.mxu0 0.0
        %4051 = vmatpush1.msra.mxu0 0.0
        %4052 = vmatprep.subr.mxu0 0.0
        %4053 = vmatpush1.msra.mxu0 0.0
        %4054 = vmatprep.subr.mxu0 0.0
        %4055 = vmatpush1.msra.mxu0 0.0
        %4056 = vmatprep.subr.mxu0 0.0
        %4057 = vmatpush1.msra.mxu0 0.0
        %4058 = vmatprep.subr.mxu0 0.0
        %4059 = vmatpush1.msra.mxu0 0.0
        %4060 = vmatprep.subr.mxu0 0.0
        %4061 = vmatpush1.msra.mxu0 0.0
        %4062 = vmatprep.subr.mxu0 0.0
        %4063 = vmatpush1.msra.mxu0 0.0
        %4064 = vmatprep.subr.mxu0 0.0
        %4065 = vmatpush1.msra.mxu0 0.0
        %4066 = vmatprep.subr.mxu0 0.0
        %4067 = vmatpush1.msra.mxu0 0.0
        %4068 = vmatprep.subr.mxu0 0.0
        %4069 = vmatpush1.msra.mxu0 0.0
        %4070 = vmatprep.subr.mxu0 0.0
        %v4071 = vand.u32 %v1815, 4294901760
        %v4072 = vsub.f32 %v1815, %v4071
        %v4073 = vand.u32 %v4072, 4294901760
        %v4074 = vsub.f32 %v4072, %v4073
        %v4075 = vand.u32 %v4074, 4294901760
        %4076 = vmatpush1.msra.mxu0 %v4075
        %4077 = vmatprep.subr.mxu0 0.0
        %v4078 = vand.u32 %v1809, 4294901760
        %v4079 = vsub.f32 %v1809, %v4078
        %v4080 = vand.u32 %v4079, 4294901760
        %v4081 = vsub.f32 %v4079, %v4080
        %v4082 = vand.u32 %v4081, 4294901760
        %4083 = vmatpush1.msra.mxu0 %v4082
        %4084 = vmatprep.subr.mxu0 0.0
        %v4085 = vand.u32 %v1803, 4294901760
        %v4086 = vsub.f32 %v1803, %v4085
        %v4087 = vand.u32 %v4086, 4294901760
        %v4088 = vsub.f32 %v4086, %v4087
        %v4089 = vand.u32 %v4088, 4294901760
        %4090 = vmatpush1.msra.mxu0 %v4089
        %4091 = vmatprep.subr.mxu0 0.0
        %v4092 = vand.u32 %v1797, 4294901760
        %v4093 = vsub.f32 %v1797, %v4092
        %v4094 = vand.u32 %v4093, 4294901760
        %v4095 = vsub.f32 %v4093, %v4094
        %v4096 = vand.u32 %v4095, 4294901760
        %4097 = vmatpush1.msra.mxu0 %v4096
        %4098 = vmatprep.subr.mxu0 0.0
        %4099 = vmatpush2.msra.mxu0 0.0
        %4100 = vmatprep.subr.mxu0 0.0
        %4101 = vmatpush2.msra.mxu0 0.0
        %4102 = vmatprep.subr.mxu0 0.0
        %4103 = vmatpush2.msra.mxu0 0.0
        %4104 = vmatprep.subr.mxu0 0.0
        %4105 = vmatpush2.msra.mxu0 0.0
        %4106 = vmatprep.subr.mxu0 0.0
        %4107 = vmatpush2.msra.mxu0 0.0
        %4108 = vmatprep.subr.mxu0 0.0
        %4109 = vmatpush2.msra.mxu0 0.0
        %4110 = vmatprep.subr.mxu0 0.0
        %4111 = vmatpush2.msra.mxu0 0.0
        %4112 = vmatprep.subr.mxu0 0.0
        %4113 = vmatpush2.msra.mxu0 0.0
        %4114 = vmatprep.subr.mxu0 0.0
        %4115 = vmatpush2.msra.mxu0 0.0
        %4116 = vmatprep.subr.mxu0 0.0
        %4117 = vmatpush2.msra.mxu0 0.0
        %4118 = vmatprep.subr.mxu0 0.0
        %4119 = vmatpush2.msra.mxu0 0.0
        %4120 = vmatprep.subr.mxu0 0.0
        %4121 = vmatpush2.msra.mxu0 0.0
        %4122 = vmatprep.subr.mxu0 0.0
        %4123 = vmatpush2.msra.mxu0 0.0
        %4124 = vmatprep.subr.mxu0 0.0
        %4125 = vmatpush2.msra.mxu0 0.0
        %4126 = vmatprep.subr.mxu0 0.0
        %4127 = vmatpush2.msra.mxu0 0.0
        %4128 = vmatprep.subr.mxu0 0.0
        %4129 = vmatpush2.msra.mxu0 0.0
        %4130 = vmatprep.mubr.f32.mxu0 0.0
        %v4131 = vand.u32 %v1840, 4294901760
        %4132 = vmatmul.mubr.f32.gmra.mxu0 %v4131
        %v4133 = vpop.f32.mrf.mxu0
        %v4134 = vadd.f32 %v4033, %v4133
        %v4135 = vpop.f32.mrf.mxu0
        %4136 = vmatprep.mubr.f32.mxu0 0.0
        %v4137 = vand.u32 %v1843, 4294901760
        %4138 = vmatmul.mubr.f32.gmra.mxu0 %v4137
        %v4139 = vpop.f32.mrf.mxu0
        %v4140 = vadd.f32 %v4043, %v4139
        %v4141 = vpop.f32.mrf.mxu0
        %4142 = vdwg.mxu0
        %4143 = vmatprep.subr.mxu0 0.0
        %4144 = vmatpush1.msra.mxu0 0.0
        %4145 = vmatprep.subr.mxu0 0.0
        %4146 = vmatpush1.msra.mxu0 0.0
        %4147 = vmatprep.subr.mxu0 0.0
        %4148 = vmatpush1.msra.mxu0 0.0
        %4149 = vmatprep.subr.mxu0 0.0
        %4150 = vmatpush1.msra.mxu0 0.0
        %4151 = vmatprep.subr.mxu0 0.0
        %4152 = vmatpush1.msra.mxu0 0.0
        %4153 = vmatprep.subr.mxu0 0.0
        %4154 = vmatpush1.msra.mxu0 0.0
        %4155 = vmatprep.subr.mxu0 0.0
        %4156 = vmatpush1.msra.mxu0 0.0
        %4157 = vmatprep.subr.mxu0 0.0
        %4158 = vmatpush1.msra.mxu0 0.0
        %4159 = vmatprep.subr.mxu0 0.0
        %4160 = vmatpush1.msra.mxu0 0.0
        %4161 = vmatprep.subr.mxu0 0.0
        %4162 = vmatpush1.msra.mxu0 0.0
        %4163 = vmatprep.subr.mxu0 0.0
        %4164 = vmatpush1.msra.mxu0 0.0
        %4165 = vmatprep.subr.mxu0 0.0
        %4166 = vmatpush1.msra.mxu0 0.0
        %4167 = vmatprep.subr.mxu0 0.0
        %v4168 = vand.u32 %v1815, 4294901760
        %v4169 = vsub.f32 %v1815, %v4168
        %4170 = vmatpush1.msra.mxu0 %v4169
        %4171 = vmatprep.subr.mxu0 0.0
        %v4172 = vand.u32 %v1809, 4294901760
        %v4173 = vsub.f32 %v1809, %v4172
        %4174 = vmatpush1.msra.mxu0 %v4173
        %4175 = vmatprep.subr.mxu0 0.0
        %v4176 = vand.u32 %v1803, 4294901760
        %v4177 = vsub.f32 %v1803, %v4176
        %4178 = vmatpush1.msra.mxu0 %v4177
        %4179 = vmatprep.subr.mxu0 0.0
        %v4180 = vand.u32 %v1797, 4294901760
        %v4181 = vsub.f32 %v1797, %v4180
        %4182 = vmatpush1.msra.mxu0 %v4181
        %4183 = vmatprep.subr.mxu0 0.0
        %4184 = vmatpush2.msra.mxu0 0.0
        %4185 = vmatprep.subr.mxu0 0.0
        %4186 = vmatpush2.msra.mxu0 0.0
        %4187 = vmatprep.subr.mxu0 0.0
        %4188 = vmatpush2.msra.mxu0 0.0
        %4189 = vmatprep.subr.mxu0 0.0
        %4190 = vmatpush2.msra.mxu0 0.0
        %4191 = vmatprep.subr.mxu0 0.0
        %4192 = vmatpush2.msra.mxu0 0.0
        %4193 = vmatprep.subr.mxu0 0.0
        %4194 = vmatpush2.msra.mxu0 0.0
        %4195 = vmatprep.subr.mxu0 0.0
        %4196 = vmatpush2.msra.mxu0 0.0
        %4197 = vmatprep.subr.mxu0 0.0
        %4198 = vmatpush2.msra.mxu0 0.0
        %4199 = vmatprep.subr.mxu0 0.0
        %4200 = vmatpush2.msra.mxu0 0.0
        %4201 = vmatprep.subr.mxu0 0.0
        %4202 = vmatpush2.msra.mxu0 0.0
        %4203 = vmatprep.subr.mxu0 0.0
        %4204 = vmatpush2.msra.mxu0 0.0
        %4205 = vmatprep.subr.mxu0 0.0
        %4206 = vmatpush2.msra.mxu0 0.0
        %4207 = vmatprep.subr.mxu0 0.0
        %4208 = vmatpush2.msra.mxu0 0.0
        %4209 = vmatprep.subr.mxu0 0.0
        %4210 = vmatpush2.msra.mxu0 0.0
        %4211 = vmatprep.subr.mxu0 0.0
        %4212 = vmatpush2.msra.mxu0 0.0
        %4213 = vmatprep.subr.mxu0 0.0
        %4214 = vmatpush2.msra.mxu0 0.0
        %4215 = vmatprep.mubr.f32.mxu0 0.0
        %v4216 = vand.u32 %v1840, 4294901760
        %v4217 = vsub.f32 %v1840, %v4216
        %4218 = vmatmul.mubr.f32.gmra.mxu0 %v4217
        %v4219 = vpop.f32.mrf.mxu0
        %v4220 = vadd.f32 %v4134, %v4219
        %v4221 = vpop.f32.mrf.mxu0
        %4222 = vmatprep.mubr.f32.mxu0 0.0
        %v4223 = vand.u32 %v1843, 4294901760
        %v4224 = vsub.f32 %v1843, %v4223
        %4225 = vmatmul.mubr.f32.gmra.mxu0 %v4224
        %v4226 = vpop.f32.mrf.mxu0
        %v4227 = vadd.f32 %v4140, %v4226
        %v4228 = vpop.f32.mrf.mxu0
        %4229 = vdwg.mxu0
        %4230 = vmatprep.subr.mxu0 0.0
        %4231 = vmatpush1.msra.mxu0 0.0
        %4232 = vmatprep.subr.mxu0 0.0
        %4233 = vmatpush1.msra.mxu0 0.0
        %4234 = vmatprep.subr.mxu0 0.0
        %4235 = vmatpush1.msra.mxu0 0.0
        %4236 = vmatprep.subr.mxu0 0.0
        %4237 = vmatpush1.msra.mxu0 0.0
        %4238 = vmatprep.subr.mxu0 0.0
        %4239 = vmatpush1.msra.mxu0 0.0
        %4240 = vmatprep.subr.mxu0 0.0
        %4241 = vmatpush1.msra.mxu0 0.0
        %4242 = vmatprep.subr.mxu0 0.0
        %4243 = vmatpush1.msra.mxu0 0.0
        %4244 = vmatprep.subr.mxu0 0.0
        %4245 = vmatpush1.msra.mxu0 0.0
        %4246 = vmatprep.subr.mxu0 0.0
        %4247 = vmatpush1.msra.mxu0 0.0
        %4248 = vmatprep.subr.mxu0 0.0
        %4249 = vmatpush1.msra.mxu0 0.0
        %4250 = vmatprep.subr.mxu0 0.0
        %4251 = vmatpush1.msra.mxu0 0.0
        %4252 = vmatprep.subr.mxu0 0.0
        %4253 = vmatpush1.msra.mxu0 0.0
        %4254 = vmatprep.subr.mxu0 0.0
        %v4255 = vand.u32 %v1815, 4294901760
        %4256 = vmatpush1.msra.mxu0 %v4255
        %4257 = vmatprep.subr.mxu0 0.0
        %v4258 = vand.u32 %v1809, 4294901760
        %4259 = vmatpush1.msra.mxu0 %v4258
        %4260 = vmatprep.subr.mxu0 0.0
        %v4261 = vand.u32 %v1803, 4294901760
        %4262 = vmatpush1.msra.mxu0 %v4261
        %4263 = vmatprep.subr.mxu0 0.0
        %v4264 = vand.u32 %v1797, 4294901760
        %4265 = vmatpush1.msra.mxu0 %v4264
        %4266 = vmatprep.subr.mxu0 0.0
        %4267 = vmatpush2.msra.mxu0 0.0
        %4268 = vmatprep.subr.mxu0 0.0
        %4269 = vmatpush2.msra.mxu0 0.0
        %4270 = vmatprep.subr.mxu0 0.0
        %4271 = vmatpush2.msra.mxu0 0.0
        %4272 = vmatprep.subr.mxu0 0.0
        %4273 = vmatpush2.msra.mxu0 0.0
        %4274 = vmatprep.subr.mxu0 0.0
        %4275 = vmatpush2.msra.mxu0 0.0
        %4276 = vmatprep.subr.mxu0 0.0
        %4277 = vmatpush2.msra.mxu0 0.0
        %4278 = vmatprep.subr.mxu0 0.0
        %4279 = vmatpush2.msra.mxu0 0.0
        %4280 = vmatprep.subr.mxu0 0.0
        %4281 = vmatpush2.msra.mxu0 0.0
        %4282 = vmatprep.subr.mxu0 0.0
        %4283 = vmatpush2.msra.mxu0 0.0
        %4284 = vmatprep.subr.mxu0 0.0
        %4285 = vmatpush2.msra.mxu0 0.0
        %4286 = vmatprep.subr.mxu0 0.0
        %4287 = vmatpush2.msra.mxu0 0.0
        %4288 = vmatprep.subr.mxu0 0.0
        %4289 = vmatpush2.msra.mxu0 0.0
        %4290 = vmatprep.subr.mxu0 0.0
        %4291 = vmatpush2.msra.mxu0 0.0
        %4292 = vmatprep.subr.mxu0 0.0
        %4293 = vmatpush2.msra.mxu0 0.0
        %4294 = vmatprep.subr.mxu0 0.0
        %4295 = vmatpush2.msra.mxu0 0.0
        %4296 = vmatprep.subr.mxu0 0.0
        %4297 = vmatpush2.msra.mxu0 0.0
        %4298 = vmatprep.mubr.f32.mxu0 0.0
        %v4299 = vand.u32 %v1840, 4294901760
        %v4300 = vsub.f32 %v1840, %v4299
        %v4301 = vand.u32 %v4300, 4294901760
        %4302 = vmatmul.mubr.f32.gmra.mxu0 %v4301
        %v4303 = vpop.f32.mrf.mxu0
        %v4304 = vadd.f32 %v4220, %v4303
        %v4305 = vpop.f32.mrf.mxu0
        %4306 = vmatprep.mubr.f32.mxu0 0.0
        %v4307 = vand.u32 %v1843, 4294901760
        %v4308 = vsub.f32 %v1843, %v4307
        %v4309 = vand.u32 %v4308, 4294901760
        %4310 = vmatmul.mubr.f32.gmra.mxu0 %v4309
        %v4311 = vpop.f32.mrf.mxu0
        %v4312 = vadd.f32 %v4227, %v4311
        %v4313 = vpop.f32.mrf.mxu0
        %4314 = vdwg.mxu0
        %4315 = vmatprep.subr.mxu0 0.0
        %4316 = vmatpush1.msra.mxu0 0.0
        %4317 = vmatprep.subr.mxu0 0.0
        %4318 = vmatpush1.msra.mxu0 0.0
        %4319 = vmatprep.subr.mxu0 0.0
        %4320 = vmatpush1.msra.mxu0 0.0
        %4321 = vmatprep.subr.mxu0 0.0
        %4322 = vmatpush1.msra.mxu0 0.0
        %4323 = vmatprep.subr.mxu0 0.0
        %4324 = vmatpush1.msra.mxu0 0.0
        %4325 = vmatprep.subr.mxu0 0.0
        %4326 = vmatpush1.msra.mxu0 0.0
        %4327 = vmatprep.subr.mxu0 0.0
        %4328 = vmatpush1.msra.mxu0 0.0
        %4329 = vmatprep.subr.mxu0 0.0
        %4330 = vmatpush1.msra.mxu0 0.0
        %4331 = vmatprep.subr.mxu0 0.0
        %4332 = vmatpush1.msra.mxu0 0.0
        %4333 = vmatprep.subr.mxu0 0.0
        %4334 = vmatpush1.msra.mxu0 0.0
        %4335 = vmatprep.subr.mxu0 0.0
        %4336 = vmatpush1.msra.mxu0 0.0
        %4337 = vmatprep.subr.mxu0 0.0
        %4338 = vmatpush1.msra.mxu0 0.0
        %4339 = vmatprep.subr.mxu0 0.0
        %v4340 = vand.u32 %v1815, 4294901760
        %v4341 = vsub.f32 %v1815, %v4340
        %v4342 = vand.u32 %v4341, 4294901760
        %4343 = vmatpush1.msra.mxu0 %v4342
        %4344 = vmatprep.subr.mxu0 0.0
        %v4345 = vand.u32 %v1809, 4294901760
        %v4346 = vsub.f32 %v1809, %v4345
        %v4347 = vand.u32 %v4346, 4294901760
        %4348 = vmatpush1.msra.mxu0 %v4347
        %4349 = vmatprep.subr.mxu0 0.0
        %v4350 = vand.u32 %v1803, 4294901760
        %v4351 = vsub.f32 %v1803, %v4350
        %v4352 = vand.u32 %v4351, 4294901760
        %4353 = vmatpush1.msra.mxu0 %v4352
        %4354 = vmatprep.subr.mxu0 0.0
        %v4355 = vand.u32 %v1797, 4294901760
        %v4356 = vsub.f32 %v1797, %v4355
        %v4357 = vand.u32 %v4356, 4294901760
        %4358 = vmatpush1.msra.mxu0 %v4357
        %4359 = vmatprep.subr.mxu0 0.0
        %4360 = vmatpush2.msra.mxu0 0.0
        %4361 = vmatprep.subr.mxu0 0.0
        %4362 = vmatpush2.msra.mxu0 0.0
        %4363 = vmatprep.subr.mxu0 0.0
        %4364 = vmatpush2.msra.mxu0 0.0
        %4365 = vmatprep.subr.mxu0 0.0
        %4366 = vmatpush2.msra.mxu0 0.0
        %4367 = vmatprep.subr.mxu0 0.0
        %4368 = vmatpush2.msra.mxu0 0.0
        %4369 = vmatprep.subr.mxu0 0.0
        %4370 = vmatpush2.msra.mxu0 0.0
        %4371 = vmatprep.subr.mxu0 0.0
        %4372 = vmatpush2.msra.mxu0 0.0
        %4373 = vmatprep.subr.mxu0 0.0
        %4374 = vmatpush2.msra.mxu0 0.0
        %4375 = vmatprep.subr.mxu0 0.0
        %4376 = vmatpush2.msra.mxu0 0.0
        %4377 = vmatprep.subr.mxu0 0.0
        %4378 = vmatpush2.msra.mxu0 0.0
        %4379 = vmatprep.subr.mxu0 0.0
        %4380 = vmatpush2.msra.mxu0 0.0
        %4381 = vmatprep.subr.mxu0 0.0
        %4382 = vmatpush2.msra.mxu0 0.0
        %4383 = vmatprep.subr.mxu0 0.0
        %4384 = vmatpush2.msra.mxu0 0.0
        %4385 = vmatprep.subr.mxu0 0.0
        %4386 = vmatpush2.msra.mxu0 0.0
        %4387 = vmatprep.subr.mxu0 0.0
        %4388 = vmatpush2.msra.mxu0 0.0
        %4389 = vmatprep.subr.mxu0 0.0
        %4390 = vmatpush2.msra.mxu0 0.0
        %4391 = vmatprep.mubr.f32.mxu0 0.0
        %v4392 = vand.u32 %v1840, 4294901760
        %4393 = vmatmul.mubr.f32.gmra.mxu0 %v4392
        %v4394 = vpop.f32.mrf.mxu0
        %v4395 = vadd.f32 %v4304, %v4394
        %v4396 = vpop.f32.mrf.mxu0
        %4397 = vmatprep.mubr.f32.mxu0 0.0
        %v4398 = vand.u32 %v1843, 4294901760
        %4399 = vmatmul.mubr.f32.gmra.mxu0 %v4398
        %v4400 = vpop.f32.mrf.mxu0
        %v4401 = vadd.f32 %v4312, %v4400
        %v4402 = vpop.f32.mrf.mxu0
        %4403 = vdwg.mxu0
        %4404 = vmatprep.subr.mxu0 0.0
        %4405 = vmatpush1.msra.mxu0 0.0
        %4406 = vmatprep.subr.mxu0 0.0
        %4407 = vmatpush1.msra.mxu0 0.0
        %4408 = vmatprep.subr.mxu0 0.0
        %4409 = vmatpush1.msra.mxu0 0.0
        %4410 = vmatprep.subr.mxu0 0.0
        %4411 = vmatpush1.msra.mxu0 0.0
        %4412 = vmatprep.subr.mxu0 0.0
        %4413 = vmatpush1.msra.mxu0 0.0
        %4414 = vmatprep.subr.mxu0 0.0
        %4415 = vmatpush1.msra.mxu0 0.0
        %4416 = vmatprep.subr.mxu0 0.0
        %4417 = vmatpush1.msra.mxu0 0.0
        %4418 = vmatprep.subr.mxu0 0.0
        %4419 = vmatpush1.msra.mxu0 0.0
        %4420 = vmatprep.subr.mxu0 0.0
        %4421 = vmatpush1.msra.mxu0 0.0
        %4422 = vmatprep.subr.mxu0 0.0
        %4423 = vmatpush1.msra.mxu0 0.0
        %4424 = vmatprep.subr.mxu0 0.0
        %4425 = vmatpush1.msra.mxu0 0.0
        %4426 = vmatprep.subr.mxu0 0.0
        %4427 = vmatpush1.msra.mxu0 0.0
        %4428 = vmatprep.subr.mxu0 0.0
        %v4429 = vand.u32 %v1815, 4294901760
        %4430 = vmatpush1.msra.mxu0 %v4429
        %4431 = vmatprep.subr.mxu0 0.0
        %v4432 = vand.u32 %v1809, 4294901760
        %4433 = vmatpush1.msra.mxu0 %v4432
        %4434 = vmatprep.subr.mxu0 0.0
        %v4435 = vand.u32 %v1803, 4294901760
        %4436 = vmatpush1.msra.mxu0 %v4435
        %4437 = vmatprep.subr.mxu0 0.0
        %v4438 = vand.u32 %v1797, 4294901760
        %4439 = vmatpush1.msra.mxu0 %v4438
        %4440 = vmatprep.subr.mxu0 0.0
        %4441 = vmatpush2.msra.mxu0 0.0
        %4442 = vmatprep.subr.mxu0 0.0
        %4443 = vmatpush2.msra.mxu0 0.0
        %4444 = vmatprep.subr.mxu0 0.0
        %4445 = vmatpush2.msra.mxu0 0.0
        %4446 = vmatprep.subr.mxu0 0.0
        %4447 = vmatpush2.msra.mxu0 0.0
        %4448 = vmatprep.subr.mxu0 0.0
        %4449 = vmatpush2.msra.mxu0 0.0
        %4450 = vmatprep.subr.mxu0 0.0
        %4451 = vmatpush2.msra.mxu0 0.0
        %4452 = vmatprep.subr.mxu0 0.0
        %4453 = vmatpush2.msra.mxu0 0.0
        %4454 = vmatprep.subr.mxu0 0.0
        %4455 = vmatpush2.msra.mxu0 0.0
        %4456 = vmatprep.subr.mxu0 0.0
        %4457 = vmatpush2.msra.mxu0 0.0
        %4458 = vmatprep.subr.mxu0 0.0
        %4459 = vmatpush2.msra.mxu0 0.0
        %4460 = vmatprep.subr.mxu0 0.0
        %4461 = vmatpush2.msra.mxu0 0.0
        %4462 = vmatprep.subr.mxu0 0.0
        %4463 = vmatpush2.msra.mxu0 0.0
        %4464 = vmatprep.subr.mxu0 0.0
        %4465 = vmatpush2.msra.mxu0 0.0
        %4466 = vmatprep.subr.mxu0 0.0
        %4467 = vmatpush2.msra.mxu0 0.0
        %4468 = vmatprep.subr.mxu0 0.0
        %4469 = vmatpush2.msra.mxu0 0.0
        %4470 = vmatprep.subr.mxu0 0.0
        %4471 = vmatpush2.msra.mxu0 0.0
        %4472 = vmatprep.mubr.f32.mxu0 0.0
        %v4473 = vand.u32 %v1840, 4294901760
        %4474 = vmatmul.mubr.f32.gmra.mxu0 %v4473
        %v4475 = vpop.f32.mrf.mxu0
        %v4476 = vadd.f32 %v4395, %v4475
        %v4477 = vpop.f32.mrf.mxu0
        %4478 = vmatprep.mubr.f32.mxu0 0.0
        %v4479 = vand.u32 %v1843, 4294901760
        %4480 = vmatmul.mubr.f32.gmra.mxu0 %v4479
        %v4481 = vpop.f32.mrf.mxu0
        %v4482 = vadd.f32 %v4401, %v4481
        %v4483 = vpop.f32.mrf.mxu0
        %4484 = vdwg.mxu0
        %v4485 = vmul.f32 %v2364, %v2364
        %v4486 = vmul.f32 %v2370, %v2370
        %v4487 = vmul.f32 %v2892, %v2892
        %v4488 = vmul.f32 %v2898, %v2898
        %v4489 = vmul.f32 %v2364, %v2892
        %v4490 = vmul.f32 %v2370, %v2898
        %v4491 = vsub.f32 %v3420, %v4485
        %v4492 = vsub.f32 %v3426, %v4486
        %v4493 = vsub.f32 %v3948, %v4487
        %v4494 = vsub.f32 %v3954, %v4488
        %v4495 = vsub.f32 %v4476, %v4489
        %v4496 = vsub.f32 %v4482, %v4490
        %v4497 = vmul.f32 %v4489, 2.0
        %v4498 = vmul.f32 %v4490, 2.0
        %v4499 = vadd.f32 %v4497, 0.0001
        %v4500 = vadd.f32 %v4498, 0.0001
        %v4501 = vmul.f32 %v4495, 2.0
        %v4502 = vmul.f32 %v4496, 2.0
        %v4503 = vadd.f32 %v4501, 0.0009
        %v4504 = vadd.f32 %v4502, 0.0009
        %v4505 = vmul.f32 %v4499, %v4503
        %v4506 = vmul.f32 %v4500, %v4504
        %v4507 = vadd.f32 %v4485, %v4487
        %v4508 = vadd.f32 %v4486, %v4488
        %v4509 = vadd.f32 %v4507, 0.0001
        %v4510 = vadd.f32 %v4508, 0.0001
        %v4511 = vadd.f32 %v4491, %v4493
        %v4512 = vadd.f32 %v4492, %v4494
        %v4513 = vadd.f32 %v4511, 0.0009
        %v4514 = vadd.f32 %v4512, 0.0009
        %v4515 = vmul.f32 %v4509, %v4513
        %v4516 = vmul.f32 %v4510, %v4514
        %v4517 = vrcp.pop %v4515
        %v4518 = vrcp.pop %v4516
        %v4519 = vmul.f32 %v4515, %v4517
        %v4520 = vmul.f32 %v4516, %v4518
        %v4521 = vsub.f32 2.0, %v4519
        %v4522 = vsub.f32 2.0, %v4520
        %v4523 = vmul.f32 %v4517, %v4521
        %v4524 = vmul.f32 %v4518, %v4522
        %v4525 = vmul.f32 %v4505, %v4523
        %v4526 = vmul.f32 %v4506, %v4524
        %s4527 = smul.u32 %s20, 4
        %v4528 = vstv %s4527
        %v4529 = vadd.s32 %v4528, %v1837
        %vm4530 = vcmp.lt.s32.totalorder %v4529, 8
        %vm4531 = vmand %vm1828, %vm4530
        %vm4532 = vmand %vm1829, %vm4530
        %v4533 = vsel %vm4531, %v4525, 0.0
        %v4534 = vsel %vm4532, %v4526, 0.0
        %v4535 = vadd.f32 %v4533, %v4534
        %4536 = vadd.xlane.f32.xlu0 %v4535
        %v4537 = vpop.xlane.xlu0 %4536
        %v4538 = vrot.slane %v4537, 4
        %v4539 = vadd.f32 %v4537, %v4538
        %v4540 = vrot.slane %v4539, 2
        %v4541 = vadd.f32 %v4539, %v4540
        %v4542 = vrot.slane %v4541, 1
        %v4543 = vadd.f32 %v4541, %v4542
        %s4544 = vtos %v4543
        %s4545 = sadd.f32 %s4544, 0.0
        %v4546 = vstv %s4545
        %4547 = vst [vmem:[%s279] sm:$0xff] %v4546
        %s4548 = sand.u32 %s122, 1
        %s4549 = scalar_lea.sflag [#allocation5], %s4548
        %s4550 = sand.u32 %s122, 1
        %s4551 = smul.addr %s4550, 8
        %s4552 = scalar_lea.vmem [#allocation10], %s4551
        // Predicated region
        $region53: #{tpu_custom_call.1} parent=35 // pred_check
          %p4553 = pneg %p132
        $region54: #{tpu_custom_call.1} parent=35 // pred_check_branch
          %4555 = sbr.rel (%p4553) target = $region56
        $region55: #{tpu_custom_call.1} parent=35 // pred_region
          %s4557 = ssub.s32 128, 128
          %4558 = vsyncadd %s4549, %s4557
          %s4559 = smul.addr %s20, 128
          %s4560 = scalar_lea.hbm %s4, %s4559
          %s4562 = sshll.u32 %s4552, 4
          %s4563 = int_to_ptr.vmem [resolvable:$true] %s4562
          %4565 = dma.vmem_to_hbm [thread:$0]  %s4563, 128, %s4560, %s4549
        $region56: #{tpu_custom_call.1} parent=35 // pred_fallthru
          _
      $region36: #{tpu_custom_call.1} parent=5 // pred_fallthru
        _
      %p4566 = scmp.le.s32.totalorder 2, %s15
      // Predicated region
      $region57: #{tpu_custom_call.1} parent=5 // pred_check
        %p4567 = pneg %p4566
      $region58: #{tpu_custom_call.1} parent=5 // pred_check_branch
        %4569 = sbr.rel (%p4567) target = $region60
      $region59: #{tpu_custom_call.1} parent=5 // pred_region
        %s4570 = ssub.s32 %s15, 2
        // Predicated region
        $region61: #{tpu_custom_call.1} parent=59 // pred_check
          %p4571 = pneg %p138
        $region62: #{tpu_custom_call.1} parent=59 // pred_check_branch
          %4573 = sbr.rel (%p4571) target = $region64
        $region63: #{tpu_custom_call.1} parent=59 // pred_region
          %s4574 = sand.u32 %s123, 1
          %s4575 = scalar_lea.sflag [#allocation5], %s4574
          %s4576 = sand.u32 %s123, 1
          %s4577 = smul.addr %s4576, 8
          %s4578 = scalar_lea.vmem [#allocation10], %s4577
          %4579 = dma.done %s4575, 128
        $region64: #{tpu_custom_call.1} parent=59 // pred_fallthru
          _
      $region60: #{tpu_custom_call.1} parent=5 // pred_fallthru
        _
    $region6: #{tpu_custom_call.1} parent=1 // loop_footer
      %s19 = sadd.s32 1, %s15
    $region7: #{tpu_custom_call.1} parent=1 // loop_footer_branch
      %14 = sbr.rel target = $region3
    $region8: #{tpu_custom_call.1} parent=1 // loop_exit
      _
    %4580 = vsyncpa [#allocation4], 1
    %s4581 = scalar_lea.sflag [#allocation4], 1
    %4582 = vsyncpa %s4581, 1
    %4583 = vsyncpa [#allocation7], 1
    %4584 = vsyncpa [#allocation5], 1
    %s4585 = scalar_lea.sflag [#allocation5], 1
    %4586 = vsyncpa %s4585, 1

// kernel: tpu_custom_call.1
$region0: #{tpu_custom_call.1}
  #allocation0 [shape = 'u32[]', space=smem, size = 0x4, offset = 0x4, fixed_abs, tag = 'smem constant byte address 0x4 - core index']
  #allocation1 [shape = 'u32[144,128]{1,0:T(1,128)}', space=vmem, size = 0x12000, scoped, tag = 'internal scratch']
  #allocation2 [shape = 'f32[5,32,128]{2,1,0:T(8,128)}', space=vmem, size = 0x14000, scoped, tag = 'scratch operand']
  %s0 = inlined_call_operand.hbm [shape: f32[16,32], index: 0, kind: input, shape index: {}]
  %s1 = inlined_call_operand.hbm [shape: f32[128,128], index: 1, kind: input, shape index: {}]
  %s2 = inlined_call_operand.hbm [shape: f32[2,32,128], index: 2, kind: input, shape index: {}]
  %s3 = inlined_call_operand.hbm [shape: f32[2,32,128], index: 3, kind: input, shape index: {}]
  %s4 = inlined_call_operand.hbm [shape: f32[2,8,128], index: 4, kind: output, shape index: {}]
  %s5 = sld [smem:[#allocation0]]
  $region65: #{tpu_custom_call.1} parent=0
    _
  %s7 = ssub.s32 1, %s5
  %s8 = scalar_select 0, %s7, %s5
  $region1: #{tpu_custom_call.1} parent=0
    #allocation3 [shape = 'u8[8192]{0}', space=vmem, size = 0x2000, scoped, tag = 'input window, operand 0, single buffered']
    #allocation4 [shape = 's32[2]{0}', space=sflag, size = 0x8, scoped, tag = 'scoped memory for tpu_custom_call.1']
    #allocation5 [shape = 's32[2]{0}', space=sflag, size = 0x8, scoped, tag = 'scoped memory for tpu_custom_call.1']
    #allocation6 [shape = 'u8[65536]{0}', space=vmem, size = 0x10000, scoped, tag = 'input window, operand 1, single buffered']
    #allocation7 [shape = 's32[1]{0}', space=sflag, size = 0x4, scoped, tag = 'scoped memory for tpu_custom_call.1']
    #allocation8 [shape = 'u8[32768]{0}', space=vmem, size = 0x8000, scoped, tag = 'input window, operand 2']
    #allocation9 [shape = 'u8[32768]{0}', space=vmem, size = 0x8000, scoped, tag = 'input window, operand 3']
    #allocation10 [shape = 'u8[8192]{0}', space=vmem, size = 0x2000, scoped, tag = 'output window, operand 0']
    %9 = vsyncpa [#allocation4], 0
    %10 = vsyncpa [#allocation7], 0
    %11 = vsyncpa [#allocation5], 0
    %s12 = scalar_lea.sflag [#allocation5], 1
    %13 = vsyncpa %s12, 0
    loop: start=0, step=1, limit=4
    $region2: #{tpu_custom_call.1} parent=1 // loop_pre_header
      _
    $region3: #{tpu_custom_call.1} parent=1 // loop_header
      %s15 = sphi 0, %s19
      %p16 = scmp.ge.s32.totalorder %s15, 4
      %s23 = sphi 0, %s23
      %s25 = sphi 0, %s23
      %s26 = sphi 0, %s25
      %s40 = sphi 0, %s26
      %s44 = sphi 0, %s44
      %s46 = sphi 0, %s44
      %s47 = sphi 0, %s46
      %s61 = sphi 0, %s47
      %s67 = sphi 0, %s69
      %s70 = sphi 0, %s67
      %s71 = sphi 0, %s70
      %s87 = sphi 0, %s71
      %s93 = sphi 0, %s95
      %s96 = sphi 0, %s93
      %s97 = sphi 0, %s96
      %s113 = sphi 0, %s97
      %s119 = sphi 0, %s121
      %s122 = sphi 0, %s119
      %s123 = sphi 0, %s122
      %s139 = sphi 0, %s123
    $region4: #{tpu_custom_call.1} parent=1 // loop_header_branch
      %18 = sbr.rel (%p16) target = $region8
    $region5: #{tpu_custom_call.1} parent=1 // loop_body
      %s20 = ssub.s32 %s15, 1
      %s21 = ssub.s32 %s15, 2
      %s22 = sadd.s32 %s15, 1
      %s24 = sadd.s32 %s23, 1
      %p27 = scmp.eq.s32.totalorder %s15, 1
      %p28 = scmp.ne.s32.totalorder %s23, %s25
      %p29 = scmp.eq.s32.totalorder %s15, 0
      %p30 = por %p28, %p29
      %p31 = scmp.ne.s32.totalorder %s23, %s25
      %p32 = scmp.eq.s32.totalorder %s20, 1
      %p33 = por %p31, %p32
      %p34 = scmp.ne.s32.totalorder %s25, %s26
      %p35 = scmp.eq.s32.totalorder %s20, 0
      %p36 = por %p34, %p35
      %p37 = scmp.ne.s32.totalorder %s25, %s26
      %p38 = scmp.eq.s32.totalorder %s21, 1
      %p39 = por %p37, %p38
      %p41 = scmp.ne.s32.totalorder %s26, %s40
      %p42 = scmp.eq.s32.totalorder %s21, 0
      %p43 = por %p41, %p42
      %s45 = sadd.s32 %s44, 1
      %p48 = scmp.eq.s32.totalorder %s15, 1
      %p49 = scmp.ne.s32.totalorder %s44, %s46
      %p50 = scmp.eq.s32.totalorder %s15, 0
      %p51 = por %p49, %p50
      %p52 = scmp.ne.s32.totalorder %s44, %s46
      %p53 = scmp.eq.s32.totalorder %s20, 1
      %p54 = por %p52, %p53
      %p55 = scmp.ne.s32.totalorder %s46, %s47
      %p56 = scmp.eq.s32.totalorder %s20, 0
      %p57 = por %p55, %p56
      %p58 = scmp.ne.s32.totalorder %s46, %s47
      %p59 = scmp.eq.s32.totalorder %s21, 1
      %p60 = por %p58, %p59
      %p62 = scmp.ne.s32.totalorder %s47, %s61
      %p63 = scmp.eq.s32.totalorder %s21, 0
      %p64 = por %p62, %p63
      %s65 = ssub.s32 %s15, %s22
      %p66 = scmp.eq.s32.totalorder %s65, 0
      %s68 = sadd.s32 %s67, 1
      %s69 = scalar_select %p66, %s67, %s68
      %p72 = pneg %p66
      %p73 = scmp.eq.s32.totalorder %s15, 1
      %p74 = por %p72, %p73
      %p75 = scmp.ne.s32.totalorder %s67, %s70
      %p76 = scmp.eq.s32.totalorder %s15, 0
      %p77 = por %p75, %p76
      %p78 = scmp.ne.s32.totalorder %s67, %s70
      %p79 = scmp.eq.s32.totalorder %s20, 1
      %p80 = por %p78, %p79
      %p81 = scmp.ne.s32.totalorder %s70, %s71
      %p82 = scmp.eq.s32.totalorder %s20, 0
      %p83 = por %p81, %p82
      %p84 = scmp.ne.s32.totalorder %s70, %s71
      %p85 = scmp.eq.s32.totalorder %s21, 1
      %p86 = por %p84, %p85
      %p88 = scmp.ne.s32.totalorder %s71, %s87
      %p89 = scmp.eq.s32.totalorder %s21, 0
      %p90 = por %p88, %p89
      %s91 = ssub.s32 %s15, %s22
      %p92 = scmp.eq.s32.totalorder %s91, 0
      %s94 = sadd.s32 %s93, 1
      %s95 = scalar_select %p92, %s93, %s94
      %p98 = pneg %p92
      %p99 = scmp.eq.s32.totalorder %s15, 1
      %p100 = por %p98, %p99
      %p101 = scmp.ne.s32.totalorder %s93, %s96
      %p102 = scmp.eq.s32.totalorder %s15, 0
      %p103 = por %p101, %p102
      %p104 = scmp.ne.s32.totalorder %s93, %s96
      %p105 = scmp.eq.s32.totalorder %s20, 1
      %p106 = por %p104, %p105
      %p107 = scmp.ne.s32.totalorder %s96, %s97
      %p108 = scmp.eq.s32.totalorder %s20, 0
      %p109 = por %p107, %p108
      %p110 = scmp.ne.s32.totalorder %s96, %s97
      %p111 = scmp.eq.s32.totalorder %s21, 1
      %p112 = por %p110, %p111
      %p114 = scmp.ne.s32.totalorder %s97, %s113
      %p115 = scmp.eq.s32.totalorder %s21, 0
      %p116 = por %p114, %p115
      %s117 = ssub.s32 %s15, %s22
      %p118 = scmp.eq.s32.totalorder %s117, 0
      %s120 = sadd.s32 %s119, 1
      %s121 = scalar_select %p118, %s119, %s120
      %p124 = pneg %p118
      %p125 = scmp.eq.s32.totalorder %s15, 1
      %p126 = por %p124, %p125
      %p127 = scmp.ne.s32.totalorder %s119, %s122
      %p128 = scmp.eq.s32.totalorder %s15, 0
      %p129 = por %p127, %p128
      %p130 = scmp.ne.s32.totalorder %s119, %s122
      %p131 = scmp.eq.s32.totalorder %s20, 1
      %p132 = por %p130, %p131
      %p133 = scmp.ne.s32.totalorder %s122, %s123
      %p134 = scmp.eq.s32.totalorder %s20, 0
      %p135 = por %p133, %p134
      %p136 = scmp.ne.s32.totalorder %s122, %s123
      %p137 = scmp.eq.s32.totalorder %s21, 1
      %p138 = por %p136, %p137
      %p140 = scmp.ne.s32.totalorder %s123, %s139
      %p141 = scmp.eq.s32.totalorder %s21, 0
      %p142 = por %p140, %p141
      %p143 = scmp.le.s32.totalorder 1, %s15
      %p144 = scmp.lt.s32.totalorder %s15, 3
      %p145 = pnand %p143, %p144
      %p146 = pneg %p145
      // Predicated region
      $region9: #{tpu_custom_call.1} parent=5 // pred_check
        _
      $region10: #{tpu_custom_call.1} parent=5 // pred_check_branch
        %148 = sbr.rel (%p145) target = $region12
      $region11: #{tpu_custom_call.1} parent=5 // pred_region
        %s149 = ssub.s32 %s15, 1
        // Predicated region
        $region13: #{tpu_custom_call.1} parent=11 // pred_check
          %p150 = pneg %p36
        $region14: #{tpu_custom_call.1} parent=11 // pred_check_branch
          %152 = sbr.rel (%p150) target = $region16
        $region15: #{tpu_custom_call.1} parent=11 // pred_region
          %s154 = ssub.s32 256, 256
          %155 = vsyncadd [#allocation4], %s154
          %s156 = sshll.u32 [#allocation3], 4
          %s157 = int_to_ptr.vmem [resolvable:$true] %s156
          %162 = dma.hbm_to_vmem [thread:$0]  %s0, 256, %s157, [#allocation4], 128, 128, 8
        $region16: #{tpu_custom_call.1} parent=11 // pred_fallthru
          _
        // Predicated region
        $region17: #{tpu_custom_call.1} parent=11 // pred_check
          %p163 = pneg %p57
        $region18: #{tpu_custom_call.1} parent=11 // pred_check_branch
          %165 = sbr.rel (%p163) target = $region20
        $region19: #{tpu_custom_call.1} parent=11 // pred_region
          %s167 = ssub.s32 2048, 2048
          %168 = vsyncadd [#allocation7], %s167
          %s169 = sshll.u32 [#allocation6], 4
          %s170 = int_to_ptr.vmem [resolvable:$true] %s169
          %175 = dma.hbm_to_vmem [thread:$0]  %s1, 2048, %s170, [#allocation7], 128, 128, 8
        $region20: #{tpu_custom_call.1} parent=11 // pred_fallthru
          _
      $region12: #{tpu_custom_call.1} parent=5 // pred_fallthru
        _
      %p176 = scmp.lt.s32.totalorder %s15, 2
      // Predicated region
      $region21: #{tpu_custom_call.1} parent=5 // pred_check
        %p177 = pneg %p176
      $region22: #{tpu_custom_call.1} parent=5 // pred_check_branch
        %179 = sbr.rel (%p177) target = $region24
      $region23: #{tpu_custom_call.1} parent=5 // pred_region
        // Predicated region
        $region25: #{tpu_custom_call.1} parent=23 // pred_check
          %p180 = pneg %p77
        $region26: #{tpu_custom_call.1} parent=23 // pred_check_branch
          %182 = sbr.rel (%p180) target = $region28
        $region27: #{tpu_custom_call.1} parent=23 // pred_region
          %s183 = sand.u32 %s15, 1
          %s184 = scalar_lea.sflag [#allocation4], %s183
          %s185 = sand.u32 %s67, 1
          %s186 = smul.addr %s185, 32
          %s187 = scalar_lea.vmem [#allocation8], %s186
          %s189 = ssub.s32 512, 512
          %190 = vsyncadd %s184, %s189
          %s191 = smul.addr %s15, 4
          %s192 = smul.addr %s191, 128
          %s193 = scalar_lea.hbm %s2, %s192
          %s194 = sshll.u32 %s187, 4
          %s195 = int_to_ptr.vmem [resolvable:$true] %s194
          %200 = dma.hbm_to_vmem [thread:$0]  %s193, 512, %s195, %s184, 128, 128, 8
        $region28: #{tpu_custom_call.1} parent=23 // pred_fallthru
          _
        // Predicated region
        $region29: #{tpu_custom_call.1} parent=23 // pred_check
          %p201 = pneg %p103
        $region30: #{tpu_custom_call.1} parent=23 // pred_check_branch
          %203 = sbr.rel (%p201) target = $region32
        $region31: #{tpu_custom_call.1} parent=23 // pred_region
          %s204 = sand.u32 %s15, 1
          %s205 = scalar_lea.sflag [#allocation4], %s204
          %s206 = sand.u32 %s93, 1
          %s207 = smul.addr %s206, 32
          %s208 = scalar_lea.vmem [#allocation9], %s207
          %s210 = ssub.s32 512, 512
          %211 = vsyncadd %s205, %s210
          %s212 = smul.addr %s15, 4
          %s213 = smul.addr %s212, 128
          %s214 = scalar_lea.hbm %s3, %s213
          %s215 = sshll.u32 %s208, 4
          %s216 = int_to_ptr.vmem [resolvable:$true] %s215
          %221 = dma.hbm_to_vmem [thread:$0]  %s214, 512, %s216, %s205, 128, 128, 8
        $region32: #{tpu_custom_call.1} parent=23 // pred_fallthru
          _
      $region24: #{tpu_custom_call.1} parent=5 // pred_fallthru
        _
      %p222 = scmp.le.s32.totalorder 1, %s15
      %p223 = scmp.lt.s32.totalorder %s15, 3
      %p224 = pnand %p222, %p223
      %p225 = pneg %p224
      // Predicated region
      $region33: #{tpu_custom_call.1} parent=5 // pred_check
        _
      $region34: #{tpu_custom_call.1} parent=5 // pred_check_branch
        %227 = sbr.rel (%p224) target = $region36
      $region35: #{tpu_custom_call.1} parent=5 // pred_region
        %s228 = ssub.s32 %s15, 1
        // Predicated region
        $region37: #{tpu_custom_call.1} parent=35 // pred_check
          %p229 = pneg %p36
        $region38: #{tpu_custom_call.1} parent=35 // pred_check_branch
          %231 = sbr.rel (%p229) target = $region40
        $region39: #{tpu_custom_call.1} parent=35 // pred_region
          %232 = dma.done [#allocation4], 256
        $region40: #{tpu_custom_call.1} parent=35 // pred_fallthru
          _
        // Predicated region
        $region41: #{tpu_custom_call.1} parent=35 // pred_check
          %p233 = pneg %p57
        $region42: #{tpu_custom_call.1} parent=35 // pred_check_branch
          %235 = sbr.rel (%p233) target = $region44
        $region43: #{tpu_custom_call.1} parent=35 // pred_region
          %236 = dma.done [#allocation7], 2048
        $region44: #{tpu_custom_call.1} parent=35 // pred_fallthru
          _
        %s237 = sand.u32 %s20, 1
        %s238 = scalar_lea.sflag [#allocation4], %s237
        %s239 = sand.u32 %s70, 1
        %s240 = smul.addr %s239, 32
        %s241 = scalar_lea.vmem [#allocation8], %s240
        // Predicated region
        $region45: #{tpu_custom_call.1} parent=35 // pred_check
          %p242 = pneg %p83
        $region46: #{tpu_custom_call.1} parent=35 // pred_check_branch
          %244 = sbr.rel (%p242) target = $region48
        $region47: #{tpu_custom_call.1} parent=35 // pred_region
          %245 = dma.done %s238, 512
        $region48: #{tpu_custom_call.1} parent=35 // pred_fallthru
          _
        %s246 = sand.u32 %s20, 1
        %s247 = scalar_lea.sflag [#allocation4], %s246
        %s248 = sand.u32 %s96, 1
        %s249 = smul.addr %s248, 32
        %s250 = scalar_lea.vmem [#allocation9], %s249
        // Predicated region
        $region49: #{tpu_custom_call.1} parent=35 // pred_check
          %p251 = pneg %p109
        $region50: #{tpu_custom_call.1} parent=35 // pred_check_branch
          %253 = sbr.rel (%p251) target = $region52
        $region51: #{tpu_custom_call.1} parent=35 // pred_region
          %254 = dma.done %s247, 512
        $region52: #{tpu_custom_call.1} parent=35 // pred_fallthru
          _
        %p255 = pneg %p36
        %p256 = pneg %p33
        %p257 = pneg %p57
        %p258 = pneg %p54
        %s259 = sand.u32 %s20, 1
        %s260 = scalar_lea.sflag [#allocation4], %s259
        %s261 = sand.u32 %s70, 1
        %s262 = smul.addr %s261, 32
        %s263 = scalar_lea.vmem [#allocation8], %s262
        %p264 = pneg %p83
        %p265 = pneg %p80
        %s266 = sand.u32 %s20, 1
        %s267 = scalar_lea.sflag [#allocation4], %s266
        %s268 = sand.u32 %s96, 1
        %s269 = smul.addr %s268, 32
        %s270 = scalar_lea.vmem [#allocation9], %s269
        %p271 = pneg %p109
        %p272 = pneg %p106
        %p273 = pneg %p135
        %p274 = pneg %p132
        %s275 = sand.u32 %s122, 1
        %s276 = scalar_lea.sflag [#allocation5], %s275
        %s277 = sand.u32 %s122, 1
        %s278 = smul.addr %s277, 8
        %s279 = scalar_lea.vmem [#allocation10], %s278
        %v280 = vld [vmem:[%s241] sm:$0xff]
        %v281 = vld [vmem:[%s241 + $0x8] sm:$0xff]
        %v282 = vld [vmem:[%s241 + $0x10] sm:$0xff]
        %v283 = vld [vmem:[%s241 + $0x18] sm:$0xff]
        %v284 = vld [vmem:[%s250] sm:$0xff]
        %v285 = vld [vmem:[%s250 + $0x8] sm:$0xff]
        %v286 = vld [vmem:[%s250 + $0x10] sm:$0xff]
        %v287 = vld [vmem:[%s250 + $0x18] sm:$0xff]
        %288 = vst [vmem:[#allocation2] sm:$0xff] %v280
        %289 = vst [vmem:[#allocation2 + $0x8] sm:$0xff] %v281
        %290 = vst [vmem:[#allocation2 + $0x10] sm:$0xff] %v282
        %291 = vst [vmem:[#allocation2 + $0x18] sm:$0xff] %v283
        %s292 = scalar_lea.vmem [#allocation2], 32
        %293 = vst [vmem:[%s292] sm:$0xff] %v284
        %294 = vst [vmem:[%s292 + $0x8] sm:$0xff] %v285
        %295 = vst [vmem:[%s292 + $0x10] sm:$0xff] %v286
        %296 = vst [vmem:[%s292 + $0x18] sm:$0xff] %v287
        %v297 = vmul.f32 %v280, %v280
        %v298 = vmul.f32 %v281, %v281
        %v299 = vmul.f32 %v282, %v282
        %v300 = vmul.f32 %v283, %v283
        %s301 = scalar_lea.vmem [#allocation2], 64
        %302 = vst [vmem:[%s301] sm:$0xff] %v297
        %303 = vst [vmem:[%s301 + $0x8] sm:$0xff] %v298
        %304 = vst [vmem:[%s301 + $0x10] sm:$0xff] %v299
        %305 = vst [vmem:[%s301 + $0x18] sm:$0xff] %v300
        %v306 = vmul.f32 %v284, %v284
        %v307 = vmul.f32 %v285, %v285
        %v308 = vmul.f32 %v286, %v286
        %v309 = vmul.f32 %v287, %v287
        %s310 = scalar_lea.vmem [#allocation2], 96
        %311 = vst [vmem:[%s310] sm:$0xff] %v306
        %312 = vst [vmem:[%s310 + $0x8] sm:$0xff] %v307
        %313 = vst [vmem:[%s310 + $0x10] sm:$0xff] %v308
        %314 = vst [vmem:[%s310 + $0x18] sm:$0xff] %v309
        %v315 = vmul.f32 %v280, %v284
        %v316 = vmul.f32 %v281, %v285
        %v317 = vmul.f32 %v282, %v286
        %v318 = vmul.f32 %v283, %v287
        %s319 = scalar_lea.vmem [#allocation2], 128
        %320 = vst [vmem:[%s319] sm:$0xff] %v315
        %321 = vst [vmem:[%s319 + $0x8] sm:$0xff] %v316
        %322 = vst [vmem:[%s319 + $0x10] sm:$0xff] %v317
        %323 = vst [vmem:[%s319 + $0x18] sm:$0xff] %v318
        %v324 = vld [vmem:[#allocation2] sm:$0xff]
        %v325 = vld [vmem:[#allocation2 + $0x8] sm:$0xff]
        %v326 = vld [vmem:[#allocation2 + $0x10] sm:$0xff]
        %v327 = vld [vmem:[#allocation2 + $0x18] sm:$0xff]
        %v328 = vld [vmem:[#allocation2 + $0x20] sm:$0xff]
        %v329 = vld [vmem:[#allocation2 + $0x28] sm:$0xff]
        %v330 = vld [vmem:[#allocation2 + $0x30] sm:$0xff]
        %v331 = vld [vmem:[#allocation2 + $0x38] sm:$0xff]
        %v332 = vld [vmem:[#allocation2 + $0x40] sm:$0xff]
        %v333 = vld [vmem:[#allocation2 + $0x48] sm:$0xff]
        %v334 = vld [vmem:[#allocation2 + $0x50] sm:$0xff]
        %v335 = vld [vmem:[#allocation2 + $0x58] sm:$0xff]
        %v336 = vld [vmem:[#allocation2 + $0x60] sm:$0xff]
        %v337 = vld [vmem:[#allocation2 + $0x68] sm:$0xff]
        %v338 = vld [vmem:[#allocation2 + $0x70] sm:$0xff]
        %v339 = vld [vmem:[#allocation2 + $0x78] sm:$0xff]
        %v340 = vld [vmem:[#allocation2 + $0x80] sm:$0xff]
        %v341 = vld [vmem:[#allocation2 + $0x88] sm:$0xff]
        %v342 = vld [vmem:[#allocation2 + $0x90] sm:$0xff]
        %v343 = vld [vmem:[#allocation2 + $0x98] sm:$0xff]
        %v344 = vld [vmem:[#allocation6] sm:$0xff]
        %v345 = vld [vmem:[#allocation6 + $0x8] sm:$0xff]
        %v346 = vld [vmem:[#allocation6 + $0x10] sm:$0xff]
        %v347 = vld [vmem:[#allocation6 + $0x18] sm:$0xff]
        %v348 = vld [vmem:[#allocation6 + $0x20] sm:$0xff]
        %v349 = vld [vmem:[#allocation6 + $0x28] sm:$0xff]
        %v350 = vld [vmem:[#allocation6 + $0x30] sm:$0xff]
        %v351 = vld [vmem:[#allocation6 + $0x38] sm:$0xff]
        %v352 = vld [vmem:[#allocation6 + $0x40] sm:$0xff]
        %v353 = vld [vmem:[#allocation6 + $0x48] sm:$0xff]
        %v354 = vld [vmem:[#allocation6 + $0x50] sm:$0xff]
        %v355 = vld [vmem:[#allocation6 + $0x58] sm:$0xff]
        %v356 = vld [vmem:[#allocation6 + $0x60] sm:$0xff]
        %v357 = vld [vmem:[#allocation6 + $0x68] sm:$0xff]
        %v358 = vld [vmem:[#allocation6 + $0x70] sm:$0xff]
        %v359 = vld [vmem:[#allocation6 + $0x78] sm:$0xff]
        %360 = vmatprep.subr.mxu0 0.0
        %v361 = vand.u32 %v359, 4294901760
        %362 = vmatpush1.msra.mxu0 %v361
        %363 = vmatprep.subr.mxu0 0.0
        %v364 = vand.u32 %v358, 4294901760
        %365 = vmatpush1.msra.mxu0 %v364
        %366 = vmatprep.subr.mxu0 0.0
        %v367 = vand.u32 %v357, 4294901760
        %368 = vmatpush1.msra.mxu0 %v367
        %369 = vmatprep.subr.mxu0 0.0
        %v370 = vand.u32 %v356, 4294901760
        %371 = vmatpush1.msra.mxu0 %v370
        %372 = vmatprep.subr.mxu0 0.0
        %v373 = vand.u32 %v355, 4294901760
        %374 = vmatpush1.msra.mxu0 %v373
        %375 = vmatprep.subr.mxu0 0.0
        %v376 = vand.u32 %v354, 4294901760
        %377 = vmatpush1.msra.mxu0 %v376
        %378 = vmatprep.subr.mxu0 0.0
        %v379 = vand.u32 %v353, 4294901760
        %380 = vmatpush1.msra.mxu0 %v379
        %381 = vmatprep.subr.mxu0 0.0
        %v382 = vand.u32 %v352, 4294901760
        %383 = vmatpush1.msra.mxu0 %v382
        %384 = vmatprep.subr.mxu0 0.0
        %v385 = vand.u32 %v351, 4294901760
        %386 = vmatpush1.msra.mxu0 %v385
        %387 = vmatprep.subr.mxu0 0.0
        %v388 = vand.u32 %v350, 4294901760
        %389 = vmatpush1.msra.mxu0 %v388
        %390 = vmatprep.subr.mxu0 0.0
        %v391 = vand.u32 %v349, 4294901760
        %392 = vmatpush1.msra.mxu0 %v391
        %393 = vmatprep.subr.mxu0 0.0
        %v394 = vand.u32 %v348, 4294901760
        %395 = vmatpush1.msra.mxu0 %v394
        %396 = vmatprep.subr.mxu0 0.0
        %v397 = vand.u32 %v347, 4294901760
        %398 = vmatpush1.msra.mxu0 %v397
        %399 = vmatprep.subr.mxu0 0.0
        %v400 = vand.u32 %v346, 4294901760
        %401 = vmatpush1.msra.mxu0 %v400
        %402 = vmatprep.subr.mxu0 0.0
        %v403 = vand.u32 %v345, 4294901760
        %404 = vmatpush1.msra.mxu0 %v403
        %405 = vmatprep.subr.mxu0 0.0
        %v406 = vand.u32 %v344, 4294901760
        %407 = vmatpush1.msra.mxu0 %v406
        %408 = vmatprep.subr.mxu0 0.0
        %409 = vmatpush2.msra.mxu0 0.0
        %410 = vmatprep.subr.mxu0 0.0
        %411 = vmatpush2.msra.mxu0 0.0
        %412 = vmatprep.subr.mxu0 0.0
        %413 = vmatpush2.msra.mxu0 0.0
        %414 = vmatprep.subr.mxu0 0.0
        %415 = vmatpush2.msra.mxu0 0.0
        %416 = vmatprep.subr.mxu0 0.0
        %417 = vmatpush2.msra.mxu0 0.0
        %418 = vmatprep.subr.mxu0 0.0
        %419 = vmatpush2.msra.mxu0 0.0
        %420 = vmatprep.subr.mxu0 0.0
        %421 = vmatpush2.msra.mxu0 0.0
        %422 = vmatprep.subr.mxu0 0.0
        %423 = vmatpush2.msra.mxu0 0.0
        %424 = vmatprep.subr.mxu0 0.0
        %425 = vmatpush2.msra.mxu0 0.0
        %426 = vmatprep.subr.mxu0 0.0
        %427 = vmatpush2.msra.mxu0 0.0
        %428 = vmatprep.subr.mxu0 0.0
        %429 = vmatpush2.msra.mxu0 0.0
        %430 = vmatprep.subr.mxu0 0.0
        %431 = vmatpush2.msra.mxu0 0.0
        %432 = vmatprep.subr.mxu0 0.0
        %433 = vmatpush2.msra.mxu0 0.0
        %434 = vmatprep.subr.mxu0 0.0
        %435 = vmatpush2.msra.mxu0 0.0
        %436 = vmatprep.subr.mxu0 0.0
        %437 = vmatpush2.msra.mxu0 0.0
        %438 = vmatprep.subr.mxu0 0.0
        %439 = vmatpush2.msra.mxu0 0.0
        %440 = vmatprep.mubr.f32.mxu0 0.0
        %v441 = vand.u32 %v324, 4294901760
        %v442 = vsub.f32 %v324, %v441
        %v443 = vand.u32 %v442, 4294901760
        %v444 = vsub.f32 %v442, %v443
        %v445 = vand.u32 %v444, 4294901760
        %446 = vmatmul.mubr.f32.gmra.mxu0 %v445
        %v447 = vpop.f32.mrf.mxu0
        %v448 = vadd.f32 0.0, %v447
        %v449 = vpop.f32.mrf.mxu0
        %450 = vmatprep.mubr.f32.mxu0 0.0
        %v451 = vand.u32 %v325, 4294901760
        %v452 = vsub.f32 %v325, %v451
        %v453 = vand.u32 %v452, 4294901760
        %v454 = vsub.f32 %v452, %v453
        %v455 = vand.u32 %v454, 4294901760
        %456 = vmatmul.mubr.f32.gmra.mxu0 %v455
        %v457 = vpop.f32.mrf.mxu0
        %v458 = vadd.f32 0.0, %v457
        %v459 = vpop.f32.mrf.mxu0
        %460 = vmatprep.mubr.f32.mxu0 0.0
        %v461 = vand.u32 %v326, 4294901760
        %v462 = vsub.f32 %v326, %v461
        %v463 = vand.u32 %v462, 4294901760
        %v464 = vsub.f32 %v462, %v463
        %v465 = vand.u32 %v464, 4294901760
        %466 = vmatmul.mubr.f32.gmra.mxu0 %v465
        %v467 = vpop.f32.mrf.mxu0
        %v468 = vadd.f32 0.0, %v467
        %v469 = vpop.f32.mrf.mxu0
        %470 = vmatprep.mubr.f32.mxu0 0.0
        %v471 = vand.u32 %v327, 4294901760
        %v472 = vsub.f32 %v327, %v471
        %v473 = vand.u32 %v472, 4294901760
        %v474 = vsub.f32 %v472, %v473
        %v475 = vand.u32 %v474, 4294901760
        %476 = vmatmul.mubr.f32.gmra.mxu0 %v475
        %v477 = vpop.f32.mrf.mxu0
        %v478 = vadd.f32 0.0, %v477
        %v479 = vpop.f32.mrf.mxu0
        %480 = vmatprep.mubr.f32.mxu0 0.0
        %v481 = vand.u32 %v328, 4294901760
        %v482 = vsub.f32 %v328, %v481
        %v483 = vand.u32 %v482, 4294901760
        %v484 = vsub.f32 %v482, %v483
        %v485 = vand.u32 %v484, 4294901760
        %486 = vmatmul.mubr.f32.gmra.mxu0 %v485
        %v487 = vpop.f32.mrf.mxu0
        %v488 = vadd.f32 0.0, %v487
        %v489 = vpop.f32.mrf.mxu0
        %490 = vmatprep.mubr.f32.mxu0 0.0
        %v491 = vand.u32 %v329, 4294901760
        %v492 = vsub.f32 %v329, %v491
        %v493 = vand.u32 %v492, 4294901760
        %v494 = vsub.f32 %v492, %v493
        %v495 = vand.u32 %v494, 4294901760
        %496 = vmatmul.mubr.f32.gmra.mxu0 %v495
        %v497 = vpop.f32.mrf.mxu0
        %v498 = vadd.f32 0.0, %v497
        %v499 = vpop.f32.mrf.mxu0
        %500 = vmatprep.mubr.f32.mxu0 0.0
        %v501 = vand.u32 %v330, 4294901760
        %v502 = vsub.f32 %v330, %v501
        %v503 = vand.u32 %v502, 4294901760
        %v504 = vsub.f32 %v502, %v503
        %v505 = vand.u32 %v504, 4294901760
        %506 = vmatmul.mubr.f32.gmra.mxu0 %v505
        %v507 = vpop.f32.mrf.mxu0
        %v508 = vadd.f32 0.0, %v507
        %v509 = vpop.f32.mrf.mxu0
        %510 = vmatprep.mubr.f32.mxu0 0.0
        %v511 = vand.u32 %v331, 4294901760
        %v512 = vsub.f32 %v331, %v511
        %v513 = vand.u32 %v512, 4294901760
        %v514 = vsub.f32 %v512, %v513
        %v515 = vand.u32 %v514, 4294901760
        %516 = vmatmul.mubr.f32.gmra.mxu0 %v515
        %v517 = vpop.f32.mrf.mxu0
        %v518 = vadd.f32 0.0, %v517
        %v519 = vpop.f32.mrf.mxu0
        %520 = vmatprep.mubr.f32.mxu0 0.0
        %v521 = vand.u32 %v332, 4294901760
        %v522 = vsub.f32 %v332, %v521
        %v523 = vand.u32 %v522, 4294901760
        %v524 = vsub.f32 %v522, %v523
        %v525 = vand.u32 %v524, 4294901760
        %526 = vmatmul.mubr.f32.gmra.mxu0 %v525
        %v527 = vpop.f32.mrf.mxu0
        %v528 = vadd.f32 0.0, %v527
        %v529 = vpop.f32.mrf.mxu0
        %530 = vmatprep.mubr.f32.mxu0 0.0
        %v531 = vand.u32 %v333, 4294901760
        %v532 = vsub.f32 %v333, %v531
        %v533 = vand.u32 %v532, 4294901760
        %v534 = vsub.f32 %v532, %v533
        %v535 = vand.u32 %v534, 4294901760
        %536 = vmatmul.mubr.f32.gmra.mxu0 %v535
        %v537 = vpop.f32.mrf.mxu0
        %v538 = vadd.f32 0.0, %v537
        %v539 = vpop.f32.mrf.mxu0
        %540 = vmatprep.mubr.f32.mxu0 0.0
        %v541 = vand.u32 %v334, 4294901760
        %v542 = vsub.f32 %v334, %v541
        %v543 = vand.u32 %v542, 4294901760
        %v544 = vsub.f32 %v542, %v543
        %v545 = vand.u32 %v544, 4294901760
        %546 = vmatmul.mubr.f32.gmra.mxu0 %v545
        %v547 = vpop.f32.mrf.mxu0
        %v548 = vadd.f32 0.0, %v547
        %v549 = vpop.f32.mrf.mxu0
        %550 = vmatprep.mubr.f32.mxu0 0.0
        %v551 = vand.u32 %v335, 4294901760
        %v552 = vsub.f32 %v335, %v551
        %v553 = vand.u32 %v552, 4294901760
        %v554 = vsub.f32 %v552, %v553
        %v555 = vand.u32 %v554, 4294901760
        %556 = vmatmul.mubr.f32.gmra.mxu0 %v555
        %v557 = vpop.f32.mrf.mxu0
        %v558 = vadd.f32 0.0, %v557
        %v559 = vpop.f32.mrf.mxu0
        %560 = vmatprep.mubr.f32.mxu0 0.0
        %v561 = vand.u32 %v336, 4294901760
        %v562 = vsub.f32 %v336, %v561
        %v563 = vand.u32 %v562, 4294901760
        %v564 = vsub.f32 %v562, %v563
        %v565 = vand.u32 %v564, 4294901760
        %566 = vmatmul.mubr.f32.gmra.mxu0 %v565
        %v567 = vpop.f32.mrf.mxu0
        %v568 = vadd.f32 0.0, %v567
        %v569 = vpop.f32.mrf.mxu0
        %570 = vmatprep.mubr.f32.mxu0 0.0
        %v571 = vand.u32 %v337, 4294901760
        %v572 = vsub.f32 %v337, %v571
        %v573 = vand.u32 %v572, 4294901760
        %v574 = vsub.f32 %v572, %v573
        %v575 = vand.u32 %v574, 4294901760
        %576 = vmatmul.mubr.f32.gmra.mxu0 %v575
        %v577 = vpop.f32.mrf.mxu0
        %v578 = vadd.f32 0.0, %v577
        %v579 = vpop.f32.mrf.mxu0
        %580 = vmatprep.mubr.f32.mxu0 0.0
        %v581 = vand.u32 %v338, 4294901760
        %v582 = vsub.f32 %v338, %v581
        %v583 = vand.u32 %v582, 4294901760
        %v584 = vsub.f32 %v582, %v583
        %v585 = vand.u32 %v584, 4294901760
        %586 = vmatmul.mubr.f32.gmra.mxu0 %v585
        %v587 = vpop.f32.mrf.mxu0
        %v588 = vadd.f32 0.0, %v587
        %v589 = vpop.f32.mrf.mxu0
        %590 = vmatprep.mubr.f32.mxu0 0.0
        %v591 = vand.u32 %v339, 4294901760
        %v592 = vsub.f32 %v339, %v591
        %v593 = vand.u32 %v592, 4294901760
        %v594 = vsub.f32 %v592, %v593
        %v595 = vand.u32 %v594, 4294901760
        %596 = vmatmul.mubr.f32.gmra.mxu0 %v595
        %v597 = vpop.f32.mrf.mxu0
        %v598 = vadd.f32 0.0, %v597
        %v599 = vpop.f32.mrf.mxu0
        %600 = vmatprep.mubr.f32.mxu0 0.0
        %v601 = vand.u32 %v340, 4294901760
        %v602 = vsub.f32 %v340, %v601
        %v603 = vand.u32 %v602, 4294901760
        %v604 = vsub.f32 %v602, %v603
        %v605 = vand.u32 %v604, 4294901760
        %606 = vmatmul.mubr.f32.gmra.mxu0 %v605
        %v607 = vpop.f32.mrf.mxu0
        %v608 = vadd.f32 0.0, %v607
        %v609 = vpop.f32.mrf.mxu0
        %610 = vmatprep.mubr.f32.mxu0 0.0
        %v611 = vand.u32 %v341, 4294901760
        %v612 = vsub.f32 %v341, %v611
        %v613 = vand.u32 %v612, 4294901760
        %v614 = vsub.f32 %v612, %v613
        %v615 = vand.u32 %v614, 4294901760
        %616 = vmatmul.mubr.f32.gmra.mxu0 %v615
        %v617 = vpop.f32.mrf.mxu0
        %v618 = vadd.f32 0.0, %v617
        %v619 = vpop.f32.mrf.mxu0
        %620 = vmatprep.mubr.f32.mxu0 0.0
        %v621 = vand.u32 %v342, 4294901760
        %v622 = vsub.f32 %v342, %v621
        %v623 = vand.u32 %v622, 4294901760
        %v624 = vsub.f32 %v622, %v623
        %v625 = vand.u32 %v624, 4294901760
        %626 = vmatmul.mubr.f32.gmra.mxu0 %v625
        %v627 = vpop.f32.mrf.mxu0
        %v628 = vadd.f32 0.0, %v627
        %v629 = vpop.f32.mrf.mxu0
        %630 = vmatprep.mubr.f32.mxu0 0.0
        %v631 = vand.u32 %v343, 4294901760
        %v632 = vsub.f32 %v343, %v631
        %v633 = vand.u32 %v632, 4294901760
        %v634 = vsub.f32 %v632, %v633
        %v635 = vand.u32 %v634, 4294901760
        %636 = vmatmul.mubr.f32.gmra.mxu0 %v635
        %v637 = vpop.f32.mrf.mxu0
        %v638 = vadd.f32 0.0, %v637
        %v639 = vpop.f32.mrf.mxu0
        %640 = vdwg.mxu0
        %641 = vmatprep.subr.mxu0 0.0
        %v642 = vand.u32 %v359, 4294901760
        %v643 = vsub.f32 %v359, %v642
        %v644 = vand.u32 %v643, 4294901760
        %v645 = vsub.f32 %v643, %v644
        %v646 = vand.u32 %v645, 4294901760
        %647 = vmatpush1.msra.mxu0 %v646
        %648 = vmatprep.subr.mxu0 0.0
        %v649 = vand.u32 %v358, 4294901760
        %v650 = vsub.f32 %v358, %v649
        %v651 = vand.u32 %v650, 4294901760
        %v652 = vsub.f32 %v650, %v651
        %v653 = vand.u32 %v652, 4294901760
        %654 = vmatpush1.msra.mxu0 %v653
        %655 = vmatprep.subr.mxu0 0.0
        %v656 = vand.u32 %v357, 4294901760
        %v657 = vsub.f32 %v357, %v656
        %v658 = vand.u32 %v657, 4294901760
        %v659 = vsub.f32 %v657, %v658
        %v660 = vand.u32 %v659, 4294901760
        %661 = vmatpush1.msra.mxu0 %v660
        %662 = vmatprep.subr.mxu0 0.0
        %v663 = vand.u32 %v356, 4294901760
        %v664 = vsub.f32 %v356, %v663
        %v665 = vand.u32 %v664, 4294901760
        %v666 = vsub.f32 %v664, %v665
        %v667 = vand.u32 %v666, 4294901760
        %668 = vmatpush1.msra.mxu0 %v667
        %669 = vmatprep.subr.mxu0 0.0
        %v670 = vand.u32 %v355, 4294901760
        %v671 = vsub.f32 %v355, %v670
        %v672 = vand.u32 %v671, 4294901760
        %v673 = vsub.f32 %v671, %v672
        %v674 = vand.u32 %v673, 4294901760
        %675 = vmatpush1.msra.mxu0 %v674
        %676 = vmatprep.subr.mxu0 0.0
        %v677 = vand.u32 %v354, 4294901760
        %v678 = vsub.f32 %v354, %v677
        %v679 = vand.u32 %v678, 4294901760
        %v680 = vsub.f32 %v678, %v679
        %v681 = vand.u32 %v680, 4294901760
        %682 = vmatpush1.msra.mxu0 %v681
        %683 = vmatprep.subr.mxu0 0.0
        %v684 = vand.u32 %v353, 4294901760
        %v685 = vsub.f32 %v353, %v684
        %v686 = vand.u32 %v685, 4294901760
        %v687 = vsub.f32 %v685, %v686
        %v688 = vand.u32 %v687, 4294901760
        %689 = vmatpush1.msra.mxu0 %v688
        %690 = vmatprep.subr.mxu0 0.0
        %v691 = vand.u32 %v352, 4294901760
        %v692 = vsub.f32 %v352, %v691
        %v693 = vand.u32 %v692, 4294901760
        %v694 = vsub.f32 %v692, %v693
        %v695 = vand.u32 %v694, 4294901760
        %696 = vmatpush1.msra.mxu0 %v695
        %697 = vmatprep.subr.mxu0 0.0
        %v698 = vand.u32 %v351, 4294901760
        %v699 = vsub.f32 %v351, %v698
        %v700 = vand.u32 %v699, 4294901760
        %v701 = vsub.f32 %v699, %v700
        %v702 = vand.u32 %v701, 4294901760
        %703 = vmatpush1.msra.mxu0 %v702
        %704 = vmatprep.subr.mxu0 0.0
        %v705 = vand.u32 %v350, 4294901760
        %v706 = vsub.f32 %v350, %v705
        %v707 = vand.u32 %v706, 4294901760
        %v708 = vsub.f32 %v706, %v707
        %v709 = vand.u32 %v708, 4294901760
        %710 = vmatpush1.msra.mxu0 %v709
        %711 = vmatprep.subr.mxu0 0.0
        %v712 = vand.u32 %v349, 4294901760
        %v713 = vsub.f32 %v349, %v712
        %v714 = vand.u32 %v713, 4294901760
        %v715 = vsub.f32 %v713, %v714
        %v716 = vand.u32 %v715, 4294901760
        %717 = vmatpush1.msra.mxu0 %v716
        %718 = vmatprep.subr.mxu0 0.0
        %v719 = vand.u32 %v348, 4294901760
        %v720 = vsub.f32 %v348, %v719
        %v721 = vand.u32 %v720, 4294901760
        %v722 = vsub.f32 %v720, %v721
        %v723 = vand.u32 %v722, 4294901760
        %724 = vmatpush1.msra.mxu0 %v723
        %725 = vmatprep.subr.mxu0 0.0
        %v726 = vand.u32 %v347, 4294901760
        %v727 = vsub.f32 %v347, %v726
        %v728 = vand.u32 %v727, 4294901760
        %v729 = vsub.f32 %v727, %v728
        %v730 = vand.u32 %v729, 4294901760
        %731 = vmatpush1.msra.mxu0 %v730
        %732 = vmatprep.subr.mxu0 0.0
        %v733 = vand.u32 %v346, 4294901760
        %v734 = vsub.f32 %v346, %v733
        %v735 = vand.u32 %v734, 4294901760
        %v736 = vsub.f32 %v734, %v735
        %v737 = vand.u32 %v736, 4294901760
        %738 = vmatpush1.msra.mxu0 %v737
        %739 = vmatprep.subr.mxu0 0.0
        %v740 = vand.u32 %v345, 4294901760
        %v741 = vsub.f32 %v345, %v740
        %v742 = vand.u32 %v741, 4294901760
        %v743 = vsub.f32 %v741, %v742
        %v744 = vand.u32 %v743, 4294901760
        %745 = vmatpush1.msra.mxu0 %v744
        %746 = vmatprep.subr.mxu0 0.0
        %v747 = vand.u32 %v344, 4294901760
        %v748 = vsub.f32 %v344, %v747
        %v749 = vand.u32 %v748, 4294901760
        %v750 = vsub.f32 %v748, %v749
        %v751 = vand.u32 %v750, 4294901760
        %752 = vmatpush1.msra.mxu0 %v751
        %753 = vmatprep.subr.mxu0 0.0
        %754 = vmatpush2.msra.mxu0 0.0
        %755 = vmatprep.subr.mxu0 0.0
        %756 = vmatpush2.msra.mxu0 0.0
        %757 = vmatprep.subr.mxu0 0.0
        %758 = vmatpush2.msra.mxu0 0.0
        %759 = vmatprep.subr.mxu0 0.0
        %760 = vmatpush2.msra.mxu0 0.0
        %761 = vmatprep.subr.mxu0 0.0
        %762 = vmatpush2.msra.mxu0 0.0
        %763 = vmatprep.subr.mxu0 0.0
        %764 = vmatpush2.msra.mxu0 0.0
        %765 = vmatprep.subr.mxu0 0.0
        %766 = vmatpush2.msra.mxu0 0.0
        %767 = vmatprep.subr.mxu0 0.0
        %768 = vmatpush2.msra.mxu0 0.0
        %769 = vmatprep.subr.mxu0 0.0
        %770 = vmatpush2.msra.mxu0 0.0
        %771 = vmatprep.subr.mxu0 0.0
        %772 = vmatpush2.msra.mxu0 0.0
        %773 = vmatprep.subr.mxu0 0.0
        %774 = vmatpush2.msra.mxu0 0.0
        %775 = vmatprep.subr.mxu0 0.0
        %776 = vmatpush2.msra.mxu0 0.0
        %777 = vmatprep.subr.mxu0 0.0
        %778 = vmatpush2.msra.mxu0 0.0
        %779 = vmatprep.subr.mxu0 0.0
        %780 = vmatpush2.msra.mxu0 0.0
        %781 = vmatprep.subr.mxu0 0.0
        %782 = vmatpush2.msra.mxu0 0.0
        %783 = vmatprep.subr.mxu0 0.0
        %784 = vmatpush2.msra.mxu0 0.0
        %785 = vmatprep.mubr.f32.mxu0 0.0
        %v786 = vand.u32 %v324, 4294901760
        %787 = vmatmul.mubr.f32.gmra.mxu0 %v786
        %v788 = vpop.f32.mrf.mxu0
        %v789 = vadd.f32 %v448, %v788
        %v790 = vpop.f32.mrf.mxu0
        %791 = vmatprep.mubr.f32.mxu0 0.0
        %v792 = vand.u32 %v325, 4294901760
        %793 = vmatmul.mubr.f32.gmra.mxu0 %v792
        %v794 = vpop.f32.mrf.mxu0
        %v795 = vadd.f32 %v458, %v794
        %v796 = vpop.f32.mrf.mxu0
        %797 = vmatprep.mubr.f32.mxu0 0.0
        %v798 = vand.u32 %v326, 4294901760
        %799 = vmatmul.mubr.f32.gmra.mxu0 %v798
        %v800 = vpop.f32.mrf.mxu0
        %v801 = vadd.f32 %v468, %v800
        %v802 = vpop.f32.mrf.mxu0
        %803 = vmatprep.mubr.f32.mxu0 0.0
        %v804 = vand.u32 %v327, 4294901760
        %805 = vmatmul.mubr.f32.gmra.mxu0 %v804
        %v806 = vpop.f32.mrf.mxu0
        %v807 = vadd.f32 %v478, %v806
        %v808 = vpop.f32.mrf.mxu0
        %809 = vmatprep.mubr.f32.mxu0 0.0
        %v810 = vand.u32 %v328, 4294901760
        %811 = vmatmul.mubr.f32.gmra.mxu0 %v810
        %v812 = vpop.f32.mrf.mxu0
        %v813 = vadd.f32 %v488, %v812
        %v814 = vpop.f32.mrf.mxu0
        %815 = vmatprep.mubr.f32.mxu0 0.0
        %v816 = vand.u32 %v329, 4294901760
        %817 = vmatmul.mubr.f32.gmra.mxu0 %v816
        %v818 = vpop.f32.mrf.mxu0
        %v819 = vadd.f32 %v498, %v818
        %v820 = vpop.f32.mrf.mxu0
        %821 = vmatprep.mubr.f32.mxu0 0.0
        %v822 = vand.u32 %v330, 4294901760
        %823 = vmatmul.mubr.f32.gmra.mxu0 %v822
        %v824 = vpop.f32.mrf.mxu0
        %v825 = vadd.f32 %v508, %v824
        %v826 = vpop.f32.mrf.mxu0
        %827 = vmatprep.mubr.f32.mxu0 0.0
        %v828 = vand.u32 %v331, 4294901760
        %829 = vmatmul.mubr.f32.gmra.mxu0 %v828
        %v830 = vpop.f32.mrf.mxu0
        %v831 = vadd.f32 %v518, %v830
        %v832 = vpop.f32.mrf.mxu0
        %833 = vmatprep.mubr.f32.mxu0 0.0
        %v834 = vand.u32 %v332, 4294901760
        %835 = vmatmul.mubr.f32.gmra.mxu0 %v834
        %v836 = vpop.f32.mrf.mxu0
        %v837 = vadd.f32 %v528, %v836
        %v838 = vpop.f32.mrf.mxu0
        %839 = vmatprep.mubr.f32.mxu0 0.0
        %v840 = vand.u32 %v333, 4294901760
        %841 = vmatmul.mubr.f32.gmra.mxu0 %v840
        %v842 = vpop.f32.mrf.mxu0
        %v843 = vadd.f32 %v538, %v842
        %v844 = vpop.f32.mrf.mxu0
        %845 = vmatprep.mubr.f32.mxu0 0.0
        %v846 = vand.u32 %v334, 4294901760
        %847 = vmatmul.mubr.f32.gmra.mxu0 %v846
        %v848 = vpop.f32.mrf.mxu0
        %v849 = vadd.f32 %v548, %v848
        %v850 = vpop.f32.mrf.mxu0
        %851 = vmatprep.mubr.f32.mxu0 0.0
        %v852 = vand.u32 %v335, 4294901760
        %853 = vmatmul.mubr.f32.gmra.mxu0 %v852
        %v854 = vpop.f32.mrf.mxu0
        %v855 = vadd.f32 %v558, %v854
        %v856 = vpop.f32.mrf.mxu0
        %857 = vmatprep.mubr.f32.mxu0 0.0
        %v858 = vand.u32 %v336, 4294901760
        %859 = vmatmul.mubr.f32.gmra.mxu0 %v858
        %v860 = vpop.f32.mrf.mxu0
        %v861 = vadd.f32 %v568, %v860
        %v862 = vpop.f32.mrf.mxu0
        %863 = vmatprep.mubr.f32.mxu0 0.0
        %v864 = vand.u32 %v337, 4294901760
        %865 = vmatmul.mubr.f32.gmra.mxu0 %v864
        %v866 = vpop.f32.mrf.mxu0
        %v867 = vadd.f32 %v578, %v866
        %v868 = vpop.f32.mrf.mxu0
        %869 = vmatprep.mubr.f32.mxu0 0.0
        %v870 = vand.u32 %v338, 4294901760
        %871 = vmatmul.mubr.f32.gmra.mxu0 %v870
        %v872 = vpop.f32.mrf.mxu0
        %v873 = vadd.f32 %v588, %v872
        %v874 = vpop.f32.mrf.mxu0
        %875 = vmatprep.mubr.f32.mxu0 0.0
        %v876 = vand.u32 %v339, 4294901760
        %877 = vmatmul.mubr.f32.gmra.mxu0 %v876
        %v878 = vpop.f32.mrf.mxu0
        %v879 = vadd.f32 %v598, %v878
        %v880 = vpop.f32.mrf.mxu0
        %881 = vmatprep.mubr.f32.mxu0 0.0
        %v882 = vand.u32 %v340, 4294901760
        %883 = vmatmul.mubr.f32.gmra.mxu0 %v882
        %v884 = vpop.f32.mrf.mxu0
        %v885 = vadd.f32 %v608, %v884
        %v886 = vpop.f32.mrf.mxu0
        %887 = vmatprep.mubr.f32.mxu0 0.0
        %v888 = vand.u32 %v341, 4294901760
        %889 = vmatmul.mubr.f32.gmra.mxu0 %v888
        %v890 = vpop.f32.mrf.mxu0
        %v891 = vadd.f32 %v618, %v890
        %v892 = vpop.f32.mrf.mxu0
        %893 = vmatprep.mubr.f32.mxu0 0.0
        %v894 = vand.u32 %v342, 4294901760
        %895 = vmatmul.mubr.f32.gmra.mxu0 %v894
        %v896 = vpop.f32.mrf.mxu0
        %v897 = vadd.f32 %v628, %v896
        %v898 = vpop.f32.mrf.mxu0
        %899 = vmatprep.mubr.f32.mxu0 0.0
        %v900 = vand.u32 %v343, 4294901760
        %901 = vmatmul.mubr.f32.gmra.mxu0 %v900
        %v902 = vpop.f32.mrf.mxu0
        %v903 = vadd.f32 %v638, %v902
        %v904 = vpop.f32.mrf.mxu0
        %905 = vdwg.mxu0
        %906 = vmatprep.subr.mxu0 0.0
        %v907 = vand.u32 %v359, 4294901760
        %v908 = vsub.f32 %v359, %v907
        %909 = vmatpush1.msra.mxu0 %v908
        %910 = vmatprep.subr.mxu0 0.0
        %v911 = vand.u32 %v358, 4294901760
        %v912 = vsub.f32 %v358, %v911
        %913 = vmatpush1.msra.mxu0 %v912
        %914 = vmatprep.subr.mxu0 0.0
        %v915 = vand.u32 %v357, 4294901760
        %v916 = vsub.f32 %v357, %v915
        %917 = vmatpush1.msra.mxu0 %v916
        %918 = vmatprep.subr.mxu0 0.0
        %v919 = vand.u32 %v356, 4294901760
        %v920 = vsub.f32 %v356, %v919
        %921 = vmatpush1.msra.mxu0 %v920
        %922 = vmatprep.subr.mxu0 0.0
        %v923 = vand.u32 %v355, 4294901760
        %v924 = vsub.f32 %v355, %v923
        %925 = vmatpush1.msra.mxu0 %v924
        %926 = vmatprep.subr.mxu0 0.0
        %v927 = vand.u32 %v354, 4294901760
        %v928 = vsub.f32 %v354, %v927
        %929 = vmatpush1.msra.mxu0 %v928
        %930 = vmatprep.subr.mxu0 0.0
        %v931 = vand.u32 %v353, 4294901760
        %v932 = vsub.f32 %v353, %v931
        %933 = vmatpush1.msra.mxu0 %v932
        %934 = vmatprep.subr.mxu0 0.0
        %v935 = vand.u32 %v352, 4294901760
        %v936 = vsub.f32 %v352, %v935
        %937 = vmatpush1.msra.mxu0 %v936
        %938 = vmatprep.subr.mxu0 0.0
        %v939 = vand.u32 %v351, 4294901760
        %v940 = vsub.f32 %v351, %v939
        %941 = vmatpush1.msra.mxu0 %v940
        %942 = vmatprep.subr.mxu0 0.0
        %v943 = vand.u32 %v350, 4294901760
        %v944 = vsub.f32 %v350, %v943
        %945 = vmatpush1.msra.mxu0 %v944
        %946 = vmatprep.subr.mxu0 0.0
        %v947 = vand.u32 %v349, 4294901760
        %v948 = vsub.f32 %v349, %v947
        %949 = vmatpush1.msra.mxu0 %v948
        %950 = vmatprep.subr.mxu0 0.0
        %v951 = vand.u32 %v348, 4294901760
        %v952 = vsub.f32 %v348, %v951
        %953 = vmatpush1.msra.mxu0 %v952
        %954 = vmatprep.subr.mxu0 0.0
        %v955 = vand.u32 %v347, 4294901760
        %v956 = vsub.f32 %v347, %v955
        %957 = vmatpush1.msra.mxu0 %v956
        %958 = vmatprep.subr.mxu0 0.0
        %v959 = vand.u32 %v346, 4294901760
        %v960 = vsub.f32 %v346, %v959
        %961 = vmatpush1.msra.mxu0 %v960
        %962 = vmatprep.subr.mxu0 0.0
        %v963 = vand.u32 %v345, 4294901760
        %v964 = vsub.f32 %v345, %v963
        %965 = vmatpush1.msra.mxu0 %v964
        %966 = vmatprep.subr.mxu0 0.0
        %v967 = vand.u32 %v344, 4294901760
        %v968 = vsub.f32 %v344, %v967
        %969 = vmatpush1.msra.mxu0 %v968
        %970 = vmatprep.subr.mxu0 0.0
        %971 = vmatpush2.msra.mxu0 0.0
        %972 = vmatprep.subr.mxu0 0.0
        %973 = vmatpush2.msra.mxu0 0.0
        %974 = vmatprep.subr.mxu0 0.0
        %975 = vmatpush2.msra.mxu0 0.0
        %976 = vmatprep.subr.mxu0 0.0
        %977 = vmatpush2.msra.mxu0 0.0
        %978 = vmatprep.subr.mxu0 0.0
        %979 = vmatpush2.msra.mxu0 0.0
        %980 = vmatprep.subr.mxu0 0.0
        %981 = vmatpush2.msra.mxu0 0.0
        %982 = vmatprep.subr.mxu0 0.0
        %983 = vmatpush2.msra.mxu0 0.0
        %984 = vmatprep.subr.mxu0 0.0
        %985 = vmatpush2.msra.mxu0 0.0
        %986 = vmatprep.subr.mxu0 0.0
        %987 = vmatpush2.msra.mxu0 0.0
        %988 = vmatprep.subr.mxu0 0.0
        %989 = vmatpush2.msra.mxu0 0.0
        %990 = vmatprep.subr.mxu0 0.0
        %991 = vmatpush2.msra.mxu0 0.0
        %992 = vmatprep.subr.mxu0 0.0
        %993 = vmatpush2.msra.mxu0 0.0
        %994 = vmatprep.subr.mxu0 0.0
        %995 = vmatpush2.msra.mxu0 0.0
        %996 = vmatprep.subr.mxu0 0.0
        %997 = vmatpush2.msra.mxu0 0.0
        %998 = vmatprep.subr.mxu0 0.0
        %999 = vmatpush2.msra.mxu0 0.0
        %1000 = vmatprep.subr.mxu0 0.0
        %1001 = vmatpush2.msra.mxu0 0.0
        %1002 = vmatprep.mubr.f32.mxu0 0.0
        %v1003 = vand.u32 %v324, 4294901760
        %v1004 = vsub.f32 %v324, %v1003
        %1005 = vmatmul.mubr.f32.gmra.mxu0 %v1004
        %v1006 = vpop.f32.mrf.mxu0
        %v1007 = vadd.f32 %v789, %v1006
        %v1008 = vpop.f32.mrf.mxu0
        %1009 = vmatprep.mubr.f32.mxu0 0.0
        %v1010 = vand.u32 %v325, 4294901760
        %v1011 = vsub.f32 %v325, %v1010
        %1012 = vmatmul.mubr.f32.gmra.mxu0 %v1011
        %v1013 = vpop.f32.mrf.mxu0
        %v1014 = vadd.f32 %v795, %v1013
        %v1015 = vpop.f32.mrf.mxu0
        %1016 = vmatprep.mubr.f32.mxu0 0.0
        %v1017 = vand.u32 %v326, 4294901760
        %v1018 = vsub.f32 %v326, %v1017
        %1019 = vmatmul.mubr.f32.gmra.mxu0 %v1018
        %v1020 = vpop.f32.mrf.mxu0
        %v1021 = vadd.f32 %v801, %v1020
        %v1022 = vpop.f32.mrf.mxu0
        %1023 = vmatprep.mubr.f32.mxu0 0.0
        %v1024 = vand.u32 %v327, 4294901760
        %v1025 = vsub.f32 %v327, %v1024
        %1026 = vmatmul.mubr.f32.gmra.mxu0 %v1025
        %v1027 = vpop.f32.mrf.mxu0
        %v1028 = vadd.f32 %v807, %v1027
        %v1029 = vpop.f32.mrf.mxu0
        %1030 = vmatprep.mubr.f32.mxu0 0.0
        %v1031 = vand.u32 %v328, 4294901760
        %v1032 = vsub.f32 %v328, %v1031
        %1033 = vmatmul.mubr.f32.gmra.mxu0 %v1032
        %v1034 = vpop.f32.mrf.mxu0
        %v1035 = vadd.f32 %v813, %v1034
        %v1036 = vpop.f32.mrf.mxu0
        %1037 = vmatprep.mubr.f32.mxu0 0.0
        %v1038 = vand.u32 %v329, 4294901760
        %v1039 = vsub.f32 %v329, %v1038
        %1040 = vmatmul.mubr.f32.gmra.mxu0 %v1039
        %v1041 = vpop.f32.mrf.mxu0
        %v1042 = vadd.f32 %v819, %v1041
        %v1043 = vpop.f32.mrf.mxu0
        %1044 = vmatprep.mubr.f32.mxu0 0.0
        %v1045 = vand.u32 %v330, 4294901760
        %v1046 = vsub.f32 %v330, %v1045
        %1047 = vmatmul.mubr.f32.gmra.mxu0 %v1046
        %v1048 = vpop.f32.mrf.mxu0
        %v1049 = vadd.f32 %v825, %v1048
        %v1050 = vpop.f32.mrf.mxu0
        %1051 = vmatprep.mubr.f32.mxu0 0.0
        %v1052 = vand.u32 %v331, 4294901760
        %v1053 = vsub.f32 %v331, %v1052
        %1054 = vmatmul.mubr.f32.gmra.mxu0 %v1053
        %v1055 = vpop.f32.mrf.mxu0
        %v1056 = vadd.f32 %v831, %v1055
        %v1057 = vpop.f32.mrf.mxu0
        %1058 = vmatprep.mubr.f32.mxu0 0.0
        %v1059 = vand.u32 %v332, 4294901760
        %v1060 = vsub.f32 %v332, %v1059
        %1061 = vmatmul.mubr.f32.gmra.mxu0 %v1060
        %v1062 = vpop.f32.mrf.mxu0
        %v1063 = vadd.f32 %v837, %v1062
        %v1064 = vpop.f32.mrf.mxu0
        %1065 = vmatprep.mubr.f32.mxu0 0.0
        %v1066 = vand.u32 %v333, 4294901760
        %v1067 = vsub.f32 %v333, %v1066
        %1068 = vmatmul.mubr.f32.gmra.mxu0 %v1067
        %v1069 = vpop.f32.mrf.mxu0
        %v1070 = vadd.f32 %v843, %v1069
        %v1071 = vpop.f32.mrf.mxu0
        %1072 = vmatprep.mubr.f32.mxu0 0.0
        %v1073 = vand.u32 %v334, 4294901760
        %v1074 = vsub.f32 %v334, %v1073
        %1075 = vmatmul.mubr.f32.gmra.mxu0 %v1074
        %v1076 = vpop.f32.mrf.mxu0
        %v1077 = vadd.f32 %v849, %v1076
        %v1078 = vpop.f32.mrf.mxu0
        %1079 = vmatprep.mubr.f32.mxu0 0.0
        %v1080 = vand.u32 %v335, 4294901760
        %v1081 = vsub.f32 %v335, %v1080
        %1082 = vmatmul.mubr.f32.gmra.mxu0 %v1081
        %v1083 = vpop.f32.mrf.mxu0
        %v1084 = vadd.f32 %v855, %v1083
        %v1085 = vpop.f32.mrf.mxu0
        %1086 = vmatprep.mubr.f32.mxu0 0.0
        %v1087 = vand.u32 %v336, 4294901760
        %v1088 = vsub.f32 %v336, %v1087
        %1089 = vmatmul.mubr.f32.gmra.mxu0 %v1088
        %v1090 = vpop.f32.mrf.mxu0
        %v1091 = vadd.f32 %v861, %v1090
        %v1092 = vpop.f32.mrf.mxu0
        %1093 = vmatprep.mubr.f32.mxu0 0.0
        %v1094 = vand.u32 %v337, 4294901760
        %v1095 = vsub.f32 %v337, %v1094
        %1096 = vmatmul.mubr.f32.gmra.mxu0 %v1095
        %v1097 = vpop.f32.mrf.mxu0
        %v1098 = vadd.f32 %v867, %v1097
        %v1099 = vpop.f32.mrf.mxu0
        %1100 = vmatprep.mubr.f32.mxu0 0.0
        %v1101 = vand.u32 %v338, 4294901760
        %v1102 = vsub.f32 %v338, %v1101
        %1103 = vmatmul.mubr.f32.gmra.mxu0 %v1102
        %v1104 = vpop.f32.mrf.mxu0
        %v1105 = vadd.f32 %v873, %v1104
        %v1106 = vpop.f32.mrf.mxu0
        %1107 = vmatprep.mubr.f32.mxu0 0.0
        %v1108 = vand.u32 %v339, 4294901760
        %v1109 = vsub.f32 %v339, %v1108
        %1110 = vmatmul.mubr.f32.gmra.mxu0 %v1109
        %v1111 = vpop.f32.mrf.mxu0
        %v1112 = vadd.f32 %v879, %v1111
        %v1113 = vpop.f32.mrf.mxu0
        %1114 = vmatprep.mubr.f32.mxu0 0.0
        %v1115 = vand.u32 %v340, 4294901760
        %v1116 = vsub.f32 %v340, %v1115
        %1117 = vmatmul.mubr.f32.gmra.mxu0 %v1116
        %v1118 = vpop.f32.mrf.mxu0
        %v1119 = vadd.f32 %v885, %v1118
        %v1120 = vpop.f32.mrf.mxu0
        %1121 = vmatprep.mubr.f32.mxu0 0.0
        %v1122 = vand.u32 %v341, 4294901760
        %v1123 = vsub.f32 %v341, %v1122
        %1124 = vmatmul.mubr.f32.gmra.mxu0 %v1123
        %v1125 = vpop.f32.mrf.mxu0
        %v1126 = vadd.f32 %v891, %v1125
        %v1127 = vpop.f32.mrf.mxu0
        %1128 = vmatprep.mubr.f32.mxu0 0.0
        %v1129 = vand.u32 %v342, 4294901760
        %v1130 = vsub.f32 %v342, %v1129
        %1131 = vmatmul.mubr.f32.gmra.mxu0 %v1130
        %v1132 = vpop.f32.mrf.mxu0
        %v1133 = vadd.f32 %v897, %v1132
        %v1134 = vpop.f32.mrf.mxu0
        %1135 = vmatprep.mubr.f32.mxu0 0.0
        %v1136 = vand.u32 %v343, 4294901760
        %v1137 = vsub.f32 %v343, %v1136
        %1138 = vmatmul.mubr.f32.gmra.mxu0 %v1137
        %v1139 = vpop.f32.mrf.mxu0
        %v1140 = vadd.f32 %v903, %v1139
        %v1141 = vpop.f32.mrf.mxu0
        %1142 = vdwg.mxu0
        %1143 = vmatprep.subr.mxu0 0.0
        %v1144 = vand.u32 %v359, 4294901760
        %1145 = vmatpush1.msra.mxu0 %v1144
        %1146 = vmatprep.subr.mxu0 0.0
        %v1147 = vand.u32 %v358, 4294901760
        %1148 = vmatpush1.msra.mxu0 %v1147
        %1149 = vmatprep.subr.mxu0 0.0
        %v1150 = vand.u32 %v357, 4294901760
        %1151 = vmatpush1.msra.mxu0 %v1150
        %1152 = vmatprep.subr.mxu0 0.0
        %v1153 = vand.u32 %v356, 4294901760
        %1154 = vmatpush1.msra.mxu0 %v1153
        %1155 = vmatprep.subr.mxu0 0.0
        %v1156 = vand.u32 %v355, 4294901760
        %1157 = vmatpush1.msra.mxu0 %v1156
        %1158 = vmatprep.subr.mxu0 0.0
        %v1159 = vand.u32 %v354, 4294901760
        %1160 = vmatpush1.msra.mxu0 %v1159
        %1161 = vmatprep.subr.mxu0 0.0
        %v1162 = vand.u32 %v353, 4294901760
        %1163 = vmatpush1.msra.mxu0 %v1162
        %1164 = vmatprep.subr.mxu0 0.0
        %v1165 = vand.u32 %v352, 4294901760
        %1166 = vmatpush1.msra.mxu0 %v1165
        %1167 = vmatprep.subr.mxu0 0.0
        %v1168 = vand.u32 %v351, 4294901760
        %1169 = vmatpush1.msra.mxu0 %v1168
        %1170 = vmatprep.subr.mxu0 0.0
        %v1171 = vand.u32 %v350, 4294901760
        %1172 = vmatpush1.msra.mxu0 %v1171
        %1173 = vmatprep.subr.mxu0 0.0
        %v1174 = vand.u32 %v349, 4294901760
        %1175 = vmatpush1.msra.mxu0 %v1174
        %1176 = vmatprep.subr.mxu0 0.0
        %v1177 = vand.u32 %v348, 4294901760
        %1178 = vmatpush1.msra.mxu0 %v1177
        %1179 = vmatprep.subr.mxu0 0.0
        %v1180 = vand.u32 %v347, 4294901760
        %1181 = vmatpush1.msra.mxu0 %v1180
        %1182 = vmatprep.subr.mxu0 0.0
        %v1183 = vand.u32 %v346, 4294901760
        %1184 = vmatpush1.msra.mxu0 %v1183
        %1185 = vmatprep.subr.mxu0 0.0
        %v1186 = vand.u32 %v345, 4294901760
        %1187 = vmatpush1.msra.mxu0 %v1186
        %1188 = vmatprep.subr.mxu0 0.0
        %v1189 = vand.u32 %v344, 4294901760
        %1190 = vmatpush1.msra.mxu0 %v1189
        %1191 = vmatprep.subr.mxu0 0.0
        %1192 = vmatpush2.msra.mxu0 0.0
        %1193 = vmatprep.subr.mxu0 0.0
        %1194 = vmatpush2.msra.mxu0 0.0
        %1195 = vmatprep.subr.mxu0 0.0
        %1196 = vmatpush2.msra.mxu0 0.0
        %1197 = vmatprep.subr.mxu0 0.0
        %1198 = vmatpush2.msra.mxu0 0.0
        %1199 = vmatprep.subr.mxu0 0.0
        %1200 = vmatpush2.msra.mxu0 0.0
        %1201 = vmatprep.subr.mxu0 0.0
        %1202 = vmatpush2.msra.mxu0 0.0
        %1203 = vmatprep.subr.mxu0 0.0
        %1204 = vmatpush2.msra.mxu0 0.0
        %1205 = vmatprep.subr.mxu0 0.0
        %1206 = vmatpush2.msra.mxu0 0.0
        %1207 = vmatprep.subr.mxu0 0.0
        %1208 = vmatpush2.msra.mxu0 0.0
        %1209 = vmatprep.subr.mxu0 0.0
        %1210 = vmatpush2.msra.mxu0 0.0
        %1211 = vmatprep.subr.mxu0 0.0
        %1212 = vmatpush2.msra.mxu0 0.0
        %1213 = vmatprep.subr.mxu0 0.0
        %1214 = vmatpush2.msra.mxu0 0.0
        %1215 = vmatprep.subr.mxu0 0.0
        %1216 = vmatpush2.msra.mxu0 0.0
        %1217 = vmatprep.subr.mxu0 0.0
        %1218 = vmatpush2.msra.mxu0 0.0
        %1219 = vmatprep.subr.mxu0 0.0
        %1220 = vmatpush2.msra.mxu0 0.0
        %1221 = vmatprep.subr.mxu0 0.0
        %1222 = vmatpush2.msra.mxu0 0.0
        %1223 = vmatprep.mubr.f32.mxu0 0.0
        %v1224 = vand.u32 %v324, 4294901760
        %v1225 = vsub.f32 %v324, %v1224
        %v1226 = vand.u32 %v1225, 4294901760
        %1227 = vmatmul.mubr.f32.gmra.mxu0 %v1226
        %v1228 = vpop.f32.mrf.mxu0
        %v1229 = vadd.f32 %v1007, %v1228
        %v1230 = vpop.f32.mrf.mxu0
        %1231 = vmatprep.mubr.f32.mxu0 0.0
        %v1232 = vand.u32 %v325, 4294901760
        %v1233 = vsub.f32 %v325, %v1232
        %v1234 = vand.u32 %v1233, 4294901760
        %1235 = vmatmul.mubr.f32.gmra.mxu0 %v1234
        %v1236 = vpop.f32.mrf.mxu0
        %v1237 = vadd.f32 %v1014, %v1236
        %v1238 = vpop.f32.mrf.mxu0
        %1239 = vmatprep.mubr.f32.mxu0 0.0
        %v1240 = vand.u32 %v326, 4294901760
        %v1241 = vsub.f32 %v326, %v1240
        %v1242 = vand.u32 %v1241, 4294901760
        %1243 = vmatmul.mubr.f32.gmra.mxu0 %v1242
        %v1244 = vpop.f32.mrf.mxu0
        %v1245 = vadd.f32 %v1021, %v1244
        %v1246 = vpop.f32.mrf.mxu0
        %1247 = vmatprep.mubr.f32.mxu0 0.0
        %v1248 = vand.u32 %v327, 4294901760
        %v1249 = vsub.f32 %v327, %v1248
        %v1250 = vand.u32 %v1249, 4294901760
        %1251 = vmatmul.mubr.f32.gmra.mxu0 %v1250
        %v1252 = vpop.f32.mrf.mxu0
        %v1253 = vadd.f32 %v1028, %v1252
        %v1254 = vpop.f32.mrf.mxu0
        %1255 = vmatprep.mubr.f32.mxu0 0.0
        %v1256 = vand.u32 %v328, 4294901760
        %v1257 = vsub.f32 %v328, %v1256
        %v1258 = vand.u32 %v1257, 4294901760
        %1259 = vmatmul.mubr.f32.gmra.mxu0 %v1258
        %v1260 = vpop.f32.mrf.mxu0
        %v1261 = vadd.f32 %v1035, %v1260
        %v1262 = vpop.f32.mrf.mxu0
        %1263 = vmatprep.mubr.f32.mxu0 0.0
        %v1264 = vand.u32 %v329, 4294901760
        %v1265 = vsub.f32 %v329, %v1264
        %v1266 = vand.u32 %v1265, 4294901760
        %1267 = vmatmul.mubr.f32.gmra.mxu0 %v1266
        %v1268 = vpop.f32.mrf.mxu0
        %v1269 = vadd.f32 %v1042, %v1268
        %v1270 = vpop.f32.mrf.mxu0
        %1271 = vmatprep.mubr.f32.mxu0 0.0
        %v1272 = vand.u32 %v330, 4294901760
        %v1273 = vsub.f32 %v330, %v1272
        %v1274 = vand.u32 %v1273, 4294901760
        %1275 = vmatmul.mubr.f32.gmra.mxu0 %v1274
        %v1276 = vpop.f32.mrf.mxu0
        %v1277 = vadd.f32 %v1049, %v1276
        %v1278 = vpop.f32.mrf.mxu0
        %1279 = vmatprep.mubr.f32.mxu0 0.0
        %v1280 = vand.u32 %v331, 4294901760
        %v1281 = vsub.f32 %v331, %v1280
        %v1282 = vand.u32 %v1281, 4294901760
        %1283 = vmatmul.mubr.f32.gmra.mxu0 %v1282
        %v1284 = vpop.f32.mrf.mxu0
        %v1285 = vadd.f32 %v1056, %v1284
        %v1286 = vpop.f32.mrf.mxu0
        %1287 = vmatprep.mubr.f32.mxu0 0.0
        %v1288 = vand.u32 %v332, 4294901760
        %v1289 = vsub.f32 %v332, %v1288
        %v1290 = vand.u32 %v1289, 4294901760
        %1291 = vmatmul.mubr.f32.gmra.mxu0 %v1290
        %v1292 = vpop.f32.mrf.mxu0
        %v1293 = vadd.f32 %v1063, %v1292
        %v1294 = vpop.f32.mrf.mxu0
        %1295 = vmatprep.mubr.f32.mxu0 0.0
        %v1296 = vand.u32 %v333, 4294901760
        %v1297 = vsub.f32 %v333, %v1296
        %v1298 = vand.u32 %v1297, 4294901760
        %1299 = vmatmul.mubr.f32.gmra.mxu0 %v1298
        %v1300 = vpop.f32.mrf.mxu0
        %v1301 = vadd.f32 %v1070, %v1300
        %v1302 = vpop.f32.mrf.mxu0
        %1303 = vmatprep.mubr.f32.mxu0 0.0
        %v1304 = vand.u32 %v334, 4294901760
        %v1305 = vsub.f32 %v334, %v1304
        %v1306 = vand.u32 %v1305, 4294901760
        %1307 = vmatmul.mubr.f32.gmra.mxu0 %v1306
        %v1308 = vpop.f32.mrf.mxu0
        %v1309 = vadd.f32 %v1077, %v1308
        %v1310 = vpop.f32.mrf.mxu0
        %1311 = vmatprep.mubr.f32.mxu0 0.0
        %v1312 = vand.u32 %v335, 4294901760
        %v1313 = vsub.f32 %v335, %v1312
        %v1314 = vand.u32 %v1313, 4294901760
        %1315 = vmatmul.mubr.f32.gmra.mxu0 %v1314
        %v1316 = vpop.f32.mrf.mxu0
        %v1317 = vadd.f32 %v1084, %v1316
        %v1318 = vpop.f32.mrf.mxu0
        %1319 = vmatprep.mubr.f32.mxu0 0.0
        %v1320 = vand.u32 %v336, 4294901760
        %v1321 = vsub.f32 %v336, %v1320
        %v1322 = vand.u32 %v1321, 4294901760
        %1323 = vmatmul.mubr.f32.gmra.mxu0 %v1322
        %v1324 = vpop.f32.mrf.mxu0
        %v1325 = vadd.f32 %v1091, %v1324
        %v1326 = vpop.f32.mrf.mxu0
        %1327 = vmatprep.mubr.f32.mxu0 0.0
        %v1328 = vand.u32 %v337, 4294901760
        %v1329 = vsub.f32 %v337, %v1328
        %v1330 = vand.u32 %v1329, 4294901760
        %1331 = vmatmul.mubr.f32.gmra.mxu0 %v1330
        %v1332 = vpop.f32.mrf.mxu0
        %v1333 = vadd.f32 %v1098, %v1332
        %v1334 = vpop.f32.mrf.mxu0
        %1335 = vmatprep.mubr.f32.mxu0 0.0
        %v1336 = vand.u32 %v338, 4294901760
        %v1337 = vsub.f32 %v338, %v1336
        %v1338 = vand.u32 %v1337, 4294901760
        %1339 = vmatmul.mubr.f32.gmra.mxu0 %v1338
        %v1340 = vpop.f32.mrf.mxu0
        %v1341 = vadd.f32 %v1105, %v1340
        %v1342 = vpop.f32.mrf.mxu0
        %1343 = vmatprep.mubr.f32.mxu0 0.0
        %v1344 = vand.u32 %v339, 4294901760
        %v1345 = vsub.f32 %v339, %v1344
        %v1346 = vand.u32 %v1345, 4294901760
        %1347 = vmatmul.mubr.f32.gmra.mxu0 %v1346
        %v1348 = vpop.f32.mrf.mxu0
        %v1349 = vadd.f32 %v1112, %v1348
        %v1350 = vpop.f32.mrf.mxu0
        %1351 = vmatprep.mubr.f32.mxu0 0.0
        %v1352 = vand.u32 %v340, 4294901760
        %v1353 = vsub.f32 %v340, %v1352
        %v1354 = vand.u32 %v1353, 4294901760
        %1355 = vmatmul.mubr.f32.gmra.mxu0 %v1354
        %v1356 = vpop.f32.mrf.mxu0
        %v1357 = vadd.f32 %v1119, %v1356
        %v1358 = vpop.f32.mrf.mxu0
        %1359 = vmatprep.mubr.f32.mxu0 0.0
        %v1360 = vand.u32 %v341, 4294901760
        %v1361 = vsub.f32 %v341, %v1360
        %v1362 = vand.u32 %v1361, 4294901760
        %1363 = vmatmul.mubr.f32.gmra.mxu0 %v1362
        %v1364 = vpop.f32.mrf.mxu0
        %v1365 = vadd.f32 %v1126, %v1364
        %v1366 = vpop.f32.mrf.mxu0
        %1367 = vmatprep.mubr.f32.mxu0 0.0
        %v1368 = vand.u32 %v342, 4294901760
        %v1369 = vsub.f32 %v342, %v1368
        %v1370 = vand.u32 %v1369, 4294901760
        %1371 = vmatmul.mubr.f32.gmra.mxu0 %v1370
        %v1372 = vpop.f32.mrf.mxu0
        %v1373 = vadd.f32 %v1133, %v1372
        %v1374 = vpop.f32.mrf.mxu0
        %1375 = vmatprep.mubr.f32.mxu0 0.0
        %v1376 = vand.u32 %v343, 4294901760
        %v1377 = vsub.f32 %v343, %v1376
        %v1378 = vand.u32 %v1377, 4294901760
        %1379 = vmatmul.mubr.f32.gmra.mxu0 %v1378
        %v1380 = vpop.f32.mrf.mxu0
        %v1381 = vadd.f32 %v1140, %v1380
        %v1382 = vpop.f32.mrf.mxu0
        %1383 = vdwg.mxu0
        %1384 = vmatprep.subr.mxu0 0.0
        %v1385 = vand.u32 %v359, 4294901760
        %v1386 = vsub.f32 %v359, %v1385
        %v1387 = vand.u32 %v1386, 4294901760
        %1388 = vmatpush1.msra.mxu0 %v1387
        %1389 = vmatprep.subr.mxu0 0.0
        %v1390 = vand.u32 %v358, 4294901760
        %v1391 = vsub.f32 %v358, %v1390
        %v1392 = vand.u32 %v1391, 4294901760
        %1393 = vmatpush1.msra.mxu0 %v1392
        %1394 = vmatprep.subr.mxu0 0.0
        %v1395 = vand.u32 %v357, 4294901760
        %v1396 = vsub.f32 %v357, %v1395
        %v1397 = vand.u32 %v1396, 4294901760
        %1398 = vmatpush1.msra.mxu0 %v1397
        %1399 = vmatprep.subr.mxu0 0.0
        %v1400 = vand.u32 %v356, 4294901760
        %v1401 = vsub.f32 %v356, %v1400
        %v1402 = vand.u32 %v1401, 4294901760
        %1403 = vmatpush1.msra.mxu0 %v1402
        %1404 = vmatprep.subr.mxu0 0.0
        %v1405 = vand.u32 %v355, 4294901760
        %v1406 = vsub.f32 %v355, %v1405
        %v1407 = vand.u32 %v1406, 4294901760
        %1408 = vmatpush1.msra.mxu0 %v1407
        %1409 = vmatprep.subr.mxu0 0.0
        %v1410 = vand.u32 %v354, 4294901760
        %v1411 = vsub.f32 %v354, %v1410
        %v1412 = vand.u32 %v1411, 4294901760
        %1413 = vmatpush1.msra.mxu0 %v1412
        %1414 = vmatprep.subr.mxu0 0.0
        %v1415 = vand.u32 %v353, 4294901760
        %v1416 = vsub.f32 %v353, %v1415
        %v1417 = vand.u32 %v1416, 4294901760
        %1418 = vmatpush1.msra.mxu0 %v1417
        %1419 = vmatprep.subr.mxu0 0.0
        %v1420 = vand.u32 %v352, 4294901760
        %v1421 = vsub.f32 %v352, %v1420
        %v1422 = vand.u32 %v1421, 4294901760
        %1423 = vmatpush1.msra.mxu0 %v1422
        %1424 = vmatprep.subr.mxu0 0.0
        %v1425 = vand.u32 %v351, 4294901760
        %v1426 = vsub.f32 %v351, %v1425
        %v1427 = vand.u32 %v1426, 4294901760
        %1428 = vmatpush1.msra.mxu0 %v1427
        %1429 = vmatprep.subr.mxu0 0.0
        %v1430 = vand.u32 %v350, 4294901760
        %v1431 = vsub.f32 %v350, %v1430
        %v1432 = vand.u32 %v1431, 4294901760
        %1433 = vmatpush1.msra.mxu0 %v1432
        %1434 = vmatprep.subr.mxu0 0.0
        %v1435 = vand.u32 %v349, 4294901760
        %v1436 = vsub.f32 %v349, %v1435
        %v1437 = vand.u32 %v1436, 4294901760
        %1438 = vmatpush1.msra.mxu0 %v1437
        %1439 = vmatprep.subr.mxu0 0.0
        %v1440 = vand.u32 %v348, 4294901760
        %v1441 = vsub.f32 %v348, %v1440
        %v1442 = vand.u32 %v1441, 4294901760
        %1443 = vmatpush1.msra.mxu0 %v1442
        %1444 = vmatprep.subr.mxu0 0.0
        %v1445 = vand.u32 %v347, 4294901760
        %v1446 = vsub.f32 %v347, %v1445
        %v1447 = vand.u32 %v1446, 4294901760
        %1448 = vmatpush1.msra.mxu0 %v1447
        %1449 = vmatprep.subr.mxu0 0.0
        %v1450 = vand.u32 %v346, 4294901760
        %v1451 = vsub.f32 %v346, %v1450
        %v1452 = vand.u32 %v1451, 4294901760
        %1453 = vmatpush1.msra.mxu0 %v1452
        %1454 = vmatprep.subr.mxu0 0.0
        %v1455 = vand.u32 %v345, 4294901760
        %v1456 = vsub.f32 %v345, %v1455
        %v1457 = vand.u32 %v1456, 4294901760
        %1458 = vmatpush1.msra.mxu0 %v1457
        %1459 = vmatprep.subr.mxu0 0.0
        %v1460 = vand.u32 %v344, 4294901760
        %v1461 = vsub.f32 %v344, %v1460
        %v1462 = vand.u32 %v1461, 4294901760
        %1463 = vmatpush1.msra.mxu0 %v1462
        %1464 = vmatprep.subr.mxu0 0.0
        %1465 = vmatpush2.msra.mxu0 0.0
        %1466 = vmatprep.subr.mxu0 0.0
        %1467 = vmatpush2.msra.mxu0 0.0
        %1468 = vmatprep.subr.mxu0 0.0
        %1469 = vmatpush2.msra.mxu0 0.0
        %1470 = vmatprep.subr.mxu0 0.0
        %1471 = vmatpush2.msra.mxu0 0.0
        %1472 = vmatprep.subr.mxu0 0.0
        %1473 = vmatpush2.msra.mxu0 0.0
        %1474 = vmatprep.subr.mxu0 0.0
        %1475 = vmatpush2.msra.mxu0 0.0
        %1476 = vmatprep.subr.mxu0 0.0
        %1477 = vmatpush2.msra.mxu0 0.0
        %1478 = vmatprep.subr.mxu0 0.0
        %1479 = vmatpush2.msra.mxu0 0.0
        %1480 = vmatprep.subr.mxu0 0.0
        %1481 = vmatpush2.msra.mxu0 0.0
        %1482 = vmatprep.subr.mxu0 0.0
        %1483 = vmatpush2.msra.mxu0 0.0
        %1484 = vmatprep.subr.mxu0 0.0
        %1485 = vmatpush2.msra.mxu0 0.0
        %1486 = vmatprep.subr.mxu0 0.0
        %1487 = vmatpush2.msra.mxu0 0.0
        %1488 = vmatprep.subr.mxu0 0.0
        %1489 = vmatpush2.msra.mxu0 0.0
        %1490 = vmatprep.subr.mxu0 0.0
        %1491 = vmatpush2.msra.mxu0 0.0
        %1492 = vmatprep.subr.mxu0 0.0
        %1493 = vmatpush2.msra.mxu0 0.0
        %1494 = vmatprep.subr.mxu0 0.0
        %1495 = vmatpush2.msra.mxu0 0.0
        %1496 = vmatprep.mubr.f32.mxu0 0.0
        %v1497 = vand.u32 %v324, 4294901760
        %1498 = vmatmul.mubr.f32.gmra.mxu0 %v1497
        %v1499 = vpop.f32.mrf.mxu0
        %v1500 = vadd.f32 %v1229, %v1499
        %v1501 = vpop.f32.mrf.mxu0
        %1502 = vmatprep.mubr.f32.mxu0 0.0
        %v1503 = vand.u32 %v325, 4294901760
        %1504 = vmatmul.mubr.f32.gmra.mxu0 %v1503
        %v1505 = vpop.f32.mrf.mxu0
        %v1506 = vadd.f32 %v1237, %v1505
        %v1507 = vpop.f32.mrf.mxu0
        %1508 = vmatprep.mubr.f32.mxu0 0.0
        %v1509 = vand.u32 %v326, 4294901760
        %1510 = vmatmul.mubr.f32.gmra.mxu0 %v1509
        %v1511 = vpop.f32.mrf.mxu0
        %v1512 = vadd.f32 %v1245, %v1511
        %v1513 = vpop.f32.mrf.mxu0
        %1514 = vmatprep.mubr.f32.mxu0 0.0
        %v1515 = vand.u32 %v327, 4294901760
        %1516 = vmatmul.mubr.f32.gmra.mxu0 %v1515
        %v1517 = vpop.f32.mrf.mxu0
        %v1518 = vadd.f32 %v1253, %v1517
        %v1519 = vpop.f32.mrf.mxu0
        %1520 = vmatprep.mubr.f32.mxu0 0.0
        %v1521 = vand.u32 %v328, 4294901760
        %1522 = vmatmul.mubr.f32.gmra.mxu0 %v1521
        %v1523 = vpop.f32.mrf.mxu0
        %v1524 = vadd.f32 %v1261, %v1523
        %v1525 = vpop.f32.mrf.mxu0
        %1526 = vmatprep.mubr.f32.mxu0 0.0
        %v1527 = vand.u32 %v329, 4294901760
        %1528 = vmatmul.mubr.f32.gmra.mxu0 %v1527
        %v1529 = vpop.f32.mrf.mxu0
        %v1530 = vadd.f32 %v1269, %v1529
        %v1531 = vpop.f32.mrf.mxu0
        %1532 = vmatprep.mubr.f32.mxu0 0.0
        %v1533 = vand.u32 %v330, 4294901760
        %1534 = vmatmul.mubr.f32.gmra.mxu0 %v1533
        %v1535 = vpop.f32.mrf.mxu0
        %v1536 = vadd.f32 %v1277, %v1535
        %v1537 = vpop.f32.mrf.mxu0
        %1538 = vmatprep.mubr.f32.mxu0 0.0
        %v1539 = vand.u32 %v331, 4294901760
        %1540 = vmatmul.mubr.f32.gmra.mxu0 %v1539
        %v1541 = vpop.f32.mrf.mxu0
        %v1542 = vadd.f32 %v1285, %v1541
        %v1543 = vpop.f32.mrf.mxu0
        %1544 = vmatprep.mubr.f32.mxu0 0.0
        %v1545 = vand.u32 %v332, 4294901760
        %1546 = vmatmul.mubr.f32.gmra.mxu0 %v1545
        %v1547 = vpop.f32.mrf.mxu0
        %v1548 = vadd.f32 %v1293, %v1547
        %v1549 = vpop.f32.mrf.mxu0
        %1550 = vmatprep.mubr.f32.mxu0 0.0
        %v1551 = vand.u32 %v333, 4294901760
        %1552 = vmatmul.mubr.f32.gmra.mxu0 %v1551
        %v1553 = vpop.f32.mrf.mxu0
        %v1554 = vadd.f32 %v1301, %v1553
        %v1555 = vpop.f32.mrf.mxu0
        %1556 = vmatprep.mubr.f32.mxu0 0.0
        %v1557 = vand.u32 %v334, 4294901760
        %1558 = vmatmul.mubr.f32.gmra.mxu0 %v1557
        %v1559 = vpop.f32.mrf.mxu0
        %v1560 = vadd.f32 %v1309, %v1559
        %v1561 = vpop.f32.mrf.mxu0
        %1562 = vmatprep.mubr.f32.mxu0 0.0
        %v1563 = vand.u32 %v335, 4294901760
        %1564 = vmatmul.mubr.f32.gmra.mxu0 %v1563
        %v1565 = vpop.f32.mrf.mxu0
        %v1566 = vadd.f32 %v1317, %v1565
        %v1567 = vpop.f32.mrf.mxu0
        %1568 = vmatprep.mubr.f32.mxu0 0.0
        %v1569 = vand.u32 %v336, 4294901760
        %1570 = vmatmul.mubr.f32.gmra.mxu0 %v1569
        %v1571 = vpop.f32.mrf.mxu0
        %v1572 = vadd.f32 %v1325, %v1571
        %v1573 = vpop.f32.mrf.mxu0
        %1574 = vmatprep.mubr.f32.mxu0 0.0
        %v1575 = vand.u32 %v337, 4294901760
        %1576 = vmatmul.mubr.f32.gmra.mxu0 %v1575
        %v1577 = vpop.f32.mrf.mxu0
        %v1578 = vadd.f32 %v1333, %v1577
        %v1579 = vpop.f32.mrf.mxu0
        %1580 = vmatprep.mubr.f32.mxu0 0.0
        %v1581 = vand.u32 %v338, 4294901760
        %1582 = vmatmul.mubr.f32.gmra.mxu0 %v1581
        %v1583 = vpop.f32.mrf.mxu0
        %v1584 = vadd.f32 %v1341, %v1583
        %v1585 = vpop.f32.mrf.mxu0
        %1586 = vmatprep.mubr.f32.mxu0 0.0
        %v1587 = vand.u32 %v339, 4294901760
        %1588 = vmatmul.mubr.f32.gmra.mxu0 %v1587
        %v1589 = vpop.f32.mrf.mxu0
        %v1590 = vadd.f32 %v1349, %v1589
        %v1591 = vpop.f32.mrf.mxu0
        %1592 = vmatprep.mubr.f32.mxu0 0.0
        %v1593 = vand.u32 %v340, 4294901760
        %1594 = vmatmul.mubr.f32.gmra.mxu0 %v1593
        %v1595 = vpop.f32.mrf.mxu0
        %v1596 = vadd.f32 %v1357, %v1595
        %v1597 = vpop.f32.mrf.mxu0
        %1598 = vmatprep.mubr.f32.mxu0 0.0
        %v1599 = vand.u32 %v341, 4294901760
        %1600 = vmatmul.mubr.f32.gmra.mxu0 %v1599
        %v1601 = vpop.f32.mrf.mxu0
        %v1602 = vadd.f32 %v1365, %v1601
        %v1603 = vpop.f32.mrf.mxu0
        %1604 = vmatprep.mubr.f32.mxu0 0.0
        %v1605 = vand.u32 %v342, 4294901760
        %1606 = vmatmul.mubr.f32.gmra.mxu0 %v1605
        %v1607 = vpop.f32.mrf.mxu0
        %v1608 = vadd.f32 %v1373, %v1607
        %v1609 = vpop.f32.mrf.mxu0
        %1610 = vmatprep.mubr.f32.mxu0 0.0
        %v1611 = vand.u32 %v343, 4294901760
        %1612 = vmatmul.mubr.f32.gmra.mxu0 %v1611
        %v1613 = vpop.f32.mrf.mxu0
        %v1614 = vadd.f32 %v1381, %v1613
        %v1615 = vpop.f32.mrf.mxu0
        %1616 = vdwg.mxu0
        %1617 = vmatprep.subr.mxu0 0.0
        %v1618 = vand.u32 %v359, 4294901760
        %1619 = vmatpush1.msra.mxu0 %v1618
        %1620 = vmatprep.subr.mxu0 0.0
        %v1621 = vand.u32 %v358, 4294901760
        %1622 = vmatpush1.msra.mxu0 %v1621
        %1623 = vmatprep.subr.mxu0 0.0
        %v1624 = vand.u32 %v357, 4294901760
        %1625 = vmatpush1.msra.mxu0 %v1624
        %1626 = vmatprep.subr.mxu0 0.0
        %v1627 = vand.u32 %v356, 4294901760
        %1628 = vmatpush1.msra.mxu0 %v1627
        %1629 = vmatprep.subr.mxu0 0.0
        %v1630 = vand.u32 %v355, 4294901760
        %1631 = vmatpush1.msra.mxu0 %v1630
        %1632 = vmatprep.subr.mxu0 0.0
        %v1633 = vand.u32 %v354, 4294901760
        %1634 = vmatpush1.msra.mxu0 %v1633
        %1635 = vmatprep.subr.mxu0 0.0
        %v1636 = vand.u32 %v353, 4294901760
        %1637 = vmatpush1.msra.mxu0 %v1636
        %1638 = vmatprep.subr.mxu0 0.0
        %v1639 = vand.u32 %v352, 4294901760
        %1640 = vmatpush1.msra.mxu0 %v1639
        %1641 = vmatprep.subr.mxu0 0.0
        %v1642 = vand.u32 %v351, 4294901760
        %1643 = vmatpush1.msra.mxu0 %v1642
        %1644 = vmatprep.subr.mxu0 0.0
        %v1645 = vand.u32 %v350, 4294901760
        %1646 = vmatpush1.msra.mxu0 %v1645
        %1647 = vmatprep.subr.mxu0 0.0
        %v1648 = vand.u32 %v349, 4294901760
        %1649 = vmatpush1.msra.mxu0 %v1648
        %1650 = vmatprep.subr.mxu0 0.0
        %v1651 = vand.u32 %v348, 4294901760
        %1652 = vmatpush1.msra.mxu0 %v1651
        %1653 = vmatprep.subr.mxu0 0.0
        %v1654 = vand.u32 %v347, 4294901760
        %1655 = vmatpush1.msra.mxu0 %v1654
        %1656 = vmatprep.subr.mxu0 0.0
        %v1657 = vand.u32 %v346, 4294901760
        %1658 = vmatpush1.msra.mxu0 %v1657
        %1659 = vmatprep.subr.mxu0 0.0
        %v1660 = vand.u32 %v345, 4294901760
        %1661 = vmatpush1.msra.mxu0 %v1660
        %1662 = vmatprep.subr.mxu0 0.0
        %v1663 = vand.u32 %v344, 4294901760
        %1664 = vmatpush1.msra.mxu0 %v1663
        %1665 = vmatprep.subr.mxu0 0.0
        %1666 = vmatpush2.msra.mxu0 0.0
        %1667 = vmatprep.subr.mxu0 0.0
        %1668 = vmatpush2.msra.mxu0 0.0
        %1669 = vmatprep.subr.mxu0 0.0
        %1670 = vmatpush2.msra.mxu0 0.0
        %1671 = vmatprep.subr.mxu0 0.0
        %1672 = vmatpush2.msra.mxu0 0.0
        %1673 = vmatprep.subr.mxu0 0.0
        %1674 = vmatpush2.msra.mxu0 0.0
        %1675 = vmatprep.subr.mxu0 0.0
        %1676 = vmatpush2.msra.mxu0 0.0
        %1677 = vmatprep.subr.mxu0 0.0
        %1678 = vmatpush2.msra.mxu0 0.0
        %1679 = vmatprep.subr.mxu0 0.0
        %1680 = vmatpush2.msra.mxu0 0.0
        %1681 = vmatprep.subr.mxu0 0.0
        %1682 = vmatpush2.msra.mxu0 0.0
        %1683 = vmatprep.subr.mxu0 0.0
        %1684 = vmatpush2.msra.mxu0 0.0
        %1685 = vmatprep.subr.mxu0 0.0
        %1686 = vmatpush2.msra.mxu0 0.0
        %1687 = vmatprep.subr.mxu0 0.0
        %1688 = vmatpush2.msra.mxu0 0.0
        %1689 = vmatprep.subr.mxu0 0.0
        %1690 = vmatpush2.msra.mxu0 0.0
        %1691 = vmatprep.subr.mxu0 0.0
        %1692 = vmatpush2.msra.mxu0 0.0
        %1693 = vmatprep.subr.mxu0 0.0
        %1694 = vmatpush2.msra.mxu0 0.0
        %1695 = vmatprep.subr.mxu0 0.0
        %1696 = vmatpush2.msra.mxu0 0.0
        %1697 = vmatprep.mubr.f32.mxu0 0.0
        %v1698 = vand.u32 %v324, 4294901760
        %1699 = vmatmul.mubr.f32.gmra.mxu0 %v1698
        %v1700 = vpop.f32.mrf.mxu0
        %v1701 = vadd.f32 %v1500, %v1700
        %v1702 = vpop.f32.mrf.mxu0
        %1703 = vmatprep.mubr.f32.mxu0 0.0
        %v1704 = vand.u32 %v325, 4294901760
        %1705 = vmatmul.mubr.f32.gmra.mxu0 %v1704
        %v1706 = vpop.f32.mrf.mxu0
        %v1707 = vadd.f32 %v1506, %v1706
        %v1708 = vpop.f32.mrf.mxu0
        %1709 = vmatprep.mubr.f32.mxu0 0.0
        %v1710 = vand.u32 %v326, 4294901760
        %1711 = vmatmul.mubr.f32.gmra.mxu0 %v1710
        %v1712 = vpop.f32.mrf.mxu0
        %v1713 = vadd.f32 %v1512, %v1712
        %v1714 = vpop.f32.mrf.mxu0
        %1715 = vmatprep.mubr.f32.mxu0 0.0
        %v1716 = vand.u32 %v327, 4294901760
        %1717 = vmatmul.mubr.f32.gmra.mxu0 %v1716
        %v1718 = vpop.f32.mrf.mxu0
        %v1719 = vadd.f32 %v1518, %v1718
        %v1720 = vpop.f32.mrf.mxu0
        %1721 = vmatprep.mubr.f32.mxu0 0.0
        %v1722 = vand.u32 %v328, 4294901760
        %1723 = vmatmul.mubr.f32.gmra.mxu0 %v1722
        %v1724 = vpop.f32.mrf.mxu0
        %v1725 = vadd.f32 %v1524, %v1724
        %v1726 = vpop.f32.mrf.mxu0
        %1727 = vmatprep.mubr.f32.mxu0 0.0
        %v1728 = vand.u32 %v329, 4294901760
        %1729 = vmatmul.mubr.f32.gmra.mxu0 %v1728
        %v1730 = vpop.f32.mrf.mxu0
        %v1731 = vadd.f32 %v1530, %v1730
        %v1732 = vpop.f32.mrf.mxu0
        %1733 = vmatprep.mubr.f32.mxu0 0.0
        %v1734 = vand.u32 %v330, 4294901760
        %1735 = vmatmul.mubr.f32.gmra.mxu0 %v1734
        %v1736 = vpop.f32.mrf.mxu0
        %v1737 = vadd.f32 %v1536, %v1736
        %v1738 = vpop.f32.mrf.mxu0
        %1739 = vmatprep.mubr.f32.mxu0 0.0
        %v1740 = vand.u32 %v331, 4294901760
        %1741 = vmatmul.mubr.f32.gmra.mxu0 %v1740
        %v1742 = vpop.f32.mrf.mxu0
        %v1743 = vadd.f32 %v1542, %v1742
        %v1744 = vpop.f32.mrf.mxu0
        %1745 = vmatprep.mubr.f32.mxu0 0.0
        %v1746 = vand.u32 %v332, 4294901760
        %1747 = vmatmul.mubr.f32.gmra.mxu0 %v1746
        %v1748 = vpop.f32.mrf.mxu0
        %v1749 = vadd.f32 %v1548, %v1748
        %v1750 = vpop.f32.mrf.mxu0
        %1751 = vmatprep.mubr.f32.mxu0 0.0
        %v1752 = vand.u32 %v333, 4294901760
        %1753 = vmatmul.mubr.f32.gmra.mxu0 %v1752
        %v1754 = vpop.f32.mrf.mxu0
        %v1755 = vadd.f32 %v1554, %v1754
        %v1756 = vpop.f32.mrf.mxu0
        %1757 = vmatprep.mubr.f32.mxu0 0.0
        %v1758 = vand.u32 %v334, 4294901760
        %1759 = vmatmul.mubr.f32.gmra.mxu0 %v1758
        %v1760 = vpop.f32.mrf.mxu0
        %v1761 = vadd.f32 %v1560, %v1760
        %v1762 = vpop.f32.mrf.mxu0
        %1763 = vmatprep.mubr.f32.mxu0 0.0
        %v1764 = vand.u32 %v335, 4294901760
        %1765 = vmatmul.mubr.f32.gmra.mxu0 %v1764
        %v1766 = vpop.f32.mrf.mxu0
        %v1767 = vadd.f32 %v1566, %v1766
        %v1768 = vpop.f32.mrf.mxu0
        %1769 = vmatprep.mubr.f32.mxu0 0.0
        %v1770 = vand.u32 %v336, 4294901760
        %1771 = vmatmul.mubr.f32.gmra.mxu0 %v1770
        %v1772 = vpop.f32.mrf.mxu0
        %v1773 = vadd.f32 %v1572, %v1772
        %v1774 = vpop.f32.mrf.mxu0
        %1775 = vmatprep.mubr.f32.mxu0 0.0
        %v1776 = vand.u32 %v337, 4294901760
        %1777 = vmatmul.mubr.f32.gmra.mxu0 %v1776
        %v1778 = vpop.f32.mrf.mxu0
        %v1779 = vadd.f32 %v1578, %v1778
        %v1780 = vpop.f32.mrf.mxu0
        %1781 = vmatprep.mubr.f32.mxu0 0.0
        %v1782 = vand.u32 %v338, 4294901760
        %1783 = vmatmul.mubr.f32.gmra.mxu0 %v1782
        %v1784 = vpop.f32.mrf.mxu0
        %v1785 = vadd.f32 %v1584, %v1784
        %v1786 = vpop.f32.mrf.mxu0
        %1787 = vmatprep.mubr.f32.mxu0 0.0
        %v1788 = vand.u32 %v339, 4294901760
        %1789 = vmatmul.mubr.f32.gmra.mxu0 %v1788
        %v1790 = vpop.f32.mrf.mxu0
        %v1791 = vadd.f32 %v1590, %v1790
        %v1792 = vpop.f32.mrf.mxu0
        %1793 = vmatprep.mubr.f32.mxu0 0.0
        %v1794 = vand.u32 %v340, 4294901760
        %1795 = vmatmul.mubr.f32.gmra.mxu0 %v1794
        %v1796 = vpop.f32.mrf.mxu0
        %v1797 = vadd.f32 %v1596, %v1796
        %v1798 = vpop.f32.mrf.mxu0
        %1799 = vmatprep.mubr.f32.mxu0 0.0
        %v1800 = vand.u32 %v341, 4294901760
        %1801 = vmatmul.mubr.f32.gmra.mxu0 %v1800
        %v1802 = vpop.f32.mrf.mxu0
        %v1803 = vadd.f32 %v1602, %v1802
        %v1804 = vpop.f32.mrf.mxu0
        %1805 = vmatprep.mubr.f32.mxu0 0.0
        %v1806 = vand.u32 %v342, 4294901760
        %1807 = vmatmul.mubr.f32.gmra.mxu0 %v1806
        %v1808 = vpop.f32.mrf.mxu0
        %v1809 = vadd.f32 %v1608, %v1808
        %v1810 = vpop.f32.mrf.mxu0
        %1811 = vmatprep.mubr.f32.mxu0 0.0
        %v1812 = vand.u32 %v343, 4294901760
        %1813 = vmatmul.mubr.f32.gmra.mxu0 %v1812
        %v1814 = vpop.f32.mrf.mxu0
        %v1815 = vadd.f32 %v1614, %v1814
        %v1816 = vpop.f32.mrf.mxu0
        %1817 = vdwg.mxu0
        %v1818 = vld [vmem:[#allocation3] sm:$0xff]
        %v1819 = vld [vmem:[#allocation3 + $0x8] sm:$0xff]
        %v1820 = vlaneseq
        %v1821 = vshrl.u32 %v1820, 7
        %v1822 = vadd.s32 %v1821, 8
        %v1823 = vlaneseq
        %v1824 = vand.u32 %v1823, 127
        %vm1825 = vcmp.lt.s32.totalorder %v1821, 16
        %vm1826 = vcmp.lt.s32.totalorder %v1822, 16
        %vm1827 = vcmp.lt.s32.totalorder %v1824, 64
        %vm1828 = vmand %vm1825, %vm1827
        %vm1829 = vmand %vm1826, %vm1827
        %vm1830 = vcmp.ge.s32.totalorder %v1824, 16
        %v1831 = vsel %vm1830, 1, 0
        %vm1832 = vcmp.ge.s32.totalorder %v1824, 32
        %v1833 = vsel %vm1832, 1, 0
        %v1834 = vadd.s32 %v1831, %v1833
        %vm1835 = vcmp.ge.s32.totalorder %v1824, 48
        %v1836 = vsel %vm1835, 1, 0
        %v1837 = vadd.s32 %v1834, %v1836
        %vm1838 = vcmask 261120
        %v1840 = vsel %vm1838, %v1818, 0
        %v1843 = vsel %vm1838, %v1819, 0
        %1845 = vmatprep.subr.mxu0 0.0
        %1846 = vmatpush1.msra.mxu0 0.0
        %1847 = vmatprep.subr.mxu0 0.0
        %1848 = vmatpush1.msra.mxu0 0.0
        %1849 = vmatprep.subr.mxu0 0.0
        %1850 = vmatpush1.msra.mxu0 0.0
        %1851 = vmatprep.subr.mxu0 0.0
        %1852 = vmatpush1.msra.mxu0 0.0
        %1853 = vmatprep.subr.mxu0 0.0
        %1854 = vmatpush1.msra.mxu0 0.0
        %1855 = vmatprep.subr.mxu0 0.0
        %1856 = vmatpush1.msra.mxu0 0.0
        %1857 = vmatprep.subr.mxu0 0.0
        %1858 = vmatpush1.msra.mxu0 0.0
        %1859 = vmatprep.subr.mxu0 0.0
        %1860 = vmatpush1.msra.mxu0 0.0
        %1861 = vmatprep.subr.mxu0 0.0
        %1862 = vmatpush1.msra.mxu0 0.0
        %1863 = vmatprep.subr.mxu0 0.0
        %1864 = vmatpush1.msra.mxu0 0.0
        %1865 = vmatprep.subr.mxu0 0.0
        %1866 = vmatpush1.msra.mxu0 0.0
        %1867 = vmatprep.subr.mxu0 0.0
        %1868 = vmatpush1.msra.mxu0 0.0
        %1869 = vmatprep.subr.mxu0 0.0
        %v1870 = vand.u32 %v1719, 4294901760
        %1871 = vmatpush1.msra.mxu0 %v1870
        %1872 = vmatprep.subr.mxu0 0.0
        %v1873 = vand.u32 %v1713, 4294901760
        %1874 = vmatpush1.msra.mxu0 %v1873
        %1875 = vmatprep.subr.mxu0 0.0
        %v1876 = vand.u32 %v1707, 4294901760
        %1877 = vmatpush1.msra.mxu0 %v1876
        %1878 = vmatprep.subr.mxu0 0.0
        %v1879 = vand.u32 %v1701, 4294901760
        %1880 = vmatpush1.msra.mxu0 %v1879
        %1881 = vmatprep.subr.mxu0 0.0
        %1882 = vmatpush2.msra.mxu0 0.0
        %1883 = vmatprep.subr.mxu0 0.0
        %1884 = vmatpush2.msra.mxu0 0.0
        %1885 = vmatprep.subr.mxu0 0.0
        %1886 = vmatpush2.msra.mxu0 0.0
        %1887 = vmatprep.subr.mxu0 0.0
        %1888 = vmatpush2.msra.mxu0 0.0
        %1889 = vmatprep.subr.mxu0 0.0
        %1890 = vmatpush2.msra.mxu0 0.0
        %1891 = vmatprep.subr.mxu0 0.0
        %1892 = vmatpush2.msra.mxu0 0.0
        %1893 = vmatprep.subr.mxu0 0.0
        %1894 = vmatpush2.msra.mxu0 0.0
        %1895 = vmatprep.subr.mxu0 0.0
        %1896 = vmatpush2.msra.mxu0 0.0
        %1897 = vmatprep.subr.mxu0 0.0
        %1898 = vmatpush2.msra.mxu0 0.0
        %1899 = vmatprep.subr.mxu0 0.0
        %1900 = vmatpush2.msra.mxu0 0.0
        %1901 = vmatprep.subr.mxu0 0.0
        %1902 = vmatpush2.msra.mxu0 0.0
        %1903 = vmatprep.subr.mxu0 0.0
        %1904 = vmatpush2.msra.mxu0 0.0
        %1905 = vmatprep.subr.mxu0 0.0
        %1906 = vmatpush2.msra.mxu0 0.0
        %1907 = vmatprep.subr.mxu0 0.0
        %1908 = vmatpush2.msra.mxu0 0.0
        %1909 = vmatprep.subr.mxu0 0.0
        %1910 = vmatpush2.msra.mxu0 0.0
        %1911 = vmatprep.subr.mxu0 0.0
        %1912 = vmatpush2.msra.mxu0 0.0
        %1913 = vmatprep.mubr.f32.mxu0 0.0
        %v1914 = vand.u32 %v1840, 4294901760
        %v1915 = vsub.f32 %v1840, %v1914
        %v1916 = vand.u32 %v1915, 4294901760
        %v1917 = vsub.f32 %v1915, %v1916
        %v1918 = vand.u32 %v1917, 4294901760
        %1919 = vmatmul.mubr.f32.gmra.mxu0 %v1918
        %v1920 = vpop.f32.mrf.mxu0
        %v1921 = vadd.f32 0.0, %v1920
        %v1922 = vpop.f32.mrf.mxu0
        %1923 = vmatprep.mubr.f32.mxu0 0.0
        %v1924 = vand.u32 %v1843, 4294901760
        %v1925 = vsub.f32 %v1843, %v1924
        %v1926 = vand.u32 %v1925, 4294901760
        %v1927 = vsub.f32 %v1925, %v1926
        %v1928 = vand.u32 %v1927, 4294901760
        %1929 = vmatmul.mubr.f32.gmra.mxu0 %v1928
        %v1930 = vpop.f32.mrf.mxu0
        %v1931 = vadd.f32 0.0, %v1930
        %v1932 = vpop.f32.mrf.mxu0
        %1933 = vdwg.mxu0
        %1934 = vmatprep.subr.mxu0 0.0
        %1935 = vmatpush1.msra.mxu0 0.0
        %1936 = vmatprep.subr.mxu0 0.0
        %1937 = vmatpush1.msra.mxu0 0.0
        %1938 = vmatprep.subr.mxu0 0.0
        %1939 = vmatpush1.msra.mxu0 0.0
        %1940 = vmatprep.subr.mxu0 0.0
        %1941 = vmatpush1.msra.mxu0 0.0
        %1942 = vmatprep.subr.mxu0 0.0
        %1943 = vmatpush1.msra.mxu0 0.0
        %1944 = vmatprep.subr.mxu0 0.0
        %1945 = vmatpush1.msra.mxu0 0.0
        %1946 = vmatprep.subr.mxu0 0.0
        %1947 = vmatpush1.msra.mxu0 0.0
        %1948 = vmatprep.subr.mxu0 0.0
        %1949 = vmatpush1.msra.mxu0 0.0
        %1950 = vmatprep.subr.mxu0 0.0
        %1951 = vmatpush1.msra.mxu0 0.0
        %1952 = vmatprep.subr.mxu0 0.0
        %1953 = vmatpush1.msra.mxu0 0.0
        %1954 = vmatprep.subr.mxu0 0.0
        %1955 = vmatpush1.msra.mxu0 0.0
        %1956 = vmatprep.subr.mxu0 0.0
        %1957 = vmatpush1.msra.mxu0 0.0
        %1958 = vmatprep.subr.mxu0 0.0
        %v1959 = vand.u32 %v1719, 4294901760
        %v1960 = vsub.f32 %v1719, %v1959
        %v1961 = vand.u32 %v1960, 4294901760
        %v1962 = vsub.f32 %v1960, %v1961
        %v1963 = vand.u32 %v1962, 4294901760
        %1964 = vmatpush1.msra.mxu0 %v1963
        %1965 = vmatprep.subr.mxu0 0.0
        %v1966 = vand.u32 %v1713, 4294901760
        %v1967 = vsub.f32 %v1713, %v1966
        %v1968 = vand.u32 %v1967, 4294901760
        %v1969 = vsub.f32 %v1967, %v1968
        %v1970 = vand.u32 %v1969, 4294901760
        %1971 = vmatpush1.msra.mxu0 %v1970
        %1972 = vmatprep.subr.mxu0 0.0
        %v1973 = vand.u32 %v1707, 4294901760
        %v1974 = vsub.f32 %v1707, %v1973
        %v1975 = vand.u32 %v1974, 4294901760
        %v1976 = vsub.f32 %v1974, %v1975
        %v1977 = vand.u32 %v1976, 4294901760
        %1978 = vmatpush1.msra.mxu0 %v1977
        %1979 = vmatprep.subr.mxu0 0.0
        %v1980 = vand.u32 %v1701, 4294901760
        %v1981 = vsub.f32 %v1701, %v1980
        %v1982 = vand.u32 %v1981, 4294901760
        %v1983 = vsub.f32 %v1981, %v1982
        %v1984 = vand.u32 %v1983, 4294901760
        %1985 = vmatpush1.msra.mxu0 %v1984
        %1986 = vmatprep.subr.mxu0 0.0
        %1987 = vmatpush2.msra.mxu0 0.0
        %1988 = vmatprep.subr.mxu0 0.0
        %1989 = vmatpush2.msra.mxu0 0.0
        %1990 = vmatprep.subr.mxu0 0.0
        %1991 = vmatpush2.msra.mxu0 0.0
        %1992 = vmatprep.subr.mxu0 0.0
        %1993 = vmatpush2.msra.mxu0 0.0
        %1994 = vmatprep.subr.mxu0 0.0
        %1995 = vmatpush2.msra.mxu0 0.0
        %1996 = vmatprep.subr.mxu0 0.0
        %1997 = vmatpush2.msra.mxu0 0.0
        %1998 = vmatprep.subr.mxu0 0.0
        %1999 = vmatpush2.msra.mxu0 0.0
        %2000 = vmatprep.subr.mxu0 0.0
        %2001 = vmatpush2.msra.mxu0 0.0
        %2002 = vmatprep.subr.mxu0 0.0
        %2003 = vmatpush2.msra.mxu0 0.0
        %2004 = vmatprep.subr.mxu0 0.0
        %2005 = vmatpush2.msra.mxu0 0.0
        %2006 = vmatprep.subr.mxu0 0.0
        %2007 = vmatpush2.msra.mxu0 0.0
        %2008 = vmatprep.subr.mxu0 0.0
        %2009 = vmatpush2.msra.mxu0 0.0
        %2010 = vmatprep.subr.mxu0 0.0
        %2011 = vmatpush2.msra.mxu0 0.0
        %2012 = vmatprep.subr.mxu0 0.0
        %2013 = vmatpush2.msra.mxu0 0.0
        %2014 = vmatprep.subr.mxu0 0.0
        %2015 = vmatpush2.msra.mxu0 0.0
        %2016 = vmatprep.subr.mxu0 0.0
        %2017 = vmatpush2.msra.mxu0 0.0
        %2018 = vmatprep.mubr.f32.mxu0 0.0
        %v2019 = vand.u32 %v1840, 4294901760
        %2020 = vmatmul.mubr.f32.gmra.mxu0 %v2019
        %v2021 = vpop.f32.mrf.mxu0
        %v2022 = vadd.f32 %v1921, %v2021
        %v2023 = vpop.f32.mrf.mxu0
        %2024 = vmatprep.mubr.f32.mxu0 0.0
        %v2025 = vand.u32 %v1843, 4294901760
        %2026 = vmatmul.mubr.f32.gmra.mxu0 %v2025
        %v2027 = vpop.f32.mrf.mxu0
        %v2028 = vadd.f32 %v1931, %v2027
        %v2029 = vpop.f32.mrf.mxu0
        %2030 = vdwg.mxu0
        %2031 = vmatprep.subr.mxu0 0.0
        %2032 = vmatpush1.msra.mxu0 0.0
        %2033 = vmatprep.subr.mxu0 0.0
        %2034 = vmatpush1.msra.mxu0 0.0
        %2035 = vmatprep.subr.mxu0 0.0
        %2036 = vmatpush1.msra.mxu0 0.0
        %2037 = vmatprep.subr.mxu0 0.0
        %2038 = vmatpush1.msra.mxu0 0.0
        %2039 = vmatprep.subr.mxu0 0.0
        %2040 = vmatpush1.msra.mxu0 0.0
        %2041 = vmatprep.subr.mxu0 0.0
        %2042 = vmatpush1.msra.mxu0 0.0
        %2043 = vmatprep.subr.mxu0 0.0
        %2044 = vmatpush1.msra.mxu0 0.0
        %2045 = vmatprep.subr.mxu0 0.0
        %2046 = vmatpush1.msra.mxu0 0.0
        %2047 = vmatprep.subr.mxu0 0.0
        %2048 = vmatpush1.msra.mxu0 0.0
        %2049 = vmatprep.subr.mxu0 0.0
        %2050 = vmatpush1.msra.mxu0 0.0
        %2051 = vmatprep.subr.mxu0 0.0
        %2052 = vmatpush1.msra.mxu0 0.0
        %2053 = vmatprep.subr.mxu0 0.0
        %2054 = vmatpush1.msra.mxu0 0.0
        %2055 = vmatprep.subr.mxu0 0.0
        %v2056 = vand.u32 %v1719, 4294901760
        %v2057 = vsub.f32 %v1719, %v2056
        %2058 = vmatpush1.msra.mxu0 %v2057
        %2059 = vmatprep.subr.mxu0 0.0
        %v2060 = vand.u32 %v1713, 4294901760
        %v2061 = vsub.f32 %v1713, %v2060
        %2062 = vmatpush1.msra.mxu0 %v2061
        %2063 = vmatprep.subr.mxu0 0.0
        %v2064 = vand.u32 %v1707, 4294901760
        %v2065 = vsub.f32 %v1707, %v2064
        %2066 = vmatpush1.msra.mxu0 %v2065
        %2067 = vmatprep.subr.mxu0 0.0
        %v2068 = vand.u32 %v1701, 4294901760
        %v2069 = vsub.f32 %v1701, %v2068
        %2070 = vmatpush1.msra.mxu0 %v2069
        %2071 = vmatprep.subr.mxu0 0.0
        %2072 = vmatpush2.msra.mxu0 0.0
        %2073 = vmatprep.subr.mxu0 0.0
        %2074 = vmatpush2.msra.mxu0 0.0
        %2075 = vmatprep.subr.mxu0 0.0
        %2076 = vmatpush2.msra.mxu0 0.0
        %2077 = vmatprep.subr.mxu0 0.0
        %2078 = vmatpush2.msra.mxu0 0.0
        %2079 = vmatprep.subr.mxu0 0.0
        %2080 = vmatpush2.msra.mxu0 0.0
        %2081 = vmatprep.subr.mxu0 0.0
        %2082 = vmatpush2.msra.mxu0 0.0
        %2083 = vmatprep.subr.mxu0 0.0
        %2084 = vmatpush2.msra.mxu0 0.0
        %2085 = vmatprep.subr.mxu0 0.0
        %2086 = vmatpush2.msra.mxu0 0.0
        %2087 = vmatprep.subr.mxu0 0.0
        %2088 = vmatpush2.msra.mxu0 0.0
        %2089 = vmatprep.subr.mxu0 0.0
        %2090 = vmatpush2.msra.mxu0 0.0
        %2091 = vmatprep.subr.mxu0 0.0
        %2092 = vmatpush2.msra.mxu0 0.0
        %2093 = vmatprep.subr.mxu0 0.0
        %2094 = vmatpush2.msra.mxu0 0.0
        %2095 = vmatprep.subr.mxu0 0.0
        %2096 = vmatpush2.msra.mxu0 0.0
        %2097 = vmatprep.subr.mxu0 0.0
        %2098 = vmatpush2.msra.mxu0 0.0
        %2099 = vmatprep.subr.mxu0 0.0
        %2100 = vmatpush2.msra.mxu0 0.0
        %2101 = vmatprep.subr.mxu0 0.0
        %2102 = vmatpush2.msra.mxu0 0.0
        %2103 = vmatprep.mubr.f32.mxu0 0.0
        %v2104 = vand.u32 %v1840, 4294901760
        %v2105 = vsub.f32 %v1840, %v2104
        %2106 = vmatmul.mubr.f32.gmra.mxu0 %v2105
        %v2107 = vpop.f32.mrf.mxu0
        %v2108 = vadd.f32 %v2022, %v2107
        %v2109 = vpop.f32.mrf.mxu0
        %2110 = vmatprep.mubr.f32.mxu0 0.0
        %v2111 = vand.u32 %v1843, 4294901760
        %v2112 = vsub.f32 %v1843, %v2111
        %2113 = vmatmul.mubr.f32.gmra.mxu0 %v2112
        %v2114 = vpop.f32.mrf.mxu0
        %v2115 = vadd.f32 %v2028, %v2114
        %v2116 = vpop.f32.mrf.mxu0
        %2117 = vdwg.mxu0
        %2118 = vmatprep.subr.mxu0 0.0
        %2119 = vmatpush1.msra.mxu0 0.0
        %2120 = vmatprep.subr.mxu0 0.0
        %2121 = vmatpush1.msra.mxu0 0.0
        %2122 = vmatprep.subr.mxu0 0.0
        %2123 = vmatpush1.msra.mxu0 0.0
        %2124 = vmatprep.subr.mxu0 0.0
        %2125 = vmatpush1.msra.mxu0 0.0
        %2126 = vmatprep.subr.mxu0 0.0
        %2127 = vmatpush1.msra.mxu0 0.0
        %2128 = vmatprep.subr.mxu0 0.0
        %2129 = vmatpush1.msra.mxu0 0.0
        %2130 = vmatprep.subr.mxu0 0.0
        %2131 = vmatpush1.msra.mxu0 0.0
        %2132 = vmatprep.subr.mxu0 0.0
        %2133 = vmatpush1.msra.mxu0 0.0
        %2134 = vmatprep.subr.mxu0 0.0
        %2135 = vmatpush1.msra.mxu0 0.0
        %2136 = vmatprep.subr.mxu0 0.0
        %2137 = vmatpush1.msra.mxu0 0.0
        %2138 = vmatprep.subr.mxu0 0.0
        %2139 = vmatpush1.msra.mxu0 0.0
        %2140 = vmatprep.subr.mxu0 0.0
        %2141 = vmatpush1.msra.mxu0 0.0
        %2142 = vmatprep.subr.mxu0 0.0
        %v2143 = vand.u32 %v1719, 4294901760
        %2144 = vmatpush1.msra.mxu0 %v2143
        %2145 = vmatprep.subr.mxu0 0.0
        %v2146 = vand.u32 %v1713, 4294901760
        %2147 = vmatpush1.msra.mxu0 %v2146
        %2148 = vmatprep.subr.mxu0 0.0
        %v2149 = vand.u32 %v1707, 4294901760
        %2150 = vmatpush1.msra.mxu0 %v2149
        %2151 = vmatprep.subr.mxu0 0.0
        %v2152 = vand.u32 %v1701, 4294901760
        %2153 = vmatpush1.msra.mxu0 %v2152
        %2154 = vmatprep.subr.mxu0 0.0
        %2155 = vmatpush2.msra.mxu0 0.0
        %2156 = vmatprep.subr.mxu0 0.0
        %2157 = vmatpush2.msra.mxu0 0.0
        %2158 = vmatprep.subr.mxu0 0.0
        %2159 = vmatpush2.msra.mxu0 0.0
        %2160 = vmatprep.subr.mxu0 0.0
        %2161 = vmatpush2.msra.mxu0 0.0
        %2162 = vmatprep.subr.mxu0 0.0
        %2163 = vmatpush2.msra.mxu0 0.0
        %2164 = vmatprep.subr.mxu0 0.0
        %2165 = vmatpush2.msra.mxu0 0.0
        %2166 = vmatprep.subr.mxu0 0.0
        %2167 = vmatpush2.msra.mxu0 0.0
        %2168 = vmatprep.subr.mxu0 0.0
        %2169 = vmatpush2.msra.mxu0 0.0
        %2170 = vmatprep.subr.mxu0 0.0
        %2171 = vmatpush2.msra.mxu0 0.0
        %2172 = vmatprep.subr.mxu0 0.0
        %2173 = vmatpush2.msra.mxu0 0.0
        %2174 = vmatprep.subr.mxu0 0.0
        %2175 = vmatpush2.msra.mxu0 0.0
        %2176 = vmatprep.subr.mxu0 0.0
        %2177 = vmatpush2.msra.mxu0 0.0
        %2178 = vmatprep.subr.mxu0 0.0
        %2179 = vmatpush2.msra.mxu0 0.0
        %2180 = vmatprep.subr.mxu0 0.0
        %2181 = vmatpush2.msra.mxu0 0.0
        %2182 = vmatprep.subr.mxu0 0.0
        %2183 = vmatpush2.msra.mxu0 0.0
        %2184 = vmatprep.subr.mxu0 0.0
        %2185 = vmatpush2.msra.mxu0 0.0
        %2186 = vmatprep.mubr.f32.mxu0 0.0
        %v2187 = vand.u32 %v1840, 4294901760
        %v2188 = vsub.f32 %v1840, %v2187
        %v2189 = vand.u32 %v2188, 4294901760
        %2190 = vmatmul.mubr.f32.gmra.mxu0 %v2189
        %v2191 = vpop.f32.mrf.mxu0
        %v2192 = vadd.f32 %v2108, %v2191
        %v2193 = vpop.f32.mrf.mxu0
        %2194 = vmatprep.mubr.f32.mxu0 0.0
        %v2195 = vand.u32 %v1843, 4294901760
        %v2196 = vsub.f32 %v1843, %v2195
        %v2197 = vand.u32 %v2196, 4294901760
        %2198 = vmatmul.mubr.f32.gmra.mxu0 %v2197
        %v2199 = vpop.f32.mrf.mxu0
        %v2200 = vadd.f32 %v2115, %v2199
        %v2201 = vpop.f32.mrf.mxu0
        %2202 = vdwg.mxu0
        %2203 = vmatprep.subr.mxu0 0.0
        %2204 = vmatpush1.msra.mxu0 0.0
        %2205 = vmatprep.subr.mxu0 0.0
        %2206 = vmatpush1.msra.mxu0 0.0
        %2207 = vmatprep.subr.mxu0 0.0
        %2208 = vmatpush1.msra.mxu0 0.0
        %2209 = vmatprep.subr.mxu0 0.0
        %2210 = vmatpush1.msra.mxu0 0.0
        %2211 = vmatprep.subr.mxu0 0.0
        %2212 = vmatpush1.msra.mxu0 0.0
        %2213 = vmatprep.subr.mxu0 0.0
        %2214 = vmatpush1.msra.mxu0 0.0
        %2215 = vmatprep.subr.mxu0 0.0
        %2216 = vmatpush1.msra.mxu0 0.0
        %2217 = vmatprep.subr.mxu0 0.0
        %2218 = vmatpush1.msra.mxu0 0.0
        %2219 = vmatprep.subr.mxu0 0.0
        %2220 = vmatpush1.msra.mxu0 0.0
        %2221 = vmatprep.subr.mxu0 0.0
        %2222 = vmatpush1.msra.mxu0 0.0
        %2223 = vmatprep.subr.mxu0 0.0
        %2224 = vmatpush1.msra.mxu0 0.0
        %2225 = vmatprep.subr.mxu0 0.0
        %2226 = vmatpush1.msra.mxu0 0.0
        %2227 = vmatprep.subr.mxu0 0.0
        %v2228 = vand.u32 %v1719, 4294901760
        %v2229 = vsub.f32 %v1719, %v2228
        %v2230 = vand.u32 %v2229, 4294901760
        %2231 = vmatpush1.msra.mxu0 %v2230
        %2232 = vmatprep.subr.mxu0 0.0
        %v2233 = vand.u32 %v1713, 4294901760
        %v2234 = vsub.f32 %v1713, %v2233
        %v2235 = vand.u32 %v2234, 4294901760
        %2236 = vmatpush1.msra.mxu0 %v2235
        %2237 = vmatprep.subr.mxu0 0.0
        %v2238 = vand.u32 %v1707, 4294901760
        %v2239 = vsub.f32 %v1707, %v2238
        %v2240 = vand.u32 %v2239, 4294901760
        %2241 = vmatpush1.msra.mxu0 %v2240
        %2242 = vmatprep.subr.mxu0 0.0
        %v2243 = vand.u32 %v1701, 4294901760
        %v2244 = vsub.f32 %v1701, %v2243
        %v2245 = vand.u32 %v2244, 4294901760
        %2246 = vmatpush1.msra.mxu0 %v2245
        %2247 = vmatprep.subr.mxu0 0.0
        %2248 = vmatpush2.msra.mxu0 0.0
        %2249 = vmatprep.subr.mxu0 0.0
        %2250 = vmatpush2.msra.mxu0 0.0
        %2251 = vmatprep.subr.mxu0 0.0
        %2252 = vmatpush2.msra.mxu0 0.0
        %2253 = vmatprep.subr.mxu0 0.0
        %2254 = vmatpush2.msra.mxu0 0.0
        %2255 = vmatprep.subr.mxu0 0.0
        %2256 = vmatpush2.msra.mxu0 0.0
        %2257 = vmatprep.subr.mxu0 0.0
        %2258 = vmatpush2.msra.mxu0 0.0
        %2259 = vmatprep.subr.mxu0 0.0
        %2260 = vmatpush2.msra.mxu0 0.0
        %2261 = vmatprep.subr.mxu0 0.0
        %2262 = vmatpush2.msra.mxu0 0.0
        %2263 = vmatprep.subr.mxu0 0.0
        %2264 = vmatpush2.msra.mxu0 0.0
        %2265 = vmatprep.subr.mxu0 0.0
        %2266 = vmatpush2.msra.mxu0 0.0
        %2267 = vmatprep.subr.mxu0 0.0
        %2268 = vmatpush2.msra.mxu0 0.0
        %2269 = vmatprep.subr.mxu0 0.0
        %2270 = vmatpush2.msra.mxu0 0.0
        %2271 = vmatprep.subr.mxu0 0.0
        %2272 = vmatpush2.msra.mxu0 0.0
        %2273 = vmatprep.subr.mxu0 0.0
        %2274 = vmatpush2.msra.mxu0 0.0
        %2275 = vmatprep.subr.mxu0 0.0
        %2276 = vmatpush2.msra.mxu0 0.0
        %2277 = vmatprep.subr.mxu0 0.0
        %2278 = vmatpush2.msra.mxu0 0.0
        %2279 = vmatprep.mubr.f32.mxu0 0.0
        %v2280 = vand.u32 %v1840, 4294901760
        %2281 = vmatmul.mubr.f32.gmra.mxu0 %v2280
        %v2282 = vpop.f32.mrf.mxu0
        %v2283 = vadd.f32 %v2192, %v2282
        %v2284 = vpop.f32.mrf.mxu0
        %2285 = vmatprep.mubr.f32.mxu0 0.0
        %v2286 = vand.u32 %v1843, 4294901760
        %2287 = vmatmul.mubr.f32.gmra.mxu0 %v2286
        %v2288 = vpop.f32.mrf.mxu0
        %v2289 = vadd.f32 %v2200, %v2288
        %v2290 = vpop.f32.mrf.mxu0
        %2291 = vdwg.mxu0
        %2292 = vmatprep.subr.mxu0 0.0
        %2293 = vmatpush1.msra.mxu0 0.0
        %2294 = vmatprep.subr.mxu0 0.0
        %2295 = vmatpush1.msra.mxu0 0.0
        %2296 = vmatprep.subr.mxu0 0.0
        %2297 = vmatpush1.msra.mxu0 0.0
        %2298 = vmatprep.subr.mxu0 0.0
        %2299 = vmatpush1.msra.mxu0 0.0
        %2300 = vmatprep.subr.mxu0 0.0
        %2301 = vmatpush1.msra.mxu0 0.0
        %2302 = vmatprep.subr.mxu0 0.0
        %2303 = vmatpush1.msra.mxu0 0.0
        %2304 = vmatprep.subr.mxu0 0.0
        %2305 = vmatpush1.msra.mxu0 0.0
        %2306 = vmatprep.subr.mxu0 0.0
        %2307 = vmatpush1.msra.mxu0 0.0
        %2308 = vmatprep.subr.mxu0 0.0
        %2309 = vmatpush1.msra.mxu0 0.0
        %2310 = vmatprep.subr.mxu0 0.0
        %2311 = vmatpush1.msra.mxu0 0.0
        %2312 = vmatprep.subr.mxu0 0.0
        %2313 = vmatpush1.msra.mxu0 0.0
        %2314 = vmatprep.subr.mxu0 0.0
        %2315 = vmatpush1.msra.mxu0 0.0
        %2316 = vmatprep.subr.mxu0 0.0
        %v2317 = vand.u32 %v1719, 4294901760
        %2318 = vmatpush1.msra.mxu0 %v2317
        %2319 = vmatprep.subr.mxu0 0.0
        %v2320 = vand.u32 %v1713, 4294901760
        %2321 = vmatpush1.msra.mxu0 %v2320
        %2322 = vmatprep.subr.mxu0 0.0
        %v2323 = vand.u32 %v1707, 4294901760
        %2324 = vmatpush1.msra.mxu0 %v2323
        %2325 = vmatprep.subr.mxu0 0.0
        %v2326 = vand.u32 %v1701, 4294901760
        %2327 = vmatpush1.msra.mxu0 %v2326
        %2328 = vmatprep.subr.mxu0 0.0
        %2329 = vmatpush2.msra.mxu0 0.0
        %2330 = vmatprep.subr.mxu0 0.0
        %2331 = vmatpush2.msra.mxu0 0.0
        %2332 = vmatprep.subr.mxu0 0.0
        %2333 = vmatpush2.msra.mxu0 0.0
        %2334 = vmatprep.subr.mxu0 0.0
        %2335 = vmatpush2.msra.mxu0 0.0
        %2336 = vmatprep.subr.mxu0 0.0
        %2337 = vmatpush2.msra.mxu0 0.0
        %2338 = vmatprep.subr.mxu0 0.0
        %2339 = vmatpush2.msra.mxu0 0.0
        %2340 = vmatprep.subr.mxu0 0.0
        %2341 = vmatpush2.msra.mxu0 0.0
        %2342 = vmatprep.subr.mxu0 0.0
        %2343 = vmatpush2.msra.mxu0 0.0
        %2344 = vmatprep.subr.mxu0 0.0
        %2345 = vmatpush2.msra.mxu0 0.0
        %2346 = vmatprep.subr.mxu0 0.0
        %2347 = vmatpush2.msra.mxu0 0.0
        %2348 = vmatprep.subr.mxu0 0.0
        %2349 = vmatpush2.msra.mxu0 0.0
        %2350 = vmatprep.subr.mxu0 0.0
        %2351 = vmatpush2.msra.mxu0 0.0
        %2352 = vmatprep.subr.mxu0 0.0
        %2353 = vmatpush2.msra.mxu0 0.0
        %2354 = vmatprep.subr.mxu0 0.0
        %2355 = vmatpush2.msra.mxu0 0.0
        %2356 = vmatprep.subr.mxu0 0.0
        %2357 = vmatpush2.msra.mxu0 0.0
        %2358 = vmatprep.subr.mxu0 0.0
        %2359 = vmatpush2.msra.mxu0 0.0
        %2360 = vmatprep.mubr.f32.mxu0 0.0
        %v2361 = vand.u32 %v1840, 4294901760
        %2362 = vmatmul.mubr.f32.gmra.mxu0 %v2361
        %v2363 = vpop.f32.mrf.mxu0
        %v2364 = vadd.f32 %v2283, %v2363
        %v2365 = vpop.f32.mrf.mxu0
        %2366 = vmatprep.mubr.f32.mxu0 0.0
        %v2367 = vand.u32 %v1843, 4294901760
        %2368 = vmatmul.mubr.f32.gmra.mxu0 %v2367
        %v2369 = vpop.f32.mrf.mxu0
        %v2370 = vadd.f32 %v2289, %v2369
        %v2371 = vpop.f32.mrf.mxu0
        %2372 = vdwg.mxu0
        %2373 = vmatprep.subr.mxu0 0.0
        %2374 = vmatpush1.msra.mxu0 0.0
        %2375 = vmatprep.subr.mxu0 0.0
        %2376 = vmatpush1.msra.mxu0 0.0
        %2377 = vmatprep.subr.mxu0 0.0
        %2378 = vmatpush1.msra.mxu0 0.0
        %2379 = vmatprep.subr.mxu0 0.0
        %2380 = vmatpush1.msra.mxu0 0.0
        %2381 = vmatprep.subr.mxu0 0.0
        %2382 = vmatpush1.msra.mxu0 0.0
        %2383 = vmatprep.subr.mxu0 0.0
        %2384 = vmatpush1.msra.mxu0 0.0
        %2385 = vmatprep.subr.mxu0 0.0
        %2386 = vmatpush1.msra.mxu0 0.0
        %2387 = vmatprep.subr.mxu0 0.0
        %2388 = vmatpush1.msra.mxu0 0.0
        %2389 = vmatprep.subr.mxu0 0.0
        %2390 = vmatpush1.msra.mxu0 0.0
        %2391 = vmatprep.subr.mxu0 0.0
        %2392 = vmatpush1.msra.mxu0 0.0
        %2393 = vmatprep.subr.mxu0 0.0
        %2394 = vmatpush1.msra.mxu0 0.0
        %2395 = vmatprep.subr.mxu0 0.0
        %2396 = vmatpush1.msra.mxu0 0.0
        %2397 = vmatprep.subr.mxu0 0.0
        %v2398 = vand.u32 %v1743, 4294901760
        %2399 = vmatpush1.msra.mxu0 %v2398
        %2400 = vmatprep.subr.mxu0 0.0
        %v2401 = vand.u32 %v1737, 4294901760
        %2402 = vmatpush1.msra.mxu0 %v2401
        %2403 = vmatprep.subr.mxu0 0.0
        %v2404 = vand.u32 %v1731, 4294901760
        %2405 = vmatpush1.msra.mxu0 %v2404
        %2406 = vmatprep.subr.mxu0 0.0
        %v2407 = vand.u32 %v1725, 4294901760
        %2408 = vmatpush1.msra.mxu0 %v2407
        %2409 = vmatprep.subr.mxu0 0.0
        %2410 = vmatpush2.msra.mxu0 0.0
        %2411 = vmatprep.subr.mxu0 0.0
        %2412 = vmatpush2.msra.mxu0 0.0
        %2413 = vmatprep.subr.mxu0 0.0
        %2414 = vmatpush2.msra.mxu0 0.0
        %2415 = vmatprep.subr.mxu0 0.0
        %2416 = vmatpush2.msra.mxu0 0.0
        %2417 = vmatprep.subr.mxu0 0.0
        %2418 = vmatpush2.msra.mxu0 0.0
        %2419 = vmatprep.subr.mxu0 0.0
        %2420 = vmatpush2.msra.mxu0 0.0
        %2421 = vmatprep.subr.mxu0 0.0
        %2422 = vmatpush2.msra.mxu0 0.0
        %2423 = vmatprep.subr.mxu0 0.0
        %2424 = vmatpush2.msra.mxu0 0.0
        %2425 = vmatprep.subr.mxu0 0.0
        %2426 = vmatpush2.msra.mxu0 0.0
        %2427 = vmatprep.subr.mxu0 0.0
        %2428 = vmatpush2.msra.mxu0 0.0
        %2429 = vmatprep.subr.mxu0 0.0
        %2430 = vmatpush2.msra.mxu0 0.0
        %2431 = vmatprep.subr.mxu0 0.0
        %2432 = vmatpush2.msra.mxu0 0.0
        %2433 = vmatprep.subr.mxu0 0.0
        %2434 = vmatpush2.msra.mxu0 0.0
        %2435 = vmatprep.subr.mxu0 0.0
        %2436 = vmatpush2.msra.mxu0 0.0
        %2437 = vmatprep.subr.mxu0 0.0
        %2438 = vmatpush2.msra.mxu0 0.0
        %2439 = vmatprep.subr.mxu0 0.0
        %2440 = vmatpush2.msra.mxu0 0.0
        %2441 = vmatprep.mubr.f32.mxu0 0.0
        %v2442 = vand.u32 %v1840, 4294901760
        %v2443 = vsub.f32 %v1840, %v2442
        %v2444 = vand.u32 %v2443, 4294901760
        %v2445 = vsub.f32 %v2443, %v2444
        %v2446 = vand.u32 %v2445, 4294901760
        %2447 = vmatmul.mubr.f32.gmra.mxu0 %v2446
        %v2448 = vpop.f32.mrf.mxu0
        %v2449 = vadd.f32 0.0, %v2448
        %v2450 = vpop.f32.mrf.mxu0
        %2451 = vmatprep.mubr.f32.mxu0 0.0
        %v2452 = vand.u32 %v1843, 4294901760
        %v2453 = vsub.f32 %v1843, %v2452
        %v2454 = vand.u32 %v2453, 4294901760
        %v2455 = vsub.f32 %v2453, %v2454
        %v2456 = vand.u32 %v2455, 4294901760
        %2457 = vmatmul.mubr.f32.gmra.mxu0 %v2456
        %v2458 = vpop.f32.mrf.mxu0
        %v2459 = vadd.f32 0.0, %v2458
        %v2460 = vpop.f32.mrf.mxu0
        %2461 = vdwg.mxu0
        %2462 = vmatprep.subr.mxu0 0.0
        %2463 = vmatpush1.msra.mxu0 0.0
        %2464 = vmatprep.subr.mxu0 0.0
        %2465 = vmatpush1.msra.mxu0 0.0
        %2466 = vmatprep.subr.mxu0 0.0
        %2467 = vmatpush1.msra.mxu0 0.0
        %2468 = vmatprep.subr.mxu0 0.0
        %2469 = vmatpush1.msra.mxu0 0.0
        %2470 = vmatprep.subr.mxu0 0.0
        %2471 = vmatpush1.msra.mxu0 0.0
        %2472 = vmatprep.subr.mxu0 0.0
        %2473 = vmatpush1.msra.mxu0 0.0
        %2474 = vmatprep.subr.mxu0 0.0
        %2475 = vmatpush1.msra.mxu0 0.0
        %2476 = vmatprep.subr.mxu0 0.0
        %2477 = vmatpush1.msra.mxu0 0.0
        %2478 = vmatprep.subr.mxu0 0.0
        %2479 = vmatpush1.msra.mxu0 0.0
        %2480 = vmatprep.subr.mxu0 0.0
        %2481 = vmatpush1.msra.mxu0 0.0
        %2482 = vmatprep.subr.mxu0 0.0
        %2483 = vmatpush1.msra.mxu0 0.0
        %2484 = vmatprep.subr.mxu0 0.0
        %2485 = vmatpush1.msra.mxu0 0.0
        %2486 = vmatprep.subr.mxu0 0.0
        %v2487 = vand.u32 %v1743, 4294901760
        %v2488 = vsub.f32 %v1743, %v2487
        %v2489 = vand.u32 %v2488, 4294901760
        %v2490 = vsub.f32 %v2488, %v2489
        %v2491 = vand.u32 %v2490, 4294901760
        %2492 = vmatpush1.msra.mxu0 %v2491
        %2493 = vmatprep.subr.mxu0 0.0
        %v2494 = vand.u32 %v1737, 4294901760
        %v2495 = vsub.f32 %v1737, %v2494
        %v2496 = vand.u32 %v2495, 4294901760
        %v2497 = vsub.f32 %v2495, %v2496
        %v2498 = vand.u32 %v2497, 4294901760
        %2499 = vmatpush1.msra.mxu0 %v2498
        %2500 = vmatprep.subr.mxu0 0.0
        %v2501 = vand.u32 %v1731, 4294901760
        %v2502 = vsub.f32 %v1731, %v2501
        %v2503 = vand.u32 %v2502, 4294901760
        %v2504 = vsub.f32 %v2502, %v2503
        %v2505 = vand.u32 %v2504, 4294901760
        %2506 = vmatpush1.msra.mxu0 %v2505
        %2507 = vmatprep.subr.mxu0 0.0
        %v2508 = vand.u32 %v1725, 4294901760
        %v2509 = vsub.f32 %v1725, %v2508
        %v2510 = vand.u32 %v2509, 4294901760
        %v2511 = vsub.f32 %v2509, %v2510
        %v2512 = vand.u32 %v2511, 4294901760
        %2513 = vmatpush1.msra.mxu0 %v2512
        %2514 = vmatprep.subr.mxu0 0.0
        %2515 = vmatpush2.msra.mxu0 0.0
        %2516 = vmatprep.subr.mxu0 0.0
        %2517 = vmatpush2.msra.mxu0 0.0
        %2518 = vmatprep.subr.mxu0 0.0
        %2519 = vmatpush2.msra.mxu0 0.0
        %2520 = vmatprep.subr.mxu0 0.0
        %2521 = vmatpush2.msra.mxu0 0.0
        %2522 = vmatprep.subr.mxu0 0.0
        %2523 = vmatpush2.msra.mxu0 0.0
        %2524 = vmatprep.subr.mxu0 0.0
        %2525 = vmatpush2.msra.mxu0 0.0
        %2526 = vmatprep.subr.mxu0 0.0
        %2527 = vmatpush2.msra.mxu0 0.0
        %2528 = vmatprep.subr.mxu0 0.0
        %2529 = vmatpush2.msra.mxu0 0.0
        %2530 = vmatprep.subr.mxu0 0.0
        %2531 = vmatpush2.msra.mxu0 0.0
        %2532 = vmatprep.subr.mxu0 0.0
        %2533 = vmatpush2.msra.mxu0 0.0
        %2534 = vmatprep.subr.mxu0 0.0
        %2535 = vmatpush2.msra.mxu0 0.0
        %2536 = vmatprep.subr.mxu0 0.0
        %2537 = vmatpush2.msra.mxu0 0.0
        %2538 = vmatprep.subr.mxu0 0.0
        %2539 = vmatpush2.msra.mxu0 0.0
        %2540 = vmatprep.subr.mxu0 0.0
        %2541 = vmatpush2.msra.mxu0 0.0
        %2542 = vmatprep.subr.mxu0 0.0
        %2543 = vmatpush2.msra.mxu0 0.0
        %2544 = vmatprep.subr.mxu0 0.0
        %2545 = vmatpush2.msra.mxu0 0.0
        %2546 = vmatprep.mubr.f32.mxu0 0.0
        %v2547 = vand.u32 %v1840, 4294901760
        %2548 = vmatmul.mubr.f32.gmra.mxu0 %v2547
        %v2549 = vpop.f32.mrf.mxu0
        %v2550 = vadd.f32 %v2449, %v2549
        %v2551 = vpop.f32.mrf.mxu0
        %2552 = vmatprep.mubr.f32.mxu0 0.0
        %v2553 = vand.u32 %v1843, 4294901760
        %2554 = vmatmul.mubr.f32.gmra.mxu0 %v2553
        %v2555 = vpop.f32.mrf.mxu0
        %v2556 = vadd.f32 %v2459, %v2555
        %v2557 = vpop.f32.mrf.mxu0
        %2558 = vdwg.mxu0
        %2559 = vmatprep.subr.mxu0 0.0
        %2560 = vmatpush1.msra.mxu0 0.0
        %2561 = vmatprep.subr.mxu0 0.0
        %2562 = vmatpush1.msra.mxu0 0.0
        %2563 = vmatprep.subr.mxu0 0.0
        %2564 = vmatpush1.msra.mxu0 0.0
        %2565 = vmatprep.subr.mxu0 0.0
        %2566 = vmatpush1.msra.mxu0 0.0
        %2567 = vmatprep.subr.mxu0 0.0
        %2568 = vmatpush1.msra.mxu0 0.0
        %2569 = vmatprep.subr.mxu0 0.0
        %2570 = vmatpush1.msra.mxu0 0.0
        %2571 = vmatprep.subr.mxu0 0.0
        %2572 = vmatpush1.msra.mxu0 0.0
        %2573 = vmatprep.subr.mxu0 0.0
        %2574 = vmatpush1.msra.mxu0 0.0
        %2575 = vmatprep.subr.mxu0 0.0
        %2576 = vmatpush1.msra.mxu0 0.0
        %2577 = vmatprep.subr.mxu0 0.0
        %2578 = vmatpush1.msra.mxu0 0.0
        %2579 = vmatprep.subr.mxu0 0.0
        %2580 = vmatpush1.msra.mxu0 0.0
        %2581 = vmatprep.subr.mxu0 0.0
        %2582 = vmatpush1.msra.mxu0 0.0
        %2583 = vmatprep.subr.mxu0 0.0
        %v2584 = vand.u32 %v1743, 4294901760
        %v2585 = vsub.f32 %v1743, %v2584
        %2586 = vmatpush1.msra.mxu0 %v2585
        %2587 = vmatprep.subr.mxu0 0.0
        %v2588 = vand.u32 %v1737, 4294901760
        %v2589 = vsub.f32 %v1737, %v2588
        %2590 = vmatpush1.msra.mxu0 %v2589
        %2591 = vmatprep.subr.mxu0 0.0
        %v2592 = vand.u32 %v1731, 4294901760
        %v2593 = vsub.f32 %v1731, %v2592
        %2594 = vmatpush1.msra.mxu0 %v2593
        %2595 = vmatprep.subr.mxu0 0.0
        %v2596 = vand.u32 %v1725, 4294901760
        %v2597 = vsub.f32 %v1725, %v2596
        %2598 = vmatpush1.msra.mxu0 %v2597
        %2599 = vmatprep.subr.mxu0 0.0
        %2600 = vmatpush2.msra.mxu0 0.0
        %2601 = vmatprep.subr.mxu0 0.0
        %2602 = vmatpush2.msra.mxu0 0.0
        %2603 = vmatprep.subr.mxu0 0.0
        %2604 = vmatpush2.msra.mxu0 0.0
        %2605 = vmatprep.subr.mxu0 0.0
        %2606 = vmatpush2.msra.mxu0 0.0
        %2607 = vmatprep.subr.mxu0 0.0
        %2608 = vmatpush2.msra.mxu0 0.0
        %2609 = vmatprep.subr.mxu0 0.0
        %2610 = vmatpush2.msra.mxu0 0.0
        %2611 = vmatprep.subr.mxu0 0.0
        %2612 = vmatpush2.msra.mxu0 0.0
        %2613 = vmatprep.subr.mxu0 0.0
        %2614 = vmatpush2.msra.mxu0 0.0
        %2615 = vmatprep.subr.mxu0 0.0
        %2616 = vmatpush2.msra.mxu0 0.0
        %2617 = vmatprep.subr.mxu0 0.0
        %2618 = vmatpush2.msra.mxu0 0.0
        %2619 = vmatprep.subr.mxu0 0.0
        %2620 = vmatpush2.msra.mxu0 0.0
        %2621 = vmatprep.subr.mxu0 0.0
        %2622 = vmatpush2.msra.mxu0 0.0
        %2623 = vmatprep.subr.mxu0 0.0
        %2624 = vmatpush2.msra.mxu0 0.0
        %2625 = vmatprep.subr.mxu0 0.0
        %2626 = vmatpush2.msra.mxu0 0.0
        %2627 = vmatprep.subr.mxu0 0.0
        %2628 = vmatpush2.msra.mxu0 0.0
        %2629 = vmatprep.subr.mxu0 0.0
        %2630 = vmatpush2.msra.mxu0 0.0
        %2631 = vmatprep.mubr.f32.mxu0 0.0
        %v2632 = vand.u32 %v1840, 4294901760
        %v2633 = vsub.f32 %v1840, %v2632
        %2634 = vmatmul.mubr.f32.gmra.mxu0 %v2633
        %v2635 = vpop.f32.mrf.mxu0
        %v2636 = vadd.f32 %v2550, %v2635
        %v2637 = vpop.f32.mrf.mxu0
        %2638 = vmatprep.mubr.f32.mxu0 0.0
        %v2639 = vand.u32 %v1843, 4294901760
        %v2640 = vsub.f32 %v1843, %v2639
        %2641 = vmatmul.mubr.f32.gmra.mxu0 %v2640
        %v2642 = vpop.f32.mrf.mxu0
        %v2643 = vadd.f32 %v2556, %v2642
        %v2644 = vpop.f32.mrf.mxu0
        %2645 = vdwg.mxu0
        %2646 = vmatprep.subr.mxu0 0.0
        %2647 = vmatpush1.msra.mxu0 0.0
        %2648 = vmatprep.subr.mxu0 0.0
        %2649 = vmatpush1.msra.mxu0 0.0
        %2650 = vmatprep.subr.mxu0 0.0
        %2651 = vmatpush1.msra.mxu0 0.0
        %2652 = vmatprep.subr.mxu0 0.0
        %2653 = vmatpush1.msra.mxu0 0.0
        %2654 = vmatprep.subr.mxu0 0.0
        %2655 = vmatpush1.msra.mxu0 0.0
        %2656 = vmatprep.subr.mxu0 0.0
        %2657 = vmatpush1.msra.mxu0 0.0
        %2658 = vmatprep.subr.mxu0 0.0
        %2659 = vmatpush1.msra.mxu0 0.0
        %2660 = vmatprep.subr.mxu0 0.0
        %2661 = vmatpush1.msra.mxu0 0.0
        %2662 = vmatprep.subr.mxu0 0.0
        %2663 = vmatpush1.msra.mxu0 0.0
        %2664 = vmatprep.subr.mxu0 0.0
        %2665 = vmatpush1.msra.mxu0 0.0
        %2666 = vmatprep.subr.mxu0 0.0
        %2667 = vmatpush1.msra.mxu0 0.0
        %2668 = vmatprep.subr.mxu0 0.0
        %2669 = vmatpush1.msra.mxu0 0.0
        %2670 = vmatprep.subr.mxu0 0.0
        %v2671 = vand.u32 %v1743, 4294901760
        %2672 = vmatpush1.msra.mxu0 %v2671
        %2673 = vmatprep.subr.mxu0 0.0
        %v2674 = vand.u32 %v1737, 4294901760
        %2675 = vmatpush1.msra.mxu0 %v2674
        %2676 = vmatprep.subr.mxu0 0.0
        %v2677 = vand.u32 %v1731, 4294901760
        %2678 = vmatpush1.msra.mxu0 %v2677
        %2679 = vmatprep.subr.mxu0 0.0
        %v2680 = vand.u32 %v1725, 4294901760
        %2681 = vmatpush1.msra.mxu0 %v2680
        %2682 = vmatprep.subr.mxu0 0.0
        %2683 = vmatpush2.msra.mxu0 0.0
        %2684 = vmatprep.subr.mxu0 0.0
        %2685 = vmatpush2.msra.mxu0 0.0
        %2686 = vmatprep.subr.mxu0 0.0
        %2687 = vmatpush2.msra.mxu0 0.0
        %2688 = vmatprep.subr.mxu0 0.0
        %2689 = vmatpush2.msra.mxu0 0.0
        %2690 = vmatprep.subr.mxu0 0.0
        %2691 = vmatpush2.msra.mxu0 0.0
        %2692 = vmatprep.subr.mxu0 0.0
        %2693 = vmatpush2.msra.mxu0 0.0
        %2694 = vmatprep.subr.mxu0 0.0
        %2695 = vmatpush2.msra.mxu0 0.0
        %2696 = vmatprep.subr.mxu0 0.0
        %2697 = vmatpush2.msra.mxu0 0.0
        %2698 = vmatprep.subr.mxu0 0.0
        %2699 = vmatpush2.msra.mxu0 0.0
        %2700 = vmatprep.subr.mxu0 0.0
        %2701 = vmatpush2.msra.mxu0 0.0
        %2702 = vmatprep.subr.mxu0 0.0
        %2703 = vmatpush2.msra.mxu0 0.0
        %2704 = vmatprep.subr.mxu0 0.0
        %2705 = vmatpush2.msra.mxu0 0.0
        %2706 = vmatprep.subr.mxu0 0.0
        %2707 = vmatpush2.msra.mxu0 0.0
        %2708 = vmatprep.subr.mxu0 0.0
        %2709 = vmatpush2.msra.mxu0 0.0
        %2710 = vmatprep.subr.mxu0 0.0
        %2711 = vmatpush2.msra.mxu0 0.0
        %2712 = vmatprep.subr.mxu0 0.0
        %2713 = vmatpush2.msra.mxu0 0.0
        %2714 = vmatprep.mubr.f32.mxu0 0.0
        %v2715 = vand.u32 %v1840, 4294901760
        %v2716 = vsub.f32 %v1840, %v2715
        %v2717 = vand.u32 %v2716, 4294901760
        %2718 = vmatmul.mubr.f32.gmra.mxu0 %v2717
        %v2719 = vpop.f32.mrf.mxu0
        %v2720 = vadd.f32 %v2636, %v2719
        %v2721 = vpop.f32.mrf.mxu0
        %2722 = vmatprep.mubr.f32.mxu0 0.0
        %v2723 = vand.u32 %v1843, 4294901760
        %v2724 = vsub.f32 %v1843, %v2723
        %v2725 = vand.u32 %v2724, 4294901760
        %2726 = vmatmul.mubr.f32.gmra.mxu0 %v2725
        %v2727 = vpop.f32.mrf.mxu0
        %v2728 = vadd.f32 %v2643, %v2727
        %v2729 = vpop.f32.mrf.mxu0
        %2730 = vdwg.mxu0
        %2731 = vmatprep.subr.mxu0 0.0
        %2732 = vmatpush1.msra.mxu0 0.0
        %2733 = vmatprep.subr.mxu0 0.0
        %2734 = vmatpush1.msra.mxu0 0.0
        %2735 = vmatprep.subr.mxu0 0.0
        %2736 = vmatpush1.msra.mxu0 0.0
        %2737 = vmatprep.subr.mxu0 0.0
        %2738 = vmatpush1.msra.mxu0 0.0
        %2739 = vmatprep.subr.mxu0 0.0
        %2740 = vmatpush1.msra.mxu0 0.0
        %2741 = vmatprep.subr.mxu0 0.0
        %2742 = vmatpush1.msra.mxu0 0.0
        %2743 = vmatprep.subr.mxu0 0.0
        %2744 = vmatpush1.msra.mxu0 0.0
        %2745 = vmatprep.subr.mxu0 0.0
        %2746 = vmatpush1.msra.mxu0 0.0
        %2747 = vmatprep.subr.mxu0 0.0
        %2748 = vmatpush1.msra.mxu0 0.0
        %2749 = vmatprep.subr.mxu0 0.0
        %2750 = vmatpush1.msra.mxu0 0.0
        %2751 = vmatprep.subr.mxu0 0.0
        %2752 = vmatpush1.msra.mxu0 0.0
        %2753 = vmatprep.subr.mxu0 0.0
        %2754 = vmatpush1.msra.mxu0 0.0
        %2755 = vmatprep.subr.mxu0 0.0
        %v2756 = vand.u32 %v1743, 4294901760
        %v2757 = vsub.f32 %v1743, %v2756
        %v2758 = vand.u32 %v2757, 4294901760
        %2759 = vmatpush1.msra.mxu0 %v2758
        %2760 = vmatprep.subr.mxu0 0.0
        %v2761 = vand.u32 %v1737, 4294901760
        %v2762 = vsub.f32 %v1737, %v2761
        %v2763 = vand.u32 %v2762, 4294901760
        %2764 = vmatpush1.msra.mxu0 %v2763
        %2765 = vmatprep.subr.mxu0 0.0
        %v2766 = vand.u32 %v1731, 4294901760
        %v2767 = vsub.f32 %v1731, %v2766
        %v2768 = vand.u32 %v2767, 4294901760
        %2769 = vmatpush1.msra.mxu0 %v2768
        %2770 = vmatprep.subr.mxu0 0.0
        %v2771 = vand.u32 %v1725, 4294901760
        %v2772 = vsub.f32 %v1725, %v2771
        %v2773 = vand.u32 %v2772, 4294901760
        %2774 = vmatpush1.msra.mxu0 %v2773
        %2775 = vmatprep.subr.mxu0 0.0
        %2776 = vmatpush2.msra.mxu0 0.0
        %2777 = vmatprep.subr.mxu0 0.0
        %2778 = vmatpush2.msra.mxu0 0.0
        %2779 = vmatprep.subr.mxu0 0.0
        %2780 = vmatpush2.msra.mxu0 0.0
        %2781 = vmatprep.subr.mxu0 0.0
        %2782 = vmatpush2.msra.mxu0 0.0
        %2783 = vmatprep.subr.mxu0 0.0
        %2784 = vmatpush2.msra.mxu0 0.0
        %2785 = vmatprep.subr.mxu0 0.0
        %2786 = vmatpush2.msra.mxu0 0.0
        %2787 = vmatprep.subr.mxu0 0.0
        %2788 = vmatpush2.msra.mxu0 0.0
        %2789 = vmatprep.subr.mxu0 0.0
        %2790 = vmatpush2.msra.mxu0 0.0
        %2791 = vmatprep.subr.mxu0 0.0
        %2792 = vmatpush2.msra.mxu0 0.0
        %2793 = vmatprep.subr.mxu0 0.0
        %2794 = vmatpush2.msra.mxu0 0.0
        %2795 = vmatprep.subr.mxu0 0.0
        %2796 = vmatpush2.msra.mxu0 0.0
        %2797 = vmatprep.subr.mxu0 0.0
        %2798 = vmatpush2.msra.mxu0 0.0
        %2799 = vmatprep.subr.mxu0 0.0
        %2800 = vmatpush2.msra.mxu0 0.0
        %2801 = vmatprep.subr.mxu0 0.0
        %2802 = vmatpush2.msra.mxu0 0.0
        %2803 = vmatprep.subr.mxu0 0.0
        %2804 = vmatpush2.msra.mxu0 0.0
        %2805 = vmatprep.subr.mxu0 0.0
        %2806 = vmatpush2.msra.mxu0 0.0
        %2807 = vmatprep.mubr.f32.mxu0 0.0
        %v2808 = vand.u32 %v1840, 4294901760
        %2809 = vmatmul.mubr.f32.gmra.mxu0 %v2808
        %v2810 = vpop.f32.mrf.mxu0
        %v2811 = vadd.f32 %v2720, %v2810
        %v2812 = vpop.f32.mrf.mxu0
        %2813 = vmatprep.mubr.f32.mxu0 0.0
        %v2814 = vand.u32 %v1843, 4294901760
        %2815 = vmatmul.mubr.f32.gmra.mxu0 %v2814
        %v2816 = vpop.f32.mrf.mxu0
        %v2817 = vadd.f32 %v2728, %v2816
        %v2818 = vpop.f32.mrf.mxu0
        %2819 = vdwg.mxu0
        %2820 = vmatprep.subr.mxu0 0.0
        %2821 = vmatpush1.msra.mxu0 0.0
        %2822 = vmatprep.subr.mxu0 0.0
        %2823 = vmatpush1.msra.mxu0 0.0
        %2824 = vmatprep.subr.mxu0 0.0
        %2825 = vmatpush1.msra.mxu0 0.0
        %2826 = vmatprep.subr.mxu0 0.0
        %2827 = vmatpush1.msra.mxu0 0.0
        %2828 = vmatprep.subr.mxu0 0.0
        %2829 = vmatpush1.msra.mxu0 0.0
        %2830 = vmatprep.subr.mxu0 0.0
        %2831 = vmatpush1.msra.mxu0 0.0
        %2832 = vmatprep.subr.mxu0 0.0
        %2833 = vmatpush1.msra.mxu0 0.0
        %2834 = vmatprep.subr.mxu0 0.0
        %2835 = vmatpush1.msra.mxu0 0.0
        %2836 = vmatprep.subr.mxu0 0.0
        %2837 = vmatpush1.msra.mxu0 0.0
        %2838 = vmatprep.subr.mxu0 0.0
        %2839 = vmatpush1.msra.mxu0 0.0
        %2840 = vmatprep.subr.mxu0 0.0
        %2841 = vmatpush1.msra.mxu0 0.0
        %2842 = vmatprep.subr.mxu0 0.0
        %2843 = vmatpush1.msra.mxu0 0.0
        %2844 = vmatprep.subr.mxu0 0.0
        %v2845 = vand.u32 %v1743, 4294901760
        %2846 = vmatpush1.msra.mxu0 %v2845
        %2847 = vmatprep.subr.mxu0 0.0
        %v2848 = vand.u32 %v1737, 4294901760
        %2849 = vmatpush1.msra.mxu0 %v2848
        %2850 = vmatprep.subr.mxu0 0.0
        %v2851 = vand.u32 %v1731, 4294901760
        %2852 = vmatpush1.msra.mxu0 %v2851
        %2853 = vmatprep.subr.mxu0 0.0
        %v2854 = vand.u32 %v1725, 4294901760
        %2855 = vmatpush1.msra.mxu0 %v2854
        %2856 = vmatprep.subr.mxu0 0.0
        %2857 = vmatpush2.msra.mxu0 0.0
        %2858 = vmatprep.subr.mxu0 0.0
        %2859 = vmatpush2.msra.mxu0 0.0
        %2860 = vmatprep.subr.mxu0 0.0
        %2861 = vmatpush2.msra.mxu0 0.0
        %2862 = vmatprep.subr.mxu0 0.0
        %2863 = vmatpush2.msra.mxu0 0.0
        %2864 = vmatprep.subr.mxu0 0.0
        %2865 = vmatpush2.msra.mxu0 0.0
        %2866 = vmatprep.subr.mxu0 0.0
        %2867 = vmatpush2.msra.mxu0 0.0
        %2868 = vmatprep.subr.mxu0 0.0
        %2869 = vmatpush2.msra.mxu0 0.0
        %2870 = vmatprep.subr.mxu0 0.0
        %2871 = vmatpush2.msra.mxu0 0.0
        %2872 = vmatprep.subr.mxu0 0.0
        %2873 = vmatpush2.msra.mxu0 0.0
        %2874 = vmatprep.subr.mxu0 0.0
        %2875 = vmatpush2.msra.mxu0 0.0
        %2876 = vmatprep.subr.mxu0 0.0
        %2877 = vmatpush2.msra.mxu0 0.0
        %2878 = vmatprep.subr.mxu0 0.0
        %2879 = vmatpush2.msra.mxu0 0.0
        %2880 = vmatprep.subr.mxu0 0.0
        %2881 = vmatpush2.msra.mxu0 0.0
        %2882 = vmatprep.subr.mxu0 0.0
        %2883 = vmatpush2.msra.mxu0 0.0
        %2884 = vmatprep.subr.mxu0 0.0
        %2885 = vmatpush2.msra.mxu0 0.0
        %2886 = vmatprep.subr.mxu0 0.0
        %2887 = vmatpush2.msra.mxu0 0.0
        %2888 = vmatprep.mubr.f32.mxu0 0.0
        %v2889 = vand.u32 %v1840, 4294901760
        %2890 = vmatmul.mubr.f32.gmra.mxu0 %v2889
        %v2891 = vpop.f32.mrf.mxu0
        %v2892 = vadd.f32 %v2811, %v2891
        %v2893 = vpop.f32.mrf.mxu0
        %2894 = vmatprep.mubr.f32.mxu0 0.0
        %v2895 = vand.u32 %v1843, 4294901760
        %2896 = vmatmul.mubr.f32.gmra.mxu0 %v2895
        %v2897 = vpop.f32.mrf.mxu0
        %v2898 = vadd.f32 %v2817, %v2897
        %v2899 = vpop.f32.mrf.mxu0
        %2900 = vdwg.mxu0
        %2901 = vmatprep.subr.mxu0 0.0
        %2902 = vmatpush1.msra.mxu0 0.0
        %2903 = vmatprep.subr.mxu0 0.0
        %2904 = vmatpush1.msra.mxu0 0.0
        %2905 = vmatprep.subr.mxu0 0.0
        %2906 = vmatpush1.msra.mxu0 0.0
        %2907 = vmatprep.subr.mxu0 0.0
        %2908 = vmatpush1.msra.mxu0 0.0
        %2909 = vmatprep.subr.mxu0 0.0
        %2910 = vmatpush1.msra.mxu0 0.0
        %2911 = vmatprep.subr.mxu0 0.0
        %2912 = vmatpush1.msra.mxu0 0.0
        %2913 = vmatprep.subr.mxu0 0.0
        %2914 = vmatpush1.msra.mxu0 0.0
        %2915 = vmatprep.subr.mxu0 0.0
        %2916 = vmatpush1.msra.mxu0 0.0
        %2917 = vmatprep.subr.mxu0 0.0
        %2918 = vmatpush1.msra.mxu0 0.0
        %2919 = vmatprep.subr.mxu0 0.0
        %2920 = vmatpush1.msra.mxu0 0.0
        %2921 = vmatprep.subr.mxu0 0.0
        %2922 = vmatpush1.msra.mxu0 0.0
        %2923 = vmatprep.subr.mxu0 0.0
        %2924 = vmatpush1.msra.mxu0 0.0
        %2925 = vmatprep.subr.mxu0 0.0
        %v2926 = vand.u32 %v1767, 4294901760
        %2927 = vmatpush1.msra.mxu0 %v2926
        %2928 = vmatprep.subr.mxu0 0.0
        %v2929 = vand.u32 %v1761, 4294901760
        %2930 = vmatpush1.msra.mxu0 %v2929
        %2931 = vmatprep.subr.mxu0 0.0
        %v2932 = vand.u32 %v1755, 4294901760
        %2933 = vmatpush1.msra.mxu0 %v2932
        %2934 = vmatprep.subr.mxu0 0.0
        %v2935 = vand.u32 %v1749, 4294901760
        %2936 = vmatpush1.msra.mxu0 %v2935
        %2937 = vmatprep.subr.mxu0 0.0
        %2938 = vmatpush2.msra.mxu0 0.0
        %2939 = vmatprep.subr.mxu0 0.0
        %2940 = vmatpush2.msra.mxu0 0.0
        %2941 = vmatprep.subr.mxu0 0.0
        %2942 = vmatpush2.msra.mxu0 0.0
        %2943 = vmatprep.subr.mxu0 0.0
        %2944 = vmatpush2.msra.mxu0 0.0
        %2945 = vmatprep.subr.mxu0 0.0
        %2946 = vmatpush2.msra.mxu0 0.0
        %2947 = vmatprep.subr.mxu0 0.0
        %2948 = vmatpush2.msra.mxu0 0.0
        %2949 = vmatprep.subr.mxu0 0.0
        %2950 = vmatpush2.msra.mxu0 0.0
        %2951 = vmatprep.subr.mxu0 0.0
        %2952 = vmatpush2.msra.mxu0 0.0
        %2953 = vmatprep.subr.mxu0 0.0
        %2954 = vmatpush2.msra.mxu0 0.0
        %2955 = vmatprep.subr.mxu0 0.0
        %2956 = vmatpush2.msra.mxu0 0.0
        %2957 = vmatprep.subr.mxu0 0.0
        %2958 = vmatpush2.msra.mxu0 0.0
        %2959 = vmatprep.subr.mxu0 0.0
        %2960 = vmatpush2.msra.mxu0 0.0
        %2961 = vmatprep.subr.mxu0 0.0
        %2962 = vmatpush2.msra.mxu0 0.0
        %2963 = vmatprep.subr.mxu0 0.0
        %2964 = vmatpush2.msra.mxu0 0.0
        %2965 = vmatprep.subr.mxu0 0.0
        %2966 = vmatpush2.msra.mxu0 0.0
        %2967 = vmatprep.subr.mxu0 0.0
        %2968 = vmatpush2.msra.mxu0 0.0
        %2969 = vmatprep.mubr.f32.mxu0 0.0
        %v2970 = vand.u32 %v1840, 4294901760
        %v2971 = vsub.f32 %v1840, %v2970
        %v2972 = vand.u32 %v2971, 4294901760
        %v2973 = vsub.f32 %v2971, %v2972
        %v2974 = vand.u32 %v2973, 4294901760
        %2975 = vmatmul.mubr.f32.gmra.mxu0 %v2974
        %v2976 = vpop.f32.mrf.mxu0
        %v2977 = vadd.f32 0.0, %v2976
        %v2978 = vpop.f32.mrf.mxu0
        %2979 = vmatprep.mubr.f32.mxu0 0.0
        %v2980 = vand.u32 %v1843, 4294901760
        %v2981 = vsub.f32 %v1843, %v2980
        %v2982 = vand.u32 %v2981, 4294901760
        %v2983 = vsub.f32 %v2981, %v2982
        %v2984 = vand.u32 %v2983, 4294901760
        %2985 = vmatmul.mubr.f32.gmra.mxu0 %v2984
        %v2986 = vpop.f32.mrf.mxu0
        %v2987 = vadd.f32 0.0, %v2986
        %v2988 = vpop.f32.mrf.mxu0
        %2989 = vdwg.mxu0
        %2990 = vmatprep.subr.mxu0 0.0
        %2991 = vmatpush1.msra.mxu0 0.0
        %2992 = vmatprep.subr.mxu0 0.0
        %2993 = vmatpush1.msra.mxu0 0.0
        %2994 = vmatprep.subr.mxu0 0.0
        %2995 = vmatpush1.msra.mxu0 0.0
        %2996 = vmatprep.subr.mxu0 0.0
        %2997 = vmatpush1.msra.mxu0 0.0
        %2998 = vmatprep.subr.mxu0 0.0
        %2999 = vmatpush1.msra.mxu0 0.0
        %3000 = vmatprep.subr.mxu0 0.0
        %3001 = vmatpush1.msra.mxu0 0.0
        %3002 = vmatprep.subr.mxu0 0.0
        %3003 = vmatpush1.msra.mxu0 0.0
        %3004 = vmatprep.subr.mxu0 0.0
        %3005 = vmatpush1.msra.mxu0 0.0
        %3006 = vmatprep.subr.mxu0 0.0
        %3007 = vmatpush1.msra.mxu0 0.0
        %3008 = vmatprep.subr.mxu0 0.0
        %3009 = vmatpush1.msra.mxu0 0.0
        %3010 = vmatprep.subr.mxu0 0.0
        %3011 = vmatpush1.msra.mxu0 0.0
        %3012 = vmatprep.subr.mxu0 0.0
        %3013 = vmatpush1.msra.mxu0 0.0
        %3014 = vmatprep.subr.mxu0 0.0
        %v3015 = vand.u32 %v1767, 4294901760
        %v3016 = vsub.f32 %v1767, %v3015
        %v3017 = vand.u32 %v3016, 4294901760
        %v3018 = vsub.f32 %v3016, %v3017
        %v3019 = vand.u32 %v3018, 4294901760
        %3020 = vmatpush1.msra.mxu0 %v3019
        %3021 = vmatprep.subr.mxu0 0.0
        %v3022 = vand.u32 %v1761, 4294901760
        %v3023 = vsub.f32 %v1761, %v3022
        %v3024 = vand.u32 %v3023, 4294901760
        %v3025 = vsub.f32 %v3023, %v3024
        %v3026 = vand.u32 %v3025, 4294901760
        %3027 = vmatpush1.msra.mxu0 %v3026
        %3028 = vmatprep.subr.mxu0 0.0
        %v3029 = vand.u32 %v1755, 4294901760
        %v3030 = vsub.f32 %v1755, %v3029
        %v3031 = vand.u32 %v3030, 4294901760
        %v3032 = vsub.f32 %v3030, %v3031
        %v3033 = vand.u32 %v3032, 4294901760
        %3034 = vmatpush1.msra.mxu0 %v3033
        %3035 = vmatprep.subr.mxu0 0.0
        %v3036 = vand.u32 %v1749, 4294901760
        %v3037 = vsub.f32 %v1749, %v3036
        %v3038 = vand.u32 %v3037, 4294901760
        %v3039 = vsub.f32 %v3037, %v3038
        %v3040 = vand.u32 %v3039, 4294901760
        %3041 = vmatpush1.msra.mxu0 %v3040
        %3042 = vmatprep.subr.mxu0 0.0
        %3043 = vmatpush2.msra.mxu0 0.0
        %3044 = vmatprep.subr.mxu0 0.0
        %3045 = vmatpush2.msra.mxu0 0.0
        %3046 = vmatprep.subr.mxu0 0.0
        %3047 = vmatpush2.msra.mxu0 0.0
        %3048 = vmatprep.subr.mxu0 0.0
        %3049 = vmatpush2.msra.mxu0 0.0
        %3050 = vmatprep.subr.mxu0 0.0
        %3051 = vmatpush2.msra.mxu0 0.0
        %3052 = vmatprep.subr.mxu0 0.0
        %3053 = vmatpush2.msra.mxu0 0.0
        %3054 = vmatprep.subr.mxu0 0.0
        %3055 = vmatpush2.msra.mxu0 0.0
        %3056 = vmatprep.subr.mxu0 0.0
        %3057 = vmatpush2.msra.mxu0 0.0
        %3058 = vmatprep.subr.mxu0 0.0
        %3059 = vmatpush2.msra.mxu0 0.0
        %3060 = vmatprep.subr.mxu0 0.0
        %3061 = vmatpush2.msra.mxu0 0.0
        %3062 = vmatprep.subr.mxu0 0.0
        %3063 = vmatpush2.msra.mxu0 0.0
        %3064 = vmatprep.subr.mxu0 0.0
        %3065 = vmatpush2.msra.mxu0 0.0
        %3066 = vmatprep.subr.mxu0 0.0
        %3067 = vmatpush2.msra.mxu0 0.0
        %3068 = vmatprep.subr.mxu0 0.0
        %3069 = vmatpush2.msra.mxu0 0.0
        %3070 = vmatprep.subr.mxu0 0.0
        %3071 = vmatpush2.msra.mxu0 0.0
        %3072 = vmatprep.subr.mxu0 0.0
        %3073 = vmatpush2.msra.mxu0 0.0
        %3074 = vmatprep.mubr.f32.mxu0 0.0
        %v3075 = vand.u32 %v1840, 4294901760
        %3076 = vmatmul.mubr.f32.gmra.mxu0 %v3075
        %v3077 = vpop.f32.mrf.mxu0
        %v3078 = vadd.f32 %v2977, %v3077
        %v3079 = vpop.f32.mrf.mxu0
        %3080 = vmatprep.mubr.f32.mxu0 0.0
        %v3081 = vand.u32 %v1843, 4294901760
        %3082 = vmatmul.mubr.f32.gmra.mxu0 %v3081
        %v3083 = vpop.f32.mrf.mxu0
        %v3084 = vadd.f32 %v2987, %v3083
        %v3085 = vpop.f32.mrf.mxu0
        %3086 = vdwg.mxu0
        %3087 = vmatprep.subr.mxu0 0.0
        %3088 = vmatpush1.msra.mxu0 0.0
        %3089 = vmatprep.subr.mxu0 0.0
        %3090 = vmatpush1.msra.mxu0 0.0
        %3091 = vmatprep.subr.mxu0 0.0
        %3092 = vmatpush1.msra.mxu0 0.0
        %3093 = vmatprep.subr.mxu0 0.0
        %3094 = vmatpush1.msra.mxu0 0.0
        %3095 = vmatprep.subr.mxu0 0.0
        %3096 = vmatpush1.msra.mxu0 0.0
        %3097 = vmatprep.subr.mxu0 0.0
        %3098 = vmatpush1.msra.mxu0 0.0
        %3099 = vmatprep.subr.mxu0 0.0
        %3100 = vmatpush1.msra.mxu0 0.0
        %3101 = vmatprep.subr.mxu0 0.0
        %3102 = vmatpush1.msra.mxu0 0.0
        %3103 = vmatprep.subr.mxu0 0.0
        %3104 = vmatpush1.msra.mxu0 0.0
        %3105 = vmatprep.subr.mxu0 0.0
        %3106 = vmatpush1.msra.mxu0 0.0
        %3107 = vmatprep.subr.mxu0 0.0
        %3108 = vmatpush1.msra.mxu0 0.0
        %3109 = vmatprep.subr.mxu0 0.0
        %3110 = vmatpush1.msra.mxu0 0.0
        %3111 = vmatprep.subr.mxu0 0.0
        %v3112 = vand.u32 %v1767, 4294901760
        %v3113 = vsub.f32 %v1767, %v3112
        %3114 = vmatpush1.msra.mxu0 %v3113
        %3115 = vmatprep.subr.mxu0 0.0
        %v3116 = vand.u32 %v1761, 4294901760
        %v3117 = vsub.f32 %v1761, %v3116
        %3118 = vmatpush1.msra.mxu0 %v3117
        %3119 = vmatprep.subr.mxu0 0.0
        %v3120 = vand.u32 %v1755, 4294901760
        %v3121 = vsub.f32 %v1755, %v3120
        %3122 = vmatpush1.msra.mxu0 %v3121
        %3123 = vmatprep.subr.mxu0 0.0
        %v3124 = vand.u32 %v1749, 4294901760
        %v3125 = vsub.f32 %v1749, %v3124
        %3126 = vmatpush1.msra.mxu0 %v3125
        %3127 = vmatprep.subr.mxu0 0.0
        %3128 = vmatpush2.msra.mxu0 0.0
        %3129 = vmatprep.subr.mxu0 0.0
        %3130 = vmatpush2.msra.mxu0 0.0
        %3131 = vmatprep.subr.mxu0 0.0
        %3132 = vmatpush2.msra.mxu0 0.0
        %3133 = vmatprep.subr.mxu0 0.0
        %3134 = vmatpush2.msra.mxu0 0.0
        %3135 = vmatprep.subr.mxu0 0.0
        %3136 = vmatpush2.msra.mxu0 0.0
        %3137 = vmatprep.subr.mxu0 0.0
        %3138 = vmatpush2.msra.mxu0 0.0
        %3139 = vmatprep.subr.mxu0 0.0
        %3140 = vmatpush2.msra.mxu0 0.0
        %3141 = vmatprep.subr.mxu0 0.0
        %3142 = vmatpush2.msra.mxu0 0.0
        %3143 = vmatprep.subr.mxu0 0.0
        %3144 = vmatpush2.msra.mxu0 0.0
        %3145 = vmatprep.subr.mxu0 0.0
        %3146 = vmatpush2.msra.mxu0 0.0
        %3147 = vmatprep.subr.mxu0 0.0
        %3148 = vmatpush2.msra.mxu0 0.0
        %3149 = vmatprep.subr.mxu0 0.0
        %3150 = vmatpush2.msra.mxu0 0.0
        %3151 = vmatprep.subr.mxu0 0.0
        %3152 = vmatpush2.msra.mxu0 0.0
        %3153 = vmatprep.subr.mxu0 0.0
        %3154 = vmatpush2.msra.mxu0 0.0
        %3155 = vmatprep.subr.mxu0 0.0
        %3156 = vmatpush2.msra.mxu0 0.0
        %3157 = vmatprep.subr.mxu0 0.0
        %3158 = vmatpush2.msra.mxu0 0.0
        %3159 = vmatprep.mubr.f32.mxu0 0.0
        %v3160 = vand.u32 %v1840, 4294901760
        %v3161 = vsub.f32 %v1840, %v3160
        %3162 = vmatmul.mubr.f32.gmra.mxu0 %v3161
        %v3163 = vpop.f32.mrf.mxu0
        %v3164 = vadd.f32 %v3078, %v3163
        %v3165 = vpop.f32.mrf.mxu0
        %3166 = vmatprep.mubr.f32.mxu0 0.0
        %v3167 = vand.u32 %v1843, 4294901760
        %v3168 = vsub.f32 %v1843, %v3167
        %3169 = vmatmul.mubr.f32.gmra.mxu0 %v3168
        %v3170 = vpop.f32.mrf.mxu0
        %v3171 = vadd.f32 %v3084, %v3170
        %v3172 = vpop.f32.mrf.mxu0
        %3173 = vdwg.mxu0
        %3174 = vmatprep.subr.mxu0 0.0
        %3175 = vmatpush1.msra.mxu0 0.0
        %3176 = vmatprep.subr.mxu0 0.0
        %3177 = vmatpush1.msra.mxu0 0.0
        %3178 = vmatprep.subr.mxu0 0.0
        %3179 = vmatpush1.msra.mxu0 0.0
        %3180 = vmatprep.subr.mxu0 0.0
        %3181 = vmatpush1.msra.mxu0 0.0
        %3182 = vmatprep.subr.mxu0 0.0
        %3183 = vmatpush1.msra.mxu0 0.0
        %3184 = vmatprep.subr.mxu0 0.0
        %3185 = vmatpush1.msra.mxu0 0.0
        %3186 = vmatprep.subr.mxu0 0.0
        %3187 = vmatpush1.msra.mxu0 0.0
        %3188 = vmatprep.subr.mxu0 0.0
        %3189 = vmatpush1.msra.mxu0 0.0
        %3190 = vmatprep.subr.mxu0 0.0
        %3191 = vmatpush1.msra.mxu0 0.0
        %3192 = vmatprep.subr.mxu0 0.0
        %3193 = vmatpush1.msra.mxu0 0.0
        %3194 = vmatprep.subr.mxu0 0.0
        %3195 = vmatpush1.msra.mxu0 0.0
        %3196 = vmatprep.subr.mxu0 0.0
        %3197 = vmatpush1.msra.mxu0 0.0
        %3198 = vmatprep.subr.mxu0 0.0
        %v3199 = vand.u32 %v1767, 4294901760
        %3200 = vmatpush1.msra.mxu0 %v3199
        %3201 = vmatprep.subr.mxu0 0.0
        %v3202 = vand.u32 %v1761, 4294901760
        %3203 = vmatpush1.msra.mxu0 %v3202
        %3204 = vmatprep.subr.mxu0 0.0
        %v3205 = vand.u32 %v1755, 4294901760
        %3206 = vmatpush1.msra.mxu0 %v3205
        %3207 = vmatprep.subr.mxu0 0.0
        %v3208 = vand.u32 %v1749, 4294901760
        %3209 = vmatpush1.msra.mxu0 %v3208
        %3210 = vmatprep.subr.mxu0 0.0
        %3211 = vmatpush2.msra.mxu0 0.0
        %3212 = vmatprep.subr.mxu0 0.0
        %3213 = vmatpush2.msra.mxu0 0.0
        %3214 = vmatprep.subr.mxu0 0.0
        %3215 = vmatpush2.msra.mxu0 0.0
        %3216 = vmatprep.subr.mxu0 0.0
        %3217 = vmatpush2.msra.mxu0 0.0
        %3218 = vmatprep.subr.mxu0 0.0
        %3219 = vmatpush2.msra.mxu0 0.0
        %3220 = vmatprep.subr.mxu0 0.0
        %3221 = vmatpush2.msra.mxu0 0.0
        %3222 = vmatprep.subr.mxu0 0.0
        %3223 = vmatpush2.msra.mxu0 0.0
        %3224 = vmatprep.subr.mxu0 0.0
        %3225 = vmatpush2.msra.mxu0 0.0
        %3226 = vmatprep.subr.mxu0 0.0
        %3227 = vmatpush2.msra.mxu0 0.0
        %3228 = vmatprep.subr.mxu0 0.0
        %3229 = vmatpush2.msra.mxu0 0.0
        %3230 = vmatprep.subr.mxu0 0.0
        %3231 = vmatpush2.msra.mxu0 0.0
        %3232 = vmatprep.subr.mxu0 0.0
        %3233 = vmatpush2.msra.mxu0 0.0
        %3234 = vmatprep.subr.mxu0 0.0
        %3235 = vmatpush2.msra.mxu0 0.0
        %3236 = vmatprep.subr.mxu0 0.0
        %3237 = vmatpush2.msra.mxu0 0.0
        %3238 = vmatprep.subr.mxu0 0.0
        %3239 = vmatpush2.msra.mxu0 0.0
        %3240 = vmatprep.subr.mxu0 0.0
        %3241 = vmatpush2.msra.mxu0 0.0
        %3242 = vmatprep.mubr.f32.mxu0 0.0
        %v3243 = vand.u32 %v1840, 4294901760
        %v3244 = vsub.f32 %v1840, %v3243
        %v3245 = vand.u32 %v3244, 4294901760
        %3246 = vmatmul.mubr.f32.gmra.mxu0 %v3245
        %v3247 = vpop.f32.mrf.mxu0
        %v3248 = vadd.f32 %v3164, %v3247
        %v3249 = vpop.f32.mrf.mxu0
        %3250 = vmatprep.mubr.f32.mxu0 0.0
        %v3251 = vand.u32 %v1843, 4294901760
        %v3252 = vsub.f32 %v1843, %v3251
        %v3253 = vand.u32 %v3252, 4294901760
        %3254 = vmatmul.mubr.f32.gmra.mxu0 %v3253
        %v3255 = vpop.f32.mrf.mxu0
        %v3256 = vadd.f32 %v3171, %v3255
        %v3257 = vpop.f32.mrf.mxu0
        %3258 = vdwg.mxu0
        %3259 = vmatprep.subr.mxu0 0.0
        %3260 = vmatpush1.msra.mxu0 0.0
        %3261 = vmatprep.subr.mxu0 0.0
        %3262 = vmatpush1.msra.mxu0 0.0
        %3263 = vmatprep.subr.mxu0 0.0
        %3264 = vmatpush1.msra.mxu0 0.0
        %3265 = vmatprep.subr.mxu0 0.0
        %3266 = vmatpush1.msra.mxu0 0.0
        %3267 = vmatprep.subr.mxu0 0.0
        %3268 = vmatpush1.msra.mxu0 0.0
        %3269 = vmatprep.subr.mxu0 0.0
        %3270 = vmatpush1.msra.mxu0 0.0
        %3271 = vmatprep.subr.mxu0 0.0
        %3272 = vmatpush1.msra.mxu0 0.0
        %3273 = vmatprep.subr.mxu0 0.0
        %3274 = vmatpush1.msra.mxu0 0.0
        %3275 = vmatprep.subr.mxu0 0.0
        %3276 = vmatpush1.msra.mxu0 0.0
        %3277 = vmatprep.subr.mxu0 0.0
        %3278 = vmatpush1.msra.mxu0 0.0
        %3279 = vmatprep.subr.mxu0 0.0
        %3280 = vmatpush1.msra.mxu0 0.0
        %3281 = vmatprep.subr.mxu0 0.0
        %3282 = vmatpush1.msra.mxu0 0.0
        %3283 = vmatprep.subr.mxu0 0.0
        %v3284 = vand.u32 %v1767, 4294901760
        %v3285 = vsub.f32 %v1767, %v3284
        %v3286 = vand.u32 %v3285, 4294901760
        %3287 = vmatpush1.msra.mxu0 %v3286
        %3288 = vmatprep.subr.mxu0 0.0
        %v3289 = vand.u32 %v1761, 4294901760
        %v3290 = vsub.f32 %v1761, %v3289
        %v3291 = vand.u32 %v3290, 4294901760
        %3292 = vmatpush1.msra.mxu0 %v3291
        %3293 = vmatprep.subr.mxu0 0.0
        %v3294 = vand.u32 %v1755, 4294901760
        %v3295 = vsub.f32 %v1755, %v3294
        %v3296 = vand.u32 %v3295, 4294901760
        %3297 = vmatpush1.msra.mxu0 %v3296
        %3298 = vmatprep.subr.mxu0 0.0
        %v3299 = vand.u32 %v1749, 4294901760
        %v3300 = vsub.f32 %v1749, %v3299
        %v3301 = vand.u32 %v3300, 4294901760
        %3302 = vmatpush1.msra.mxu0 %v3301
        %3303 = vmatprep.subr.mxu0 0.0
        %3304 = vmatpush2.msra.mxu0 0.0
        %3305 = vmatprep.subr.mxu0 0.0
        %3306 = vmatpush2.msra.mxu0 0.0
        %3307 = vmatprep.subr.mxu0 0.0
        %3308 = vmatpush2.msra.mxu0 0.0
        %3309 = vmatprep.subr.mxu0 0.0
        %3310 = vmatpush2.msra.mxu0 0.0
        %3311 = vmatprep.subr.mxu0 0.0
        %3312 = vmatpush2.msra.mxu0 0.0
        %3313 = vmatprep.subr.mxu0 0.0
        %3314 = vmatpush2.msra.mxu0 0.0
        %3315 = vmatprep.subr.mxu0 0.0
        %3316 = vmatpush2.msra.mxu0 0.0
        %3317 = vmatprep.subr.mxu0 0.0
        %3318 = vmatpush2.msra.mxu0 0.0
        %3319 = vmatprep.subr.mxu0 0.0
        %3320 = vmatpush2.msra.mxu0 0.0
        %3321 = vmatprep.subr.mxu0 0.0
        %3322 = vmatpush2.msra.mxu0 0.0
        %3323 = vmatprep.subr.mxu0 0.0
        %3324 = vmatpush2.msra.mxu0 0.0
        %3325 = vmatprep.subr.mxu0 0.0
        %3326 = vmatpush2.msra.mxu0 0.0
        %3327 = vmatprep.subr.mxu0 0.0
        %3328 = vmatpush2.msra.mxu0 0.0
        %3329 = vmatprep.subr.mxu0 0.0
        %3330 = vmatpush2.msra.mxu0 0.0
        %3331 = vmatprep.subr.mxu0 0.0
        %3332 = vmatpush2.msra.mxu0 0.0
        %3333 = vmatprep.subr.mxu0 0.0
        %3334 = vmatpush2.msra.mxu0 0.0
        %3335 = vmatprep.mubr.f32.mxu0 0.0
        %v3336 = vand.u32 %v1840, 4294901760
        %3337 = vmatmul.mubr.f32.gmra.mxu0 %v3336
        %v3338 = vpop.f32.mrf.mxu0
        %v3339 = vadd.f32 %v3248, %v3338
        %v3340 = vpop.f32.mrf.mxu0
        %3341 = vmatprep.mubr.f32.mxu0 0.0
        %v3342 = vand.u32 %v1843, 4294901760
        %3343 = vmatmul.mubr.f32.gmra.mxu0 %v3342
        %v3344 = vpop.f32.mrf.mxu0
        %v3345 = vadd.f32 %v3256, %v3344
        %v3346 = vpop.f32.mrf.mxu0
        %3347 = vdwg.mxu0
        %3348 = vmatprep.subr.mxu0 0.0
        %3349 = vmatpush1.msra.mxu0 0.0
        %3350 = vmatprep.subr.mxu0 0.0
        %3351 = vmatpush1.msra.mxu0 0.0
        %3352 = vmatprep.subr.mxu0 0.0
        %3353 = vmatpush1.msra.mxu0 0.0
        %3354 = vmatprep.subr.mxu0 0.0
        %3355 = vmatpush1.msra.mxu0 0.0
        %3356 = vmatprep.subr.mxu0 0.0
        %3357 = vmatpush1.msra.mxu0 0.0
        %3358 = vmatprep.subr.mxu0 0.0
        %3359 = vmatpush1.msra.mxu0 0.0
        %3360 = vmatprep.subr.mxu0 0.0
        %3361 = vmatpush1.msra.mxu0 0.0
        %3362 = vmatprep.subr.mxu0 0.0
        %3363 = vmatpush1.msra.mxu0 0.0
        %3364 = vmatprep.subr.mxu0 0.0
        %3365 = vmatpush1.msra.mxu0 0.0
        %3366 = vmatprep.subr.mxu0 0.0
        %3367 = vmatpush1.msra.mxu0 0.0
        %3368 = vmatprep.subr.mxu0 0.0
        %3369 = vmatpush1.msra.mxu0 0.0
        %3370 = vmatprep.subr.mxu0 0.0
        %3371 = vmatpush1.msra.mxu0 0.0
        %3372 = vmatprep.subr.mxu0 0.0
        %v3373 = vand.u32 %v1767, 4294901760
        %3374 = vmatpush1.msra.mxu0 %v3373
        %3375 = vmatprep.subr.mxu0 0.0
        %v3376 = vand.u32 %v1761, 4294901760
        %3377 = vmatpush1.msra.mxu0 %v3376
        %3378 = vmatprep.subr.mxu0 0.0
        %v3379 = vand.u32 %v1755, 4294901760
        %3380 = vmatpush1.msra.mxu0 %v3379
        %3381 = vmatprep.subr.mxu0 0.0
        %v3382 = vand.u32 %v1749, 4294901760
        %3383 = vmatpush1.msra.mxu0 %v3382
        %3384 = vmatprep.subr.mxu0 0.0
        %3385 = vmatpush2.msra.mxu0 0.0
        %3386 = vmatprep.subr.mxu0 0.0
        %3387 = vmatpush2.msra.mxu0 0.0
        %3388 = vmatprep.subr.mxu0 0.0
        %3389 = vmatpush2.msra.mxu0 0.0
        %3390 = vmatprep.subr.mxu0 0.0
        %3391 = vmatpush2.msra.mxu0 0.0
        %3392 = vmatprep.subr.mxu0 0.0
        %3393 = vmatpush2.msra.mxu0 0.0
        %3394 = vmatprep.subr.mxu0 0.0
        %3395 = vmatpush2.msra.mxu0 0.0
        %3396 = vmatprep.subr.mxu0 0.0
        %3397 = vmatpush2.msra.mxu0 0.0
        %3398 = vmatprep.subr.mxu0 0.0
        %3399 = vmatpush2.msra.mxu0 0.0
        %3400 = vmatprep.subr.mxu0 0.0
        %3401 = vmatpush2.msra.mxu0 0.0
        %3402 = vmatprep.subr.mxu0 0.0
        %3403 = vmatpush2.msra.mxu0 0.0
        %3404 = vmatprep.subr.mxu0 0.0
        %3405 = vmatpush2.msra.mxu0 0.0
        %3406 = vmatprep.subr.mxu0 0.0
        %3407 = vmatpush2.msra.mxu0 0.0
        %3408 = vmatprep.subr.mxu0 0.0
        %3409 = vmatpush2.msra.mxu0 0.0
        %3410 = vmatprep.subr.mxu0 0.0
        %3411 = vmatpush2.msra.mxu0 0.0
        %3412 = vmatprep.subr.mxu0 0.0
        %3413 = vmatpush2.msra.mxu0 0.0
        %3414 = vmatprep.subr.mxu0 0.0
        %3415 = vmatpush2.msra.mxu0 0.0
        %3416 = vmatprep.mubr.f32.mxu0 0.0
        %v3417 = vand.u32 %v1840, 4294901760
        %3418 = vmatmul.mubr.f32.gmra.mxu0 %v3417
        %v3419 = vpop.f32.mrf.mxu0
        %v3420 = vadd.f32 %v3339, %v3419
        %v3421 = vpop.f32.mrf.mxu0
        %3422 = vmatprep.mubr.f32.mxu0 0.0
        %v3423 = vand.u32 %v1843, 4294901760
        %3424 = vmatmul.mubr.f32.gmra.mxu0 %v3423
        %v3425 = vpop.f32.mrf.mxu0
        %v3426 = vadd.f32 %v3345, %v3425
        %v3427 = vpop.f32.mrf.mxu0
        %3428 = vdwg.mxu0
        %3429 = vmatprep.subr.mxu0 0.0
        %3430 = vmatpush1.msra.mxu0 0.0
        %3431 = vmatprep.subr.mxu0 0.0
        %3432 = vmatpush1.msra.mxu0 0.0
        %3433 = vmatprep.subr.mxu0 0.0
        %3434 = vmatpush1.msra.mxu0 0.0
        %3435 = vmatprep.subr.mxu0 0.0
        %3436 = vmatpush1.msra.mxu0 0.0
        %3437 = vmatprep.subr.mxu0 0.0
        %3438 = vmatpush1.msra.mxu0 0.0
        %3439 = vmatprep.subr.mxu0 0.0
        %3440 = vmatpush1.msra.mxu0 0.0
        %3441 = vmatprep.subr.mxu0 0.0
        %3442 = vmatpush1.msra.mxu0 0.0
        %3443 = vmatprep.subr.mxu0 0.0
        %3444 = vmatpush1.msra.mxu0 0.0
        %3445 = vmatprep.subr.mxu0 0.0
        %3446 = vmatpush1.msra.mxu0 0.0
        %3447 = vmatprep.subr.mxu0 0.0
        %3448 = vmatpush1.msra.mxu0 0.0
        %3449 = vmatprep.subr.mxu0 0.0
        %3450 = vmatpush1.msra.mxu0 0.0
        %3451 = vmatprep.subr.mxu0 0.0
        %3452 = vmatpush1.msra.mxu0 0.0
        %3453 = vmatprep.subr.mxu0 0.0
        %v3454 = vand.u32 %v1791, 4294901760
        %3455 = vmatpush1.msra.mxu0 %v3454
        %3456 = vmatprep.subr.mxu0 0.0
        %v3457 = vand.u32 %v1785, 4294901760
        %3458 = vmatpush1.msra.mxu0 %v3457
        %3459 = vmatprep.subr.mxu0 0.0
        %v3460 = vand.u32 %v1779, 4294901760
        %3461 = vmatpush1.msra.mxu0 %v3460
        %3462 = vmatprep.subr.mxu0 0.0
        %v3463 = vand.u32 %v1773, 4294901760
        %3464 = vmatpush1.msra.mxu0 %v3463
        %3465 = vmatprep.subr.mxu0 0.0
        %3466 = vmatpush2.msra.mxu0 0.0
        %3467 = vmatprep.subr.mxu0 0.0
        %3468 = vmatpush2.msra.mxu0 0.0
        %3469 = vmatprep.subr.mxu0 0.0
        %3470 = vmatpush2.msra.mxu0 0.0
        %3471 = vmatprep.subr.mxu0 0.0
        %3472 = vmatpush2.msra.mxu0 0.0
        %3473 = vmatprep.subr.mxu0 0.0
        %3474 = vmatpush2.msra.mxu0 0.0
        %3475 = vmatprep.subr.mxu0 0.0
        %3476 = vmatpush2.msra.mxu0 0.0
        %3477 = vmatprep.subr.mxu0 0.0
        %3478 = vmatpush2.msra.mxu0 0.0
        %3479 = vmatprep.subr.mxu0 0.0
        %3480 = vmatpush2.msra.mxu0 0.0
        %3481 = vmatprep.subr.mxu0 0.0
        %3482 = vmatpush2.msra.mxu0 0.0
        %3483 = vmatprep.subr.mxu0 0.0
        %3484 = vmatpush2.msra.mxu0 0.0
        %3485 = vmatprep.subr.mxu0 0.0
        %3486 = vmatpush2.msra.mxu0 0.0
        %3487 = vmatprep.subr.mxu0 0.0
        %3488 = vmatpush2.msra.mxu0 0.0
        %3489 = vmatprep.subr.mxu0 0.0
        %3490 = vmatpush2.msra.mxu0 0.0
        %3491 = vmatprep.subr.mxu0 0.0
        %3492 = vmatpush2.msra.mxu0 0.0
        %3493 = vmatprep.subr.mxu0 0.0
        %3494 = vmatpush2.msra.mxu0 0.0
        %3495 = vmatprep.subr.mxu0 0.0
        %3496 = vmatpush2.msra.mxu0 0.0
        %3497 = vmatprep.mubr.f32.mxu0 0.0
        %v3498 = vand.u32 %v1840, 4294901760
        %v3499 = vsub.f32 %v1840, %v3498
        %v3500 = vand.u32 %v3499, 4294901760
        %v3501 = vsub.f32 %v3499, %v3500
        %v3502 = vand.u32 %v3501, 4294901760
        %3503 = vmatmul.mubr.f32.gmra.mxu0 %v3502
        %v3504 = vpop.f32.mrf.mxu0
        %v3505 = vadd.f32 0.0, %v3504
        %v3506 = vpop.f32.mrf.mxu0
        %3507 = vmatprep.mubr.f32.mxu0 0.0
        %v3508 = vand.u32 %v1843, 4294901760
        %v3509 = vsub.f32 %v1843, %v3508
        %v3510 = vand.u32 %v3509, 4294901760
        %v3511 = vsub.f32 %v3509, %v3510
        %v3512 = vand.u32 %v3511, 4294901760
        %3513 = vmatmul.mubr.f32.gmra.mxu0 %v3512
        %v3514 = vpop.f32.mrf.mxu0
        %v3515 = vadd.f32 0.0, %v3514
        %v3516 = vpop.f32.mrf.mxu0
        %3517 = vdwg.mxu0
        %3518 = vmatprep.subr.mxu0 0.0
        %3519 = vmatpush1.msra.mxu0 0.0
        %3520 = vmatprep.subr.mxu0 0.0
        %3521 = vmatpush1.msra.mxu0 0.0
        %3522 = vmatprep.subr.mxu0 0.0
        %3523 = vmatpush1.msra.mxu0 0.0
        %3524 = vmatprep.subr.mxu0 0.0
        %3525 = vmatpush1.msra.mxu0 0.0
        %3526 = vmatprep.subr.mxu0 0.0
        %3527 = vmatpush1.msra.mxu0 0.0
        %3528 = vmatprep.subr.mxu0 0.0
        %3529 = vmatpush1.msra.mxu0 0.0
        %3530 = vmatprep.subr.mxu0 0.0
        %3531 = vmatpush1.msra.mxu0 0.0
        %3532 = vmatprep.subr.mxu0 0.0
        %3533 = vmatpush1.msra.mxu0 0.0
        %3534 = vmatprep.subr.mxu0 0.0
        %3535 = vmatpush1.msra.mxu0 0.0
        %3536 = vmatprep.subr.mxu0 0.0
        %3537 = vmatpush1.msra.mxu0 0.0
        %3538 = vmatprep.subr.mxu0 0.0
        %3539 = vmatpush1.msra.mxu0 0.0
        %3540 = vmatprep.subr.mxu0 0.0
        %3541 = vmatpush1.msra.mxu0 0.0
        %3542 = vmatprep.subr.mxu0 0.0
        %v3543 = vand.u32 %v1791, 4294901760
        %v3544 = vsub.f32 %v1791, %v3543
        %v3545 = vand.u32 %v3544, 4294901760
        %v3546 = vsub.f32 %v3544, %v3545
        %v3547 = vand.u32 %v3546, 4294901760
        %3548 = vmatpush1.msra.mxu0 %v3547
        %3549 = vmatprep.subr.mxu0 0.0
        %v3550 = vand.u32 %v1785, 4294901760
        %v3551 = vsub.f32 %v1785, %v3550
        %v3552 = vand.u32 %v3551, 4294901760
        %v3553 = vsub.f32 %v3551, %v3552
        %v3554 = vand.u32 %v3553, 4294901760
        %3555 = vmatpush1.msra.mxu0 %v3554
        %3556 = vmatprep.subr.mxu0 0.0
        %v3557 = vand.u32 %v1779, 4294901760
        %v3558 = vsub.f32 %v1779, %v3557
        %v3559 = vand.u32 %v3558, 4294901760
        %v3560 = vsub.f32 %v3558, %v3559
        %v3561 = vand.u32 %v3560, 4294901760
        %3562 = vmatpush1.msra.mxu0 %v3561
        %3563 = vmatprep.subr.mxu0 0.0
        %v3564 = vand.u32 %v1773, 4294901760
        %v3565 = vsub.f32 %v1773, %v3564
        %v3566 = vand.u32 %v3565, 4294901760
        %v3567 = vsub.f32 %v3565, %v3566
        %v3568 = vand.u32 %v3567, 4294901760
        %3569 = vmatpush1.msra.mxu0 %v3568
        %3570 = vmatprep.subr.mxu0 0.0
        %3571 = vmatpush2.msra.mxu0 0.0
        %3572 = vmatprep.subr.mxu0 0.0
        %3573 = vmatpush2.msra.mxu0 0.0
        %3574 = vmatprep.subr.mxu0 0.0
        %3575 = vmatpush2.msra.mxu0 0.0
        %3576 = vmatprep.subr.mxu0 0.0
        %3577 = vmatpush2.msra.mxu0 0.0
        %3578 = vmatprep.subr.mxu0 0.0
        %3579 = vmatpush2.msra.mxu0 0.0
        %3580 = vmatprep.subr.mxu0 0.0
        %3581 = vmatpush2.msra.mxu0 0.0
        %3582 = vmatprep.subr.mxu0 0.0
        %3583 = vmatpush2.msra.mxu0 0.0
        %3584 = vmatprep.subr.mxu0 0.0
        %3585 = vmatpush2.msra.mxu0 0.0
        %3586 = vmatprep.subr.mxu0 0.0
        %3587 = vmatpush2.msra.mxu0 0.0
        %3588 = vmatprep.subr.mxu0 0.0
        %3589 = vmatpush2.msra.mxu0 0.0
        %3590 = vmatprep.subr.mxu0 0.0
        %3591 = vmatpush2.msra.mxu0 0.0
        %3592 = vmatprep.subr.mxu0 0.0
        %3593 = vmatpush2.msra.mxu0 0.0
        %3594 = vmatprep.subr.mxu0 0.0
        %3595 = vmatpush2.msra.mxu0 0.0
        %3596 = vmatprep.subr.mxu0 0.0
        %3597 = vmatpush2.msra.mxu0 0.0
        %3598 = vmatprep.subr.mxu0 0.0
        %3599 = vmatpush2.msra.mxu0 0.0
        %3600 = vmatprep.subr.mxu0 0.0
        %3601 = vmatpush2.msra.mxu0 0.0
        %3602 = vmatprep.mubr.f32.mxu0 0.0
        %v3603 = vand.u32 %v1840, 4294901760
        %3604 = vmatmul.mubr.f32.gmra.mxu0 %v3603
        %v3605 = vpop.f32.mrf.mxu0
        %v3606 = vadd.f32 %v3505, %v3605
        %v3607 = vpop.f32.mrf.mxu0
        %3608 = vmatprep.mubr.f32.mxu0 0.0
        %v3609 = vand.u32 %v1843, 4294901760
        %3610 = vmatmul.mubr.f32.gmra.mxu0 %v3609
        %v3611 = vpop.f32.mrf.mxu0
        %v3612 = vadd.f32 %v3515, %v3611
        %v3613 = vpop.f32.mrf.mxu0
        %3614 = vdwg.mxu0
        %3615 = vmatprep.subr.mxu0 0.0
        %3616 = vmatpush1.msra.mxu0 0.0
        %3617 = vmatprep.subr.mxu0 0.0
        %3618 = vmatpush1.msra.mxu0 0.0
        %3619 = vmatprep.subr.mxu0 0.0
        %3620 = vmatpush1.msra.mxu0 0.0
        %3621 = vmatprep.subr.mxu0 0.0
        %3622 = vmatpush1.msra.mxu0 0.0
        %3623 = vmatprep.subr.mxu0 0.0
        %3624 = vmatpush1.msra.mxu0 0.0
        %3625 = vmatprep.subr.mxu0 0.0
        %3626 = vmatpush1.msra.mxu0 0.0
        %3627 = vmatprep.subr.mxu0 0.0
        %3628 = vmatpush1.msra.mxu0 0.0
        %3629 = vmatprep.subr.mxu0 0.0
        %3630 = vmatpush1.msra.mxu0 0.0
        %3631 = vmatprep.subr.mxu0 0.0
        %3632 = vmatpush1.msra.mxu0 0.0
        %3633 = vmatprep.subr.mxu0 0.0
        %3634 = vmatpush1.msra.mxu0 0.0
        %3635 = vmatprep.subr.mxu0 0.0
        %3636 = vmatpush1.msra.mxu0 0.0
        %3637 = vmatprep.subr.mxu0 0.0
        %3638 = vmatpush1.msra.mxu0 0.0
        %3639 = vmatprep.subr.mxu0 0.0
        %v3640 = vand.u32 %v1791, 4294901760
        %v3641 = vsub.f32 %v1791, %v3640
        %3642 = vmatpush1.msra.mxu0 %v3641
        %3643 = vmatprep.subr.mxu0 0.0
        %v3644 = vand.u32 %v1785, 4294901760
        %v3645 = vsub.f32 %v1785, %v3644
        %3646 = vmatpush1.msra.mxu0 %v3645
        %3647 = vmatprep.subr.mxu0 0.0
        %v3648 = vand.u32 %v1779, 4294901760
        %v3649 = vsub.f32 %v1779, %v3648
        %3650 = vmatpush1.msra.mxu0 %v3649
        %3651 = vmatprep.subr.mxu0 0.0
        %v3652 = vand.u32 %v1773, 4294901760
        %v3653 = vsub.f32 %v1773, %v3652
        %3654 = vmatpush1.msra.mxu0 %v3653
        %3655 = vmatprep.subr.mxu0 0.0
        %3656 = vmatpush2.msra.mxu0 0.0
        %3657 = vmatprep.subr.mxu0 0.0
        %3658 = vmatpush2.msra.mxu0 0.0
        %3659 = vmatprep.subr.mxu0 0.0
        %3660 = vmatpush2.msra.mxu0 0.0
        %3661 = vmatprep.subr.mxu0 0.0
        %3662 = vmatpush2.msra.mxu0 0.0
        %3663 = vmatprep.subr.mxu0 0.0
        %3664 = vmatpush2.msra.mxu0 0.0
        %3665 = vmatprep.subr.mxu0 0.0
        %3666 = vmatpush2.msra.mxu0 0.0
        %3667 = vmatprep.subr.mxu0 0.0
        %3668 = vmatpush2.msra.mxu0 0.0
        %3669 = vmatprep.subr.mxu0 0.0
        %3670 = vmatpush2.msra.mxu0 0.0
        %3671 = vmatprep.subr.mxu0 0.0
        %3672 = vmatpush2.msra.mxu0 0.0
        %3673 = vmatprep.subr.mxu0 0.0
        %3674 = vmatpush2.msra.mxu0 0.0
        %3675 = vmatprep.subr.mxu0 0.0
        %3676 = vmatpush2.msra.mxu0 0.0
        %3677 = vmatprep.subr.mxu0 0.0
        %3678 = vmatpush2.msra.mxu0 0.0
        %3679 = vmatprep.subr.mxu0 0.0
        %3680 = vmatpush2.msra.mxu0 0.0
        %3681 = vmatprep.subr.mxu0 0.0
        %3682 = vmatpush2.msra.mxu0 0.0
        %3683 = vmatprep.subr.mxu0 0.0
        %3684 = vmatpush2.msra.mxu0 0.0
        %3685 = vmatprep.subr.mxu0 0.0
        %3686 = vmatpush2.msra.mxu0 0.0
        %3687 = vmatprep.mubr.f32.mxu0 0.0
        %v3688 = vand.u32 %v1840, 4294901760
        %v3689 = vsub.f32 %v1840, %v3688
        %3690 = vmatmul.mubr.f32.gmra.mxu0 %v3689
        %v3691 = vpop.f32.mrf.mxu0
        %v3692 = vadd.f32 %v3606, %v3691
        %v3693 = vpop.f32.mrf.mxu0
        %3694 = vmatprep.mubr.f32.mxu0 0.0
        %v3695 = vand.u32 %v1843, 4294901760
        %v3696 = vsub.f32 %v1843, %v3695
        %3697 = vmatmul.mubr.f32.gmra.mxu0 %v3696
        %v3698 = vpop.f32.mrf.mxu0
        %v3699 = vadd.f32 %v3612, %v3698
        %v3700 = vpop.f32.mrf.mxu0
        %3701 = vdwg.mxu0
        %3702 = vmatprep.subr.mxu0 0.0
        %3703 = vmatpush1.msra.mxu0 0.0
        %3704 = vmatprep.subr.mxu0 0.0
        %3705 = vmatpush1.msra.mxu0 0.0
        %3706 = vmatprep.subr.mxu0 0.0
        %3707 = vmatpush1.msra.mxu0 0.0
        %3708 = vmatprep.subr.mxu0 0.0
        %3709 = vmatpush1.msra.mxu0 0.0
        %3710 = vmatprep.subr.mxu0 0.0
        %3711 = vmatpush1.msra.mxu0 0.0
        %3712 = vmatprep.subr.mxu0 0.0
        %3713 = vmatpush1.msra.mxu0 0.0
        %3714 = vmatprep.subr.mxu0 0.0
        %3715 = vmatpush1.msra.mxu0 0.0
        %3716 = vmatprep.subr.mxu0 0.0
        %3717 = vmatpush1.msra.mxu0 0.0
        %3718 = vmatprep.subr.mxu0 0.0
        %3719 = vmatpush1.msra.mxu0 0.0
        %3720 = vmatprep.subr.mxu0 0.0
        %3721 = vmatpush1.msra.mxu0 0.0
        %3722 = vmatprep.subr.mxu0 0.0
        %3723 = vmatpush1.msra.mxu0 0.0
        %3724 = vmatprep.subr.mxu0 0.0
        %3725 = vmatpush1.msra.mxu0 0.0
        %3726 = vmatprep.subr.mxu0 0.0
        %v3727 = vand.u32 %v1791, 4294901760
        %3728 = vmatpush1.msra.mxu0 %v3727
        %3729 = vmatprep.subr.mxu0 0.0
        %v3730 = vand.u32 %v1785, 4294901760
        %3731 = vmatpush1.msra.mxu0 %v3730
        %3732 = vmatprep.subr.mxu0 0.0
        %v3733 = vand.u32 %v1779, 4294901760
        %3734 = vmatpush1.msra.mxu0 %v3733
        %3735 = vmatprep.subr.mxu0 0.0
        %v3736 = vand.u32 %v1773, 4294901760
        %3737 = vmatpush1.msra.mxu0 %v3736
        %3738 = vmatprep.subr.mxu0 0.0
        %3739 = vmatpush2.msra.mxu0 0.0
        %3740 = vmatprep.subr.mxu0 0.0
        %3741 = vmatpush2.msra.mxu0 0.0
        %3742 = vmatprep.subr.mxu0 0.0
        %3743 = vmatpush2.msra.mxu0 0.0
        %3744 = vmatprep.subr.mxu0 0.0
        %3745 = vmatpush2.msra.mxu0 0.0
        %3746 = vmatprep.subr.mxu0 0.0
        %3747 = vmatpush2.msra.mxu0 0.0
        %3748 = vmatprep.subr.mxu0 0.0
        %3749 = vmatpush2.msra.mxu0 0.0
        %3750 = vmatprep.subr.mxu0 0.0
        %3751 = vmatpush2.msra.mxu0 0.0
        %3752 = vmatprep.subr.mxu0 0.0
        %3753 = vmatpush2.msra.mxu0 0.0
        %3754 = vmatprep.subr.mxu0 0.0
        %3755 = vmatpush2.msra.mxu0 0.0
        %3756 = vmatprep.subr.mxu0 0.0
        %3757 = vmatpush2.msra.mxu0 0.0
        %3758 = vmatprep.subr.mxu0 0.0
        %3759 = vmatpush2.msra.mxu0 0.0
        %3760 = vmatprep.subr.mxu0 0.0
        %3761 = vmatpush2.msra.mxu0 0.0
        %3762 = vmatprep.subr.mxu0 0.0
        %3763 = vmatpush2.msra.mxu0 0.0
        %3764 = vmatprep.subr.mxu0 0.0
        %3765 = vmatpush2.msra.mxu0 0.0
        %3766 = vmatprep.subr.mxu0 0.0
        %3767 = vmatpush2.msra.mxu0 0.0
        %3768 = vmatprep.subr.mxu0 0.0
        %3769 = vmatpush2.msra.mxu0 0.0
        %3770 = vmatprep.mubr.f32.mxu0 0.0
        %v3771 = vand.u32 %v1840, 4294901760
        %v3772 = vsub.f32 %v1840, %v3771
        %v3773 = vand.u32 %v3772, 4294901760
        %3774 = vmatmul.mubr.f32.gmra.mxu0 %v3773
        %v3775 = vpop.f32.mrf.mxu0
        %v3776 = vadd.f32 %v3692, %v3775
        %v3777 = vpop.f32.mrf.mxu0
        %3778 = vmatprep.mubr.f32.mxu0 0.0
        %v3779 = vand.u32 %v1843, 4294901760
        %v3780 = vsub.f32 %v1843, %v3779
        %v3781 = vand.u32 %v3780, 4294901760
        %3782 = vmatmul.mubr.f32.gmra.mxu0 %v3781
        %v3783 = vpop.f32.mrf.mxu0
        %v3784 = vadd.f32 %v3699, %v3783
        %v3785 = vpop.f32.mrf.mxu0
        %3786 = vdwg.mxu0
        %3787 = vmatprep.subr.mxu0 0.0
        %3788 = vmatpush1.msra.mxu0 0.0
        %3789 = vmatprep.subr.mxu0 0.0
        %3790 = vmatpush1.msra.mxu0 0.0
        %3791 = vmatprep.subr.mxu0 0.0
        %3792 = vmatpush1.msra.mxu0 0.0
        %3793 = vmatprep.subr.mxu0 0.0
        %3794 = vmatpush1.msra.mxu0 0.0
        %3795 = vmatprep.subr.mxu0 0.0
        %3796 = vmatpush1.msra.mxu0 0.0
        %3797 = vmatprep.subr.mxu0 0.0
        %3798 = vmatpush1.msra.mxu0 0.0
        %3799 = vmatprep.subr.mxu0 0.0
        %3800 = vmatpush1.msra.mxu0 0.0
        %3801 = vmatprep.subr.mxu0 0.0
        %3802 = vmatpush1.msra.mxu0 0.0
        %3803 = vmatprep.subr.mxu0 0.0
        %3804 = vmatpush1.msra.mxu0 0.0
        %3805 = vmatprep.subr.mxu0 0.0
        %3806 = vmatpush1.msra.mxu0 0.0
        %3807 = vmatprep.subr.mxu0 0.0
        %3808 = vmatpush1.msra.mxu0 0.0
        %3809 = vmatprep.subr.mxu0 0.0
        %3810 = vmatpush1.msra.mxu0 0.0
        %3811 = vmatprep.subr.mxu0 0.0
        %v3812 = vand.u32 %v1791, 4294901760
        %v3813 = vsub.f32 %v1791, %v3812
        %v3814 = vand.u32 %v3813, 4294901760
        %3815 = vmatpush1.msra.mxu0 %v3814
        %3816 = vmatprep.subr.mxu0 0.0
        %v3817 = vand.u32 %v1785, 4294901760
        %v3818 = vsub.f32 %v1785, %v3817
        %v3819 = vand.u32 %v3818, 4294901760
        %3820 = vmatpush1.msra.mxu0 %v3819
        %3821 = vmatprep.subr.mxu0 0.0
        %v3822 = vand.u32 %v1779, 4294901760
        %v3823 = vsub.f32 %v1779, %v3822
        %v3824 = vand.u32 %v3823, 4294901760
        %3825 = vmatpush1.msra.mxu0 %v3824
        %3826 = vmatprep.subr.mxu0 0.0
        %v3827 = vand.u32 %v1773, 4294901760
        %v3828 = vsub.f32 %v1773, %v3827
        %v3829 = vand.u32 %v3828, 4294901760
        %3830 = vmatpush1.msra.mxu0 %v3829
        %3831 = vmatprep.subr.mxu0 0.0
        %3832 = vmatpush2.msra.mxu0 0.0
        %3833 = vmatprep.subr.mxu0 0.0
        %3834 = vmatpush2.msra.mxu0 0.0
        %3835 = vmatprep.subr.mxu0 0.0
        %3836 = vmatpush2.msra.mxu0 0.0
        %3837 = vmatprep.subr.mxu0 0.0
        %3838 = vmatpush2.msra.mxu0 0.0
        %3839 = vmatprep.subr.mxu0 0.0
        %3840 = vmatpush2.msra.mxu0 0.0
        %3841 = vmatprep.subr.mxu0 0.0
        %3842 = vmatpush2.msra.mxu0 0.0
        %3843 = vmatprep.subr.mxu0 0.0
        %3844 = vmatpush2.msra.mxu0 0.0
        %3845 = vmatprep.subr.mxu0 0.0
        %3846 = vmatpush2.msra.mxu0 0.0
        %3847 = vmatprep.subr.mxu0 0.0
        %3848 = vmatpush2.msra.mxu0 0.0
        %3849 = vmatprep.subr.mxu0 0.0
        %3850 = vmatpush2.msra.mxu0 0.0
        %3851 = vmatprep.subr.mxu0 0.0
        %3852 = vmatpush2.msra.mxu0 0.0
        %3853 = vmatprep.subr.mxu0 0.0
        %3854 = vmatpush2.msra.mxu0 0.0
        %3855 = vmatprep.subr.mxu0 0.0
        %3856 = vmatpush2.msra.mxu0 0.0
        %3857 = vmatprep.subr.mxu0 0.0
        %3858 = vmatpush2.msra.mxu0 0.0
        %3859 = vmatprep.subr.mxu0 0.0
        %3860 = vmatpush2.msra.mxu0 0.0
        %3861 = vmatprep.subr.mxu0 0.0
        %3862 = vmatpush2.msra.mxu0 0.0
        %3863 = vmatprep.mubr.f32.mxu0 0.0
        %v3864 = vand.u32 %v1840, 4294901760
        %3865 = vmatmul.mubr.f32.gmra.mxu0 %v3864
        %v3866 = vpop.f32.mrf.mxu0
        %v3867 = vadd.f32 %v3776, %v3866
        %v3868 = vpop.f32.mrf.mxu0
        %3869 = vmatprep.mubr.f32.mxu0 0.0
        %v3870 = vand.u32 %v1843, 4294901760
        %3871 = vmatmul.mubr.f32.gmra.mxu0 %v3870
        %v3872 = vpop.f32.mrf.mxu0
        %v3873 = vadd.f32 %v3784, %v3872
        %v3874 = vpop.f32.mrf.mxu0
        %3875 = vdwg.mxu0
        %3876 = vmatprep.subr.mxu0 0.0
        %3877 = vmatpush1.msra.mxu0 0.0
        %3878 = vmatprep.subr.mxu0 0.0
        %3879 = vmatpush1.msra.mxu0 0.0
        %3880 = vmatprep.subr.mxu0 0.0
        %3881 = vmatpush1.msra.mxu0 0.0
        %3882 = vmatprep.subr.mxu0 0.0
        %3883 = vmatpush1.msra.mxu0 0.0
        %3884 = vmatprep.subr.mxu0 0.0
        %3885 = vmatpush1.msra.mxu0 0.0
        %3886 = vmatprep.subr.mxu0 0.0
        %3887 = vmatpush1.msra.mxu0 0.0
        %3888 = vmatprep.subr.mxu0 0.0
        %3889 = vmatpush1.msra.mxu0 0.0
        %3890 = vmatprep.subr.mxu0 0.0
        %3891 = vmatpush1.msra.mxu0 0.0
        %3892 = vmatprep.subr.mxu0 0.0
        %3893 = vmatpush1.msra.mxu0 0.0
        %3894 = vmatprep.subr.mxu0 0.0
        %3895 = vmatpush1.msra.mxu0 0.0
        %3896 = vmatprep.subr.mxu0 0.0
        %3897 = vmatpush1.msra.mxu0 0.0
        %3898 = vmatprep.subr.mxu0 0.0
        %3899 = vmatpush1.msra.mxu0 0.0
        %3900 = vmatprep.subr.mxu0 0.0
        %v3901 = vand.u32 %v1791, 4294901760
        %3902 = vmatpush1.msra.mxu0 %v3901
        %3903 = vmatprep.subr.mxu0 0.0
        %v3904 = vand.u32 %v1785, 4294901760
        %3905 = vmatpush1.msra.mxu0 %v3904
        %3906 = vmatprep.subr.mxu0 0.0
        %v3907 = vand.u32 %v1779, 4294901760
        %3908 = vmatpush1.msra.mxu0 %v3907
        %3909 = vmatprep.subr.mxu0 0.0
        %v3910 = vand.u32 %v1773, 4294901760
        %3911 = vmatpush1.msra.mxu0 %v3910
        %3912 = vmatprep.subr.mxu0 0.0
        %3913 = vmatpush2.msra.mxu0 0.0
        %3914 = vmatprep.subr.mxu0 0.0
        %3915 = vmatpush2.msra.mxu0 0.0
        %3916 = vmatprep.subr.mxu0 0.0
        %3917 = vmatpush2.msra.mxu0 0.0
        %3918 = vmatprep.subr.mxu0 0.0
        %3919 = vmatpush2.msra.mxu0 0.0
        %3920 = vmatprep.subr.mxu0 0.0
        %3921 = vmatpush2.msra.mxu0 0.0
        %3922 = vmatprep.subr.mxu0 0.0
        %3923 = vmatpush2.msra.mxu0 0.0
        %3924 = vmatprep.subr.mxu0 0.0
        %3925 = vmatpush2.msra.mxu0 0.0
        %3926 = vmatprep.subr.mxu0 0.0
        %3927 = vmatpush2.msra.mxu0 0.0
        %3928 = vmatprep.subr.mxu0 0.0
        %3929 = vmatpush2.msra.mxu0 0.0
        %3930 = vmatprep.subr.mxu0 0.0
        %3931 = vmatpush2.msra.mxu0 0.0
        %3932 = vmatprep.subr.mxu0 0.0
        %3933 = vmatpush2.msra.mxu0 0.0
        %3934 = vmatprep.subr.mxu0 0.0
        %3935 = vmatpush2.msra.mxu0 0.0
        %3936 = vmatprep.subr.mxu0 0.0
        %3937 = vmatpush2.msra.mxu0 0.0
        %3938 = vmatprep.subr.mxu0 0.0
        %3939 = vmatpush2.msra.mxu0 0.0
        %3940 = vmatprep.subr.mxu0 0.0
        %3941 = vmatpush2.msra.mxu0 0.0
        %3942 = vmatprep.subr.mxu0 0.0
        %3943 = vmatpush2.msra.mxu0 0.0
        %3944 = vmatprep.mubr.f32.mxu0 0.0
        %v3945 = vand.u32 %v1840, 4294901760
        %3946 = vmatmul.mubr.f32.gmra.mxu0 %v3945
        %v3947 = vpop.f32.mrf.mxu0
        %v3948 = vadd.f32 %v3867, %v3947
        %v3949 = vpop.f32.mrf.mxu0
        %3950 = vmatprep.mubr.f32.mxu0 0.0
        %v3951 = vand.u32 %v1843, 4294901760
        %3952 = vmatmul.mubr.f32.gmra.mxu0 %v3951
        %v3953 = vpop.f32.mrf.mxu0
        %v3954 = vadd.f32 %v3873, %v3953
        %v3955 = vpop.f32.mrf.mxu0
        %3956 = vdwg.mxu0
        %3957 = vmatprep.subr.mxu0 0.0
        %3958 = vmatpush1.msra.mxu0 0.0
        %3959 = vmatprep.subr.mxu0 0.0
        %3960 = vmatpush1.msra.mxu0 0.0
        %3961 = vmatprep.subr.mxu0 0.0
        %3962 = vmatpush1.msra.mxu0 0.0
        %3963 = vmatprep.subr.mxu0 0.0
        %3964 = vmatpush1.msra.mxu0 0.0
        %3965 = vmatprep.subr.mxu0 0.0
        %3966 = vmatpush1.msra.mxu0 0.0
        %3967 = vmatprep.subr.mxu0 0.0
        %3968 = vmatpush1.msra.mxu0 0.0
        %3969 = vmatprep.subr.mxu0 0.0
        %3970 = vmatpush1.msra.mxu0 0.0
        %3971 = vmatprep.subr.mxu0 0.0
        %3972 = vmatpush1.msra.mxu0 0.0
        %3973 = vmatprep.subr.mxu0 0.0
        %3974 = vmatpush1.msra.mxu0 0.0
        %3975 = vmatprep.subr.mxu0 0.0
        %3976 = vmatpush1.msra.mxu0 0.0
        %3977 = vmatprep.subr.mxu0 0.0
        %3978 = vmatpush1.msra.mxu0 0.0
        %3979 = vmatprep.subr.mxu0 0.0
        %3980 = vmatpush1.msra.mxu0 0.0
        %3981 = vmatprep.subr.mxu0 0.0
        %v3982 = vand.u32 %v1815, 4294901760
        %3983 = vmatpush1.msra.mxu0 %v3982
        %3984 = vmatprep.subr.mxu0 0.0
        %v3985 = vand.u32 %v1809, 4294901760
        %3986 = vmatpush1.msra.mxu0 %v3985
        %3987 = vmatprep.subr.mxu0 0.0
        %v3988 = vand.u32 %v1803, 4294901760
        %3989 = vmatpush1.msra.mxu0 %v3988
        %3990 = vmatprep.subr.mxu0 0.0
        %v3991 = vand.u32 %v1797, 4294901760
        %3992 = vmatpush1.msra.mxu0 %v3991
        %3993 = vmatprep.subr.mxu0 0.0
        %3994 = vmatpush2.msra.mxu0 0.0
        %3995 = vmatprep.subr.mxu0 0.0
        %3996 = vmatpush2.msra.mxu0 0.0
        %3997 = vmatprep.subr.mxu0 0.0
        %3998 = vmatpush2.msra.mxu0 0.0
        %3999 = vmatprep.subr.mxu0 0.0
        %4000 = vmatpush2.msra.mxu0 0.0
        %4001 = vmatprep.subr.mxu0 0.0
        %4002 = vmatpush2.msra.mxu0 0.0
        %4003 = vmatprep.subr.mxu0 0.0
        %4004 = vmatpush2.msra.mxu0 0.0
        %4005 = vmatprep.subr.mxu0 0.0
        %4006 = vmatpush2.msra.mxu0 0.0
        %4007 = vmatprep.subr.mxu0 0.0
        %4008 = vmatpush2.msra.mxu0 0.0
        %4009 = vmatprep.subr.mxu0 0.0
        %4010 = vmatpush2.msra.mxu0 0.0
        %4011 = vmatprep.subr.mxu0 0.0
        %4012 = vmatpush2.msra.mxu0 0.0
        %4013 = vmatprep.subr.mxu0 0.0
        %4014 = vmatpush2.msra.mxu0 0.0
        %4015 = vmatprep.subr.mxu0 0.0
        %4016 = vmatpush2.msra.mxu0 0.0
        %4017 = vmatprep.subr.mxu0 0.0
        %4018 = vmatpush2.msra.mxu0 0.0
        %4019 = vmatprep.subr.mxu0 0.0
        %4020 = vmatpush2.msra.mxu0 0.0
        %4021 = vmatprep.subr.mxu0 0.0
        %4022 = vmatpush2.msra.mxu0 0.0
        %4023 = vmatprep.subr.mxu0 0.0
        %4024 = vmatpush2.msra.mxu0 0.0
        %4025 = vmatprep.mubr.f32.mxu0 0.0
        %v4026 = vand.u32 %v1840, 4294901760
        %v4027 = vsub.f32 %v1840, %v4026
        %v4028 = vand.u32 %v4027, 4294901760
        %v4029 = vsub.f32 %v4027, %v4028
        %v4030 = vand.u32 %v4029, 4294901760
        %4031 = vmatmul.mubr.f32.gmra.mxu0 %v4030
        %v4032 = vpop.f32.mrf.mxu0
        %v4033 = vadd.f32 0.0, %v4032
        %v4034 = vpop.f32.mrf.mxu0
        %4035 = vmatprep.mubr.f32.mxu0 0.0
        %v4036 = vand.u32 %v1843, 4294901760
        %v4037 = vsub.f32 %v1843, %v4036
        %v4038 = vand.u32 %v4037, 4294901760
        %v4039 = vsub.f32 %v4037, %v4038
        %v4040 = vand.u32 %v4039, 4294901760
        %4041 = vmatmul.mubr.f32.gmra.mxu0 %v4040
        %v4042 = vpop.f32.mrf.mxu0
        %v4043 = vadd.f32 0.0, %v4042
        %v4044 = vpop.f32.mrf.mxu0
        %4045 = vdwg.mxu0
        %4046 = vmatprep.subr.mxu0 0.0
        %4047 = vmatpush1.msra.mxu0 0.0
        %4048 = vmatprep.subr.mxu0 0.0
        %4049 = vmatpush1.msra.mxu0 0.0
        %4050 = vmatprep.subr.mxu0 0.0
        %4051 = vmatpush1.msra.mxu0 0.0
        %4052 = vmatprep.subr.mxu0 0.0
        %4053 = vmatpush1.msra.mxu0 0.0
        %4054 = vmatprep.subr.mxu0 0.0
        %4055 = vmatpush1.msra.mxu0 0.0
        %4056 = vmatprep.subr.mxu0 0.0
        %4057 = vmatpush1.msra.mxu0 0.0
        %4058 = vmatprep.subr.mxu0 0.0
        %4059 = vmatpush1.msra.mxu0 0.0
        %4060 = vmatprep.subr.mxu0 0.0
        %4061 = vmatpush1.msra.mxu0 0.0
        %4062 = vmatprep.subr.mxu0 0.0
        %4063 = vmatpush1.msra.mxu0 0.0
        %4064 = vmatprep.subr.mxu0 0.0
        %4065 = vmatpush1.msra.mxu0 0.0
        %4066 = vmatprep.subr.mxu0 0.0
        %4067 = vmatpush1.msra.mxu0 0.0
        %4068 = vmatprep.subr.mxu0 0.0
        %4069 = vmatpush1.msra.mxu0 0.0
        %4070 = vmatprep.subr.mxu0 0.0
        %v4071 = vand.u32 %v1815, 4294901760
        %v4072 = vsub.f32 %v1815, %v4071
        %v4073 = vand.u32 %v4072, 4294901760
        %v4074 = vsub.f32 %v4072, %v4073
        %v4075 = vand.u32 %v4074, 4294901760
        %4076 = vmatpush1.msra.mxu0 %v4075
        %4077 = vmatprep.subr.mxu0 0.0
        %v4078 = vand.u32 %v1809, 4294901760
        %v4079 = vsub.f32 %v1809, %v4078
        %v4080 = vand.u32 %v4079, 4294901760
        %v4081 = vsub.f32 %v4079, %v4080
        %v4082 = vand.u32 %v4081, 4294901760
        %4083 = vmatpush1.msra.mxu0 %v4082
        %4084 = vmatprep.subr.mxu0 0.0
        %v4085 = vand.u32 %v1803, 4294901760
        %v4086 = vsub.f32 %v1803, %v4085
        %v4087 = vand.u32 %v4086, 4294901760
        %v4088 = vsub.f32 %v4086, %v4087
        %v4089 = vand.u32 %v4088, 4294901760
        %4090 = vmatpush1.msra.mxu0 %v4089
        %4091 = vmatprep.subr.mxu0 0.0
        %v4092 = vand.u32 %v1797, 4294901760
        %v4093 = vsub.f32 %v1797, %v4092
        %v4094 = vand.u32 %v4093, 4294901760
        %v4095 = vsub.f32 %v4093, %v4094
        %v4096 = vand.u32 %v4095, 4294901760
        %4097 = vmatpush1.msra.mxu0 %v4096
        %4098 = vmatprep.subr.mxu0 0.0
        %4099 = vmatpush2.msra.mxu0 0.0
        %4100 = vmatprep.subr.mxu0 0.0
        %4101 = vmatpush2.msra.mxu0 0.0
        %4102 = vmatprep.subr.mxu0 0.0
        %4103 = vmatpush2.msra.mxu0 0.0
        %4104 = vmatprep.subr.mxu0 0.0
        %4105 = vmatpush2.msra.mxu0 0.0
        %4106 = vmatprep.subr.mxu0 0.0
        %4107 = vmatpush2.msra.mxu0 0.0
        %4108 = vmatprep.subr.mxu0 0.0
        %4109 = vmatpush2.msra.mxu0 0.0
        %4110 = vmatprep.subr.mxu0 0.0
        %4111 = vmatpush2.msra.mxu0 0.0
        %4112 = vmatprep.subr.mxu0 0.0
        %4113 = vmatpush2.msra.mxu0 0.0
        %4114 = vmatprep.subr.mxu0 0.0
        %4115 = vmatpush2.msra.mxu0 0.0
        %4116 = vmatprep.subr.mxu0 0.0
        %4117 = vmatpush2.msra.mxu0 0.0
        %4118 = vmatprep.subr.mxu0 0.0
        %4119 = vmatpush2.msra.mxu0 0.0
        %4120 = vmatprep.subr.mxu0 0.0
        %4121 = vmatpush2.msra.mxu0 0.0
        %4122 = vmatprep.subr.mxu0 0.0
        %4123 = vmatpush2.msra.mxu0 0.0
        %4124 = vmatprep.subr.mxu0 0.0
        %4125 = vmatpush2.msra.mxu0 0.0
        %4126 = vmatprep.subr.mxu0 0.0
        %4127 = vmatpush2.msra.mxu0 0.0
        %4128 = vmatprep.subr.mxu0 0.0
        %4129 = vmatpush2.msra.mxu0 0.0
        %4130 = vmatprep.mubr.f32.mxu0 0.0
        %v4131 = vand.u32 %v1840, 4294901760
        %4132 = vmatmul.mubr.f32.gmra.mxu0 %v4131
        %v4133 = vpop.f32.mrf.mxu0
        %v4134 = vadd.f32 %v4033, %v4133
        %v4135 = vpop.f32.mrf.mxu0
        %4136 = vmatprep.mubr.f32.mxu0 0.0
        %v4137 = vand.u32 %v1843, 4294901760
        %4138 = vmatmul.mubr.f32.gmra.mxu0 %v4137
        %v4139 = vpop.f32.mrf.mxu0
        %v4140 = vadd.f32 %v4043, %v4139
        %v4141 = vpop.f32.mrf.mxu0
        %4142 = vdwg.mxu0
        %4143 = vmatprep.subr.mxu0 0.0
        %4144 = vmatpush1.msra.mxu0 0.0
        %4145 = vmatprep.subr.mxu0 0.0
        %4146 = vmatpush1.msra.mxu0 0.0
        %4147 = vmatprep.subr.mxu0 0.0
        %4148 = vmatpush1.msra.mxu0 0.0
        %4149 = vmatprep.subr.mxu0 0.0
        %4150 = vmatpush1.msra.mxu0 0.0
        %4151 = vmatprep.subr.mxu0 0.0
        %4152 = vmatpush1.msra.mxu0 0.0
        %4153 = vmatprep.subr.mxu0 0.0
        %4154 = vmatpush1.msra.mxu0 0.0
        %4155 = vmatprep.subr.mxu0 0.0
        %4156 = vmatpush1.msra.mxu0 0.0
        %4157 = vmatprep.subr.mxu0 0.0
        %4158 = vmatpush1.msra.mxu0 0.0
        %4159 = vmatprep.subr.mxu0 0.0
        %4160 = vmatpush1.msra.mxu0 0.0
        %4161 = vmatprep.subr.mxu0 0.0
        %4162 = vmatpush1.msra.mxu0 0.0
        %4163 = vmatprep.subr.mxu0 0.0
        %4164 = vmatpush1.msra.mxu0 0.0
        %4165 = vmatprep.subr.mxu0 0.0
        %4166 = vmatpush1.msra.mxu0 0.0
        %4167 = vmatprep.subr.mxu0 0.0
        %v4168 = vand.u32 %v1815, 4294901760
        %v4169 = vsub.f32 %v1815, %v4168
        %4170 = vmatpush1.msra.mxu0 %v4169
        %4171 = vmatprep.subr.mxu0 0.0
        %v4172 = vand.u32 %v1809, 4294901760
        %v4173 = vsub.f32 %v1809, %v4172
        %4174 = vmatpush1.msra.mxu0 %v4173
        %4175 = vmatprep.subr.mxu0 0.0
        %v4176 = vand.u32 %v1803, 4294901760
        %v4177 = vsub.f32 %v1803, %v4176
        %4178 = vmatpush1.msra.mxu0 %v4177
        %4179 = vmatprep.subr.mxu0 0.0
        %v4180 = vand.u32 %v1797, 4294901760
        %v4181 = vsub.f32 %v1797, %v4180
        %4182 = vmatpush1.msra.mxu0 %v4181
        %4183 = vmatprep.subr.mxu0 0.0
        %4184 = vmatpush2.msra.mxu0 0.0
        %4185 = vmatprep.subr.mxu0 0.0
        %4186 = vmatpush2.msra.mxu0 0.0
        %4187 = vmatprep.subr.mxu0 0.0
        %4188 = vmatpush2.msra.mxu0 0.0
        %4189 = vmatprep.subr.mxu0 0.0
        %4190 = vmatpush2.msra.mxu0 0.0
        %4191 = vmatprep.subr.mxu0 0.0
        %4192 = vmatpush2.msra.mxu0 0.0
        %4193 = vmatprep.subr.mxu0 0.0
        %4194 = vmatpush2.msra.mxu0 0.0
        %4195 = vmatprep.subr.mxu0 0.0
        %4196 = vmatpush2.msra.mxu0 0.0
        %4197 = vmatprep.subr.mxu0 0.0
        %4198 = vmatpush2.msra.mxu0 0.0
        %4199 = vmatprep.subr.mxu0 0.0
        %4200 = vmatpush2.msra.mxu0 0.0
        %4201 = vmatprep.subr.mxu0 0.0
        %4202 = vmatpush2.msra.mxu0 0.0
        %4203 = vmatprep.subr.mxu0 0.0
        %4204 = vmatpush2.msra.mxu0 0.0
        %4205 = vmatprep.subr.mxu0 0.0
        %4206 = vmatpush2.msra.mxu0 0.0
        %4207 = vmatprep.subr.mxu0 0.0
        %4208 = vmatpush2.msra.mxu0 0.0
        %4209 = vmatprep.subr.mxu0 0.0
        %4210 = vmatpush2.msra.mxu0 0.0
        %4211 = vmatprep.subr.mxu0 0.0
        %4212 = vmatpush2.msra.mxu0 0.0
        %4213 = vmatprep.subr.mxu0 0.0
        %4214 = vmatpush2.msra.mxu0 0.0
        %4215 = vmatprep.mubr.f32.mxu0 0.0
        %v4216 = vand.u32 %v1840, 4294901760
        %v4217 = vsub.f32 %v1840, %v4216
        %4218 = vmatmul.mubr.f32.gmra.mxu0 %v4217
        %v4219 = vpop.f32.mrf.mxu0
        %v4220 = vadd.f32 %v4134, %v4219
        %v4221 = vpop.f32.mrf.mxu0
        %4222 = vmatprep.mubr.f32.mxu0 0.0
        %v4223 = vand.u32 %v1843, 4294901760
        %v4224 = vsub.f32 %v1843, %v4223
        %4225 = vmatmul.mubr.f32.gmra.mxu0 %v4224
        %v4226 = vpop.f32.mrf.mxu0
        %v4227 = vadd.f32 %v4140, %v4226
        %v4228 = vpop.f32.mrf.mxu0
        %4229 = vdwg.mxu0
        %4230 = vmatprep.subr.mxu0 0.0
        %4231 = vmatpush1.msra.mxu0 0.0
        %4232 = vmatprep.subr.mxu0 0.0
        %4233 = vmatpush1.msra.mxu0 0.0
        %4234 = vmatprep.subr.mxu0 0.0
        %4235 = vmatpush1.msra.mxu0 0.0
        %4236 = vmatprep.subr.mxu0 0.0
        %4237 = vmatpush1.msra.mxu0 0.0
        %4238 = vmatprep.subr.mxu0 0.0
        %4239 = vmatpush1.msra.mxu0 0.0
        %4240 = vmatprep.subr.mxu0 0.0
        %4241 = vmatpush1.msra.mxu0 0.0
        %4242 = vmatprep.subr.mxu0 0.0
        %4243 = vmatpush1.msra.mxu0 0.0
        %4244 = vmatprep.subr.mxu0 0.0
        %4245 = vmatpush1.msra.mxu0 0.0
        %4246 = vmatprep.subr.mxu0 0.0
        %4247 = vmatpush1.msra.mxu0 0.0
        %4248 = vmatprep.subr.mxu0 0.0
        %4249 = vmatpush1.msra.mxu0 0.0
        %4250 = vmatprep.subr.mxu0 0.0
        %4251 = vmatpush1.msra.mxu0 0.0
        %4252 = vmatprep.subr.mxu0 0.0
        %4253 = vmatpush1.msra.mxu0 0.0
        %4254 = vmatprep.subr.mxu0 0.0
        %v4255 = vand.u32 %v1815, 4294901760
        %4256 = vmatpush1.msra.mxu0 %v4255
        %4257 = vmatprep.subr.mxu0 0.0
        %v4258 = vand.u32 %v1809, 4294901760
        %4259 = vmatpush1.msra.mxu0 %v4258
        %4260 = vmatprep.subr.mxu0 0.0
        %v4261 = vand.u32 %v1803, 4294901760
        %4262 = vmatpush1.msra.mxu0 %v4261
        %4263 = vmatprep.subr.mxu0 0.0
        %v4264 = vand.u32 %v1797, 4294901760
        %4265 = vmatpush1.msra.mxu0 %v4264
        %4266 = vmatprep.subr.mxu0 0.0
        %4267 = vmatpush2.msra.mxu0 0.0
        %4268 = vmatprep.subr.mxu0 0.0
        %4269 = vmatpush2.msra.mxu0 0.0
        %4270 = vmatprep.subr.mxu0 0.0
        %4271 = vmatpush2.msra.mxu0 0.0
        %4272 = vmatprep.subr.mxu0 0.0
        %4273 = vmatpush2.msra.mxu0 0.0
        %4274 = vmatprep.subr.mxu0 0.0
        %4275 = vmatpush2.msra.mxu0 0.0
        %4276 = vmatprep.subr.mxu0 0.0
        %4277 = vmatpush2.msra.mxu0 0.0
        %4278 = vmatprep.subr.mxu0 0.0
        %4279 = vmatpush2.msra.mxu0 0.0
        %4280 = vmatprep.subr.mxu0 0.0
        %4281 = vmatpush2.msra.mxu0 0.0
        %4282 = vmatprep.subr.mxu0 0.0
        %4283 = vmatpush2.msra.mxu0 0.0
        %4284 = vmatprep.subr.mxu0 0.0
        %4285 = vmatpush2.msra.mxu0 0.0
        %4286 = vmatprep.subr.mxu0 0.0
        %4287 = vmatpush2.msra.mxu0 0.0
        %4288 = vmatprep.subr.mxu0 0.0
        %4289 = vmatpush2.msra.mxu0 0.0
        %4290 = vmatprep.subr.mxu0 0.0
        %4291 = vmatpush2.msra.mxu0 0.0
        %4292 = vmatprep.subr.mxu0 0.0
        %4293 = vmatpush2.msra.mxu0 0.0
        %4294 = vmatprep.subr.mxu0 0.0
        %4295 = vmatpush2.msra.mxu0 0.0
        %4296 = vmatprep.subr.mxu0 0.0
        %4297 = vmatpush2.msra.mxu0 0.0
        %4298 = vmatprep.mubr.f32.mxu0 0.0
        %v4299 = vand.u32 %v1840, 4294901760
        %v4300 = vsub.f32 %v1840, %v4299
        %v4301 = vand.u32 %v4300, 4294901760
        %4302 = vmatmul.mubr.f32.gmra.mxu0 %v4301
        %v4303 = vpop.f32.mrf.mxu0
        %v4304 = vadd.f32 %v4220, %v4303
        %v4305 = vpop.f32.mrf.mxu0
        %4306 = vmatprep.mubr.f32.mxu0 0.0
        %v4307 = vand.u32 %v1843, 4294901760
        %v4308 = vsub.f32 %v1843, %v4307
        %v4309 = vand.u32 %v4308, 4294901760
        %4310 = vmatmul.mubr.f32.gmra.mxu0 %v4309
        %v4311 = vpop.f32.mrf.mxu0
        %v4312 = vadd.f32 %v4227, %v4311
        %v4313 = vpop.f32.mrf.mxu0
        %4314 = vdwg.mxu0
        %4315 = vmatprep.subr.mxu0 0.0
        %4316 = vmatpush1.msra.mxu0 0.0
        %4317 = vmatprep.subr.mxu0 0.0
        %4318 = vmatpush1.msra.mxu0 0.0
        %4319 = vmatprep.subr.mxu0 0.0
        %4320 = vmatpush1.msra.mxu0 0.0
        %4321 = vmatprep.subr.mxu0 0.0
        %4322 = vmatpush1.msra.mxu0 0.0
        %4323 = vmatprep.subr.mxu0 0.0
        %4324 = vmatpush1.msra.mxu0 0.0
        %4325 = vmatprep.subr.mxu0 0.0
        %4326 = vmatpush1.msra.mxu0 0.0
        %4327 = vmatprep.subr.mxu0 0.0
        %4328 = vmatpush1.msra.mxu0 0.0
        %4329 = vmatprep.subr.mxu0 0.0
        %4330 = vmatpush1.msra.mxu0 0.0
        %4331 = vmatprep.subr.mxu0 0.0
        %4332 = vmatpush1.msra.mxu0 0.0
        %4333 = vmatprep.subr.mxu0 0.0
        %4334 = vmatpush1.msra.mxu0 0.0
        %4335 = vmatprep.subr.mxu0 0.0
        %4336 = vmatpush1.msra.mxu0 0.0
        %4337 = vmatprep.subr.mxu0 0.0
        %4338 = vmatpush1.msra.mxu0 0.0
        %4339 = vmatprep.subr.mxu0 0.0
        %v4340 = vand.u32 %v1815, 4294901760
        %v4341 = vsub.f32 %v1815, %v4340
        %v4342 = vand.u32 %v4341, 4294901760
        %4343 = vmatpush1.msra.mxu0 %v4342
        %4344 = vmatprep.subr.mxu0 0.0
        %v4345 = vand.u32 %v1809, 4294901760
        %v4346 = vsub.f32 %v1809, %v4345
        %v4347 = vand.u32 %v4346, 4294901760
        %4348 = vmatpush1.msra.mxu0 %v4347
        %4349 = vmatprep.subr.mxu0 0.0
        %v4350 = vand.u32 %v1803, 4294901760
        %v4351 = vsub.f32 %v1803, %v4350
        %v4352 = vand.u32 %v4351, 4294901760
        %4353 = vmatpush1.msra.mxu0 %v4352
        %4354 = vmatprep.subr.mxu0 0.0
        %v4355 = vand.u32 %v1797, 4294901760
        %v4356 = vsub.f32 %v1797, %v4355
        %v4357 = vand.u32 %v4356, 4294901760
        %4358 = vmatpush1.msra.mxu0 %v4357
        %4359 = vmatprep.subr.mxu0 0.0
        %4360 = vmatpush2.msra.mxu0 0.0
        %4361 = vmatprep.subr.mxu0 0.0
        %4362 = vmatpush2.msra.mxu0 0.0
        %4363 = vmatprep.subr.mxu0 0.0
        %4364 = vmatpush2.msra.mxu0 0.0
        %4365 = vmatprep.subr.mxu0 0.0
        %4366 = vmatpush2.msra.mxu0 0.0
        %4367 = vmatprep.subr.mxu0 0.0
        %4368 = vmatpush2.msra.mxu0 0.0
        %4369 = vmatprep.subr.mxu0 0.0
        %4370 = vmatpush2.msra.mxu0 0.0
        %4371 = vmatprep.subr.mxu0 0.0
        %4372 = vmatpush2.msra.mxu0 0.0
        %4373 = vmatprep.subr.mxu0 0.0
        %4374 = vmatpush2.msra.mxu0 0.0
        %4375 = vmatprep.subr.mxu0 0.0
        %4376 = vmatpush2.msra.mxu0 0.0
        %4377 = vmatprep.subr.mxu0 0.0
        %4378 = vmatpush2.msra.mxu0 0.0
        %4379 = vmatprep.subr.mxu0 0.0
        %4380 = vmatpush2.msra.mxu0 0.0
        %4381 = vmatprep.subr.mxu0 0.0
        %4382 = vmatpush2.msra.mxu0 0.0
        %4383 = vmatprep.subr.mxu0 0.0
        %4384 = vmatpush2.msra.mxu0 0.0
        %4385 = vmatprep.subr.mxu0 0.0
        %4386 = vmatpush2.msra.mxu0 0.0
        %4387 = vmatprep.subr.mxu0 0.0
        %4388 = vmatpush2.msra.mxu0 0.0
        %4389 = vmatprep.subr.mxu0 0.0
        %4390 = vmatpush2.msra.mxu0 0.0
        %4391 = vmatprep.mubr.f32.mxu0 0.0
        %v4392 = vand.u32 %v1840, 4294901760
        %4393 = vmatmul.mubr.f32.gmra.mxu0 %v4392
        %v4394 = vpop.f32.mrf.mxu0
        %v4395 = vadd.f32 %v4304, %v4394
        %v4396 = vpop.f32.mrf.mxu0
        %4397 = vmatprep.mubr.f32.mxu0 0.0
        %v4398 = vand.u32 %v1843, 4294901760
        %4399 = vmatmul.mubr.f32.gmra.mxu0 %v4398
        %v4400 = vpop.f32.mrf.mxu0
        %v4401 = vadd.f32 %v4312, %v4400
        %v4402 = vpop.f32.mrf.mxu0
        %4403 = vdwg.mxu0
        %4404 = vmatprep.subr.mxu0 0.0
        %4405 = vmatpush1.msra.mxu0 0.0
        %4406 = vmatprep.subr.mxu0 0.0
        %4407 = vmatpush1.msra.mxu0 0.0
        %4408 = vmatprep.subr.mxu0 0.0
        %4409 = vmatpush1.msra.mxu0 0.0
        %4410 = vmatprep.subr.mxu0 0.0
        %4411 = vmatpush1.msra.mxu0 0.0
        %4412 = vmatprep.subr.mxu0 0.0
        %4413 = vmatpush1.msra.mxu0 0.0
        %4414 = vmatprep.subr.mxu0 0.0
        %4415 = vmatpush1.msra.mxu0 0.0
        %4416 = vmatprep.subr.mxu0 0.0
        %4417 = vmatpush1.msra.mxu0 0.0
        %4418 = vmatprep.subr.mxu0 0.0
        %4419 = vmatpush1.msra.mxu0 0.0
        %4420 = vmatprep.subr.mxu0 0.0
        %4421 = vmatpush1.msra.mxu0 0.0
        %4422 = vmatprep.subr.mxu0 0.0
        %4423 = vmatpush1.msra.mxu0 0.0
        %4424 = vmatprep.subr.mxu0 0.0
        %4425 = vmatpush1.msra.mxu0 0.0
        %4426 = vmatprep.subr.mxu0 0.0
        %4427 = vmatpush1.msra.mxu0 0.0
        %4428 = vmatprep.subr.mxu0 0.0
        %v4429 = vand.u32 %v1815, 4294901760
        %4430 = vmatpush1.msra.mxu0 %v4429
        %4431 = vmatprep.subr.mxu0 0.0
        %v4432 = vand.u32 %v1809, 4294901760
        %4433 = vmatpush1.msra.mxu0 %v4432
        %4434 = vmatprep.subr.mxu0 0.0
        %v4435 = vand.u32 %v1803, 4294901760
        %4436 = vmatpush1.msra.mxu0 %v4435
        %4437 = vmatprep.subr.mxu0 0.0
        %v4438 = vand.u32 %v1797, 4294901760
        %4439 = vmatpush1.msra.mxu0 %v4438
        %4440 = vmatprep.subr.mxu0 0.0
        %4441 = vmatpush2.msra.mxu0 0.0
        %4442 = vmatprep.subr.mxu0 0.0
        %4443 = vmatpush2.msra.mxu0 0.0
        %4444 = vmatprep.subr.mxu0 0.0
        %4445 = vmatpush2.msra.mxu0 0.0
        %4446 = vmatprep.subr.mxu0 0.0
        %4447 = vmatpush2.msra.mxu0 0.0
        %4448 = vmatprep.subr.mxu0 0.0
        %4449 = vmatpush2.msra.mxu0 0.0
        %4450 = vmatprep.subr.mxu0 0.0
        %4451 = vmatpush2.msra.mxu0 0.0
        %4452 = vmatprep.subr.mxu0 0.0
        %4453 = vmatpush2.msra.mxu0 0.0
        %4454 = vmatprep.subr.mxu0 0.0
        %4455 = vmatpush2.msra.mxu0 0.0
        %4456 = vmatprep.subr.mxu0 0.0
        %4457 = vmatpush2.msra.mxu0 0.0
        %4458 = vmatprep.subr.mxu0 0.0
        %4459 = vmatpush2.msra.mxu0 0.0
        %4460 = vmatprep.subr.mxu0 0.0
        %4461 = vmatpush2.msra.mxu0 0.0
        %4462 = vmatprep.subr.mxu0 0.0
        %4463 = vmatpush2.msra.mxu0 0.0
        %4464 = vmatprep.subr.mxu0 0.0
        %4465 = vmatpush2.msra.mxu0 0.0
        %4466 = vmatprep.subr.mxu0 0.0
        %4467 = vmatpush2.msra.mxu0 0.0
        %4468 = vmatprep.subr.mxu0 0.0
        %4469 = vmatpush2.msra.mxu0 0.0
        %4470 = vmatprep.subr.mxu0 0.0
        %4471 = vmatpush2.msra.mxu0 0.0
        %4472 = vmatprep.mubr.f32.mxu0 0.0
        %v4473 = vand.u32 %v1840, 4294901760
        %4474 = vmatmul.mubr.f32.gmra.mxu0 %v4473
        %v4475 = vpop.f32.mrf.mxu0
        %v4476 = vadd.f32 %v4395, %v4475
        %v4477 = vpop.f32.mrf.mxu0
        %4478 = vmatprep.mubr.f32.mxu0 0.0
        %v4479 = vand.u32 %v1843, 4294901760
        %4480 = vmatmul.mubr.f32.gmra.mxu0 %v4479
        %v4481 = vpop.f32.mrf.mxu0
        %v4482 = vadd.f32 %v4401, %v4481
        %v4483 = vpop.f32.mrf.mxu0
        %4484 = vdwg.mxu0
        %v4485 = vmul.f32 %v2364, %v2364
        %v4486 = vmul.f32 %v2370, %v2370
        %v4487 = vmul.f32 %v2892, %v2892
        %v4488 = vmul.f32 %v2898, %v2898
        %v4489 = vmul.f32 %v2364, %v2892
        %v4490 = vmul.f32 %v2370, %v2898
        %v4491 = vsub.f32 %v3420, %v4485
        %v4492 = vsub.f32 %v3426, %v4486
        %v4493 = vsub.f32 %v3948, %v4487
        %v4494 = vsub.f32 %v3954, %v4488
        %v4495 = vsub.f32 %v4476, %v4489
        %v4496 = vsub.f32 %v4482, %v4490
        %v4497 = vmul.f32 %v4489, 2.0
        %v4498 = vmul.f32 %v4490, 2.0
        %v4499 = vadd.f32 %v4497, 0.0001
        %v4500 = vadd.f32 %v4498, 0.0001
        %v4501 = vmul.f32 %v4495, 2.0
        %v4502 = vmul.f32 %v4496, 2.0
        %v4503 = vadd.f32 %v4501, 0.0009
        %v4504 = vadd.f32 %v4502, 0.0009
        %v4505 = vmul.f32 %v4499, %v4503
        %v4506 = vmul.f32 %v4500, %v4504
        %v4507 = vadd.f32 %v4485, %v4487
        %v4508 = vadd.f32 %v4486, %v4488
        %v4509 = vadd.f32 %v4507, 0.0001
        %v4510 = vadd.f32 %v4508, 0.0001
        %v4511 = vadd.f32 %v4491, %v4493
        %v4512 = vadd.f32 %v4492, %v4494
        %v4513 = vadd.f32 %v4511, 0.0009
        %v4514 = vadd.f32 %v4512, 0.0009
        %v4515 = vmul.f32 %v4509, %v4513
        %v4516 = vmul.f32 %v4510, %v4514
        %v4517 = vrcp.pop %v4515
        %v4518 = vrcp.pop %v4516
        %v4519 = vmul.f32 %v4515, %v4517
        %v4520 = vmul.f32 %v4516, %v4518
        %v4521 = vsub.f32 2.0, %v4519
        %v4522 = vsub.f32 2.0, %v4520
        %v4523 = vmul.f32 %v4517, %v4521
        %v4524 = vmul.f32 %v4518, %v4522
        %v4525 = vmul.f32 %v4505, %v4523
        %v4526 = vmul.f32 %v4506, %v4524
        %s4527 = smul.u32 %s20, 4
        %v4528 = vstv %s4527
        %v4529 = vadd.s32 %v4528, %v1837
        %vm4530 = vcmp.lt.s32.totalorder %v4529, 8
        %vm4531 = vmand %vm1828, %vm4530
        %vm4532 = vmand %vm1829, %vm4530
        %v4533 = vsel %vm4531, %v4525, 0.0
        %v4534 = vsel %vm4532, %v4526, 0.0
        %v4535 = vadd.f32 %v4533, %v4534
        %4536 = vadd.xlane.f32.xlu0 %v4535
        %v4537 = vpop.xlane.xlu0 %4536
        %v4538 = vrot.slane %v4537, 4
        %v4539 = vadd.f32 %v4537, %v4538
        %v4540 = vrot.slane %v4539, 2
        %v4541 = vadd.f32 %v4539, %v4540
        %v4542 = vrot.slane %v4541, 1
        %v4543 = vadd.f32 %v4541, %v4542
        %s4544 = vtos %v4543
        %s4545 = sadd.f32 %s4544, 0.0
        %v4546 = vstv %s4545
        %4547 = vst [vmem:[%s279] sm:$0xff] %v4546
        %s4548 = sand.u32 %s122, 1
        %s4549 = scalar_lea.sflag [#allocation5], %s4548
        %s4550 = sand.u32 %s122, 1
        %s4551 = smul.addr %s4550, 8
        %s4552 = scalar_lea.vmem [#allocation10], %s4551
        // Predicated region
        $region53: #{tpu_custom_call.1} parent=35 // pred_check
          %p4553 = pneg %p132
        $region54: #{tpu_custom_call.1} parent=35 // pred_check_branch
          %4555 = sbr.rel (%p4553) target = $region56
        $region55: #{tpu_custom_call.1} parent=35 // pred_region
          %s4557 = ssub.s32 128, 128
          %4558 = vsyncadd %s4549, %s4557
          %s4559 = smul.addr %s20, 128
          %s4560 = scalar_lea.hbm %s4, %s4559
          %s4562 = sshll.u32 %s4552, 4
          %s4563 = int_to_ptr.vmem [resolvable:$true] %s4562
          %4565 = dma.vmem_to_hbm [thread:$0]  %s4563, 128, %s4560, %s4549
        $region56: #{tpu_custom_call.1} parent=35 // pred_fallthru
          _
      $region36: #{tpu_custom_call.1} parent=5 // pred_fallthru
        _
      %p4566 = scmp.le.s32.totalorder 2, %s15
      // Predicated region
      $region57: #{tpu_custom_call.1} parent=5 // pred_check
        %p4567 = pneg %p4566
      $region58: #{tpu_custom_call.1} parent=5 // pred_check_branch
        %4569 = sbr.rel (%p4567) target = $region60
      $region59: #{tpu_custom_call.1} parent=5 // pred_region
        %s4570 = ssub.s32 %s15, 2
        // Predicated region
        $region61: #{tpu_custom_call.1} parent=59 // pred_check
          %p4571 = pneg %p138
        $region62: #{tpu_custom_call.1} parent=59 // pred_check_branch
          %4573 = sbr.rel (%p4571) target = $region64
        $region63: #{tpu_custom_call.1} parent=59 // pred_region
          %s4574 = sand.u32 %s123, 1
          %s4575 = scalar_lea.sflag [#allocation5], %s4574
          %s4576 = sand.u32 %s123, 1
          %s4577 = smul.addr %s4576, 8
          %s4578 = scalar_lea.vmem [#allocation10], %s4577
          %4579 = dma.done %s4575, 128
        $region64: #{tpu_custom_call.1} parent=59 // pred_fallthru
          _
      $region60: #{tpu_custom_call.1} parent=5 // pred_fallthru
        _
    $region6: #{tpu_custom_call.1} parent=1 // loop_footer
      %s19 = sadd.s32 1, %s15
    $region7: #{tpu_custom_call.1} parent=1 // loop_footer_branch
      %14 = sbr.rel target = $region3
    $region8: #{tpu_custom_call.1} parent=1 // loop_exit
      _
    %4580 = vsyncpa [#allocation4], 1
    %s4581 = scalar_lea.sflag [#allocation4], 1
    %4582 = vsyncpa %s4581, 1
    %4583 = vsyncpa [#allocation7], 1
    %4584 = vsyncpa [#allocation5], 1
    %s4585 = scalar_lea.sflag [#allocation5], 1
    %4586 = vsyncpa %s4585, 1

</llo_original>
